<compile_context>
chip_gen: v7x
topology: tpu7x:2x2x1
jax: 0.10.0
libtpu: 0.0.40
codegen_flags: <defaults>
</compile_context>

<pallas_src>
import jax
import jax.numpy as jnp
from jax.experimental import pallas as pl
from jax.experimental.pallas import tpu as pltpu

# ----------------------------- config (mini-BERT) -----------------------------
VOCAB = 100           # vocab size
MAX_POS = 32          # max position embeddings
H = 64                # real hidden size
HP = 128              # lane-padded hidden size (full vreg width)
NH = 4                # attention heads
HD = H // NH          # head dim
FF = 128              # intermediate (FFN) size
NUM_LAYERS = 2        # encoder layers
SEQ = 8               # sequence length used by this script
LN_EPS = 1e-12        # BERT layernorm eps
INV_H = 1.0 / H


# ------------------------------- kernel helpers --------------------------------
def _layernorm_padded(x, gamma, beta):
    """LayerNorm over the real H columns of a lane-padded (rows, HP) tensor.

    Pad columns (>= H) of x / gamma / beta are zero, so sums over the full HP
    lanes equal sums over the real H columns; divide by H, not HP.
    """
    s1 = jnp.sum(x, axis=-1, keepdims=True)
    mu = s1 * INV_H
    s2 = jnp.sum(x * x, axis=-1, keepdims=True)
    var = jnp.maximum(s2 * INV_H - mu * mu, 0.0)
    # gamma/beta are zero in pad columns -> output pad columns stay exactly zero.
    return (x - mu) * jax.lax.rsqrt(var + LN_EPS) * gamma + beta


def encoder_kernel(mask_ref,                                   # SMEM (B, SEQ) int32
                   emb_ref, eg_ref, eb_ref,                    # embeddings + emb LN
                   wq_ref, bq_ref, wk_ref, bk_ref, wv_ref, bv_ref,
                   wo_ref, bo_ref, l1g_ref, l1b_ref,
                   w1_ref, b1_ref, w2_ref, b2_ref, l2g_ref, l2b_ref,
                   out_ref):                                   # (1, 1, HP) CLS out
    b = pl.program_id(0)

    # Additive key-mask bias built from SMEM scalars (no lane-sparse VMEM mask DMA).
    key_pos = jax.lax.broadcasted_iota(jnp.int32, (1, SEQ), 1)      # (1, SEQ)
    bias = jnp.zeros((1, SEQ), jnp.float32)
    for i in range(SEQ):
        bias = jnp.where((key_pos == i) & (mask_ref[b, i] == 0),
                         jnp.float32(-10000.0), bias)

    # Embedding LayerNorm.
    x = _layernorm_padded(emb_ref[0], eg_ref[...], eb_ref[...])     # (SEQ, HP) f32

    for l in range(NUM_LAYERS):
        xb = x.astype(jnp.bfloat16)

        # ---- multi-head self-attention (per-head weights, no slices / concat) ----
        attn = jnp.zeros((SEQ, HP), jnp.float32)
        for h in range(NH):
            # Wq is pre-scaled by 1/sqrt(HD) at init.
            qh = (jnp.dot(xb, wq_ref[l, h], preferred_element_type=jnp.float32)
                  + bq_ref[l, h]).astype(jnp.bfloat16)               # (SEQ, HD)
            kh = (jnp.dot(xb, wk_ref[l, h], preferred_element_type=jnp.float32)
                  + bk_ref[l, h]).astype(jnp.bfloat16)
            vh = (jnp.dot(xb, wv_ref[l, h], preferred_element_type=jnp.float32)
                  + bv_ref[l, h]).astype(jnp.bfloat16)

            # scores: Q @ K^T via dot_general (rhs contraction on dim 1).
            sc = jax.lax.dot_general(qh, kh, (((1,), (1,)), ((), ())),
                                     preferred_element_type=jnp.float32)  # (SEQ, SEQ)
            sc = sc + bias

            # explicit softmax; divide on the EUP via approximate reciprocal.
            m = jnp.max(sc, axis=-1, keepdims=True)
            e = jnp.exp(sc - m)
            p = e * pl.reciprocal(jnp.sum(e, axis=-1, keepdims=True), approx=True)

            ctx = jnp.dot(p.astype(jnp.bfloat16), vh,
                          preferred_element_type=jnp.float32)             # (SEQ, HD)
            # Fold the output projection per head: attn += ctx_h @ Wo_h.
            attn = attn + jnp.dot(ctx.astype(jnp.bfloat16), wo_ref[l, h],
                                  preferred_element_type=jnp.float32)     # (SEQ, HP)

        attn = attn + bo_ref[l]
        h1 = _layernorm_padded(x + attn, l1g_ref[l], l1b_ref[l])

        # ---------------------------- feed-forward ------------------------------
        h1b = h1.astype(jnp.bfloat16)
        ff = jnp.dot(h1b, w1_ref[l], preferred_element_type=jnp.float32) + b1_ref[l]
        # TODO(synk): HF BERT uses exact erf GELU; erf has no guaranteed Mosaic
        # lowering, so the tanh approximation is used here.
        ff = jax.nn.gelu(ff, approximate=True)
        ff = jnp.dot(ff.astype(jnp.bfloat16), w2_ref[l],
                     preferred_element_type=jnp.float32) + b2_ref[l]
        x = _layernorm_padded(h1 + ff, l2g_ref[l], l2b_ref[l])

    # last_hidden_state[:, 0, :] -> write only the CLS row (lane-dense (1, HP)).
    out_ref[0] = x[0:1, :]


# --------------------------------- parameters -----------------------------------
def init_params(key):
    def nrm(k, shape):
        return 0.02 * jax.random.normal(k, shape, jnp.float32)

    def pad_cols(x):  # zero-pad last dim to HP
        return jnp.pad(x, [(0, 0)] * (x.ndim - 1) + [(0, HP - x.shape[-1])])

    keys = iter(jax.random.split(key, 3 + NUM_LAYERS * 6))

    ones_row = pad_cols(jnp.ones((1, H), jnp.float32))            # (1, HP) gamma
    ln_gamma = jnp.tile(ones_row[None], (NUM_LAYERS, 1, 1))       # (L, 1, HP)
    ln_beta = jnp.zeros((NUM_LAYERS, 1, HP), jnp.float32)

    wq_l, wk_l, wv_l, wo_l, w1_l, w2_l = [], [], [], [], [], []
    q_scale = 1.0 / (HD ** 0.5)
    for _ in range(NUM_LAYERS):
        wq = nrm(next(keys), (H, H)) * q_scale   # fold 1/sqrt(HD) into Wq (and bq,
        wk = nrm(next(keys), (H, H))             # which is zero here) once at init
        wv = nrm(next(keys), (H, H))
        wo = nrm(next(keys), (H, H))
        w1 = nrm(next(keys), (H, FF))
        w2 = nrm(next(keys), (FF, H))

        def per_head_in(w):                      # (H,H) -> (NH, HP, HD), pad rows
            wh = w.reshape(H, NH, HD).transpose(1, 0, 2)
            return jnp.pad(wh, ((0, 0), (0, HP - H), (0, 0)))

        wq_l.append(per_head_in(wq))
        wk_l.append(per_head_in(wk))
        wv_l.append(per_head_in(wv))
        wo_l.append(pad_cols(wo.reshape(NH, HD, H)))              # (NH, HD, HP)
        w1_l.append(jnp.pad(w1, ((0, HP - H), (0, 0))))           # (HP, FF)
        w2_l.append(pad_cols(w2))                                 # (FF, HP)

    def stk_bf16(lst):
        return jnp.stack(lst).astype(jnp.bfloat16)

    return {
        # embedding tables, pre-padded to HP (pad columns are exactly zero)
        "word_emb": pad_cols(nrm(next(keys), (VOCAB, H))),
        "pos_emb": pad_cols(nrm(next(keys), (MAX_POS, H))),
        "type_emb": pad_cols(nrm(next(keys), (2, H))),
        "emb_ln_g": ones_row,
        "emb_ln_b": jnp.zeros((1, HP), jnp.float32),
        # per-head bf16 MXU weights, stacked over layers
        "wq": stk_bf16(wq_l), "wk": stk_bf16(wk_l), "wv": stk_bf16(wv_l),
        "wo": stk_bf16(wo_l), "w1": stk_bf16(w1_l), "w2": stk_bf16(w2_l),
        # biases / LN params in f32 (BERT uses zero-init biases here)
        "bq": jnp.zeros((NUM_LAYERS, NH, 1, HD), jnp.float32),
        "bk": jnp.zeros((NUM_LAYERS, NH, 1, HD), jnp.float32),
        "bv": jnp.zeros((NUM_LAYERS, NH, 1, HD), jnp.float32),
        "bo": jnp.zeros((NUM_LAYERS, 1, HP), jnp.float32),
        "b1": jnp.zeros((NUM_LAYERS, 1, FF), jnp.float32),
        "b2": jnp.zeros((NUM_LAYERS, 1, HP), jnp.float32),
        "ln1_g": ln_gamma, "ln1_b": ln_beta,
        "ln2_g": ln_gamma, "ln2_b": ln_beta,
    }


# --------------------------------- full forward ----------------------------------
def text_encoder(params, input_ids, attention_mask):
    """Equivalent of TextEncoder.forward: BERT encoder, return CLS hidden state."""
    B, S = input_ids.shape
    assert S == SEQ, (S, SEQ)

    # Embedding gathers are plain-JAX glue; token_type_ids implicitly all zero.
    positions = jnp.arange(S)
    emb = (params["word_emb"][input_ids]
           + params["pos_emb"][positions][None, :, :]
           + params["type_emb"][0][None, None, :]).astype(jnp.float32)  # (B, S, HP)

    param_order = ("emb_ln_g", "emb_ln_b",
                   "wq", "bq", "wk", "bk", "wv", "bv",
                   "wo", "bo", "ln1_g", "ln1_b",
                   "w1", "b1", "w2", "b2", "ln2_g", "ln2_b")
    param_list = [params[k] for k in param_order]

    def full_spec(arr):
        zero = (0,) * arr.ndim
        return pl.BlockSpec(arr.shape, lambda b, m, _z=zero: _z)   # resident block

    grid_spec = pltpu.PrefetchScalarGridSpec(
        num_scalar_prefetch=1,                 # attention_mask -> SMEM
        grid=(B,),
        in_specs=[pl.BlockSpec((1, SEQ, HP), lambda b, m: (b, 0, 0))]
                + [full_spec(p) for p in param_list],
        out_specs=pl.BlockSpec((1, 1, HP), lambda b, m: (b, 0, 0)),
    )

    out = pl.pallas_call(
        encoder_kernel,
        out_shape=jax.ShapeDtypeStruct((B, 1, HP), jnp.float32),
        grid_spec=grid_spec,
        compiler_params=pltpu.CompilerParams(
            dimension_semantics=("parallel",)),   # v7x: 2 TCs split the batch
    )(attention_mask.astype(jnp.int32), emb, *param_list)

    # strip lane padding -> (B, H)
    return out[:, 0, :H]


# ------------------------------------- main ---------------------------------------
if __name__ == "__main__":
    B, S = 2, SEQ
    key = jax.random.PRNGKey(0)
    k_ids, k_params = jax.random.split(key)

    input_ids = jax.random.randint(k_ids, (B, S), 0, VOCAB, dtype=jnp.int32)
    attention_mask = jnp.ones((B, S), jnp.int32).at[1, 6:].set(0)  # pad last 2 of row 1

    params = init_params(k_params)
    cls = text_encoder(params, input_ids, attention_mask)
    cls = jax.block_until_ready(cls)

    assert cls.shape == (B, H), cls.shape
    assert bool(jnp.all(jnp.isfinite(cls)))
    print("KERNEL_OK")
</pallas_src>

<mosaic_0001>
module attributes {stable_mosaic.version = 11 : i64} {
  func.func @encoder_kernel(%arg0: i32, %arg1: memref<2x8xi32, #tpu.memory_space<smem>>, %arg2: memref<1x8x128xf32, #tpu.memory_space<vmem>>, %arg3: memref<1x128xf32, #tpu.memory_space<vmem>>, %arg4: memref<1x128xf32, #tpu.memory_space<vmem>>, %arg5: memref<2x4x128x16xbf16, #tpu.memory_space<vmem>>, %arg6: memref<2x4x1x16xf32, #tpu.memory_space<vmem>>, %arg7: memref<2x4x128x16xbf16, #tpu.memory_space<vmem>>, %arg8: memref<2x4x1x16xf32, #tpu.memory_space<vmem>>, %arg9: memref<2x4x128x16xbf16, #tpu.memory_space<vmem>>, %arg10: memref<2x4x1x16xf32, #tpu.memory_space<vmem>>, %arg11: memref<2x4x16x128xbf16, #tpu.memory_space<vmem>>, %arg12: memref<2x1x128xf32, #tpu.memory_space<vmem>>, %arg13: memref<2x1x128xf32, #tpu.memory_space<vmem>>, %arg14: memref<2x1x128xf32, #tpu.memory_space<vmem>>, %arg15: memref<2x128x128xbf16, #tpu.memory_space<vmem>>, %arg16: memref<2x1x128xf32, #tpu.memory_space<vmem>>, %arg17: memref<2x128x128xbf16, #tpu.memory_space<vmem>>, %arg18: memref<2x1x128xf32, #tpu.memory_space<vmem>>, %arg19: memref<2x1x128xf32, #tpu.memory_space<vmem>>, %arg20: memref<2x1x128xf32, #tpu.memory_space<vmem>>, %arg21: memref<1x1x128xf32, #tpu.memory_space<vmem>>) attributes {dimension_semantics = [#tpu.dimension_semantics<parallel>], iteration_bounds = array<i64: 2>, scalar_prefetch = 1 : i64, scratch_operands = 0 : i64, tpu.core_type = #tpu.core_type<tc>, window_params = [{transform_indices = @transform_0, window_bounds = array<i64: 1, 8, 128>}, {pipeline_mode = #tpu.pipeline_mode<synchronous>, transform_indices = @transform_1, window_bounds = array<i64: 1, 128>}, {pipeline_mode = #tpu.pipeline_mode<synchronous>, transform_indices = @transform_2, window_bounds = array<i64: 1, 128>}, {pipeline_mode = #tpu.pipeline_mode<synchronous>, transform_indices = @transform_3, window_bounds = array<i64: 2, 4, 128, 16>}, {pipeline_mode = #tpu.pipeline_mode<synchronous>, transform_indices = @transform_4, window_bounds = array<i64: 2, 4, 1, 16>}, {pipeline_mode = #tpu.pipeline_mode<synchronous>, transform_indices = @transform_5, window_bounds = array<i64: 2, 4, 128, 16>}, {pipeline_mode = #tpu.pipeline_mode<synchronous>, transform_indices = @transform_6, window_bounds = array<i64: 2, 4, 1, 16>}, {pipeline_mode = #tpu.pipeline_mode<synchronous>, transform_indices = @transform_7, window_bounds = array<i64: 2, 4, 128, 16>}, {pipeline_mode = #tpu.pipeline_mode<synchronous>, transform_indices = @transform_8, window_bounds = array<i64: 2, 4, 1, 16>}, {pipeline_mode = #tpu.pipeline_mode<synchronous>, transform_indices = @transform_9, window_bounds = array<i64: 2, 4, 16, 128>}, {pipeline_mode = #tpu.pipeline_mode<synchronous>, transform_indices = @transform_10, window_bounds = array<i64: 2, 1, 128>}, {pipeline_mode = #tpu.pipeline_mode<synchronous>, transform_indices = @transform_11, window_bounds = array<i64: 2, 1, 128>}, {pipeline_mode = #tpu.pipeline_mode<synchronous>, transform_indices = @transform_12, window_bounds = array<i64: 2, 1, 128>}, {pipeline_mode = #tpu.pipeline_mode<synchronous>, transform_indices = @transform_13, window_bounds = array<i64: 2, 128, 128>}, {pipeline_mode = #tpu.pipeline_mode<synchronous>, transform_indices = @transform_14, window_bounds = array<i64: 2, 1, 128>}, {pipeline_mode = #tpu.pipeline_mode<synchronous>, transform_indices = @transform_15, window_bounds = array<i64: 2, 128, 128>}, {pipeline_mode = #tpu.pipeline_mode<synchronous>, transform_indices = @transform_16, window_bounds = array<i64: 2, 1, 128>}, {pipeline_mode = #tpu.pipeline_mode<synchronous>, transform_indices = @transform_17, window_bounds = array<i64: 2, 1, 128>}, {pipeline_mode = #tpu.pipeline_mode<synchronous>, transform_indices = @transform_18, window_bounds = array<i64: 2, 1, 128>}, {transform_indices = @transform_19, window_bounds = array<i64: 1, 1, 128>}]} {
    %0 = tpu.iota {dimensions = array<i32: 1>} : vector<1x8xi32>
    %cst = arith.constant 0.000000e+00 : f32
    %1 = vector.broadcast %cst : f32 to vector<1x8xf32>
    %c0_i32 = arith.constant 0 : i32
    %2 = vector.broadcast %c0_i32 : i32 to vector<1x8xi32>
    %3 = arith.cmpi eq, %0, %2 : vector<1x8xi32>
    %4 = arith.index_cast %arg0 : i32 to index
    %c0 = arith.constant 0 : index
    %5 = memref.load %arg1[%4, %c0] : memref<2x8xi32, #tpu.memory_space<smem>>
    %c0_i32_0 = arith.constant 0 : i32
    %6 = arith.cmpi eq, %5, %c0_i32_0 : i32
    %7 = vector.broadcast %6 : i1 to vector<1x8xi1>
    %8 = arith.andi %3, %7 : vector<1x8xi1>
    %cst_1 = arith.constant -1.000000e+04 : f32
    %9 = vector.broadcast %cst_1 : f32 to vector<1x8xf32>
    %10 = arith.select %8, %9, %1 : vector<1x8xi1>, vector<1x8xf32>
    %c1_i32 = arith.constant 1 : i32
    %11 = vector.broadcast %c1_i32 : i32 to vector<1x8xi32>
    %12 = arith.cmpi eq, %0, %11 : vector<1x8xi32>
    %13 = arith.index_cast %arg0 : i32 to index
    %c1 = arith.constant 1 : index
    %14 = memref.load %arg1[%13, %c1] : memref<2x8xi32, #tpu.memory_space<smem>>
    %c0_i32_2 = arith.constant 0 : i32
    %15 = arith.cmpi eq, %14, %c0_i32_2 : i32
    %16 = vector.broadcast %15 : i1 to vector<1x8xi1>
    %17 = arith.andi %12, %16 : vector<1x8xi1>
    %cst_3 = arith.constant -1.000000e+04 : f32
    %18 = vector.broadcast %cst_3 : f32 to vector<1x8xf32>
    %19 = arith.select %17, %18, %10 : vector<1x8xi1>, vector<1x8xf32>
    %c2_i32 = arith.constant 2 : i32
    %20 = vector.broadcast %c2_i32 : i32 to vector<1x8xi32>
    %21 = arith.cmpi eq, %0, %20 : vector<1x8xi32>
    %22 = arith.index_cast %arg0 : i32 to index
    %c2 = arith.constant 2 : index
    %23 = memref.load %arg1[%22, %c2] : memref<2x8xi32, #tpu.memory_space<smem>>
    %c0_i32_4 = arith.constant 0 : i32
    %24 = arith.cmpi eq, %23, %c0_i32_4 : i32
    %25 = vector.broadcast %24 : i1 to vector<1x8xi1>
    %26 = arith.andi %21, %25 : vector<1x8xi1>
    %cst_5 = arith.constant -1.000000e+04 : f32
    %27 = vector.broadcast %cst_5 : f32 to vector<1x8xf32>
    %28 = arith.select %26, %27, %19 : vector<1x8xi1>, vector<1x8xf32>
    %c3_i32 = arith.constant 3 : i32
    %29 = vector.broadcast %c3_i32 : i32 to vector<1x8xi32>
    %30 = arith.cmpi eq, %0, %29 : vector<1x8xi32>
    %31 = arith.index_cast %arg0 : i32 to index
    %c3 = arith.constant 3 : index
    %32 = memref.load %arg1[%31, %c3] : memref<2x8xi32, #tpu.memory_space<smem>>
    %c0_i32_6 = arith.constant 0 : i32
    %33 = arith.cmpi eq, %32, %c0_i32_6 : i32
    %34 = vector.broadcast %33 : i1 to vector<1x8xi1>
    %35 = arith.andi %30, %34 : vector<1x8xi1>
    %cst_7 = arith.constant -1.000000e+04 : f32
    %36 = vector.broadcast %cst_7 : f32 to vector<1x8xf32>
    %37 = arith.select %35, %36, %28 : vector<1x8xi1>, vector<1x8xf32>
    %c4_i32 = arith.constant 4 : i32
    %38 = vector.broadcast %c4_i32 : i32 to vector<1x8xi32>
    %39 = arith.cmpi eq, %0, %38 : vector<1x8xi32>
    %40 = arith.index_cast %arg0 : i32 to index
    %c4 = arith.constant 4 : index
    %41 = memref.load %arg1[%40, %c4] : memref<2x8xi32, #tpu.memory_space<smem>>
    %c0_i32_8 = arith.constant 0 : i32
    %42 = arith.cmpi eq, %41, %c0_i32_8 : i32
    %43 = vector.broadcast %42 : i1 to vector<1x8xi1>
    %44 = arith.andi %39, %43 : vector<1x8xi1>
    %cst_9 = arith.constant -1.000000e+04 : f32
    %45 = vector.broadcast %cst_9 : f32 to vector<1x8xf32>
    %46 = arith.select %44, %45, %37 : vector<1x8xi1>, vector<1x8xf32>
    %c5_i32 = arith.constant 5 : i32
    %47 = vector.broadcast %c5_i32 : i32 to vector<1x8xi32>
    %48 = arith.cmpi eq, %0, %47 : vector<1x8xi32>
    %49 = arith.index_cast %arg0 : i32 to index
    %c5 = arith.constant 5 : index
    %50 = memref.load %arg1[%49, %c5] : memref<2x8xi32, #tpu.memory_space<smem>>
    %c0_i32_10 = arith.constant 0 : i32
    %51 = arith.cmpi eq, %50, %c0_i32_10 : i32
    %52 = vector.broadcast %51 : i1 to vector<1x8xi1>
    %53 = arith.andi %48, %52 : vector<1x8xi1>
    %cst_11 = arith.constant -1.000000e+04 : f32
    %54 = vector.broadcast %cst_11 : f32 to vector<1x8xf32>
    %55 = arith.select %53, %54, %46 : vector<1x8xi1>, vector<1x8xf32>
    %c6_i32 = arith.constant 6 : i32
    %56 = vector.broadcast %c6_i32 : i32 to vector<1x8xi32>
    %57 = arith.cmpi eq, %0, %56 : vector<1x8xi32>
    %58 = arith.index_cast %arg0 : i32 to index
    %c6 = arith.constant 6 : index
    %59 = memref.load %arg1[%58, %c6] : memref<2x8xi32, #tpu.memory_space<smem>>
    %c0_i32_12 = arith.constant 0 : i32
    %60 = arith.cmpi eq, %59, %c0_i32_12 : i32
    %61 = vector.broadcast %60 : i1 to vector<1x8xi1>
    %62 = arith.andi %57, %61 : vector<1x8xi1>
    %cst_13 = arith.constant -1.000000e+04 : f32
    %63 = vector.broadcast %cst_13 : f32 to vector<1x8xf32>
    %64 = arith.select %62, %63, %55 : vector<1x8xi1>, vector<1x8xf32>
    %c7_i32 = arith.constant 7 : i32
    %65 = vector.broadcast %c7_i32 : i32 to vector<1x8xi32>
    %66 = arith.cmpi eq, %0, %65 : vector<1x8xi32>
    %67 = arith.index_cast %arg0 : i32 to index
    %c7 = arith.constant 7 : index
    %68 = memref.load %arg1[%67, %c7] : memref<2x8xi32, #tpu.memory_space<smem>>
    %c0_i32_14 = arith.constant 0 : i32
    %69 = arith.cmpi eq, %68, %c0_i32_14 : i32
    %70 = vector.broadcast %69 : i1 to vector<1x8xi1>
    %71 = arith.andi %66, %70 : vector<1x8xi1>
    %cst_15 = arith.constant -1.000000e+04 : f32
    %72 = vector.broadcast %cst_15 : f32 to vector<1x8xf32>
    %73 = arith.select %71, %72, %64 : vector<1x8xi1>, vector<1x8xf32>
    %c0_16 = arith.constant 0 : index
    %c0_17 = arith.constant 0 : index
    %c0_18 = arith.constant 0 : index
    %74 = vector.load %arg2[%c0_16, %c0_17, %c0_18] : memref<1x8x128xf32, #tpu.memory_space<vmem>>, vector<1x8x128xf32>
    %75 = vector.shape_cast %74 : vector<1x8x128xf32> to vector<8x128xf32>
    %c0_19 = arith.constant 0 : index
    %c0_20 = arith.constant 0 : index
    %76 = vector.load %arg3[%c0_19, %c0_20] : memref<1x128xf32, #tpu.memory_space<vmem>>, vector<1x128xf32>
    %c0_21 = arith.constant 0 : index
    %c0_22 = arith.constant 0 : index
    %77 = vector.load %arg4[%c0_21, %c0_22] : memref<1x128xf32, #tpu.memory_space<vmem>>, vector<1x128xf32>
    %cst_23 = arith.constant dense<0.000000e+00> : vector<8xf32>
    %78 = vector.multi_reduction <add>, %75, %cst_23 [1] : vector<8x128xf32> to vector<8xf32>
    %79 = vector.shape_cast %78 : vector<8xf32> to vector<8x1xf32>
    %cst_24 = arith.constant 1.562500e-02 : f32
    %80 = vector.broadcast %cst_24 : f32 to vector<8x1xf32>
    %81 = arith.mulf %79, %80 : vector<8x1xf32>
    %82 = arith.mulf %75, %75 : vector<8x128xf32>
    %cst_25 = arith.constant dense<0.000000e+00> : vector<8xf32>
    %83 = vector.multi_reduction <add>, %82, %cst_25 [1] : vector<8x128xf32> to vector<8xf32>
    %84 = vector.shape_cast %83 : vector<8xf32> to vector<8x1xf32>
    %cst_26 = arith.constant 1.562500e-02 : f32
    %85 = vector.broadcast %cst_26 : f32 to vector<8x1xf32>
    %86 = arith.mulf %84, %85 : vector<8x1xf32>
    %87 = arith.mulf %81, %81 : vector<8x1xf32>
    %88 = arith.subf %86, %87 : vector<8x1xf32>
    %cst_27 = arith.constant 0.000000e+00 : f32
    %89 = vector.broadcast %cst_27 : f32 to vector<8x1xf32>
    %90 = arith.maximumf %88, %89 : vector<8x1xf32>
    %91 = vector.broadcast %81 : vector<8x1xf32> to vector<8x128xf32>
    %92 = arith.subf %75, %91 : vector<8x128xf32>
    %cst_28 = arith.constant 9.99999996E-13 : f32
    %93 = vector.broadcast %cst_28 : f32 to vector<8x1xf32>
    %94 = arith.addf %90, %93 : vector<8x1xf32>
    %95 = math.rsqrt %94 : vector<8x1xf32>
    %96 = vector.broadcast %95 : vector<8x1xf32> to vector<8x128xf32>
    %97 = arith.mulf %92, %96 : vector<8x128xf32>
    %98 = vector.broadcast %76 : vector<1x128xf32> to vector<8x128xf32>
    %99 = arith.mulf %97, %98 : vector<8x128xf32>
    %100 = vector.broadcast %77 : vector<1x128xf32> to vector<8x128xf32>
    %101 = arith.addf %99, %100 : vector<8x128xf32>
    %102 = arith.truncf %101 : vector<8x128xf32> to vector<8x128xbf16>
    %cst_29 = arith.constant 0.000000e+00 : f32
    %103 = vector.broadcast %cst_29 : f32 to vector<8x128xf32>
    %c0_30 = arith.constant 0 : index
    %c0_31 = arith.constant 0 : index
    %c0_32 = arith.constant 0 : index
    %c0_33 = arith.constant 0 : index
    %104 = vector.load %arg5[%c0_30, %c0_31, %c0_32, %c0_33] : memref<2x4x128x16xbf16, #tpu.memory_space<vmem>>, vector<1x1x128x16xbf16>
    %105 = vector.shape_cast %104 : vector<1x1x128x16xbf16> to vector<128x16xbf16>
    %cst_34 = arith.constant dense<0.000000e+00> : vector<8x16xf32>
    %106 = tpu.matmul %102, %105, %cst_34 {dimension_numbers = #tpu.dot_dimension_numbers<[1], [0], [0], [1], [0, 0, 1, 1], [], []>} : vector<8x128xbf16>, vector<128x16xbf16>, vector<8x16xf32> -> vector<8x16xf32>
    %c0_35 = arith.constant 0 : index
    %c0_36 = arith.constant 0 : index
    %c0_37 = arith.constant 0 : index
    %c0_38 = arith.constant 0 : index
    %107 = vector.load %arg6[%c0_35, %c0_36, %c0_37, %c0_38] : memref<2x4x1x16xf32, #tpu.memory_space<vmem>>, vector<1x1x1x16xf32>
    %108 = vector.shape_cast %107 : vector<1x1x1x16xf32> to vector<1x16xf32>
    %109 = vector.broadcast %108 : vector<1x16xf32> to vector<8x16xf32>
    %110 = arith.addf %106, %109 : vector<8x16xf32>
    %111 = arith.truncf %110 : vector<8x16xf32> to vector<8x16xbf16>
    %c0_39 = arith.constant 0 : index
    %c0_40 = arith.constant 0 : index
    %c0_41 = arith.constant 0 : index
    %c0_42 = arith.constant 0 : index
    %112 = vector.load %arg7[%c0_39, %c0_40, %c0_41, %c0_42] : memref<2x4x128x16xbf16, #tpu.memory_space<vmem>>, vector<1x1x128x16xbf16>
    %113 = vector.shape_cast %112 : vector<1x1x128x16xbf16> to vector<128x16xbf16>
    %cst_43 = arith.constant dense<0.000000e+00> : vector<8x16xf32>
    %114 = tpu.matmul %102, %113, %cst_43 {dimension_numbers = #tpu.dot_dimension_numbers<[1], [0], [0], [1], [0, 0, 1, 1], [], []>} : vector<8x128xbf16>, vector<128x16xbf16>, vector<8x16xf32> -> vector<8x16xf32>
    %c0_44 = arith.constant 0 : index
    %c0_45 = arith.constant 0 : index
    %c0_46 = arith.constant 0 : index
    %c0_47 = arith.constant 0 : index
    %115 = vector.load %arg8[%c0_44, %c0_45, %c0_46, %c0_47] : memref<2x4x1x16xf32, #tpu.memory_space<vmem>>, vector<1x1x1x16xf32>
    %116 = vector.shape_cast %115 : vector<1x1x1x16xf32> to vector<1x16xf32>
    %117 = vector.broadcast %116 : vector<1x16xf32> to vector<8x16xf32>
    %118 = arith.addf %114, %117 : vector<8x16xf32>
    %119 = arith.truncf %118 : vector<8x16xf32> to vector<8x16xbf16>
    %c0_48 = arith.constant 0 : index
    %c0_49 = arith.constant 0 : index
    %c0_50 = arith.constant 0 : index
    %c0_51 = arith.constant 0 : index
    %120 = vector.load %arg9[%c0_48, %c0_49, %c0_50, %c0_51] : memref<2x4x128x16xbf16, #tpu.memory_space<vmem>>, vector<1x1x128x16xbf16>
    %121 = vector.shape_cast %120 : vector<1x1x128x16xbf16> to vector<128x16xbf16>
    %cst_52 = arith.constant dense<0.000000e+00> : vector<8x16xf32>
    %122 = tpu.matmul %102, %121, %cst_52 {dimension_numbers = #tpu.dot_dimension_numbers<[1], [0], [0], [1], [0, 0, 1, 1], [], []>} : vector<8x128xbf16>, vector<128x16xbf16>, vector<8x16xf32> -> vector<8x16xf32>
    %c0_53 = arith.constant 0 : index
    %c0_54 = arith.constant 0 : index
    %c0_55 = arith.constant 0 : index
    %c0_56 = arith.constant 0 : index
    %123 = vector.load %arg10[%c0_53, %c0_54, %c0_55, %c0_56] : memref<2x4x1x16xf32, #tpu.memory_space<vmem>>, vector<1x1x1x16xf32>
    %124 = vector.shape_cast %123 : vector<1x1x1x16xf32> to vector<1x16xf32>
    %125 = vector.broadcast %124 : vector<1x16xf32> to vector<8x16xf32>
    %126 = arith.addf %122, %125 : vector<8x16xf32>
    %127 = arith.truncf %126 : vector<8x16xf32> to vector<8x16xbf16>
    %cst_57 = arith.constant dense<0.000000e+00> : vector<8x8xf32>
    %128 = tpu.matmul %111, %119, %cst_57 {dimension_numbers = #tpu.dot_dimension_numbers<[1], [1], [0], [0], [0, 0, 1, 0], [], []>} : vector<8x16xbf16>, vector<8x16xbf16>, vector<8x8xf32> -> vector<8x8xf32>
    %129 = vector.broadcast %73 : vector<1x8xf32> to vector<8x8xf32>
    %130 = arith.addf %128, %129 : vector<8x8xf32>
    %cst_58 = arith.constant dense<0xFF800000> : vector<8xf32>
    %131 = vector.multi_reduction <maximumf>, %130, %cst_58 [1] : vector<8x8xf32> to vector<8xf32>
    %132 = vector.shape_cast %131 : vector<8xf32> to vector<8x1xf32>
    %133 = vector.broadcast %132 : vector<8x1xf32> to vector<8x8xf32>
    %134 = arith.subf %130, %133 : vector<8x8xf32>
    %135 = math.exp %134 : vector<8x8xf32>
    %cst_59 = arith.constant dense<0.000000e+00> : vector<8xf32>
    %136 = vector.multi_reduction <add>, %135, %cst_59 [1] : vector<8x8xf32> to vector<8xf32>
    %137 = vector.shape_cast %136 : vector<8xf32> to vector<8x1xf32>
    %138 = tpu.reciprocal %137 {approx = true} : vector<8x1xf32> -> vector<8x1xf32>
    %139 = vector.broadcast %138 : vector<8x1xf32> to vector<8x8xf32>
    %140 = arith.mulf %135, %139 : vector<8x8xf32>
    %141 = arith.truncf %140 : vector<8x8xf32> to vector<8x8xbf16>
    %cst_60 = arith.constant dense<0.000000e+00> : vector<8x16xf32>
    %142 = tpu.matmul %141, %127, %cst_60 {dimension_numbers = #tpu.dot_dimension_numbers<[1], [0], [0], [1], [0, 0, 1, 1], [], []>} : vector<8x8xbf16>, vector<8x16xbf16>, vector<8x16xf32> -> vector<8x16xf32>
    %143 = arith.truncf %142 : vector<8x16xf32> to vector<8x16xbf16>
    %c0_61 = arith.constant 0 : index
    %c0_62 = arith.constant 0 : index
    %c0_63 = arith.constant 0 : index
    %c0_64 = arith.constant 0 : index
    %144 = vector.load %arg11[%c0_61, %c0_62, %c0_63, %c0_64] : memref<2x4x16x128xbf16, #tpu.memory_space<vmem>>, vector<1x1x16x128xbf16>
    %145 = vector.shape_cast %144 : vector<1x1x16x128xbf16> to vector<16x128xbf16>
    %cst_65 = arith.constant dense<0.000000e+00> : vector<8x128xf32>
    %146 = tpu.matmul %143, %145, %cst_65 {dimension_numbers = #tpu.dot_dimension_numbers<[1], [0], [0], [1], [0, 0, 1, 1], [], []>} : vector<8x16xbf16>, vector<16x128xbf16>, vector<8x128xf32> -> vector<8x128xf32>
    %147 = arith.addf %103, %146 : vector<8x128xf32>
    %c0_66 = arith.constant 0 : index
    %c1_67 = arith.constant 1 : index
    %c0_68 = arith.constant 0 : index
    %c0_69 = arith.constant 0 : index
    %148 = vector.load %arg5[%c0_66, %c1_67, %c0_68, %c0_69] : memref<2x4x128x16xbf16, #tpu.memory_space<vmem>>, vector<1x1x128x16xbf16>
    %149 = vector.shape_cast %148 : vector<1x1x128x16xbf16> to vector<128x16xbf16>
    %cst_70 = arith.constant dense<0.000000e+00> : vector<8x16xf32>
    %150 = tpu.matmul %102, %149, %cst_70 {dimension_numbers = #tpu.dot_dimension_numbers<[1], [0], [0], [1], [0, 0, 1, 1], [], []>} : vector<8x128xbf16>, vector<128x16xbf16>, vector<8x16xf32> -> vector<8x16xf32>
    %c0_71 = arith.constant 0 : index
    %c1_72 = arith.constant 1 : index
    %c0_73 = arith.constant 0 : index
    %c0_74 = arith.constant 0 : index
    %151 = vector.load %arg6[%c0_71, %c1_72, %c0_73, %c0_74] : memref<2x4x1x16xf32, #tpu.memory_space<vmem>>, vector<1x1x1x16xf32>
    %152 = vector.shape_cast %151 : vector<1x1x1x16xf32> to vector<1x16xf32>
    %153 = vector.broadcast %152 : vector<1x16xf32> to vector<8x16xf32>
    %154 = arith.addf %150, %153 : vector<8x16xf32>
    %155 = arith.truncf %154 : vector<8x16xf32> to vector<8x16xbf16>
    %c0_75 = arith.constant 0 : index
    %c1_76 = arith.constant 1 : index
    %c0_77 = arith.constant 0 : index
    %c0_78 = arith.constant 0 : index
    %156 = vector.load %arg7[%c0_75, %c1_76, %c0_77, %c0_78] : memref<2x4x128x16xbf16, #tpu.memory_space<vmem>>, vector<1x1x128x16xbf16>
    %157 = vector.shape_cast %156 : vector<1x1x128x16xbf16> to vector<128x16xbf16>
    %cst_79 = arith.constant dense<0.000000e+00> : vector<8x16xf32>
    %158 = tpu.matmul %102, %157, %cst_79 {dimension_numbers = #tpu.dot_dimension_numbers<[1], [0], [0], [1], [0, 0, 1, 1], [], []>} : vector<8x128xbf16>, vector<128x16xbf16>, vector<8x16xf32> -> vector<8x16xf32>
    %c0_80 = arith.constant 0 : index
    %c1_81 = arith.constant 1 : index
    %c0_82 = arith.constant 0 : index
    %c0_83 = arith.constant 0 : index
    %159 = vector.load %arg8[%c0_80, %c1_81, %c0_82, %c0_83] : memref<2x4x1x16xf32, #tpu.memory_space<vmem>>, vector<1x1x1x16xf32>
    %160 = vector.shape_cast %159 : vector<1x1x1x16xf32> to vector<1x16xf32>
    %161 = vector.broadcast %160 : vector<1x16xf32> to vector<8x16xf32>
    %162 = arith.addf %158, %161 : vector<8x16xf32>
    %163 = arith.truncf %162 : vector<8x16xf32> to vector<8x16xbf16>
    %c0_84 = arith.constant 0 : index
    %c1_85 = arith.constant 1 : index
    %c0_86 = arith.constant 0 : index
    %c0_87 = arith.constant 0 : index
    %164 = vector.load %arg9[%c0_84, %c1_85, %c0_86, %c0_87] : memref<2x4x128x16xbf16, #tpu.memory_space<vmem>>, vector<1x1x128x16xbf16>
    %165 = vector.shape_cast %164 : vector<1x1x128x16xbf16> to vector<128x16xbf16>
    %cst_88 = arith.constant dense<0.000000e+00> : vector<8x16xf32>
    %166 = tpu.matmul %102, %165, %cst_88 {dimension_numbers = #tpu.dot_dimension_numbers<[1], [0], [0], [1], [0, 0, 1, 1], [], []>} : vector<8x128xbf16>, vector<128x16xbf16>, vector<8x16xf32> -> vector<8x16xf32>
    %c0_89 = arith.constant 0 : index
    %c1_90 = arith.constant 1 : index
    %c0_91 = arith.constant 0 : index
    %c0_92 = arith.constant 0 : index
    %167 = vector.load %arg10[%c0_89, %c1_90, %c0_91, %c0_92] : memref<2x4x1x16xf32, #tpu.memory_space<vmem>>, vector<1x1x1x16xf32>
    %168 = vector.shape_cast %167 : vector<1x1x1x16xf32> to vector<1x16xf32>
    %169 = vector.broadcast %168 : vector<1x16xf32> to vector<8x16xf32>
    %170 = arith.addf %166, %169 : vector<8x16xf32>
    %171 = arith.truncf %170 : vector<8x16xf32> to vector<8x16xbf16>
    %cst_93 = arith.constant dense<0.000000e+00> : vector<8x8xf32>
    %172 = tpu.matmul %155, %163, %cst_93 {dimension_numbers = #tpu.dot_dimension_numbers<[1], [1], [0], [0], [0, 0, 1, 0], [], []>} : vector<8x16xbf16>, vector<8x16xbf16>, vector<8x8xf32> -> vector<8x8xf32>
    %173 = vector.broadcast %73 : vector<1x8xf32> to vector<8x8xf32>
    %174 = arith.addf %172, %173 : vector<8x8xf32>
    %cst_94 = arith.constant dense<0xFF800000> : vector<8xf32>
    %175 = vector.multi_reduction <maximumf>, %174, %cst_94 [1] : vector<8x8xf32> to vector<8xf32>
    %176 = vector.shape_cast %175 : vector<8xf32> to vector<8x1xf32>
    %177 = vector.broadcast %176 : vector<8x1xf32> to vector<8x8xf32>
    %178 = arith.subf %174, %177 : vector<8x8xf32>
    %179 = math.exp %178 : vector<8x8xf32>
    %cst_95 = arith.constant dense<0.000000e+00> : vector<8xf32>
    %180 = vector.multi_reduction <add>, %179, %cst_95 [1] : vector<8x8xf32> to vector<8xf32>
    %181 = vector.shape_cast %180 : vector<8xf32> to vector<8x1xf32>
    %182 = tpu.reciprocal %181 {approx = true} : vector<8x1xf32> -> vector<8x1xf32>
    %183 = vector.broadcast %182 : vector<8x1xf32> to vector<8x8xf32>
    %184 = arith.mulf %179, %183 : vector<8x8xf32>
    %185 = arith.truncf %184 : vector<8x8xf32> to vector<8x8xbf16>
    %cst_96 = arith.constant dense<0.000000e+00> : vector<8x16xf32>
    %186 = tpu.matmul %185, %171, %cst_96 {dimension_numbers = #tpu.dot_dimension_numbers<[1], [0], [0], [1], [0, 0, 1, 1], [], []>} : vector<8x8xbf16>, vector<8x16xbf16>, vector<8x16xf32> -> vector<8x16xf32>
    %187 = arith.truncf %186 : vector<8x16xf32> to vector<8x16xbf16>
    %c0_97 = arith.constant 0 : index
    %c1_98 = arith.constant 1 : index
    %c0_99 = arith.constant 0 : index
    %c0_100 = arith.constant 0 : index
    %188 = vector.load %arg11[%c0_97, %c1_98, %c0_99, %c0_100] : memref<2x4x16x128xbf16, #tpu.memory_space<vmem>>, vector<1x1x16x128xbf16>
    %189 = vector.shape_cast %188 : vector<1x1x16x128xbf16> to vector<16x128xbf16>
    %cst_101 = arith.constant dense<0.000000e+00> : vector<8x128xf32>
    %190 = tpu.matmul %187, %189, %cst_101 {dimension_numbers = #tpu.dot_dimension_numbers<[1], [0], [0], [1], [0, 0, 1, 1], [], []>} : vector<8x16xbf16>, vector<16x128xbf16>, vector<8x128xf32> -> vector<8x128xf32>
    %191 = arith.addf %147, %190 : vector<8x128xf32>
    %c0_102 = arith.constant 0 : index
    %c2_103 = arith.constant 2 : index
    %c0_104 = arith.constant 0 : index
    %c0_105 = arith.constant 0 : index
    %192 = vector.load %arg5[%c0_102, %c2_103, %c0_104, %c0_105] : memref<2x4x128x16xbf16, #tpu.memory_space<vmem>>, vector<1x1x128x16xbf16>
    %193 = vector.shape_cast %192 : vector<1x1x128x16xbf16> to vector<128x16xbf16>
    %cst_106 = arith.constant dense<0.000000e+00> : vector<8x16xf32>
    %194 = tpu.matmul %102, %193, %cst_106 {dimension_numbers = #tpu.dot_dimension_numbers<[1], [0], [0], [1], [0, 0, 1, 1], [], []>} : vector<8x128xbf16>, vector<128x16xbf16>, vector<8x16xf32> -> vector<8x16xf32>
    %c0_107 = arith.constant 0 : index
    %c2_108 = arith.constant 2 : index
    %c0_109 = arith.constant 0 : index
    %c0_110 = arith.constant 0 : index
    %195 = vector.load %arg6[%c0_107, %c2_108, %c0_109, %c0_110] : memref<2x4x1x16xf32, #tpu.memory_space<vmem>>, vector<1x1x1x16xf32>
    %196 = vector.shape_cast %195 : vector<1x1x1x16xf32> to vector<1x16xf32>
    %197 = vector.broadcast %196 : vector<1x16xf32> to vector<8x16xf32>
    %198 = arith.addf %194, %197 : vector<8x16xf32>
    %199 = arith.truncf %198 : vector<8x16xf32> to vector<8x16xbf16>
    %c0_111 = arith.constant 0 : index
    %c2_112 = arith.constant 2 : index
    %c0_113 = arith.constant 0 : index
    %c0_114 = arith.constant 0 : index
    %200 = vector.load %arg7[%c0_111, %c2_112, %c0_113, %c0_114] : memref<2x4x128x16xbf16, #tpu.memory_space<vmem>>, vector<1x1x128x16xbf16>
    %201 = vector.shape_cast %200 : vector<1x1x128x16xbf16> to vector<128x16xbf16>
    %cst_115 = arith.constant dense<0.000000e+00> : vector<8x16xf32>
    %202 = tpu.matmul %102, %201, %cst_115 {dimension_numbers = #tpu.dot_dimension_numbers<[1], [0], [0], [1], [0, 0, 1, 1], [], []>} : vector<8x128xbf16>, vector<128x16xbf16>, vector<8x16xf32> -> vector<8x16xf32>
    %c0_116 = arith.constant 0 : index
    %c2_117 = arith.constant 2 : index
    %c0_118 = arith.constant 0 : index
    %c0_119 = arith.constant 0 : index
    %203 = vector.load %arg8[%c0_116, %c2_117, %c0_118, %c0_119] : memref<2x4x1x16xf32, #tpu.memory_space<vmem>>, vector<1x1x1x16xf32>
    %204 = vector.shape_cast %203 : vector<1x1x1x16xf32> to vector<1x16xf32>
    %205 = vector.broadcast %204 : vector<1x16xf32> to vector<8x16xf32>
    %206 = arith.addf %202, %205 : vector<8x16xf32>
    %207 = arith.truncf %206 : vector<8x16xf32> to vector<8x16xbf16>
    %c0_120 = arith.constant 0 : index
    %c2_121 = arith.constant 2 : index
    %c0_122 = arith.constant 0 : index
    %c0_123 = arith.constant 0 : index
    %208 = vector.load %arg9[%c0_120, %c2_121, %c0_122, %c0_123] : memref<2x4x128x16xbf16, #tpu.memory_space<vmem>>, vector<1x1x128x16xbf16>
    %209 = vector.shape_cast %208 : vector<1x1x128x16xbf16> to vector<128x16xbf16>
    %cst_124 = arith.constant dense<0.000000e+00> : vector<8x16xf32>
    %210 = tpu.matmul %102, %209, %cst_124 {dimension_numbers = #tpu.dot_dimension_numbers<[1], [0], [0], [1], [0, 0, 1, 1], [], []>} : vector<8x128xbf16>, vector<128x16xbf16>, vector<8x16xf32> -> vector<8x16xf32>
    %c0_125 = arith.constant 0 : index
    %c2_126 = arith.constant 2 : index
    %c0_127 = arith.constant 0 : index
    %c0_128 = arith.constant 0 : index
    %211 = vector.load %arg10[%c0_125, %c2_126, %c0_127, %c0_128] : memref<2x4x1x16xf32, #tpu.memory_space<vmem>>, vector<1x1x1x16xf32>
    %212 = vector.shape_cast %211 : vector<1x1x1x16xf32> to vector<1x16xf32>
    %213 = vector.broadcast %212 : vector<1x16xf32> to vector<8x16xf32>
    %214 = arith.addf %210, %213 : vector<8x16xf32>
    %215 = arith.truncf %214 : vector<8x16xf32> to vector<8x16xbf16>
    %cst_129 = arith.constant dense<0.000000e+00> : vector<8x8xf32>
    %216 = tpu.matmul %199, %207, %cst_129 {dimension_numbers = #tpu.dot_dimension_numbers<[1], [1], [0], [0], [0, 0, 1, 0], [], []>} : vector<8x16xbf16>, vector<8x16xbf16>, vector<8x8xf32> -> vector<8x8xf32>
    %217 = vector.broadcast %73 : vector<1x8xf32> to vector<8x8xf32>
    %218 = arith.addf %216, %217 : vector<8x8xf32>
    %cst_130 = arith.constant dense<0xFF800000> : vector<8xf32>
    %219 = vector.multi_reduction <maximumf>, %218, %cst_130 [1] : vector<8x8xf32> to vector<8xf32>
    %220 = vector.shape_cast %219 : vector<8xf32> to vector<8x1xf32>
    %221 = vector.broadcast %220 : vector<8x1xf32> to vector<8x8xf32>
    %222 = arith.subf %218, %221 : vector<8x8xf32>
    %223 = math.exp %222 : vector<8x8xf32>
    %cst_131 = arith.constant dense<0.000000e+00> : vector<8xf32>
    %224 = vector.multi_reduction <add>, %223, %cst_131 [1] : vector<8x8xf32> to vector<8xf32>
    %225 = vector.shape_cast %224 : vector<8xf32> to vector<8x1xf32>
    %226 = tpu.reciprocal %225 {approx = true} : vector<8x1xf32> -> vector<8x1xf32>
    %227 = vector.broadcast %226 : vector<8x1xf32> to vector<8x8xf32>
    %228 = arith.mulf %223, %227 : vector<8x8xf32>
    %229 = arith.truncf %228 : vector<8x8xf32> to vector<8x8xbf16>
    %cst_132 = arith.constant dense<0.000000e+00> : vector<8x16xf32>
    %230 = tpu.matmul %229, %215, %cst_132 {dimension_numbers = #tpu.dot_dimension_numbers<[1], [0], [0], [1], [0, 0, 1, 1], [], []>} : vector<8x8xbf16>, vector<8x16xbf16>, vector<8x16xf32> -> vector<8x16xf32>
    %231 = arith.truncf %230 : vector<8x16xf32> to vector<8x16xbf16>
    %c0_133 = arith.constant 0 : index
    %c2_134 = arith.constant 2 : index
    %c0_135 = arith.constant 0 : index
    %c0_136 = arith.constant 0 : index
    %232 = vector.load %arg11[%c0_133, %c2_134, %c0_135, %c0_136] : memref<2x4x16x128xbf16, #tpu.memory_space<vmem>>, vector<1x1x16x128xbf16>
    %233 = vector.shape_cast %232 : vector<1x1x16x128xbf16> to vector<16x128xbf16>
    %cst_137 = arith.constant dense<0.000000e+00> : vector<8x128xf32>
    %234 = tpu.matmul %231, %233, %cst_137 {dimension_numbers = #tpu.dot_dimension_numbers<[1], [0], [0], [1], [0, 0, 1, 1], [], []>} : vector<8x16xbf16>, vector<16x128xbf16>, vector<8x128xf32> -> vector<8x128xf32>
    %235 = arith.addf %191, %234 : vector<8x128xf32>
    %c0_138 = arith.constant 0 : index
    %c3_139 = arith.constant 3 : index
    %c0_140 = arith.constant 0 : index
    %c0_141 = arith.constant 0 : index
    %236 = vector.load %arg5[%c0_138, %c3_139, %c0_140, %c0_141] : memref<2x4x128x16xbf16, #tpu.memory_space<vmem>>, vector<1x1x128x16xbf16>
    %237 = vector.shape_cast %236 : vector<1x1x128x16xbf16> to vector<128x16xbf16>
    %cst_142 = arith.constant dense<0.000000e+00> : vector<8x16xf32>
    %238 = tpu.matmul %102, %237, %cst_142 {dimension_numbers = #tpu.dot_dimension_numbers<[1], [0], [0], [1], [0, 0, 1, 1], [], []>} : vector<8x128xbf16>, vector<128x16xbf16>, vector<8x16xf32> -> vector<8x16xf32>
    %c0_143 = arith.constant 0 : index
    %c3_144 = arith.constant 3 : index
    %c0_145 = arith.constant 0 : index
    %c0_146 = arith.constant 0 : index
    %239 = vector.load %arg6[%c0_143, %c3_144, %c0_145, %c0_146] : memref<2x4x1x16xf32, #tpu.memory_space<vmem>>, vector<1x1x1x16xf32>
    %240 = vector.shape_cast %239 : vector<1x1x1x16xf32> to vector<1x16xf32>
    %241 = vector.broadcast %240 : vector<1x16xf32> to vector<8x16xf32>
    %242 = arith.addf %238, %241 : vector<8x16xf32>
    %243 = arith.truncf %242 : vector<8x16xf32> to vector<8x16xbf16>
    %c0_147 = arith.constant 0 : index
    %c3_148 = arith.constant 3 : index
    %c0_149 = arith.constant 0 : index
    %c0_150 = arith.constant 0 : index
    %244 = vector.load %arg7[%c0_147, %c3_148, %c0_149, %c0_150] : memref<2x4x128x16xbf16, #tpu.memory_space<vmem>>, vector<1x1x128x16xbf16>
    %245 = vector.shape_cast %244 : vector<1x1x128x16xbf16> to vector<128x16xbf16>
    %cst_151 = arith.constant dense<0.000000e+00> : vector<8x16xf32>
    %246 = tpu.matmul %102, %245, %cst_151 {dimension_numbers = #tpu.dot_dimension_numbers<[1], [0], [0], [1], [0, 0, 1, 1], [], []>} : vector<8x128xbf16>, vector<128x16xbf16>, vector<8x16xf32> -> vector<8x16xf32>
    %c0_152 = arith.constant 0 : index
    %c3_153 = arith.constant 3 : index
    %c0_154 = arith.constant 0 : index
    %c0_155 = arith.constant 0 : index
    %247 = vector.load %arg8[%c0_152, %c3_153, %c0_154, %c0_155] : memref<2x4x1x16xf32, #tpu.memory_space<vmem>>, vector<1x1x1x16xf32>
    %248 = vector.shape_cast %247 : vector<1x1x1x16xf32> to vector<1x16xf32>
    %249 = vector.broadcast %248 : vector<1x16xf32> to vector<8x16xf32>
    %250 = arith.addf %246, %249 : vector<8x16xf32>
    %251 = arith.truncf %250 : vector<8x16xf32> to vector<8x16xbf16>
    %c0_156 = arith.constant 0 : index
    %c3_157 = arith.constant 3 : index
    %c0_158 = arith.constant 0 : index
    %c0_159 = arith.constant 0 : index
    %252 = vector.load %arg9[%c0_156, %c3_157, %c0_158, %c0_159] : memref<2x4x128x16xbf16, #tpu.memory_space<vmem>>, vector<1x1x128x16xbf16>
    %253 = vector.shape_cast %252 : vector<1x1x128x16xbf16> to vector<128x16xbf16>
    %cst_160 = arith.constant dense<0.000000e+00> : vector<8x16xf32>
    %254 = tpu.matmul %102, %253, %cst_160 {dimension_numbers = #tpu.dot_dimension_numbers<[1], [0], [0], [1], [0, 0, 1, 1], [], []>} : vector<8x128xbf16>, vector<128x16xbf16>, vector<8x16xf32> -> vector<8x16xf32>
    %c0_161 = arith.constant 0 : index
    %c3_162 = arith.constant 3 : index
    %c0_163 = arith.constant 0 : index
    %c0_164 = arith.constant 0 : index
    %255 = vector.load %arg10[%c0_161, %c3_162, %c0_163, %c0_164] : memref<2x4x1x16xf32, #tpu.memory_space<vmem>>, vector<1x1x1x16xf32>
    %256 = vector.shape_cast %255 : vector<1x1x1x16xf32> to vector<1x16xf32>
    %257 = vector.broadcast %256 : vector<1x16xf32> to vector<8x16xf32>
    %258 = arith.addf %254, %257 : vector<8x16xf32>
    %259 = arith.truncf %258 : vector<8x16xf32> to vector<8x16xbf16>
    %cst_165 = arith.constant dense<0.000000e+00> : vector<8x8xf32>
    %260 = tpu.matmul %243, %251, %cst_165 {dimension_numbers = #tpu.dot_dimension_numbers<[1], [1], [0], [0], [0, 0, 1, 0], [], []>} : vector<8x16xbf16>, vector<8x16xbf16>, vector<8x8xf32> -> vector<8x8xf32>
    %261 = vector.broadcast %73 : vector<1x8xf32> to vector<8x8xf32>
    %262 = arith.addf %260, %261 : vector<8x8xf32>
    %cst_166 = arith.constant dense<0xFF800000> : vector<8xf32>
    %263 = vector.multi_reduction <maximumf>, %262, %cst_166 [1] : vector<8x8xf32> to vector<8xf32>
    %264 = vector.shape_cast %263 : vector<8xf32> to vector<8x1xf32>
    %265 = vector.broadcast %264 : vector<8x1xf32> to vector<8x8xf32>
    %266 = arith.subf %262, %265 : vector<8x8xf32>
    %267 = math.exp %266 : vector<8x8xf32>
    %cst_167 = arith.constant dense<0.000000e+00> : vector<8xf32>
    %268 = vector.multi_reduction <add>, %267, %cst_167 [1] : vector<8x8xf32> to vector<8xf32>
    %269 = vector.shape_cast %268 : vector<8xf32> to vector<8x1xf32>
    %270 = tpu.reciprocal %269 {approx = true} : vector<8x1xf32> -> vector<8x1xf32>
    %271 = vector.broadcast %270 : vector<8x1xf32> to vector<8x8xf32>
    %272 = arith.mulf %267, %271 : vector<8x8xf32>
    %273 = arith.truncf %272 : vector<8x8xf32> to vector<8x8xbf16>
    %cst_168 = arith.constant dense<0.000000e+00> : vector<8x16xf32>
    %274 = tpu.matmul %273, %259, %cst_168 {dimension_numbers = #tpu.dot_dimension_numbers<[1], [0], [0], [1], [0, 0, 1, 1], [], []>} : vector<8x8xbf16>, vector<8x16xbf16>, vector<8x16xf32> -> vector<8x16xf32>
    %275 = arith.truncf %274 : vector<8x16xf32> to vector<8x16xbf16>
    %c0_169 = arith.constant 0 : index
    %c3_170 = arith.constant 3 : index
    %c0_171 = arith.constant 0 : index
    %c0_172 = arith.constant 0 : index
    %276 = vector.load %arg11[%c0_169, %c3_170, %c0_171, %c0_172] : memref<2x4x16x128xbf16, #tpu.memory_space<vmem>>, vector<1x1x16x128xbf16>
    %277 = vector.shape_cast %276 : vector<1x1x16x128xbf16> to vector<16x128xbf16>
    %cst_173 = arith.constant dense<0.000000e+00> : vector<8x128xf32>
    %278 = tpu.matmul %275, %277, %cst_173 {dimension_numbers = #tpu.dot_dimension_numbers<[1], [0], [0], [1], [0, 0, 1, 1], [], []>} : vector<8x16xbf16>, vector<16x128xbf16>, vector<8x128xf32> -> vector<8x128xf32>
    %279 = arith.addf %235, %278 : vector<8x128xf32>
    %c0_174 = arith.constant 0 : index
    %c0_175 = arith.constant 0 : index
    %c0_176 = arith.constant 0 : index
    %280 = vector.load %arg12[%c0_174, %c0_175, %c0_176] : memref<2x1x128xf32, #tpu.memory_space<vmem>>, vector<1x1x128xf32>
    %281 = vector.shape_cast %280 : vector<1x1x128xf32> to vector<1x128xf32>
    %282 = vector.broadcast %281 : vector<1x128xf32> to vector<8x128xf32>
    %283 = arith.addf %279, %282 : vector<8x128xf32>
    %284 = arith.addf %101, %283 : vector<8x128xf32>
    %c0_177 = arith.constant 0 : index
    %c0_178 = arith.constant 0 : index
    %c0_179 = arith.constant 0 : index
    %285 = vector.load %arg13[%c0_177, %c0_178, %c0_179] : memref<2x1x128xf32, #tpu.memory_space<vmem>>, vector<1x1x128xf32>
    %286 = vector.shape_cast %285 : vector<1x1x128xf32> to vector<1x128xf32>
    %c0_180 = arith.constant 0 : index
    %c0_181 = arith.constant 0 : index
    %c0_182 = arith.constant 0 : index
    %287 = vector.load %arg14[%c0_180, %c0_181, %c0_182] : memref<2x1x128xf32, #tpu.memory_space<vmem>>, vector<1x1x128xf32>
    %288 = vector.shape_cast %287 : vector<1x1x128xf32> to vector<1x128xf32>
    %cst_183 = arith.constant dense<0.000000e+00> : vector<8xf32>
    %289 = vector.multi_reduction <add>, %284, %cst_183 [1] : vector<8x128xf32> to vector<8xf32>
    %290 = vector.shape_cast %289 : vector<8xf32> to vector<8x1xf32>
    %cst_184 = arith.constant 1.562500e-02 : f32
    %291 = vector.broadcast %cst_184 : f32 to vector<8x1xf32>
    %292 = arith.mulf %290, %291 : vector<8x1xf32>
    %293 = arith.mulf %284, %284 : vector<8x128xf32>
    %cst_185 = arith.constant dense<0.000000e+00> : vector<8xf32>
    %294 = vector.multi_reduction <add>, %293, %cst_185 [1] : vector<8x128xf32> to vector<8xf32>
    %295 = vector.shape_cast %294 : vector<8xf32> to vector<8x1xf32>
    %cst_186 = arith.constant 1.562500e-02 : f32
    %296 = vector.broadcast %cst_186 : f32 to vector<8x1xf32>
    %297 = arith.mulf %295, %296 : vector<8x1xf32>
    %298 = arith.mulf %292, %292 : vector<8x1xf32>
    %299 = arith.subf %297, %298 : vector<8x1xf32>
    %cst_187 = arith.constant 0.000000e+00 : f32
    %300 = vector.broadcast %cst_187 : f32 to vector<8x1xf32>
    %301 = arith.maximumf %299, %300 : vector<8x1xf32>
    %302 = vector.broadcast %292 : vector<8x1xf32> to vector<8x128xf32>
    %303 = arith.subf %284, %302 : vector<8x128xf32>
    %cst_188 = arith.constant 9.99999996E-13 : f32
    %304 = vector.broadcast %cst_188 : f32 to vector<8x1xf32>
    %305 = arith.addf %301, %304 : vector<8x1xf32>
    %306 = math.rsqrt %305 : vector<8x1xf32>
    %307 = vector.broadcast %306 : vector<8x1xf32> to vector<8x128xf32>
    %308 = arith.mulf %303, %307 : vector<8x128xf32>
    %309 = vector.broadcast %286 : vector<1x128xf32> to vector<8x128xf32>
    %310 = arith.mulf %308, %309 : vector<8x128xf32>
    %311 = vector.broadcast %288 : vector<1x128xf32> to vector<8x128xf32>
    %312 = arith.addf %310, %311 : vector<8x128xf32>
    %313 = arith.truncf %312 : vector<8x128xf32> to vector<8x128xbf16>
    %c0_189 = arith.constant 0 : index
    %c0_190 = arith.constant 0 : index
    %c0_191 = arith.constant 0 : index
    %314 = vector.load %arg15[%c0_189, %c0_190, %c0_191] : memref<2x128x128xbf16, #tpu.memory_space<vmem>>, vector<1x128x128xbf16>
    %315 = vector.shape_cast %314 : vector<1x128x128xbf16> to vector<128x128xbf16>
    %cst_192 = arith.constant dense<0.000000e+00> : vector<8x128xf32>
    %316 = tpu.matmul %313, %315, %cst_192 {dimension_numbers = #tpu.dot_dimension_numbers<[1], [0], [0], [1], [0, 0, 1, 1], [], []>} : vector<8x128xbf16>, vector<128x128xbf16>, vector<8x128xf32> -> vector<8x128xf32>
    %c0_193 = arith.constant 0 : index
    %c0_194 = arith.constant 0 : index
    %c0_195 = arith.constant 0 : index
    %317 = vector.load %arg16[%c0_193, %c0_194, %c0_195] : memref<2x1x128xf32, #tpu.memory_space<vmem>>, vector<1x1x128xf32>
    %318 = vector.shape_cast %317 : vector<1x1x128xf32> to vector<1x128xf32>
    %319 = vector.broadcast %318 : vector<1x128xf32> to vector<8x128xf32>
    %320 = arith.addf %316, %319 : vector<8x128xf32>
    %321 = arith.mulf %320, %320 : vector<8x128xf32>
    %322 = arith.mulf %320, %321 : vector<8x128xf32>
    %cst_196 = arith.constant 4.471500e-02 : f32
    %323 = vector.broadcast %cst_196 : f32 to vector<8x128xf32>
    %324 = arith.mulf %323, %322 : vector<8x128xf32>
    %325 = arith.addf %320, %324 : vector<8x128xf32>
    %cst_197 = arith.constant 0.797884583 : f32
    %326 = vector.broadcast %cst_197 : f32 to vector<8x128xf32>
    %327 = arith.mulf %326, %325 : vector<8x128xf32>
    %328 = math.tanh %327 : vector<8x128xf32>
    %cst_198 = arith.constant 1.000000e+00 : f32
    %329 = vector.broadcast %cst_198 : f32 to vector<8x128xf32>
    %330 = arith.addf %329, %328 : vector<8x128xf32>
    %cst_199 = arith.constant 5.000000e-01 : f32
    %331 = vector.broadcast %cst_199 : f32 to vector<8x128xf32>
    %332 = arith.mulf %331, %330 : vector<8x128xf32>
    %333 = arith.mulf %320, %332 : vector<8x128xf32>
    %334 = arith.truncf %333 : vector<8x128xf32> to vector<8x128xbf16>
    %c0_200 = arith.constant 0 : index
    %c0_201 = arith.constant 0 : index
    %c0_202 = arith.constant 0 : index
    %335 = vector.load %arg17[%c0_200, %c0_201, %c0_202] : memref<2x128x128xbf16, #tpu.memory_space<vmem>>, vector<1x128x128xbf16>
    %336 = vector.shape_cast %335 : vector<1x128x128xbf16> to vector<128x128xbf16>
    %cst_203 = arith.constant dense<0.000000e+00> : vector<8x128xf32>
    %337 = tpu.matmul %334, %336, %cst_203 {dimension_numbers = #tpu.dot_dimension_numbers<[1], [0], [0], [1], [0, 0, 1, 1], [], []>} : vector<8x128xbf16>, vector<128x128xbf16>, vector<8x128xf32> -> vector<8x128xf32>
    %c0_204 = arith.constant 0 : index
    %c0_205 = arith.constant 0 : index
    %c0_206 = arith.constant 0 : index
    %338 = vector.load %arg18[%c0_204, %c0_205, %c0_206] : memref<2x1x128xf32, #tpu.memory_space<vmem>>, vector<1x1x128xf32>
    %339 = vector.shape_cast %338 : vector<1x1x128xf32> to vector<1x128xf32>
    %340 = vector.broadcast %339 : vector<1x128xf32> to vector<8x128xf32>
    %341 = arith.addf %337, %340 : vector<8x128xf32>
    %342 = arith.addf %312, %341 : vector<8x128xf32>
    %c0_207 = arith.constant 0 : index
    %c0_208 = arith.constant 0 : index
    %c0_209 = arith.constant 0 : index
    %343 = vector.load %arg19[%c0_207, %c0_208, %c0_209] : memref<2x1x128xf32, #tpu.memory_space<vmem>>, vector<1x1x128xf32>
    %344 = vector.shape_cast %343 : vector<1x1x128xf32> to vector<1x128xf32>
    %c0_210 = arith.constant 0 : index
    %c0_211 = arith.constant 0 : index
    %c0_212 = arith.constant 0 : index
    %345 = vector.load %arg20[%c0_210, %c0_211, %c0_212] : memref<2x1x128xf32, #tpu.memory_space<vmem>>, vector<1x1x128xf32>
    %346 = vector.shape_cast %345 : vector<1x1x128xf32> to vector<1x128xf32>
    %cst_213 = arith.constant dense<0.000000e+00> : vector<8xf32>
    %347 = vector.multi_reduction <add>, %342, %cst_213 [1] : vector<8x128xf32> to vector<8xf32>
    %348 = vector.shape_cast %347 : vector<8xf32> to vector<8x1xf32>
    %cst_214 = arith.constant 1.562500e-02 : f32
    %349 = vector.broadcast %cst_214 : f32 to vector<8x1xf32>
    %350 = arith.mulf %348, %349 : vector<8x1xf32>
    %351 = arith.mulf %342, %342 : vector<8x128xf32>
    %cst_215 = arith.constant dense<0.000000e+00> : vector<8xf32>
    %352 = vector.multi_reduction <add>, %351, %cst_215 [1] : vector<8x128xf32> to vector<8xf32>
    %353 = vector.shape_cast %352 : vector<8xf32> to vector<8x1xf32>
    %cst_216 = arith.constant 1.562500e-02 : f32
    %354 = vector.broadcast %cst_216 : f32 to vector<8x1xf32>
    %355 = arith.mulf %353, %354 : vector<8x1xf32>
    %356 = arith.mulf %350, %350 : vector<8x1xf32>
    %357 = arith.subf %355, %356 : vector<8x1xf32>
    %cst_217 = arith.constant 0.000000e+00 : f32
    %358 = vector.broadcast %cst_217 : f32 to vector<8x1xf32>
    %359 = arith.maximumf %357, %358 : vector<8x1xf32>
    %360 = vector.broadcast %350 : vector<8x1xf32> to vector<8x128xf32>
    %361 = arith.subf %342, %360 : vector<8x128xf32>
    %cst_218 = arith.constant 9.99999996E-13 : f32
    %362 = vector.broadcast %cst_218 : f32 to vector<8x1xf32>
    %363 = arith.addf %359, %362 : vector<8x1xf32>
    %364 = math.rsqrt %363 : vector<8x1xf32>
    %365 = vector.broadcast %364 : vector<8x1xf32> to vector<8x128xf32>
    %366 = arith.mulf %361, %365 : vector<8x128xf32>
    %367 = vector.broadcast %344 : vector<1x128xf32> to vector<8x128xf32>
    %368 = arith.mulf %366, %367 : vector<8x128xf32>
    %369 = vector.broadcast %346 : vector<1x128xf32> to vector<8x128xf32>
    %370 = arith.addf %368, %369 : vector<8x128xf32>
    %371 = arith.truncf %370 : vector<8x128xf32> to vector<8x128xbf16>
    %cst_219 = arith.constant 0.000000e+00 : f32
    %372 = vector.broadcast %cst_219 : f32 to vector<8x128xf32>
    %c1_220 = arith.constant 1 : index
    %c0_221 = arith.constant 0 : index
    %c0_222 = arith.constant 0 : index
    %c0_223 = arith.constant 0 : index
    %373 = vector.load %arg5[%c1_220, %c0_221, %c0_222, %c0_223] : memref<2x4x128x16xbf16, #tpu.memory_space<vmem>>, vector<1x1x128x16xbf16>
    %374 = vector.shape_cast %373 : vector<1x1x128x16xbf16> to vector<128x16xbf16>
    %cst_224 = arith.constant dense<0.000000e+00> : vector<8x16xf32>
    %375 = tpu.matmul %371, %374, %cst_224 {dimension_numbers = #tpu.dot_dimension_numbers<[1], [0], [0], [1], [0, 0, 1, 1], [], []>} : vector<8x128xbf16>, vector<128x16xbf16>, vector<8x16xf32> -> vector<8x16xf32>
    %c1_225 = arith.constant 1 : index
    %c0_226 = arith.constant 0 : index
    %c0_227 = arith.constant 0 : index
    %c0_228 = arith.constant 0 : index
    %376 = vector.load %arg6[%c1_225, %c0_226, %c0_227, %c0_228] : memref<2x4x1x16xf32, #tpu.memory_space<vmem>>, vector<1x1x1x16xf32>
    %377 = vector.shape_cast %376 : vector<1x1x1x16xf32> to vector<1x16xf32>
    %378 = vector.broadcast %377 : vector<1x16xf32> to vector<8x16xf32>
    %379 = arith.addf %375, %378 : vector<8x16xf32>
    %380 = arith.truncf %379 : vector<8x16xf32> to vector<8x16xbf16>
    %c1_229 = arith.constant 1 : index
    %c0_230 = arith.constant 0 : index
    %c0_231 = arith.constant 0 : index
    %c0_232 = arith.constant 0 : index
    %381 = vector.load %arg7[%c1_229, %c0_230, %c0_231, %c0_232] : memref<2x4x128x16xbf16, #tpu.memory_space<vmem>>, vector<1x1x128x16xbf16>
    %382 = vector.shape_cast %381 : vector<1x1x128x16xbf16> to vector<128x16xbf16>
    %cst_233 = arith.constant dense<0.000000e+00> : vector<8x16xf32>
    %383 = tpu.matmul %371, %382, %cst_233 {dimension_numbers = #tpu.dot_dimension_numbers<[1], [0], [0], [1], [0, 0, 1, 1], [], []>} : vector<8x128xbf16>, vector<128x16xbf16>, vector<8x16xf32> -> vector<8x16xf32>
    %c1_234 = arith.constant 1 : index
    %c0_235 = arith.constant 0 : index
    %c0_236 = arith.constant 0 : index
    %c0_237 = arith.constant 0 : index
    %384 = vector.load %arg8[%c1_234, %c0_235, %c0_236, %c0_237] : memref<2x4x1x16xf32, #tpu.memory_space<vmem>>, vector<1x1x1x16xf32>
    %385 = vector.shape_cast %384 : vector<1x1x1x16xf32> to vector<1x16xf32>
    %386 = vector.broadcast %385 : vector<1x16xf32> to vector<8x16xf32>
    %387 = arith.addf %383, %386 : vector<8x16xf32>
    %388 = arith.truncf %387 : vector<8x16xf32> to vector<8x16xbf16>
    %c1_238 = arith.constant 1 : index
    %c0_239 = arith.constant 0 : index
    %c0_240 = arith.constant 0 : index
    %c0_241 = arith.constant 0 : index
    %389 = vector.load %arg9[%c1_238, %c0_239, %c0_240, %c0_241] : memref<2x4x128x16xbf16, #tpu.memory_space<vmem>>, vector<1x1x128x16xbf16>
    %390 = vector.shape_cast %389 : vector<1x1x128x16xbf16> to vector<128x16xbf16>
    %cst_242 = arith.constant dense<0.000000e+00> : vector<8x16xf32>
    %391 = tpu.matmul %371, %390, %cst_242 {dimension_numbers = #tpu.dot_dimension_numbers<[1], [0], [0], [1], [0, 0, 1, 1], [], []>} : vector<8x128xbf16>, vector<128x16xbf16>, vector<8x16xf32> -> vector<8x16xf32>
    %c1_243 = arith.constant 1 : index
    %c0_244 = arith.constant 0 : index
    %c0_245 = arith.constant 0 : index
    %c0_246 = arith.constant 0 : index
    %392 = vector.load %arg10[%c1_243, %c0_244, %c0_245, %c0_246] : memref<2x4x1x16xf32, #tpu.memory_space<vmem>>, vector<1x1x1x16xf32>
    %393 = vector.shape_cast %392 : vector<1x1x1x16xf32> to vector<1x16xf32>
    %394 = vector.broadcast %393 : vector<1x16xf32> to vector<8x16xf32>
    %395 = arith.addf %391, %394 : vector<8x16xf32>
    %396 = arith.truncf %395 : vector<8x16xf32> to vector<8x16xbf16>
    %cst_247 = arith.constant dense<0.000000e+00> : vector<8x8xf32>
    %397 = tpu.matmul %380, %388, %cst_247 {dimension_numbers = #tpu.dot_dimension_numbers<[1], [1], [0], [0], [0, 0, 1, 0], [], []>} : vector<8x16xbf16>, vector<8x16xbf16>, vector<8x8xf32> -> vector<8x8xf32>
    %398 = vector.broadcast %73 : vector<1x8xf32> to vector<8x8xf32>
    %399 = arith.addf %397, %398 : vector<8x8xf32>
    %cst_248 = arith.constant dense<0xFF800000> : vector<8xf32>
    %400 = vector.multi_reduction <maximumf>, %399, %cst_248 [1] : vector<8x8xf32> to vector<8xf32>
    %401 = vector.shape_cast %400 : vector<8xf32> to vector<8x1xf32>
    %402 = vector.broadcast %401 : vector<8x1xf32> to vector<8x8xf32>
    %403 = arith.subf %399, %402 : vector<8x8xf32>
    %404 = math.exp %403 : vector<8x8xf32>
    %cst_249 = arith.constant dense<0.000000e+00> : vector<8xf32>
    %405 = vector.multi_reduction <add>, %404, %cst_249 [1] : vector<8x8xf32> to vector<8xf32>
    %406 = vector.shape_cast %405 : vector<8xf32> to vector<8x1xf32>
    %407 = tpu.reciprocal %406 {approx = true} : vector<8x1xf32> -> vector<8x1xf32>
    %408 = vector.broadcast %407 : vector<8x1xf32> to vector<8x8xf32>
    %409 = arith.mulf %404, %408 : vector<8x8xf32>
    %410 = arith.truncf %409 : vector<8x8xf32> to vector<8x8xbf16>
    %cst_250 = arith.constant dense<0.000000e+00> : vector<8x16xf32>
    %411 = tpu.matmul %410, %396, %cst_250 {dimension_numbers = #tpu.dot_dimension_numbers<[1], [0], [0], [1], [0, 0, 1, 1], [], []>} : vector<8x8xbf16>, vector<8x16xbf16>, vector<8x16xf32> -> vector<8x16xf32>
    %412 = arith.truncf %411 : vector<8x16xf32> to vector<8x16xbf16>
    %c1_251 = arith.constant 1 : index
    %c0_252 = arith.constant 0 : index
    %c0_253 = arith.constant 0 : index
    %c0_254 = arith.constant 0 : index
    %413 = vector.load %arg11[%c1_251, %c0_252, %c0_253, %c0_254] : memref<2x4x16x128xbf16, #tpu.memory_space<vmem>>, vector<1x1x16x128xbf16>
    %414 = vector.shape_cast %413 : vector<1x1x16x128xbf16> to vector<16x128xbf16>
    %cst_255 = arith.constant dense<0.000000e+00> : vector<8x128xf32>
    %415 = tpu.matmul %412, %414, %cst_255 {dimension_numbers = #tpu.dot_dimension_numbers<[1], [0], [0], [1], [0, 0, 1, 1], [], []>} : vector<8x16xbf16>, vector<16x128xbf16>, vector<8x128xf32> -> vector<8x128xf32>
    %416 = arith.addf %372, %415 : vector<8x128xf32>
    %c1_256 = arith.constant 1 : index
    %c1_257 = arith.constant 1 : index
    %c0_258 = arith.constant 0 : index
    %c0_259 = arith.constant 0 : index
    %417 = vector.load %arg5[%c1_256, %c1_257, %c0_258, %c0_259] : memref<2x4x128x16xbf16, #tpu.memory_space<vmem>>, vector<1x1x128x16xbf16>
    %418 = vector.shape_cast %417 : vector<1x1x128x16xbf16> to vector<128x16xbf16>
    %cst_260 = arith.constant dense<0.000000e+00> : vector<8x16xf32>
    %419 = tpu.matmul %371, %418, %cst_260 {dimension_numbers = #tpu.dot_dimension_numbers<[1], [0], [0], [1], [0, 0, 1, 1], [], []>} : vector<8x128xbf16>, vector<128x16xbf16>, vector<8x16xf32> -> vector<8x16xf32>
    %c1_261 = arith.constant 1 : index
    %c1_262 = arith.constant 1 : index
    %c0_263 = arith.constant 0 : index
    %c0_264 = arith.constant 0 : index
    %420 = vector.load %arg6[%c1_261, %c1_262, %c0_263, %c0_264] : memref<2x4x1x16xf32, #tpu.memory_space<vmem>>, vector<1x1x1x16xf32>
    %421 = vector.shape_cast %420 : vector<1x1x1x16xf32> to vector<1x16xf32>
    %422 = vector.broadcast %421 : vector<1x16xf32> to vector<8x16xf32>
    %423 = arith.addf %419, %422 : vector<8x16xf32>
    %424 = arith.truncf %423 : vector<8x16xf32> to vector<8x16xbf16>
    %c1_265 = arith.constant 1 : index
    %c1_266 = arith.constant 1 : index
    %c0_267 = arith.constant 0 : index
    %c0_268 = arith.constant 0 : index
    %425 = vector.load %arg7[%c1_265, %c1_266, %c0_267, %c0_268] : memref<2x4x128x16xbf16, #tpu.memory_space<vmem>>, vector<1x1x128x16xbf16>
    %426 = vector.shape_cast %425 : vector<1x1x128x16xbf16> to vector<128x16xbf16>
    %cst_269 = arith.constant dense<0.000000e+00> : vector<8x16xf32>
    %427 = tpu.matmul %371, %426, %cst_269 {dimension_numbers = #tpu.dot_dimension_numbers<[1], [0], [0], [1], [0, 0, 1, 1], [], []>} : vector<8x128xbf16>, vector<128x16xbf16>, vector<8x16xf32> -> vector<8x16xf32>
    %c1_270 = arith.constant 1 : index
    %c1_271 = arith.constant 1 : index
    %c0_272 = arith.constant 0 : index
    %c0_273 = arith.constant 0 : index
    %428 = vector.load %arg8[%c1_270, %c1_271, %c0_272, %c0_273] : memref<2x4x1x16xf32, #tpu.memory_space<vmem>>, vector<1x1x1x16xf32>
    %429 = vector.shape_cast %428 : vector<1x1x1x16xf32> to vector<1x16xf32>
    %430 = vector.broadcast %429 : vector<1x16xf32> to vector<8x16xf32>
    %431 = arith.addf %427, %430 : vector<8x16xf32>
    %432 = arith.truncf %431 : vector<8x16xf32> to vector<8x16xbf16>
    %c1_274 = arith.constant 1 : index
    %c1_275 = arith.constant 1 : index
    %c0_276 = arith.constant 0 : index
    %c0_277 = arith.constant 0 : index
    %433 = vector.load %arg9[%c1_274, %c1_275, %c0_276, %c0_277] : memref<2x4x128x16xbf16, #tpu.memory_space<vmem>>, vector<1x1x128x16xbf16>
    %434 = vector.shape_cast %433 : vector<1x1x128x16xbf16> to vector<128x16xbf16>
    %cst_278 = arith.constant dense<0.000000e+00> : vector<8x16xf32>
    %435 = tpu.matmul %371, %434, %cst_278 {dimension_numbers = #tpu.dot_dimension_numbers<[1], [0], [0], [1], [0, 0, 1, 1], [], []>} : vector<8x128xbf16>, vector<128x16xbf16>, vector<8x16xf32> -> vector<8x16xf32>
    %c1_279 = arith.constant 1 : index
    %c1_280 = arith.constant 1 : index
    %c0_281 = arith.constant 0 : index
    %c0_282 = arith.constant 0 : index
    %436 = vector.load %arg10[%c1_279, %c1_280, %c0_281, %c0_282] : memref<2x4x1x16xf32, #tpu.memory_space<vmem>>, vector<1x1x1x16xf32>
    %437 = vector.shape_cast %436 : vector<1x1x1x16xf32> to vector<1x16xf32>
    %438 = vector.broadcast %437 : vector<1x16xf32> to vector<8x16xf32>
    %439 = arith.addf %435, %438 : vector<8x16xf32>
    %440 = arith.truncf %439 : vector<8x16xf32> to vector<8x16xbf16>
    %cst_283 = arith.constant dense<0.000000e+00> : vector<8x8xf32>
    %441 = tpu.matmul %424, %432, %cst_283 {dimension_numbers = #tpu.dot_dimension_numbers<[1], [1], [0], [0], [0, 0, 1, 0], [], []>} : vector<8x16xbf16>, vector<8x16xbf16>, vector<8x8xf32> -> vector<8x8xf32>
    %442 = vector.broadcast %73 : vector<1x8xf32> to vector<8x8xf32>
    %443 = arith.addf %441, %442 : vector<8x8xf32>
    %cst_284 = arith.constant dense<0xFF800000> : vector<8xf32>
    %444 = vector.multi_reduction <maximumf>, %443, %cst_284 [1] : vector<8x8xf32> to vector<8xf32>
    %445 = vector.shape_cast %444 : vector<8xf32> to vector<8x1xf32>
    %446 = vector.broadcast %445 : vector<8x1xf32> to vector<8x8xf32>
    %447 = arith.subf %443, %446 : vector<8x8xf32>
    %448 = math.exp %447 : vector<8x8xf32>
    %cst_285 = arith.constant dense<0.000000e+00> : vector<8xf32>
    %449 = vector.multi_reduction <add>, %448, %cst_285 [1] : vector<8x8xf32> to vector<8xf32>
    %450 = vector.shape_cast %449 : vector<8xf32> to vector<8x1xf32>
    %451 = tpu.reciprocal %450 {approx = true} : vector<8x1xf32> -> vector<8x1xf32>
    %452 = vector.broadcast %451 : vector<8x1xf32> to vector<8x8xf32>
    %453 = arith.mulf %448, %452 : vector<8x8xf32>
    %454 = arith.truncf %453 : vector<8x8xf32> to vector<8x8xbf16>
    %cst_286 = arith.constant dense<0.000000e+00> : vector<8x16xf32>
    %455 = tpu.matmul %454, %440, %cst_286 {dimension_numbers = #tpu.dot_dimension_numbers<[1], [0], [0], [1], [0, 0, 1, 1], [], []>} : vector<8x8xbf16>, vector<8x16xbf16>, vector<8x16xf32> -> vector<8x16xf32>
    %456 = arith.truncf %455 : vector<8x16xf32> to vector<8x16xbf16>
    %c1_287 = arith.constant 1 : index
    %c1_288 = arith.constant 1 : index
    %c0_289 = arith.constant 0 : index
    %c0_290 = arith.constant 0 : index
    %457 = vector.load %arg11[%c1_287, %c1_288, %c0_289, %c0_290] : memref<2x4x16x128xbf16, #tpu.memory_space<vmem>>, vector<1x1x16x128xbf16>
    %458 = vector.shape_cast %457 : vector<1x1x16x128xbf16> to vector<16x128xbf16>
    %cst_291 = arith.constant dense<0.000000e+00> : vector<8x128xf32>
    %459 = tpu.matmul %456, %458, %cst_291 {dimension_numbers = #tpu.dot_dimension_numbers<[1], [0], [0], [1], [0, 0, 1, 1], [], []>} : vector<8x16xbf16>, vector<16x128xbf16>, vector<8x128xf32> -> vector<8x128xf32>
    %460 = arith.addf %416, %459 : vector<8x128xf32>
    %c1_292 = arith.constant 1 : index
    %c2_293 = arith.constant 2 : index
    %c0_294 = arith.constant 0 : index
    %c0_295 = arith.constant 0 : index
    %461 = vector.load %arg5[%c1_292, %c2_293, %c0_294, %c0_295] : memref<2x4x128x16xbf16, #tpu.memory_space<vmem>>, vector<1x1x128x16xbf16>
    %462 = vector.shape_cast %461 : vector<1x1x128x16xbf16> to vector<128x16xbf16>
    %cst_296 = arith.constant dense<0.000000e+00> : vector<8x16xf32>
    %463 = tpu.matmul %371, %462, %cst_296 {dimension_numbers = #tpu.dot_dimension_numbers<[1], [0], [0], [1], [0, 0, 1, 1], [], []>} : vector<8x128xbf16>, vector<128x16xbf16>, vector<8x16xf32> -> vector<8x16xf32>
    %c1_297 = arith.constant 1 : index
    %c2_298 = arith.constant 2 : index
    %c0_299 = arith.constant 0 : index
    %c0_300 = arith.constant 0 : index
    %464 = vector.load %arg6[%c1_297, %c2_298, %c0_299, %c0_300] : memref<2x4x1x16xf32, #tpu.memory_space<vmem>>, vector<1x1x1x16xf32>
    %465 = vector.shape_cast %464 : vector<1x1x1x16xf32> to vector<1x16xf32>
    %466 = vector.broadcast %465 : vector<1x16xf32> to vector<8x16xf32>
    %467 = arith.addf %463, %466 : vector<8x16xf32>
    %468 = arith.truncf %467 : vector<8x16xf32> to vector<8x16xbf16>
    %c1_301 = arith.constant 1 : index
    %c2_302 = arith.constant 2 : index
    %c0_303 = arith.constant 0 : index
    %c0_304 = arith.constant 0 : index
    %469 = vector.load %arg7[%c1_301, %c2_302, %c0_303, %c0_304] : memref<2x4x128x16xbf16, #tpu.memory_space<vmem>>, vector<1x1x128x16xbf16>
    %470 = vector.shape_cast %469 : vector<1x1x128x16xbf16> to vector<128x16xbf16>
    %cst_305 = arith.constant dense<0.000000e+00> : vector<8x16xf32>
    %471 = tpu.matmul %371, %470, %cst_305 {dimension_numbers = #tpu.dot_dimension_numbers<[1], [0], [0], [1], [0, 0, 1, 1], [], []>} : vector<8x128xbf16>, vector<128x16xbf16>, vector<8x16xf32> -> vector<8x16xf32>
    %c1_306 = arith.constant 1 : index
    %c2_307 = arith.constant 2 : index
    %c0_308 = arith.constant 0 : index
    %c0_309 = arith.constant 0 : index
    %472 = vector.load %arg8[%c1_306, %c2_307, %c0_308, %c0_309] : memref<2x4x1x16xf32, #tpu.memory_space<vmem>>, vector<1x1x1x16xf32>
    %473 = vector.shape_cast %472 : vector<1x1x1x16xf32> to vector<1x16xf32>
    %474 = vector.broadcast %473 : vector<1x16xf32> to vector<8x16xf32>
    %475 = arith.addf %471, %474 : vector<8x16xf32>
    %476 = arith.truncf %475 : vector<8x16xf32> to vector<8x16xbf16>
    %c1_310 = arith.constant 1 : index
    %c2_311 = arith.constant 2 : index
    %c0_312 = arith.constant 0 : index
    %c0_313 = arith.constant 0 : index
    %477 = vector.load %arg9[%c1_310, %c2_311, %c0_312, %c0_313] : memref<2x4x128x16xbf16, #tpu.memory_space<vmem>>, vector<1x1x128x16xbf16>
    %478 = vector.shape_cast %477 : vector<1x1x128x16xbf16> to vector<128x16xbf16>
    %cst_314 = arith.constant dense<0.000000e+00> : vector<8x16xf32>
    %479 = tpu.matmul %371, %478, %cst_314 {dimension_numbers = #tpu.dot_dimension_numbers<[1], [0], [0], [1], [0, 0, 1, 1], [], []>} : vector<8x128xbf16>, vector<128x16xbf16>, vector<8x16xf32> -> vector<8x16xf32>
    %c1_315 = arith.constant 1 : index
    %c2_316 = arith.constant 2 : index
    %c0_317 = arith.constant 0 : index
    %c0_318 = arith.constant 0 : index
    %480 = vector.load %arg10[%c1_315, %c2_316, %c0_317, %c0_318] : memref<2x4x1x16xf32, #tpu.memory_space<vmem>>, vector<1x1x1x16xf32>
    %481 = vector.shape_cast %480 : vector<1x1x1x16xf32> to vector<1x16xf32>
    %482 = vector.broadcast %481 : vector<1x16xf32> to vector<8x16xf32>
    %483 = arith.addf %479, %482 : vector<8x16xf32>
    %484 = arith.truncf %483 : vector<8x16xf32> to vector<8x16xbf16>
    %cst_319 = arith.constant dense<0.000000e+00> : vector<8x8xf32>
    %485 = tpu.matmul %468, %476, %cst_319 {dimension_numbers = #tpu.dot_dimension_numbers<[1], [1], [0], [0], [0, 0, 1, 0], [], []>} : vector<8x16xbf16>, vector<8x16xbf16>, vector<8x8xf32> -> vector<8x8xf32>
    %486 = vector.broadcast %73 : vector<1x8xf32> to vector<8x8xf32>
    %487 = arith.addf %485, %486 : vector<8x8xf32>
    %cst_320 = arith.constant dense<0xFF800000> : vector<8xf32>
    %488 = vector.multi_reduction <maximumf>, %487, %cst_320 [1] : vector<8x8xf32> to vector<8xf32>
    %489 = vector.shape_cast %488 : vector<8xf32> to vector<8x1xf32>
    %490 = vector.broadcast %489 : vector<8x1xf32> to vector<8x8xf32>
    %491 = arith.subf %487, %490 : vector<8x8xf32>
    %492 = math.exp %491 : vector<8x8xf32>
    %cst_321 = arith.constant dense<0.000000e+00> : vector<8xf32>
    %493 = vector.multi_reduction <add>, %492, %cst_321 [1] : vector<8x8xf32> to vector<8xf32>
    %494 = vector.shape_cast %493 : vector<8xf32> to vector<8x1xf32>
    %495 = tpu.reciprocal %494 {approx = true} : vector<8x1xf32> -> vector<8x1xf32>
    %496 = vector.broadcast %495 : vector<8x1xf32> to vector<8x8xf32>
    %497 = arith.mulf %492, %496 : vector<8x8xf32>
    %498 = arith.truncf %497 : vector<8x8xf32> to vector<8x8xbf16>
    %cst_322 = arith.constant dense<0.000000e+00> : vector<8x16xf32>
    %499 = tpu.matmul %498, %484, %cst_322 {dimension_numbers = #tpu.dot_dimension_numbers<[1], [0], [0], [1], [0, 0, 1, 1], [], []>} : vector<8x8xbf16>, vector<8x16xbf16>, vector<8x16xf32> -> vector<8x16xf32>
    %500 = arith.truncf %499 : vector<8x16xf32> to vector<8x16xbf16>
    %c1_323 = arith.constant 1 : index
    %c2_324 = arith.constant 2 : index
    %c0_325 = arith.constant 0 : index
    %c0_326 = arith.constant 0 : index
    %501 = vector.load %arg11[%c1_323, %c2_324, %c0_325, %c0_326] : memref<2x4x16x128xbf16, #tpu.memory_space<vmem>>, vector<1x1x16x128xbf16>
    %502 = vector.shape_cast %501 : vector<1x1x16x128xbf16> to vector<16x128xbf16>
    %cst_327 = arith.constant dense<0.000000e+00> : vector<8x128xf32>
    %503 = tpu.matmul %500, %502, %cst_327 {dimension_numbers = #tpu.dot_dimension_numbers<[1], [0], [0], [1], [0, 0, 1, 1], [], []>} : vector<8x16xbf16>, vector<16x128xbf16>, vector<8x128xf32> -> vector<8x128xf32>
    %504 = arith.addf %460, %503 : vector<8x128xf32>
    %c1_328 = arith.constant 1 : index
    %c3_329 = arith.constant 3 : index
    %c0_330 = arith.constant 0 : index
    %c0_331 = arith.constant 0 : index
    %505 = vector.load %arg5[%c1_328, %c3_329, %c0_330, %c0_331] : memref<2x4x128x16xbf16, #tpu.memory_space<vmem>>, vector<1x1x128x16xbf16>
    %506 = vector.shape_cast %505 : vector<1x1x128x16xbf16> to vector<128x16xbf16>
    %cst_332 = arith.constant dense<0.000000e+00> : vector<8x16xf32>
    %507 = tpu.matmul %371, %506, %cst_332 {dimension_numbers = #tpu.dot_dimension_numbers<[1], [0], [0], [1], [0, 0, 1, 1], [], []>} : vector<8x128xbf16>, vector<128x16xbf16>, vector<8x16xf32> -> vector<8x16xf32>
    %c1_333 = arith.constant 1 : index
    %c3_334 = arith.constant 3 : index
    %c0_335 = arith.constant 0 : index
    %c0_336 = arith.constant 0 : index
    %508 = vector.load %arg6[%c1_333, %c3_334, %c0_335, %c0_336] : memref<2x4x1x16xf32, #tpu.memory_space<vmem>>, vector<1x1x1x16xf32>
    %509 = vector.shape_cast %508 : vector<1x1x1x16xf32> to vector<1x16xf32>
    %510 = vector.broadcast %509 : vector<1x16xf32> to vector<8x16xf32>
    %511 = arith.addf %507, %510 : vector<8x16xf32>
    %512 = arith.truncf %511 : vector<8x16xf32> to vector<8x16xbf16>
    %c1_337 = arith.constant 1 : index
    %c3_338 = arith.constant 3 : index
    %c0_339 = arith.constant 0 : index
    %c0_340 = arith.constant 0 : index
    %513 = vector.load %arg7[%c1_337, %c3_338, %c0_339, %c0_340] : memref<2x4x128x16xbf16, #tpu.memory_space<vmem>>, vector<1x1x128x16xbf16>
    %514 = vector.shape_cast %513 : vector<1x1x128x16xbf16> to vector<128x16xbf16>
    %cst_341 = arith.constant dense<0.000000e+00> : vector<8x16xf32>
    %515 = tpu.matmul %371, %514, %cst_341 {dimension_numbers = #tpu.dot_dimension_numbers<[1], [0], [0], [1], [0, 0, 1, 1], [], []>} : vector<8x128xbf16>, vector<128x16xbf16>, vector<8x16xf32> -> vector<8x16xf32>
    %c1_342 = arith.constant 1 : index
    %c3_343 = arith.constant 3 : index
    %c0_344 = arith.constant 0 : index
    %c0_345 = arith.constant 0 : index
    %516 = vector.load %arg8[%c1_342, %c3_343, %c0_344, %c0_345] : memref<2x4x1x16xf32, #tpu.memory_space<vmem>>, vector<1x1x1x16xf32>
    %517 = vector.shape_cast %516 : vector<1x1x1x16xf32> to vector<1x16xf32>
    %518 = vector.broadcast %517 : vector<1x16xf32> to vector<8x16xf32>
    %519 = arith.addf %515, %518 : vector<8x16xf32>
    %520 = arith.truncf %519 : vector<8x16xf32> to vector<8x16xbf16>
    %c1_346 = arith.constant 1 : index
    %c3_347 = arith.constant 3 : index
    %c0_348 = arith.constant 0 : index
    %c0_349 = arith.constant 0 : index
    %521 = vector.load %arg9[%c1_346, %c3_347, %c0_348, %c0_349] : memref<2x4x128x16xbf16, #tpu.memory_space<vmem>>, vector<1x1x128x16xbf16>
    %522 = vector.shape_cast %521 : vector<1x1x128x16xbf16> to vector<128x16xbf16>
    %cst_350 = arith.constant dense<0.000000e+00> : vector<8x16xf32>
    %523 = tpu.matmul %371, %522, %cst_350 {dimension_numbers = #tpu.dot_dimension_numbers<[1], [0], [0], [1], [0, 0, 1, 1], [], []>} : vector<8x128xbf16>, vector<128x16xbf16>, vector<8x16xf32> -> vector<8x16xf32>
    %c1_351 = arith.constant 1 : index
    %c3_352 = arith.constant 3 : index
    %c0_353 = arith.constant 0 : index
    %c0_354 = arith.constant 0 : index
    %524 = vector.load %arg10[%c1_351, %c3_352, %c0_353, %c0_354] : memref<2x4x1x16xf32, #tpu.memory_space<vmem>>, vector<1x1x1x16xf32>
    %525 = vector.shape_cast %524 : vector<1x1x1x16xf32> to vector<1x16xf32>
    %526 = vector.broadcast %525 : vector<1x16xf32> to vector<8x16xf32>
    %527 = arith.addf %523, %526 : vector<8x16xf32>
    %528 = arith.truncf %527 : vector<8x16xf32> to vector<8x16xbf16>
    %cst_355 = arith.constant dense<0.000000e+00> : vector<8x8xf32>
    %529 = tpu.matmul %512, %520, %cst_355 {dimension_numbers = #tpu.dot_dimension_numbers<[1], [1], [0], [0], [0, 0, 1, 0], [], []>} : vector<8x16xbf16>, vector<8x16xbf16>, vector<8x8xf32> -> vector<8x8xf32>
    %530 = vector.broadcast %73 : vector<1x8xf32> to vector<8x8xf32>
    %531 = arith.addf %529, %530 : vector<8x8xf32>
    %cst_356 = arith.constant dense<0xFF800000> : vector<8xf32>
    %532 = vector.multi_reduction <maximumf>, %531, %cst_356 [1] : vector<8x8xf32> to vector<8xf32>
    %533 = vector.shape_cast %532 : vector<8xf32> to vector<8x1xf32>
    %534 = vector.broadcast %533 : vector<8x1xf32> to vector<8x8xf32>
    %535 = arith.subf %531, %534 : vector<8x8xf32>
    %536 = math.exp %535 : vector<8x8xf32>
    %cst_357 = arith.constant dense<0.000000e+00> : vector<8xf32>
    %537 = vector.multi_reduction <add>, %536, %cst_357 [1] : vector<8x8xf32> to vector<8xf32>
    %538 = vector.shape_cast %537 : vector<8xf32> to vector<8x1xf32>
    %539 = tpu.reciprocal %538 {approx = true} : vector<8x1xf32> -> vector<8x1xf32>
    %540 = vector.broadcast %539 : vector<8x1xf32> to vector<8x8xf32>
    %541 = arith.mulf %536, %540 : vector<8x8xf32>
    %542 = arith.truncf %541 : vector<8x8xf32> to vector<8x8xbf16>
    %cst_358 = arith.constant dense<0.000000e+00> : vector<8x16xf32>
    %543 = tpu.matmul %542, %528, %cst_358 {dimension_numbers = #tpu.dot_dimension_numbers<[1], [0], [0], [1], [0, 0, 1, 1], [], []>} : vector<8x8xbf16>, vector<8x16xbf16>, vector<8x16xf32> -> vector<8x16xf32>
    %544 = arith.truncf %543 : vector<8x16xf32> to vector<8x16xbf16>
    %c1_359 = arith.constant 1 : index
    %c3_360 = arith.constant 3 : index
    %c0_361 = arith.constant 0 : index
    %c0_362 = arith.constant 0 : index
    %545 = vector.load %arg11[%c1_359, %c3_360, %c0_361, %c0_362] : memref<2x4x16x128xbf16, #tpu.memory_space<vmem>>, vector<1x1x16x128xbf16>
    %546 = vector.shape_cast %545 : vector<1x1x16x128xbf16> to vector<16x128xbf16>
    %cst_363 = arith.constant dense<0.000000e+00> : vector<8x128xf32>
    %547 = tpu.matmul %544, %546, %cst_363 {dimension_numbers = #tpu.dot_dimension_numbers<[1], [0], [0], [1], [0, 0, 1, 1], [], []>} : vector<8x16xbf16>, vector<16x128xbf16>, vector<8x128xf32> -> vector<8x128xf32>
    %548 = arith.addf %504, %547 : vector<8x128xf32>
    %c1_364 = arith.constant 1 : index
    %c0_365 = arith.constant 0 : index
    %c0_366 = arith.constant 0 : index
    %549 = vector.load %arg12[%c1_364, %c0_365, %c0_366] : memref<2x1x128xf32, #tpu.memory_space<vmem>>, vector<1x1x128xf32>
    %550 = vector.shape_cast %549 : vector<1x1x128xf32> to vector<1x128xf32>
    %551 = vector.broadcast %550 : vector<1x128xf32> to vector<8x128xf32>
    %552 = arith.addf %548, %551 : vector<8x128xf32>
    %553 = arith.addf %370, %552 : vector<8x128xf32>
    %c1_367 = arith.constant 1 : index
    %c0_368 = arith.constant 0 : index
    %c0_369 = arith.constant 0 : index
    %554 = vector.load %arg13[%c1_367, %c0_368, %c0_369] : memref<2x1x128xf32, #tpu.memory_space<vmem>>, vector<1x1x128xf32>
    %555 = vector.shape_cast %554 : vector<1x1x128xf32> to vector<1x128xf32>
    %c1_370 = arith.constant 1 : index
    %c0_371 = arith.constant 0 : index
    %c0_372 = arith.constant 0 : index
    %556 = vector.load %arg14[%c1_370, %c0_371, %c0_372] : memref<2x1x128xf32, #tpu.memory_space<vmem>>, vector<1x1x128xf32>
    %557 = vector.shape_cast %556 : vector<1x1x128xf32> to vector<1x128xf32>
    %cst_373 = arith.constant dense<0.000000e+00> : vector<8xf32>
    %558 = vector.multi_reduction <add>, %553, %cst_373 [1] : vector<8x128xf32> to vector<8xf32>
    %559 = vector.shape_cast %558 : vector<8xf32> to vector<8x1xf32>
    %cst_374 = arith.constant 1.562500e-02 : f32
    %560 = vector.broadcast %cst_374 : f32 to vector<8x1xf32>
    %561 = arith.mulf %559, %560 : vector<8x1xf32>
    %562 = arith.mulf %553, %553 : vector<8x128xf32>
    %cst_375 = arith.constant dense<0.000000e+00> : vector<8xf32>
    %563 = vector.multi_reduction <add>, %562, %cst_375 [1] : vector<8x128xf32> to vector<8xf32>
    %564 = vector.shape_cast %563 : vector<8xf32> to vector<8x1xf32>
    %cst_376 = arith.constant 1.562500e-02 : f32
    %565 = vector.broadcast %cst_376 : f32 to vector<8x1xf32>
    %566 = arith.mulf %564, %565 : vector<8x1xf32>
    %567 = arith.mulf %561, %561 : vector<8x1xf32>
    %568 = arith.subf %566, %567 : vector<8x1xf32>
    %cst_377 = arith.constant 0.000000e+00 : f32
    %569 = vector.broadcast %cst_377 : f32 to vector<8x1xf32>
    %570 = arith.maximumf %568, %569 : vector<8x1xf32>
    %571 = vector.broadcast %561 : vector<8x1xf32> to vector<8x128xf32>
    %572 = arith.subf %553, %571 : vector<8x128xf32>
    %cst_378 = arith.constant 9.99999996E-13 : f32
    %573 = vector.broadcast %cst_378 : f32 to vector<8x1xf32>
    %574 = arith.addf %570, %573 : vector<8x1xf32>
    %575 = math.rsqrt %574 : vector<8x1xf32>
    %576 = vector.broadcast %575 : vector<8x1xf32> to vector<8x128xf32>
    %577 = arith.mulf %572, %576 : vector<8x128xf32>
    %578 = vector.broadcast %555 : vector<1x128xf32> to vector<8x128xf32>
    %579 = arith.mulf %577, %578 : vector<8x128xf32>
    %580 = vector.broadcast %557 : vector<1x128xf32> to vector<8x128xf32>
    %581 = arith.addf %579, %580 : vector<8x128xf32>
    %582 = arith.truncf %581 : vector<8x128xf32> to vector<8x128xbf16>
    %c1_379 = arith.constant 1 : index
    %c0_380 = arith.constant 0 : index
    %c0_381 = arith.constant 0 : index
    %583 = vector.load %arg15[%c1_379, %c0_380, %c0_381] : memref<2x128x128xbf16, #tpu.memory_space<vmem>>, vector<1x128x128xbf16>
    %584 = vector.shape_cast %583 : vector<1x128x128xbf16> to vector<128x128xbf16>
    %cst_382 = arith.constant dense<0.000000e+00> : vector<8x128xf32>
    %585 = tpu.matmul %582, %584, %cst_382 {dimension_numbers = #tpu.dot_dimension_numbers<[1], [0], [0], [1], [0, 0, 1, 1], [], []>} : vector<8x128xbf16>, vector<128x128xbf16>, vector<8x128xf32> -> vector<8x128xf32>
    %c1_383 = arith.constant 1 : index
    %c0_384 = arith.constant 0 : index
    %c0_385 = arith.constant 0 : index
    %586 = vector.load %arg16[%c1_383, %c0_384, %c0_385] : memref<2x1x128xf32, #tpu.memory_space<vmem>>, vector<1x1x128xf32>
    %587 = vector.shape_cast %586 : vector<1x1x128xf32> to vector<1x128xf32>
    %588 = vector.broadcast %587 : vector<1x128xf32> to vector<8x128xf32>
    %589 = arith.addf %585, %588 : vector<8x128xf32>
    %590 = arith.mulf %589, %589 : vector<8x128xf32>
    %591 = arith.mulf %589, %590 : vector<8x128xf32>
    %cst_386 = arith.constant 4.471500e-02 : f32
    %592 = vector.broadcast %cst_386 : f32 to vector<8x128xf32>
    %593 = arith.mulf %592, %591 : vector<8x128xf32>
    %594 = arith.addf %589, %593 : vector<8x128xf32>
    %cst_387 = arith.constant 0.797884583 : f32
    %595 = vector.broadcast %cst_387 : f32 to vector<8x128xf32>
    %596 = arith.mulf %595, %594 : vector<8x128xf32>
    %597 = math.tanh %596 : vector<8x128xf32>
    %cst_388 = arith.constant 1.000000e+00 : f32
    %598 = vector.broadcast %cst_388 : f32 to vector<8x128xf32>
    %599 = arith.addf %598, %597 : vector<8x128xf32>
    %cst_389 = arith.constant 5.000000e-01 : f32
    %600 = vector.broadcast %cst_389 : f32 to vector<8x128xf32>
    %601 = arith.mulf %600, %599 : vector<8x128xf32>
    %602 = arith.mulf %589, %601 : vector<8x128xf32>
    %603 = arith.truncf %602 : vector<8x128xf32> to vector<8x128xbf16>
    %c1_390 = arith.constant 1 : index
    %c0_391 = arith.constant 0 : index
    %c0_392 = arith.constant 0 : index
    %604 = vector.load %arg17[%c1_390, %c0_391, %c0_392] : memref<2x128x128xbf16, #tpu.memory_space<vmem>>, vector<1x128x128xbf16>
    %605 = vector.shape_cast %604 : vector<1x128x128xbf16> to vector<128x128xbf16>
    %cst_393 = arith.constant dense<0.000000e+00> : vector<8x128xf32>
    %606 = tpu.matmul %603, %605, %cst_393 {dimension_numbers = #tpu.dot_dimension_numbers<[1], [0], [0], [1], [0, 0, 1, 1], [], []>} : vector<8x128xbf16>, vector<128x128xbf16>, vector<8x128xf32> -> vector<8x128xf32>
    %c1_394 = arith.constant 1 : index
    %c0_395 = arith.constant 0 : index
    %c0_396 = arith.constant 0 : index
    %607 = vector.load %arg18[%c1_394, %c0_395, %c0_396] : memref<2x1x128xf32, #tpu.memory_space<vmem>>, vector<1x1x128xf32>
    %608 = vector.shape_cast %607 : vector<1x1x128xf32> to vector<1x128xf32>
    %609 = vector.broadcast %608 : vector<1x128xf32> to vector<8x128xf32>
    %610 = arith.addf %606, %609 : vector<8x128xf32>
    %611 = arith.addf %581, %610 : vector<8x128xf32>
    %c1_397 = arith.constant 1 : index
    %c0_398 = arith.constant 0 : index
    %c0_399 = arith.constant 0 : index
    %612 = vector.load %arg19[%c1_397, %c0_398, %c0_399] : memref<2x1x128xf32, #tpu.memory_space<vmem>>, vector<1x1x128xf32>
    %613 = vector.shape_cast %612 : vector<1x1x128xf32> to vector<1x128xf32>
    %c1_400 = arith.constant 1 : index
    %c0_401 = arith.constant 0 : index
    %c0_402 = arith.constant 0 : index
    %614 = vector.load %arg20[%c1_400, %c0_401, %c0_402] : memref<2x1x128xf32, #tpu.memory_space<vmem>>, vector<1x1x128xf32>
    %615 = vector.shape_cast %614 : vector<1x1x128xf32> to vector<1x128xf32>
    %cst_403 = arith.constant dense<0.000000e+00> : vector<8xf32>
    %616 = vector.multi_reduction <add>, %611, %cst_403 [1] : vector<8x128xf32> to vector<8xf32>
    %617 = vector.shape_cast %616 : vector<8xf32> to vector<8x1xf32>
    %cst_404 = arith.constant 1.562500e-02 : f32
    %618 = vector.broadcast %cst_404 : f32 to vector<8x1xf32>
    %619 = arith.mulf %617, %618 : vector<8x1xf32>
    %620 = arith.mulf %611, %611 : vector<8x128xf32>
    %cst_405 = arith.constant dense<0.000000e+00> : vector<8xf32>
    %621 = vector.multi_reduction <add>, %620, %cst_405 [1] : vector<8x128xf32> to vector<8xf32>
    %622 = vector.shape_cast %621 : vector<8xf32> to vector<8x1xf32>
    %cst_406 = arith.constant 1.562500e-02 : f32
    %623 = vector.broadcast %cst_406 : f32 to vector<8x1xf32>
    %624 = arith.mulf %622, %623 : vector<8x1xf32>
    %625 = arith.mulf %619, %619 : vector<8x1xf32>
    %626 = arith.subf %624, %625 : vector<8x1xf32>
    %cst_407 = arith.constant 0.000000e+00 : f32
    %627 = vector.broadcast %cst_407 : f32 to vector<8x1xf32>
    %628 = arith.maximumf %626, %627 : vector<8x1xf32>
    %629 = vector.broadcast %619 : vector<8x1xf32> to vector<8x128xf32>
    %630 = arith.subf %611, %629 : vector<8x128xf32>
    %cst_408 = arith.constant 9.99999996E-13 : f32
    %631 = vector.broadcast %cst_408 : f32 to vector<8x1xf32>
    %632 = arith.addf %628, %631 : vector<8x1xf32>
    %633 = math.rsqrt %632 : vector<8x1xf32>
    %634 = vector.broadcast %633 : vector<8x1xf32> to vector<8x128xf32>
    %635 = arith.mulf %630, %634 : vector<8x128xf32>
    %636 = vector.broadcast %613 : vector<1x128xf32> to vector<8x128xf32>
    %637 = arith.mulf %635, %636 : vector<8x128xf32>
    %638 = vector.broadcast %615 : vector<1x128xf32> to vector<8x128xf32>
    %639 = arith.addf %637, %638 : vector<8x128xf32>
    %640 = vector.extract_strided_slice %639 {offsets = [0, 0], sizes = [1, 128], strides = [1, 1]} : vector<8x128xf32> to vector<1x128xf32>
    %c0_409 = arith.constant 0 : index
    %c0_410 = arith.constant 0 : index
    %c0_411 = arith.constant 0 : index
    %641 = vector.load %arg21[%c0_409, %c0_410, %c0_411] : memref<1x1x128xf32, #tpu.memory_space<vmem>>, vector<1x1x128xf32>
    %642 = vector.shape_cast %641 : vector<1x1x128xf32> to vector<1x128xf32>
    %643 = vector.shape_cast %640 : vector<1x128xf32> to vector<1x1x128xf32>
    tpu.vector_store %arg21[%c0_409, %c0_410, %c0_411], %643 {strides = array<i32>} : memref<1x1x128xf32, #tpu.memory_space<vmem>>, vector<1x1x128xf32>,
    return
  }
  func.func @transform_0(%arg0: i32, %arg1: memref<2x8xi32, #tpu.memory_space<smem>>) -> (i32, i32, i32) {
    %c0_i32 = arith.constant 0 : i32
    %c0_i32_0 = arith.constant 0 : i32
    %c0_i32_1 = arith.constant 0 : i32
    return %arg0, %c0_i32, %c0_i32_0 : i32, i32, i32
  }
  func.func @transform_1(%arg0: i32, %arg1: memref<2x8xi32, #tpu.memory_space<smem>>) -> (i32, i32) {
    %c0_i32 = arith.constant 0 : i32
    %c0_i32_0 = arith.constant 0 : i32
    %c0_i32_1 = arith.constant 0 : i32
    return %c0_i32, %c0_i32_0 : i32, i32
  }
  func.func @transform_2(%arg0: i32, %arg1: memref<2x8xi32, #tpu.memory_space<smem>>) -> (i32, i32) {
    %c0_i32 = arith.constant 0 : i32
    %c0_i32_0 = arith.constant 0 : i32
    %c0_i32_1 = arith.constant 0 : i32
    return %c0_i32, %c0_i32_0 : i32, i32
  }
  func.func @transform_3(%arg0: i32, %arg1: memref<2x8xi32, #tpu.memory_space<smem>>) -> (i32, i32, i32, i32) {
    %c0_i32 = arith.constant 0 : i32
    %c0_i32_0 = arith.constant 0 : i32
    %c0_i32_1 = arith.constant 0 : i32
    %c0_i32_2 = arith.constant 0 : i32
    %c0_i32_3 = arith.constant 0 : i32
    return %c0_i32, %c0_i32_0, %c0_i32_1, %c0_i32_2 : i32, i32, i32, i32
  }
  func.func @transform_4(%arg0: i32, %arg1: memref<2x8xi32, #tpu.memory_space<smem>>) -> (i32, i32, i32, i32) {
    %c0_i32 = arith.constant 0 : i32
    %c0_i32_0 = arith.constant 0 : i32
    %c0_i32_1 = arith.constant 0 : i32
    %c0_i32_2 = arith.constant 0 : i32
    %c0_i32_3 = arith.constant 0 : i32
    return %c0_i32, %c0_i32_0, %c0_i32_1, %c0_i32_2 : i32, i32, i32, i32
  }
  func.func @transform_5(%arg0: i32, %arg1: memref<2x8xi32, #tpu.memory_space<smem>>) -> (i32, i32, i32, i32) {
    %c0_i32 = arith.constant 0 : i32
    %c0_i32_0 = arith.constant 0 : i32
    %c0_i32_1 = arith.constant 0 : i32
    %c0_i32_2 = arith.constant 0 : i32
    %c0_i32_3 = arith.constant 0 : i32
    return %c0_i32, %c0_i32_0, %c0_i32_1, %c0_i32_2 : i32, i32, i32, i32
  }
  func.func @transform_6(%arg0: i32, %arg1: memref<2x8xi32, #tpu.memory_space<smem>>) -> (i32, i32, i32, i32) {
    %c0_i32 = arith.constant 0 : i32
    %c0_i32_0 = arith.constant 0 : i32
    %c0_i32_1 = arith.constant 0 : i32
    %c0_i32_2 = arith.constant 0 : i32
    %c0_i32_3 = arith.constant 0 : i32
    return %c0_i32, %c0_i32_0, %c0_i32_1, %c0_i32_2 : i32, i32, i32, i32
  }
  func.func @transform_7(%arg0: i32, %arg1: memref<2x8xi32, #tpu.memory_space<smem>>) -> (i32, i32, i32, i32) {
    %c0_i32 = arith.constant 0 : i32
    %c0_i32_0 = arith.constant 0 : i32
    %c0_i32_1 = arith.constant 0 : i32
    %c0_i32_2 = arith.constant 0 : i32
    %c0_i32_3 = arith.constant 0 : i32
    return %c0_i32, %c0_i32_0, %c0_i32_1, %c0_i32_2 : i32, i32, i32, i32
  }
  func.func @transform_8(%arg0: i32, %arg1: memref<2x8xi32, #tpu.memory_space<smem>>) -> (i32, i32, i32, i32) {
    %c0_i32 = arith.constant 0 : i32
    %c0_i32_0 = arith.constant 0 : i32
    %c0_i32_1 = arith.constant 0 : i32
    %c0_i32_2 = arith.constant 0 : i32
    %c0_i32_3 = arith.constant 0 : i32
    return %c0_i32, %c0_i32_0, %c0_i32_1, %c0_i32_2 : i32, i32, i32, i32
  }
  func.func @transform_9(%arg0: i32, %arg1: memref<2x8xi32, #tpu.memory_space<smem>>) -> (i32, i32, i32, i32) {
    %c0_i32 = arith.constant 0 : i32
    %c0_i32_0 = arith.constant 0 : i32
    %c0_i32_1 = arith.constant 0 : i32
    %c0_i32_2 = arith.constant 0 : i32
    %c0_i32_3 = arith.constant 0 : i32
    return %c0_i32, %c0_i32_0, %c0_i32_1, %c0_i32_2 : i32, i32, i32, i32
  }
  func.func @transform_10(%arg0: i32, %arg1: memref<2x8xi32, #tpu.memory_space<smem>>) -> (i32, i32, i32) {
    %c0_i32 = arith.constant 0 : i32
    %c0_i32_0 = arith.constant 0 : i32
    %c0_i32_1 = arith.constant 0 : i32
    %c0_i32_2 = arith.constant 0 : i32
    return %c0_i32, %c0_i32_0, %c0_i32_1 : i32, i32, i32
  }
  func.func @transform_11(%arg0: i32, %arg1: memref<2x8xi32, #tpu.memory_space<smem>>) -> (i32, i32, i32) {
    %c0_i32 = arith.constant 0 : i32
    %c0_i32_0 = arith.constant 0 : i32
    %c0_i32_1 = arith.constant 0 : i32
    %c0_i32_2 = arith.constant 0 : i32
    return %c0_i32, %c0_i32_0, %c0_i32_1 : i32, i32, i32
  }
  func.func @transform_12(%arg0: i32, %arg1: memref<2x8xi32, #tpu.memory_space<smem>>) -> (i32, i32, i32) {
    %c0_i32 = arith.constant 0 : i32
    %c0_i32_0 = arith.constant 0 : i32
    %c0_i32_1 = arith.constant 0 : i32
    %c0_i32_2 = arith.constant 0 : i32
    return %c0_i32, %c0_i32_0, %c0_i32_1 : i32, i32, i32
  }
  func.func @transform_13(%arg0: i32, %arg1: memref<2x8xi32, #tpu.memory_space<smem>>) -> (i32, i32, i32) {
    %c0_i32 = arith.constant 0 : i32
    %c0_i32_0 = arith.constant 0 : i32
    %c0_i32_1 = arith.constant 0 : i32
    %c0_i32_2 = arith.constant 0 : i32
    return %c0_i32, %c0_i32_0, %c0_i32_1 : i32, i32, i32
  }
  func.func @transform_14(%arg0: i32, %arg1: memref<2x8xi32, #tpu.memory_space<smem>>) -> (i32, i32, i32) {
    %c0_i32 = arith.constant 0 : i32
    %c0_i32_0 = arith.constant 0 : i32
    %c0_i32_1 = arith.constant 0 : i32
    %c0_i32_2 = arith.constant 0 : i32
    return %c0_i32, %c0_i32_0, %c0_i32_1 : i32, i32, i32
  }
  func.func @transform_15(%arg0: i32, %arg1: memref<2x8xi32, #tpu.memory_space<smem>>) -> (i32, i32, i32) {
    %c0_i32 = arith.constant 0 : i32
    %c0_i32_0 = arith.constant 0 : i32
    %c0_i32_1 = arith.constant 0 : i32
    %c0_i32_2 = arith.constant 0 : i32
    return %c0_i32, %c0_i32_0, %c0_i32_1 : i32, i32, i32
  }
  func.func @transform_16(%arg0: i32, %arg1: memref<2x8xi32, #tpu.memory_space<smem>>) -> (i32, i32, i32) {
    %c0_i32 = arith.constant 0 : i32
    %c0_i32_0 = arith.constant 0 : i32
    %c0_i32_1 = arith.constant 0 : i32
    %c0_i32_2 = arith.constant 0 : i32
    return %c0_i32, %c0_i32_0, %c0_i32_1 : i32, i32, i32
  }
  func.func @transform_17(%arg0: i32, %arg1: memref<2x8xi32, #tpu.memory_space<smem>>) -> (i32, i32, i32) {
    %c0_i32 = arith.constant 0 : i32
    %c0_i32_0 = arith.constant 0 : i32
    %c0_i32_1 = arith.constant 0 : i32
    %c0_i32_2 = arith.constant 0 : i32
    return %c0_i32, %c0_i32_0, %c0_i32_1 : i32, i32, i32
  }
  func.func @transform_18(%arg0: i32, %arg1: memref<2x8xi32, #tpu.memory_space<smem>>) -> (i32, i32, i32) {
    %c0_i32 = arith.constant 0 : i32
    %c0_i32_0 = arith.constant 0 : i32
    %c0_i32_1 = arith.constant 0 : i32
    %c0_i32_2 = arith.constant 0 : i32
    return %c0_i32, %c0_i32_0, %c0_i32_1 : i32, i32, i32
  }
  func.func @transform_19(%arg0: i32, %arg1: memref<2x8xi32, #tpu.memory_space<smem>>) -> (i32, i32, i32) {
    %c0_i32 = arith.constant 0 : i32
    %c0_i32_0 = arith.constant 0 : i32
    %c0_i32_1 = arith.constant 0 : i32
    return %arg0, %c0_i32, %c0_i32_0 : i32, i32, i32
  }
}

</mosaic_0001>

<llo_original>
// kernel: tpu_custom_call.1
$region0: #{tpu_custom_call.1}
  #allocation0 [shape = 'u32[]', space=smem, size = 0x4, offset = 0x4, fixed_abs, tag = 'smem constant byte address 0x4 - core index']
  #allocation1 [shape = 'u32[144,128]{1,0:T(1,128)}', space=vmem, size = 0x12000, scoped, tag = 'internal scratch']
  #allocation2 [shape = 's32[1]{0}', space=sflag, size = 0x4, scoped, tag = 'scoped memory for tpu_custom_call.1']
  #allocation3 [shape = 'u8[1024]{0}', space=smem, size = 0x400, scoped, tag = 'prefetched SMEM operand 0']
  %s0 = inlined_call_operand.vmem [shape: s32[2,8], index: 0, kind: input, shape index: {}]
  %s1 = inlined_call_operand.vmem [shape: f32[2,8,128], index: 1, kind: input, shape index: {}]
  %s2 = inlined_call_operand.vmem [shape: f32[1,128], index: 2, kind: input, shape index: {}]
  %s3 = inlined_call_operand.vmem [shape: f32[1,128], index: 3, kind: input, shape index: {}]
  %s4 = inlined_call_operand.vmem [shape: bf16[2,4,128,16], index: 4, kind: input, shape index: {}]
  %s5 = inlined_call_operand.vmem [shape: f32[2,4,1,16], index: 5, kind: input, shape index: {}]
  %s6 = inlined_call_operand.vmem [shape: bf16[2,4,128,16], index: 6, kind: input, shape index: {}]
  %s7 = inlined_call_operand.vmem [shape: f32[2,4,1,16], index: 7, kind: input, shape index: {}]
  %s8 = inlined_call_operand.vmem [shape: bf16[2,4,128,16], index: 8, kind: input, shape index: {}]
  %s9 = inlined_call_operand.vmem [shape: f32[2,4,1,16], index: 9, kind: input, shape index: {}]
  %s10 = inlined_call_operand.vmem [shape: bf16[2,4,16,128], index: 10, kind: input, shape index: {}]
  %s11 = inlined_call_operand.vmem [shape: f32[2,1,128], index: 11, kind: input, shape index: {}]
  %s12 = inlined_call_operand.vmem [shape: f32[2,1,128], index: 12, kind: input, shape index: {}]
  %s13 = inlined_call_operand.vmem [shape: f32[2,1,128], index: 13, kind: input, shape index: {}]
  %s14 = inlined_call_operand.vmem [shape: bf16[2,128,128], index: 14, kind: input, shape index: {}]
  %s15 = inlined_call_operand.vmem [shape: f32[2,1,128], index: 15, kind: input, shape index: {}]
  %s16 = inlined_call_operand.vmem [shape: bf16[2,128,128], index: 16, kind: input, shape index: {}]
  %s17 = inlined_call_operand.vmem [shape: f32[2,1,128], index: 17, kind: input, shape index: {}]
  %s18 = inlined_call_operand.vmem [shape: f32[2,1,128], index: 18, kind: input, shape index: {}]
  %s19 = inlined_call_operand.vmem [shape: f32[2,1,128], index: 19, kind: input, shape index: {}]
  %s20 = inlined_call_operand.hbm [shape: f32[2,1,128], index: 20, kind: output, shape index: {}]
  %s21 = sld [smem:[#allocation0]]
  $region109: #{tpu_custom_call.1} parent=0
    _
  %s23 = ssub.s32 1, %s21
  %s24 = scalar_select 0, %s23, %s21
  %s25 = sshll.u32 %s0, 4
  %s26 = int_to_ptr.vmem [resolvable:$true] %s25
  %28 = dma.vmem_to_smem %s26, 32, [#allocation3], [#allocation2]
  %29 = dma.done [#allocation2], 32
  %30 = sfence
  $region1: #{tpu_custom_call.1} parent=0
    #allocation4 [shape = 'u8[1024]{0}', space=vmem, size = 0x400, scoped, tag = 'output window, operand 0']
    #allocation5 [shape = 's32[2]{0}', space=sflag, size = 0x8, scoped, tag = 'scoped memory for tpu_custom_call.1']
    %31 = vsyncpa [#allocation5], 0
    %s32 = scalar_lea.sflag [#allocation5], 1
    %33 = vsyncpa %s32, 0
    loop: start=0, step=1, limit=4
    $region2: #{tpu_custom_call.1} parent=1 // loop_pre_header
      _
    $region3: #{tpu_custom_call.1} parent=1 // loop_header
      %s35 = sphi 0, %s39
      %p36 = scmp.ge.s32.totalorder %s35, 4
      %s45 = sphi 0, %s47
      %s48 = sphi 0, %s45
      %s49 = sphi 0, %s48
      %s65 = sphi 0, %s49
      %s69 = sphi 0, %s69
      %s71 = sphi 0, %s69
      %s72 = sphi 0, %s71
      %s86 = sphi 0, %s72
      %s90 = sphi 0, %s90
      %s92 = sphi 0, %s90
      %s93 = sphi 0, %s92
      %s107 = sphi 0, %s93
      %s111 = sphi 0, %s111
      %s113 = sphi 0, %s111
      %s114 = sphi 0, %s113
      %s128 = sphi 0, %s114
      %s132 = sphi 0, %s132
      %s134 = sphi 0, %s132
      %s135 = sphi 0, %s134
      %s149 = sphi 0, %s135
      %s153 = sphi 0, %s153
      %s155 = sphi 0, %s153
      %s156 = sphi 0, %s155
      %s170 = sphi 0, %s156
      %s174 = sphi 0, %s174
      %s176 = sphi 0, %s174
      %s177 = sphi 0, %s176
      %s191 = sphi 0, %s177
      %s195 = sphi 0, %s195
      %s197 = sphi 0, %s195
      %s198 = sphi 0, %s197
      %s212 = sphi 0, %s198
      %s216 = sphi 0, %s216
      %s218 = sphi 0, %s216
      %s219 = sphi 0, %s218
      %s233 = sphi 0, %s219
      %s237 = sphi 0, %s237
      %s239 = sphi 0, %s237
      %s240 = sphi 0, %s239
      %s254 = sphi 0, %s240
      %s258 = sphi 0, %s258
      %s260 = sphi 0, %s258
      %s261 = sphi 0, %s260
      %s275 = sphi 0, %s261
      %s279 = sphi 0, %s279
      %s281 = sphi 0, %s279
      %s282 = sphi 0, %s281
      %s296 = sphi 0, %s282
      %s300 = sphi 0, %s300
      %s302 = sphi 0, %s300
      %s303 = sphi 0, %s302
      %s317 = sphi 0, %s303
      %s321 = sphi 0, %s321
      %s323 = sphi 0, %s321
      %s324 = sphi 0, %s323
      %s338 = sphi 0, %s324
      %s342 = sphi 0, %s342
      %s344 = sphi 0, %s342
      %s345 = sphi 0, %s344
      %s359 = sphi 0, %s345
      %s363 = sphi 0, %s363
      %s365 = sphi 0, %s363
      %s366 = sphi 0, %s365
      %s380 = sphi 0, %s366
      %s384 = sphi 0, %s384
      %s386 = sphi 0, %s384
      %s387 = sphi 0, %s386
      %s401 = sphi 0, %s387
      %s405 = sphi 0, %s405
      %s407 = sphi 0, %s405
      %s408 = sphi 0, %s407
      %s422 = sphi 0, %s408
      %s426 = sphi 0, %s426
      %s428 = sphi 0, %s426
      %s429 = sphi 0, %s428
      %s443 = sphi 0, %s429
      %s449 = sphi 0, %s451
      %s452 = sphi 0, %s449
      %s453 = sphi 0, %s452
      %s469 = sphi 0, %s453
    $region4: #{tpu_custom_call.1} parent=1 // loop_header_branch
      %38 = sbr.rel (%p36) target = $region8
    $region5: #{tpu_custom_call.1} parent=1 // loop_body
      %s40 = ssub.s32 %s35, 1
      %s41 = ssub.s32 %s35, 2
      %s42 = sadd.s32 %s35, 1
      %s43 = ssub.s32 %s35, %s42
      %p44 = scmp.eq.s32.totalorder %s43, 0
      %s46 = sadd.s32 %s45, 1
      %s47 = scalar_select %p44, %s45, %s46
      %p50 = pneg %p44
      %p51 = scmp.eq.s32.totalorder %s35, 1
      %p52 = por %p50, %p51
      %p53 = scmp.ne.s32.totalorder %s45, %s48
      %p54 = scmp.eq.s32.totalorder %s35, 0
      %p55 = por %p53, %p54
      %p56 = scmp.ne.s32.totalorder %s45, %s48
      %p57 = scmp.eq.s32.totalorder %s40, 1
      %p58 = por %p56, %p57
      %p59 = scmp.ne.s32.totalorder %s48, %s49
      %p60 = scmp.eq.s32.totalorder %s40, 0
      %p61 = por %p59, %p60
      %p62 = scmp.ne.s32.totalorder %s48, %s49
      %p63 = scmp.eq.s32.totalorder %s41, 1
      %p64 = por %p62, %p63
      %p66 = scmp.ne.s32.totalorder %s49, %s65
      %p67 = scmp.eq.s32.totalorder %s41, 0
      %p68 = por %p66, %p67
      %s70 = sadd.s32 %s69, 1
      %p73 = scmp.eq.s32.totalorder %s35, 1
      %p74 = scmp.ne.s32.totalorder %s69, %s71
      %p75 = scmp.eq.s32.totalorder %s35, 0
      %p76 = por %p74, %p75
      %p77 = scmp.ne.s32.totalorder %s69, %s71
      %p78 = scmp.eq.s32.totalorder %s40, 1
      %p79 = por %p77, %p78
      %p80 = scmp.ne.s32.totalorder %s71, %s72
      %p81 = scmp.eq.s32.totalorder %s40, 0
      %p82 = por %p80, %p81
      %p83 = scmp.ne.s32.totalorder %s71, %s72
      %p84 = scmp.eq.s32.totalorder %s41, 1
      %p85 = por %p83, %p84
      %p87 = scmp.ne.s32.totalorder %s72, %s86
      %p88 = scmp.eq.s32.totalorder %s41, 0
      %p89 = por %p87, %p88
      %s91 = sadd.s32 %s90, 1
      %p94 = scmp.eq.s32.totalorder %s35, 1
      %p95 = scmp.ne.s32.totalorder %s90, %s92
      %p96 = scmp.eq.s32.totalorder %s35, 0
      %p97 = por %p95, %p96
      %p98 = scmp.ne.s32.totalorder %s90, %s92
      %p99 = scmp.eq.s32.totalorder %s40, 1
      %p100 = por %p98, %p99
      %p101 = scmp.ne.s32.totalorder %s92, %s93
      %p102 = scmp.eq.s32.totalorder %s40, 0
      %p103 = por %p101, %p102
      %p104 = scmp.ne.s32.totalorder %s92, %s93
      %p105 = scmp.eq.s32.totalorder %s41, 1
      %p106 = por %p104, %p105
      %p108 = scmp.ne.s32.totalorder %s93, %s107
      %p109 = scmp.eq.s32.totalorder %s41, 0
      %p110 = por %p108, %p109
      %s112 = sadd.s32 %s111, 1
      %p115 = scmp.eq.s32.totalorder %s35, 1
      %p116 = scmp.ne.s32.totalorder %s111, %s113
      %p117 = scmp.eq.s32.totalorder %s35, 0
      %p118 = por %p116, %p117
      %p119 = scmp.ne.s32.totalorder %s111, %s113
      %p120 = scmp.eq.s32.totalorder %s40, 1
      %p121 = por %p119, %p120
      %p122 = scmp.ne.s32.totalorder %s113, %s114
      %p123 = scmp.eq.s32.totalorder %s40, 0
      %p124 = por %p122, %p123
      %p125 = scmp.ne.s32.totalorder %s113, %s114
      %p126 = scmp.eq.s32.totalorder %s41, 1
      %p127 = por %p125, %p126
      %p129 = scmp.ne.s32.totalorder %s114, %s128
      %p130 = scmp.eq.s32.totalorder %s41, 0
      %p131 = por %p129, %p130
      %s133 = sadd.s32 %s132, 1
      %p136 = scmp.eq.s32.totalorder %s35, 1
      %p137 = scmp.ne.s32.totalorder %s132, %s134
      %p138 = scmp.eq.s32.totalorder %s35, 0
      %p139 = por %p137, %p138
      %p140 = scmp.ne.s32.totalorder %s132, %s134
      %p141 = scmp.eq.s32.totalorder %s40, 1
      %p142 = por %p140, %p141
      %p143 = scmp.ne.s32.totalorder %s134, %s135
      %p144 = scmp.eq.s32.totalorder %s40, 0
      %p145 = por %p143, %p144
      %p146 = scmp.ne.s32.totalorder %s134, %s135
      %p147 = scmp.eq.s32.totalorder %s41, 1
      %p148 = por %p146, %p147
      %p150 = scmp.ne.s32.totalorder %s135, %s149
      %p151 = scmp.eq.s32.totalorder %s41, 0
      %p152 = por %p150, %p151
      %s154 = sadd.s32 %s153, 1
      %p157 = scmp.eq.s32.totalorder %s35, 1
      %p158 = scmp.ne.s32.totalorder %s153, %s155
      %p159 = scmp.eq.s32.totalorder %s35, 0
      %p160 = por %p158, %p159
      %p161 = scmp.ne.s32.totalorder %s153, %s155
      %p162 = scmp.eq.s32.totalorder %s40, 1
      %p163 = por %p161, %p162
      %p164 = scmp.ne.s32.totalorder %s155, %s156
      %p165 = scmp.eq.s32.totalorder %s40, 0
      %p166 = por %p164, %p165
      %p167 = scmp.ne.s32.totalorder %s155, %s156
      %p168 = scmp.eq.s32.totalorder %s41, 1
      %p169 = por %p167, %p168
      %p171 = scmp.ne.s32.totalorder %s156, %s170
      %p172 = scmp.eq.s32.totalorder %s41, 0
      %p173 = por %p171, %p172
      %s175 = sadd.s32 %s174, 1
      %p178 = scmp.eq.s32.totalorder %s35, 1
      %p179 = scmp.ne.s32.totalorder %s174, %s176
      %p180 = scmp.eq.s32.totalorder %s35, 0
      %p181 = por %p179, %p180
      %p182 = scmp.ne.s32.totalorder %s174, %s176
      %p183 = scmp.eq.s32.totalorder %s40, 1
      %p184 = por %p182, %p183
      %p185 = scmp.ne.s32.totalorder %s176, %s177
      %p186 = scmp.eq.s32.totalorder %s40, 0
      %p187 = por %p185, %p186
      %p188 = scmp.ne.s32.totalorder %s176, %s177
      %p189 = scmp.eq.s32.totalorder %s41, 1
      %p190 = por %p188, %p189
      %p192 = scmp.ne.s32.totalorder %s177, %s191
      %p193 = scmp.eq.s32.totalorder %s41, 0
      %p194 = por %p192, %p193
      %s196 = sadd.s32 %s195, 1
      %p199 = scmp.eq.s32.totalorder %s35, 1
      %p200 = scmp.ne.s32.totalorder %s195, %s197
      %p201 = scmp.eq.s32.totalorder %s35, 0
      %p202 = por %p200, %p201
      %p203 = scmp.ne.s32.totalorder %s195, %s197
      %p204 = scmp.eq.s32.totalorder %s40, 1
      %p205 = por %p203, %p204
      %p206 = scmp.ne.s32.totalorder %s197, %s198
      %p207 = scmp.eq.s32.totalorder %s40, 0
      %p208 = por %p206, %p207
      %p209 = scmp.ne.s32.totalorder %s197, %s198
      %p210 = scmp.eq.s32.totalorder %s41, 1
      %p211 = por %p209, %p210
      %p213 = scmp.ne.s32.totalorder %s198, %s212
      %p214 = scmp.eq.s32.totalorder %s41, 0
      %p215 = por %p213, %p214
      %s217 = sadd.s32 %s216, 1
      %p220 = scmp.eq.s32.totalorder %s35, 1
      %p221 = scmp.ne.s32.totalorder %s216, %s218
      %p222 = scmp.eq.s32.totalorder %s35, 0
      %p223 = por %p221, %p222
      %p224 = scmp.ne.s32.totalorder %s216, %s218
      %p225 = scmp.eq.s32.totalorder %s40, 1
      %p226 = por %p224, %p225
      %p227 = scmp.ne.s32.totalorder %s218, %s219
      %p228 = scmp.eq.s32.totalorder %s40, 0
      %p229 = por %p227, %p228
      %p230 = scmp.ne.s32.totalorder %s218, %s219
      %p231 = scmp.eq.s32.totalorder %s41, 1
      %p232 = por %p230, %p231
      %p234 = scmp.ne.s32.totalorder %s219, %s233
      %p235 = scmp.eq.s32.totalorder %s41, 0
      %p236 = por %p234, %p235
      %s238 = sadd.s32 %s237, 1
      %p241 = scmp.eq.s32.totalorder %s35, 1
      %p242 = scmp.ne.s32.totalorder %s237, %s239
      %p243 = scmp.eq.s32.totalorder %s35, 0
      %p244 = por %p242, %p243
      %p245 = scmp.ne.s32.totalorder %s237, %s239
      %p246 = scmp.eq.s32.totalorder %s40, 1
      %p247 = por %p245, %p246
      %p248 = scmp.ne.s32.totalorder %s239, %s240
      %p249 = scmp.eq.s32.totalorder %s40, 0
      %p250 = por %p248, %p249
      %p251 = scmp.ne.s32.totalorder %s239, %s240
      %p252 = scmp.eq.s32.totalorder %s41, 1
      %p253 = por %p251, %p252
      %p255 = scmp.ne.s32.totalorder %s240, %s254
      %p256 = scmp.eq.s32.totalorder %s41, 0
      %p257 = por %p255, %p256
      %s259 = sadd.s32 %s258, 1
      %p262 = scmp.eq.s32.totalorder %s35, 1
      %p263 = scmp.ne.s32.totalorder %s258, %s260
      %p264 = scmp.eq.s32.totalorder %s35, 0
      %p265 = por %p263, %p264
      %p266 = scmp.ne.s32.totalorder %s258, %s260
      %p267 = scmp.eq.s32.totalorder %s40, 1
      %p268 = por %p266, %p267
      %p269 = scmp.ne.s32.totalorder %s260, %s261
      %p270 = scmp.eq.s32.totalorder %s40, 0
      %p271 = por %p269, %p270
      %p272 = scmp.ne.s32.totalorder %s260, %s261
      %p273 = scmp.eq.s32.totalorder %s41, 1
      %p274 = por %p272, %p273
      %p276 = scmp.ne.s32.totalorder %s261, %s275
      %p277 = scmp.eq.s32.totalorder %s41, 0
      %p278 = por %p276, %p277
      %s280 = sadd.s32 %s279, 1
      %p283 = scmp.eq.s32.totalorder %s35, 1
      %p284 = scmp.ne.s32.totalorder %s279, %s281
      %p285 = scmp.eq.s32.totalorder %s35, 0
      %p286 = por %p284, %p285
      %p287 = scmp.ne.s32.totalorder %s279, %s281
      %p288 = scmp.eq.s32.totalorder %s40, 1
      %p289 = por %p287, %p288
      %p290 = scmp.ne.s32.totalorder %s281, %s282
      %p291 = scmp.eq.s32.totalorder %s40, 0
      %p292 = por %p290, %p291
      %p293 = scmp.ne.s32.totalorder %s281, %s282
      %p294 = scmp.eq.s32.totalorder %s41, 1
      %p295 = por %p293, %p294
      %p297 = scmp.ne.s32.totalorder %s282, %s296
      %p298 = scmp.eq.s32.totalorder %s41, 0
      %p299 = por %p297, %p298
      %s301 = sadd.s32 %s300, 1
      %p304 = scmp.eq.s32.totalorder %s35, 1
      %p305 = scmp.ne.s32.totalorder %s300, %s302
      %p306 = scmp.eq.s32.totalorder %s35, 0
      %p307 = por %p305, %p306
      %p308 = scmp.ne.s32.totalorder %s300, %s302
      %p309 = scmp.eq.s32.totalorder %s40, 1
      %p310 = por %p308, %p309
      %p311 = scmp.ne.s32.totalorder %s302, %s303
      %p312 = scmp.eq.s32.totalorder %s40, 0
      %p313 = por %p311, %p312
      %p314 = scmp.ne.s32.totalorder %s302, %s303
      %p315 = scmp.eq.s32.totalorder %s41, 1
      %p316 = por %p314, %p315
      %p318 = scmp.ne.s32.totalorder %s303, %s317
      %p319 = scmp.eq.s32.totalorder %s41, 0
      %p320 = por %p318, %p319
      %s322 = sadd.s32 %s321, 1
      %p325 = scmp.eq.s32.totalorder %s35, 1
      %p326 = scmp.ne.s32.totalorder %s321, %s323
      %p327 = scmp.eq.s32.totalorder %s35, 0
      %p328 = por %p326, %p327
      %p329 = scmp.ne.s32.totalorder %s321, %s323
      %p330 = scmp.eq.s32.totalorder %s40, 1
      %p331 = por %p329, %p330
      %p332 = scmp.ne.s32.totalorder %s323, %s324
      %p333 = scmp.eq.s32.totalorder %s40, 0
      %p334 = por %p332, %p333
      %p335 = scmp.ne.s32.totalorder %s323, %s324
      %p336 = scmp.eq.s32.totalorder %s41, 1
      %p337 = por %p335, %p336
      %p339 = scmp.ne.s32.totalorder %s324, %s338
      %p340 = scmp.eq.s32.totalorder %s41, 0
      %p341 = por %p339, %p340
      %s343 = sadd.s32 %s342, 1
      %p346 = scmp.eq.s32.totalorder %s35, 1
      %p347 = scmp.ne.s32.totalorder %s342, %s344
      %p348 = scmp.eq.s32.totalorder %s35, 0
      %p349 = por %p347, %p348
      %p350 = scmp.ne.s32.totalorder %s342, %s344
      %p351 = scmp.eq.s32.totalorder %s40, 1
      %p352 = por %p350, %p351
      %p353 = scmp.ne.s32.totalorder %s344, %s345
      %p354 = scmp.eq.s32.totalorder %s40, 0
      %p355 = por %p353, %p354
      %p356 = scmp.ne.s32.totalorder %s344, %s345
      %p357 = scmp.eq.s32.totalorder %s41, 1
      %p358 = por %p356, %p357
      %p360 = scmp.ne.s32.totalorder %s345, %s359
      %p361 = scmp.eq.s32.totalorder %s41, 0
      %p362 = por %p360, %p361
      %s364 = sadd.s32 %s363, 1
      %p367 = scmp.eq.s32.totalorder %s35, 1
      %p368 = scmp.ne.s32.totalorder %s363, %s365
      %p369 = scmp.eq.s32.totalorder %s35, 0
      %p370 = por %p368, %p369
      %p371 = scmp.ne.s32.totalorder %s363, %s365
      %p372 = scmp.eq.s32.totalorder %s40, 1
      %p373 = por %p371, %p372
      %p374 = scmp.ne.s32.totalorder %s365, %s366
      %p375 = scmp.eq.s32.totalorder %s40, 0
      %p376 = por %p374, %p375
      %p377 = scmp.ne.s32.totalorder %s365, %s366
      %p378 = scmp.eq.s32.totalorder %s41, 1
      %p379 = por %p377, %p378
      %p381 = scmp.ne.s32.totalorder %s366, %s380
      %p382 = scmp.eq.s32.totalorder %s41, 0
      %p383 = por %p381, %p382
      %s385 = sadd.s32 %s384, 1
      %p388 = scmp.eq.s32.totalorder %s35, 1
      %p389 = scmp.ne.s32.totalorder %s384, %s386
      %p390 = scmp.eq.s32.totalorder %s35, 0
      %p391 = por %p389, %p390
      %p392 = scmp.ne.s32.totalorder %s384, %s386
      %p393 = scmp.eq.s32.totalorder %s40, 1
      %p394 = por %p392, %p393
      %p395 = scmp.ne.s32.totalorder %s386, %s387
      %p396 = scmp.eq.s32.totalorder %s40, 0
      %p397 = por %p395, %p396
      %p398 = scmp.ne.s32.totalorder %s386, %s387
      %p399 = scmp.eq.s32.totalorder %s41, 1
      %p400 = por %p398, %p399
      %p402 = scmp.ne.s32.totalorder %s387, %s401
      %p403 = scmp.eq.s32.totalorder %s41, 0
      %p404 = por %p402, %p403
      %s406 = sadd.s32 %s405, 1
      %p409 = scmp.eq.s32.totalorder %s35, 1
      %p410 = scmp.ne.s32.totalorder %s405, %s407
      %p411 = scmp.eq.s32.totalorder %s35, 0
      %p412 = por %p410, %p411
      %p413 = scmp.ne.s32.totalorder %s405, %s407
      %p414 = scmp.eq.s32.totalorder %s40, 1
      %p415 = por %p413, %p414
      %p416 = scmp.ne.s32.totalorder %s407, %s408
      %p417 = scmp.eq.s32.totalorder %s40, 0
      %p418 = por %p416, %p417
      %p419 = scmp.ne.s32.totalorder %s407, %s408
      %p420 = scmp.eq.s32.totalorder %s41, 1
      %p421 = por %p419, %p420
      %p423 = scmp.ne.s32.totalorder %s408, %s422
      %p424 = scmp.eq.s32.totalorder %s41, 0
      %p425 = por %p423, %p424
      %s427 = sadd.s32 %s426, 1
      %p430 = scmp.eq.s32.totalorder %s35, 1
      %p431 = scmp.ne.s32.totalorder %s426, %s428
      %p432 = scmp.eq.s32.totalorder %s35, 0
      %p433 = por %p431, %p432
      %p434 = scmp.ne.s32.totalorder %s426, %s428
      %p435 = scmp.eq.s32.totalorder %s40, 1
      %p436 = por %p434, %p435
      %p437 = scmp.ne.s32.totalorder %s428, %s429
      %p438 = scmp.eq.s32.totalorder %s40, 0
      %p439 = por %p437, %p438
      %p440 = scmp.ne.s32.totalorder %s428, %s429
      %p441 = scmp.eq.s32.totalorder %s41, 1
      %p442 = por %p440, %p441
      %p444 = scmp.ne.s32.totalorder %s429, %s443
      %p445 = scmp.eq.s32.totalorder %s41, 0
      %p446 = por %p444, %p445
      %s447 = ssub.s32 %s35, %s42
      %p448 = scmp.eq.s32.totalorder %s447, 0
      %s450 = sadd.s32 %s449, 1
      %s451 = scalar_select %p448, %s449, %s450
      %p454 = pneg %p448
      %p455 = scmp.eq.s32.totalorder %s35, 1
      %p456 = por %p454, %p455
      %p457 = scmp.ne.s32.totalorder %s449, %s452
      %p458 = scmp.eq.s32.totalorder %s35, 0
      %p459 = por %p457, %p458
      %p460 = scmp.ne.s32.totalorder %s449, %s452
      %p461 = scmp.eq.s32.totalorder %s40, 1
      %p462 = por %p460, %p461
      %p463 = scmp.ne.s32.totalorder %s452, %s453
      %p464 = scmp.eq.s32.totalorder %s40, 0
      %p465 = por %p463, %p464
      %p466 = scmp.ne.s32.totalorder %s452, %s453
      %p467 = scmp.eq.s32.totalorder %s41, 1
      %p468 = por %p466, %p467
      %p470 = scmp.ne.s32.totalorder %s453, %s469
      %p471 = scmp.eq.s32.totalorder %s41, 0
      %p472 = por %p470, %p471
      %p473 = scmp.le.s32.totalorder 1, %s35
      %p474 = scmp.lt.s32.totalorder %s35, 3
      %p475 = pnand %p473, %p474
      %p476 = pneg %p475
      // Predicated region
      $region9: #{tpu_custom_call.1} parent=5 // pred_check
        _
      $region10: #{tpu_custom_call.1} parent=5 // pred_check_branch
        %478 = sbr.rel (%p475) target = $region12
      $region11: #{tpu_custom_call.1} parent=5 // pred_region
        %s479 = ssub.s32 %s35, 1
        // Predicated region
        $region13: #{tpu_custom_call.1} parent=11 // pred_check
          %p480 = pneg %p82
        $region14: #{tpu_custom_call.1} parent=11 // pred_check_branch
          %482 = sbr.rel (%p480) target = $region16
        $region15: #{tpu_custom_call.1} parent=11 // pred_region
          _
        $region16: #{tpu_custom_call.1} parent=11 // pred_fallthru
          _
        // Predicated region
        $region17: #{tpu_custom_call.1} parent=11 // pred_check
          %p483 = pneg %p103
        $region18: #{tpu_custom_call.1} parent=11 // pred_check_branch
          %485 = sbr.rel (%p483) target = $region20
        $region19: #{tpu_custom_call.1} parent=11 // pred_region
          _
        $region20: #{tpu_custom_call.1} parent=11 // pred_fallthru
          _
        // Predicated region
        $region21: #{tpu_custom_call.1} parent=11 // pred_check
          %p486 = pneg %p124
        $region22: #{tpu_custom_call.1} parent=11 // pred_check_branch
          %488 = sbr.rel (%p486) target = $region24
        $region23: #{tpu_custom_call.1} parent=11 // pred_region
          _
        $region24: #{tpu_custom_call.1} parent=11 // pred_fallthru
          _
        // Predicated region
        $region25: #{tpu_custom_call.1} parent=11 // pred_check
          %p489 = pneg %p145
        $region26: #{tpu_custom_call.1} parent=11 // pred_check_branch
          %491 = sbr.rel (%p489) target = $region28
        $region27: #{tpu_custom_call.1} parent=11 // pred_region
          _
        $region28: #{tpu_custom_call.1} parent=11 // pred_fallthru
          _
        // Predicated region
        $region29: #{tpu_custom_call.1} parent=11 // pred_check
          %p492 = pneg %p166
        $region30: #{tpu_custom_call.1} parent=11 // pred_check_branch
          %494 = sbr.rel (%p492) target = $region32
        $region31: #{tpu_custom_call.1} parent=11 // pred_region
          _
        $region32: #{tpu_custom_call.1} parent=11 // pred_fallthru
          _
        // Predicated region
        $region33: #{tpu_custom_call.1} parent=11 // pred_check
          %p495 = pneg %p187
        $region34: #{tpu_custom_call.1} parent=11 // pred_check_branch
          %497 = sbr.rel (%p495) target = $region36
        $region35: #{tpu_custom_call.1} parent=11 // pred_region
          _
        $region36: #{tpu_custom_call.1} parent=11 // pred_fallthru
          _
        // Predicated region
        $region37: #{tpu_custom_call.1} parent=11 // pred_check
          %p498 = pneg %p208
        $region38: #{tpu_custom_call.1} parent=11 // pred_check_branch
          %500 = sbr.rel (%p498) target = $region40
        $region39: #{tpu_custom_call.1} parent=11 // pred_region
          _
        $region40: #{tpu_custom_call.1} parent=11 // pred_fallthru
          _
        // Predicated region
        $region41: #{tpu_custom_call.1} parent=11 // pred_check
          %p501 = pneg %p229
        $region42: #{tpu_custom_call.1} parent=11 // pred_check_branch
          %503 = sbr.rel (%p501) target = $region44
        $region43: #{tpu_custom_call.1} parent=11 // pred_region
          _
        $region44: #{tpu_custom_call.1} parent=11 // pred_fallthru
          _
        // Predicated region
        $region45: #{tpu_custom_call.1} parent=11 // pred_check
          %p504 = pneg %p250
        $region46: #{tpu_custom_call.1} parent=11 // pred_check_branch
          %506 = sbr.rel (%p504) target = $region48
        $region47: #{tpu_custom_call.1} parent=11 // pred_region
          _
        $region48: #{tpu_custom_call.1} parent=11 // pred_fallthru
          _
        // Predicated region
        $region49: #{tpu_custom_call.1} parent=11 // pred_check
          %p507 = pneg %p271
        $region50: #{tpu_custom_call.1} parent=11 // pred_check_branch
          %509 = sbr.rel (%p507) target = $region52
        $region51: #{tpu_custom_call.1} parent=11 // pred_region
          _
        $region52: #{tpu_custom_call.1} parent=11 // pred_fallthru
          _
        // Predicated region
        $region53: #{tpu_custom_call.1} parent=11 // pred_check
          %p510 = pneg %p292
        $region54: #{tpu_custom_call.1} parent=11 // pred_check_branch
          %512 = sbr.rel (%p510) target = $region56
        $region55: #{tpu_custom_call.1} parent=11 // pred_region
          _
        $region56: #{tpu_custom_call.1} parent=11 // pred_fallthru
          _
        // Predicated region
        $region57: #{tpu_custom_call.1} parent=11 // pred_check
          %p513 = pneg %p313
        $region58: #{tpu_custom_call.1} parent=11 // pred_check_branch
          %515 = sbr.rel (%p513) target = $region60
        $region59: #{tpu_custom_call.1} parent=11 // pred_region
          _
        $region60: #{tpu_custom_call.1} parent=11 // pred_fallthru
          _
        // Predicated region
        $region61: #{tpu_custom_call.1} parent=11 // pred_check
          %p516 = pneg %p334
        $region62: #{tpu_custom_call.1} parent=11 // pred_check_branch
          %518 = sbr.rel (%p516) target = $region64
        $region63: #{tpu_custom_call.1} parent=11 // pred_region
          _
        $region64: #{tpu_custom_call.1} parent=11 // pred_fallthru
          _
        // Predicated region
        $region65: #{tpu_custom_call.1} parent=11 // pred_check
          %p519 = pneg %p355
        $region66: #{tpu_custom_call.1} parent=11 // pred_check_branch
          %521 = sbr.rel (%p519) target = $region68
        $region67: #{tpu_custom_call.1} parent=11 // pred_region
          _
        $region68: #{tpu_custom_call.1} parent=11 // pred_fallthru
          _
        // Predicated region
        $region69: #{tpu_custom_call.1} parent=11 // pred_check
          %p522 = pneg %p376
        $region70: #{tpu_custom_call.1} parent=11 // pred_check_branch
          %524 = sbr.rel (%p522) target = $region72
        $region71: #{tpu_custom_call.1} parent=11 // pred_region
          _
        $region72: #{tpu_custom_call.1} parent=11 // pred_fallthru
          _
        // Predicated region
        $region73: #{tpu_custom_call.1} parent=11 // pred_check
          %p525 = pneg %p397
        $region74: #{tpu_custom_call.1} parent=11 // pred_check_branch
          %527 = sbr.rel (%p525) target = $region76
        $region75: #{tpu_custom_call.1} parent=11 // pred_region
          _
        $region76: #{tpu_custom_call.1} parent=11 // pred_fallthru
          _
        // Predicated region
        $region77: #{tpu_custom_call.1} parent=11 // pred_check
          %p528 = pneg %p418
        $region78: #{tpu_custom_call.1} parent=11 // pred_check_branch
          %530 = sbr.rel (%p528) target = $region80
        $region79: #{tpu_custom_call.1} parent=11 // pred_region
          _
        $region80: #{tpu_custom_call.1} parent=11 // pred_fallthru
          _
        // Predicated region
        $region81: #{tpu_custom_call.1} parent=11 // pred_check
          %p531 = pneg %p439
        $region82: #{tpu_custom_call.1} parent=11 // pred_check_branch
          %533 = sbr.rel (%p531) target = $region84
        $region83: #{tpu_custom_call.1} parent=11 // pred_region
          _
        $region84: #{tpu_custom_call.1} parent=11 // pred_fallthru
          _
      $region12: #{tpu_custom_call.1} parent=5 // pred_fallthru
        _
      %p534 = scmp.lt.s32.totalorder %s35, 2
      // Predicated region
      $region85: #{tpu_custom_call.1} parent=5 // pred_check
        %p535 = pneg %p534
      $region86: #{tpu_custom_call.1} parent=5 // pred_check_branch
        %537 = sbr.rel (%p535) target = $region88
      $region87: #{tpu_custom_call.1} parent=5 // pred_region
        // Predicated region
        $region89: #{tpu_custom_call.1} parent=87 // pred_check
          %p538 = pneg %p55
        $region90: #{tpu_custom_call.1} parent=87 // pred_check_branch
          %540 = sbr.rel (%p538) target = $region92
        $region91: #{tpu_custom_call.1} parent=87 // pred_region
          %p541 = scmp.lt.s32.totalorder %s35, 1
          %s542 = scalar_select %p541, %s35, 1
          %s543 = smul.addr %s542, 8
          %s544 = scalar_lea.vmem %s1, %s543
        $region92: #{tpu_custom_call.1} parent=87 // pred_fallthru
          _
      $region88: #{tpu_custom_call.1} parent=5 // pred_fallthru
        _
      %p545 = scmp.le.s32.totalorder 1, %s35
      %p546 = scmp.lt.s32.totalorder %s35, 3
      %p547 = pnand %p545, %p546
      %p548 = pneg %p547
      // Predicated region
      $region93: #{tpu_custom_call.1} parent=5 // pred_check
        _
      $region94: #{tpu_custom_call.1} parent=5 // pred_check_branch
        %550 = sbr.rel (%p547) target = $region96
      $region95: #{tpu_custom_call.1} parent=5 // pred_region
        %s551 = ssub.s32 %s35, 1
        %p552 = scmp.lt.s32.totalorder %s40, 1
        %s553 = scalar_select %p552, %s40, 1
        %s554 = smul.addr %s553, 8
        %s555 = scalar_lea.vmem %s1, %s554
        %p556 = pneg %p61
        %p557 = pneg %p58
        %p558 = pneg %p82
        %p559 = pneg %p79
        %p560 = pneg %p103
        %p561 = pneg %p100
        %p562 = pneg %p124
        %p563 = pneg %p121
        %p564 = pneg %p145
        %p565 = pneg %p142
        %p566 = pneg %p166
        %p567 = pneg %p163
        %p568 = pneg %p187
        %p569 = pneg %p184
        %p570 = pneg %p208
        %p571 = pneg %p205
        %p572 = pneg %p229
        %p573 = pneg %p226
        %p574 = pneg %p250
        %p575 = pneg %p247
        %p576 = pneg %p271
        %p577 = pneg %p268
        %p578 = pneg %p292
        %p579 = pneg %p289
        %p580 = pneg %p313
        %p581 = pneg %p310
        %p582 = pneg %p334
        %p583 = pneg %p331
        %p584 = pneg %p355
        %p585 = pneg %p352
        %p586 = pneg %p376
        %p587 = pneg %p373
        %p588 = pneg %p397
        %p589 = pneg %p394
        %p590 = pneg %p418
        %p591 = pneg %p415
        %p592 = pneg %p439
        %p593 = pneg %p436
        %p594 = pneg %p465
        %p595 = pneg %p462
        %s596 = sand.u32 %s452, 1
        %s597 = scalar_lea.sflag [#allocation5], %s596
        %s598 = sand.u32 %s452, 1
        %s599 = scalar_lea.vmem [#allocation4], %s598
        %p600 = scmp.lt.s32.totalorder %s40, 1
        %s601 = scalar_select %p600, %s40, 1
        %s602 = smul.addr %s601, 8
        %s603 = scalar_lea.vmem %s1, %s602
        %v605 = vlaneseq
        %v606 = vand.u32 %v605, 127
        %vm607 = vcmp.eq.s32.totalorder %v606, 0
        %s608 = smul.u32 %s40, 128
        %s609 = sld [smem:[#allocation3 + %s608]]
        %p610 = scmp.eq.s32.totalorder %s609, 0
        %s611 = scalar_select %p610, 1, 0
        %v612 = vstv %s611
        %vm613 = vcmp.eq.s32.totalorder %v612, 1
        %vm614 = vmand %vm607, %vm613
        %v615 = vsel %vm614, -10000.0, 0.0
        %vm616 = vcmp.eq.s32.totalorder %v606, 1
        %s617 = sadd.s32 %s608, 1
        %s618 = sld [smem:[#allocation3 + %s617]]
        %p619 = scmp.eq.s32.totalorder %s618, 0
        %s620 = scalar_select %p619, 1, 0
        %v621 = vstv %s620
        %vm622 = vcmp.eq.s32.totalorder %v621, 1
        %vm623 = vmand %vm616, %vm622
        %v624 = vsel %vm623, -10000.0, %v615
        %vm625 = vcmp.eq.s32.totalorder %v606, 2
        %s626 = sadd.s32 %s608, 2
        %s627 = sld [smem:[#allocation3 + %s626]]
        %p628 = scmp.eq.s32.totalorder %s627, 0
        %s629 = scalar_select %p628, 1, 0
        %v630 = vstv %s629
        %vm631 = vcmp.eq.s32.totalorder %v630, 1
        %vm632 = vmand %vm625, %vm631
        %v633 = vsel %vm632, -10000.0, %v624
        %vm634 = vcmp.eq.s32.totalorder %v606, 3
        %s635 = sadd.s32 %s608, 3
        %s636 = sld [smem:[#allocation3 + %s635]]
        %p637 = scmp.eq.s32.totalorder %s636, 0
        %s638 = scalar_select %p637, 1, 0
        %v639 = vstv %s638
        %vm640 = vcmp.eq.s32.totalorder %v639, 1
        %vm641 = vmand %vm634, %vm640
        %v642 = vsel %vm641, -10000.0, %v633
        %vm643 = vcmp.eq.s32.totalorder %v606, 4
        %s644 = sadd.s32 %s608, 4
        %s645 = sld [smem:[#allocation3 + %s644]]
        %p646 = scmp.eq.s32.totalorder %s645, 0
        %s647 = scalar_select %p646, 1, 0
        %v648 = vstv %s647
        %vm649 = vcmp.eq.s32.totalorder %v648, 1
        %vm650 = vmand %vm643, %vm649
        %v651 = vsel %vm650, -10000.0, %v642
        %vm652 = vcmp.eq.s32.totalorder %v606, 5
        %s653 = sadd.s32 %s608, 5
        %s654 = sld [smem:[#allocation3 + %s653]]
        %p655 = scmp.eq.s32.totalorder %s654, 0
        %s656 = scalar_select %p655, 1, 0
        %v657 = vstv %s656
        %vm658 = vcmp.eq.s32.totalorder %v657, 1
        %vm659 = vmand %vm652, %vm658
        %v660 = vsel %vm659, -10000.0, %v651
        %vm661 = vcmp.eq.s32.totalorder %v606, 6
        %s662 = sadd.s32 %s608, 6
        %s663 = sld [smem:[#allocation3 + %s662]]
        %p664 = scmp.eq.s32.totalorder %s663, 0
        %s665 = scalar_select %p664, 1, 0
        %v666 = vstv %s665
        %vm667 = vcmp.eq.s32.totalorder %v666, 1
        %vm668 = vmand %vm661, %vm667
        %v669 = vsel %vm668, -10000.0, %v660
        %vm670 = vcmp.eq.s32.totalorder %v606, 7
        %s671 = sadd.s32 %s608, 7
        %s672 = sld [smem:[#allocation3 + %s671]]
        %p673 = scmp.eq.s32.totalorder %s672, 0
        %s674 = scalar_select %p673, 1, 0
        %v675 = vstv %s674
        %vm676 = vcmp.eq.s32.totalorder %v675, 1
        %vm677 = vmand %vm670, %vm676
        %v678 = vsel %vm677, -10000.0, %v669
        %v679 = vld [vmem:[%s603] sm:$0xff]
        %v680 = vld [vmem:[%s2] sm:$0x1]
        %v681 = vld [vmem:[%s3] sm:$0x1]
        %682 = vadd.xlane.f32.xlu0 %v679
        %v683 = vpop.xlane.xlu0 %682
        %v684 = vmul.f32 %v683, 0.015625
        %v685 = vmul.f32 %v679, %v679
        %686 = vadd.xlane.f32.xlu0 %v685
        %v687 = vpop.xlane.xlu0 %686
        %v688 = vmul.f32 %v687, 0.015625
        %v689 = vmul.f32 %v684, %v684
        %v690 = vsub.f32 %v688, %v689
        %v691 = vmax.f32 %v690, 0.0
        %v692 = vsub.f32 %v679, %v684
        %v693 = vadd.f32 %v691, 1e-12
        %v694 = vrsqrt.pop %v693
        %v695 = vmul.f32 %v692, %v694
        %v697 = vlaneseq
        %v698 = vshrl.u32 %v697, 7
        %v699 = vsub.s32 0, %v698
        %v700 = vrot.slane %v680, %v699
        %v702 = vmul.f32 %v695, %v700
        %v704 = vlaneseq
        %v705 = vshrl.u32 %v704, 7
        %v706 = vsub.s32 0, %v705
        %v707 = vrot.slane %v681, %v706
        %v709 = vadd.f32 %v702, %v707
        %v710 = vpack.c.bf16 %v709, %v709
        %v711 = vld [vmem:[%s4] sm:$0xf]
        %v712 = vld [vmem:[%s4 + $0x4] sm:$0xf]
        %v713 = vld [vmem:[%s4 + $0x8] sm:$0xf]
        %v714 = vld [vmem:[%s4 + $0xc] sm:$0xf]
        %v715 = vld [vmem:[%s4 + $0x10] sm:$0xf]
        %v716 = vld [vmem:[%s4 + $0x14] sm:$0xf]
        %v717 = vld [vmem:[%s4 + $0x18] sm:$0xf]
        %v718 = vld [vmem:[%s4 + $0x1c] sm:$0xf]
        %v719 = vld [vmem:[%s4 + $0x20] sm:$0xf]
        %v720 = vld [vmem:[%s4 + $0x24] sm:$0xf]
        %v721 = vld [vmem:[%s4 + $0x28] sm:$0xf]
        %v722 = vld [vmem:[%s4 + $0x2c] sm:$0xf]
        %v723 = vld [vmem:[%s4 + $0x30] sm:$0xf]
        %v724 = vld [vmem:[%s4 + $0x34] sm:$0xf]
        %v725 = vld [vmem:[%s4 + $0x38] sm:$0xf]
        %v726 = vld [vmem:[%s4 + $0x3c] sm:$0xf]
        %v727 = vld [vmem:[%s5] sm:$0x1]
        %v729 = vlaneseq
        %v730 = vshrl.u32 %v729, 7
        %v731 = vsub.s32 0, %v730
        %v732 = vrot.slane %v727, %v731
        %v750 = vunpack.c.l.b16 %v711
        %v751 = vunpack.c.l.b16 %v712
        %v752 = vunpack.c.l.b16 %v713
        %v753 = vunpack.c.l.b16 %v714
        %v754 = vunpack.c.l.b16 %v715
        %v755 = vunpack.c.l.b16 %v716
        %v756 = vunpack.c.l.b16 %v717
        %v757 = vunpack.c.l.b16 %v718
        %v758 = vunpack.c.l.b16 %v719
        %v759 = vunpack.c.l.b16 %v720
        %v760 = vunpack.c.l.b16 %v721
        %v761 = vunpack.c.l.b16 %v722
        %v762 = vunpack.c.l.b16 %v723
        %v763 = vunpack.c.l.b16 %v724
        %v764 = vunpack.c.l.b16 %v725
        %v765 = vunpack.c.l.b16 %v726
        %v766 = vpack.c.b16 %v751, %v750
        %v767 = vpack.c.b16 %v753, %v752
        %v768 = vpack.c.b16 %v755, %v754
        %v769 = vpack.c.b16 %v757, %v756
        %v770 = vpack.c.b16 %v759, %v758
        %v771 = vpack.c.b16 %v761, %v760
        %v772 = vpack.c.b16 %v763, %v762
        %v773 = vpack.c.b16 %v765, %v764
        %782 = vmatprep.subr.bf16.mxu0 0
        %783 = vmatpush1.bf16.msra.mxu0 %v766
        %784 = vmatprep.subr.bf16.mxu0 0
        %785 = vmatpush1.bf16.msra.mxu0 %v767
        %786 = vmatprep.subr.bf16.mxu0 0
        %787 = vmatpush1.bf16.msra.mxu0 %v768
        %788 = vmatprep.subr.bf16.mxu0 0
        %789 = vmatpush1.bf16.msra.mxu0 %v769
        %790 = vmatprep.subr.bf16.mxu0 0
        %791 = vmatpush1.bf16.msra.mxu0 %v770
        %792 = vmatprep.subr.bf16.mxu0 0
        %793 = vmatpush1.bf16.msra.mxu0 %v771
        %794 = vmatprep.subr.bf16.mxu0 0
        %795 = vmatpush1.bf16.msra.mxu0 %v772
        %796 = vmatprep.subr.bf16.mxu0 0
        %797 = vmatpush1.bf16.msra.mxu0 %v773
        %798 = vmatprep.subr.bf16.mxu0 0
        %799 = vmatpush1.bf16.msra.mxu0 0
        %800 = vmatprep.subr.bf16.mxu0 0
        %801 = vmatpush1.bf16.msra.mxu0 0
        %802 = vmatprep.subr.bf16.mxu0 0
        %803 = vmatpush1.bf16.msra.mxu0 0
        %804 = vmatprep.subr.bf16.mxu0 0
        %805 = vmatpush1.bf16.msra.mxu0 0
        %806 = vmatprep.subr.bf16.mxu0 0
        %807 = vmatpush1.bf16.msra.mxu0 0
        %808 = vmatprep.subr.bf16.mxu0 0
        %809 = vmatpush1.bf16.msra.mxu0 0
        %810 = vmatprep.subr.bf16.mxu0 0
        %811 = vmatpush1.bf16.msra.mxu0 0
        %812 = vmatprep.subr.bf16.mxu0 0
        %813 = vmatpush1.bf16.msra.mxu0 0
        %814 = vmatprep.mubr.bf16.mxu0 0
        %815 = vmatmul.mubr.bf16.gmra.mrb[0].mxu0 %v710
        %v816 = vpop.f32.mrb[0].mxu0
        %v817 = vadd.f32 %v732, %v816
        %v818 = vpop.f32.mrb[0].mxu0
        %v819 = vpop.f32.mrb[0].mxu0
        %v820 = vpop.f32.mrb[0].mxu0
        %821 = vdwg.mxu0
        %v822 = vpack.c.bf16 %v817, %v817
        %v823 = vld [vmem:[%s6] sm:$0xf]
        %v824 = vld [vmem:[%s6 + $0x4] sm:$0xf]
        %v825 = vld [vmem:[%s6 + $0x8] sm:$0xf]
        %v826 = vld [vmem:[%s6 + $0xc] sm:$0xf]
        %v827 = vld [vmem:[%s6 + $0x10] sm:$0xf]
        %v828 = vld [vmem:[%s6 + $0x14] sm:$0xf]
        %v829 = vld [vmem:[%s6 + $0x18] sm:$0xf]
        %v830 = vld [vmem:[%s6 + $0x1c] sm:$0xf]
        %v831 = vld [vmem:[%s6 + $0x20] sm:$0xf]
        %v832 = vld [vmem:[%s6 + $0x24] sm:$0xf]
        %v833 = vld [vmem:[%s6 + $0x28] sm:$0xf]
        %v834 = vld [vmem:[%s6 + $0x2c] sm:$0xf]
        %v835 = vld [vmem:[%s6 + $0x30] sm:$0xf]
        %v836 = vld [vmem:[%s6 + $0x34] sm:$0xf]
        %v837 = vld [vmem:[%s6 + $0x38] sm:$0xf]
        %v838 = vld [vmem:[%s6 + $0x3c] sm:$0xf]
        %v839 = vld [vmem:[%s7] sm:$0x1]
        %v841 = vlaneseq
        %v842 = vshrl.u32 %v841, 7
        %v843 = vsub.s32 0, %v842
        %v844 = vrot.slane %v839, %v843
        %v862 = vunpack.c.l.b16 %v823
        %v863 = vunpack.c.l.b16 %v824
        %v864 = vunpack.c.l.b16 %v825
        %v865 = vunpack.c.l.b16 %v826
        %v866 = vunpack.c.l.b16 %v827
        %v867 = vunpack.c.l.b16 %v828
        %v868 = vunpack.c.l.b16 %v829
        %v869 = vunpack.c.l.b16 %v830
        %v870 = vunpack.c.l.b16 %v831
        %v871 = vunpack.c.l.b16 %v832
        %v872 = vunpack.c.l.b16 %v833
        %v873 = vunpack.c.l.b16 %v834
        %v874 = vunpack.c.l.b16 %v835
        %v875 = vunpack.c.l.b16 %v836
        %v876 = vunpack.c.l.b16 %v837
        %v877 = vunpack.c.l.b16 %v838
        %v878 = vpack.c.b16 %v863, %v862
        %v879 = vpack.c.b16 %v865, %v864
        %v880 = vpack.c.b16 %v867, %v866
        %v881 = vpack.c.b16 %v869, %v868
        %v882 = vpack.c.b16 %v871, %v870
        %v883 = vpack.c.b16 %v873, %v872
        %v884 = vpack.c.b16 %v875, %v874
        %v885 = vpack.c.b16 %v877, %v876
        %894 = vmatprep.subr.bf16.mxu0 0
        %895 = vmatpush1.bf16.msra.mxu0 %v878
        %896 = vmatprep.subr.bf16.mxu0 0
        %897 = vmatpush1.bf16.msra.mxu0 %v879
        %898 = vmatprep.subr.bf16.mxu0 0
        %899 = vmatpush1.bf16.msra.mxu0 %v880
        %900 = vmatprep.subr.bf16.mxu0 0
        %901 = vmatpush1.bf16.msra.mxu0 %v881
        %902 = vmatprep.subr.bf16.mxu0 0
        %903 = vmatpush1.bf16.msra.mxu0 %v882
        %904 = vmatprep.subr.bf16.mxu0 0
        %905 = vmatpush1.bf16.msra.mxu0 %v883
        %906 = vmatprep.subr.bf16.mxu0 0
        %907 = vmatpush1.bf16.msra.mxu0 %v884
        %908 = vmatprep.subr.bf16.mxu0 0
        %909 = vmatpush1.bf16.msra.mxu0 %v885
        %910 = vmatprep.subr.bf16.mxu0 0
        %911 = vmatpush1.bf16.msra.mxu0 0
        %912 = vmatprep.subr.bf16.mxu0 0
        %913 = vmatpush1.bf16.msra.mxu0 0
        %914 = vmatprep.subr.bf16.mxu0 0
        %915 = vmatpush1.bf16.msra.mxu0 0
        %916 = vmatprep.subr.bf16.mxu0 0
        %917 = vmatpush1.bf16.msra.mxu0 0
        %918 = vmatprep.subr.bf16.mxu0 0
        %919 = vmatpush1.bf16.msra.mxu0 0
        %920 = vmatprep.subr.bf16.mxu0 0
        %921 = vmatpush1.bf16.msra.mxu0 0
        %922 = vmatprep.subr.bf16.mxu0 0
        %923 = vmatpush1.bf16.msra.mxu0 0
        %924 = vmatprep.subr.bf16.mxu0 0
        %925 = vmatpush1.bf16.msra.mxu0 0
        %926 = vmatprep.mubr.bf16.mxu0 0
        %927 = vmatmul.mubr.bf16.gmra.mrb[0].mxu0 %v710
        %v928 = vpop.f32.mrb[0].mxu0
        %v929 = vadd.f32 %v844, %v928
        %v930 = vpop.f32.mrb[0].mxu0
        %v931 = vpop.f32.mrb[0].mxu0
        %v932 = vpop.f32.mrb[0].mxu0
        %933 = vdwg.mxu0
        %v934 = vpack.c.bf16 %v929, %v929
        %v935 = vld [vmem:[%s8] sm:$0xf]
        %v936 = vld [vmem:[%s8 + $0x4] sm:$0xf]
        %v937 = vld [vmem:[%s8 + $0x8] sm:$0xf]
        %v938 = vld [vmem:[%s8 + $0xc] sm:$0xf]
        %v939 = vld [vmem:[%s8 + $0x10] sm:$0xf]
        %v940 = vld [vmem:[%s8 + $0x14] sm:$0xf]
        %v941 = vld [vmem:[%s8 + $0x18] sm:$0xf]
        %v942 = vld [vmem:[%s8 + $0x1c] sm:$0xf]
        %v943 = vld [vmem:[%s8 + $0x20] sm:$0xf]
        %v944 = vld [vmem:[%s8 + $0x24] sm:$0xf]
        %v945 = vld [vmem:[%s8 + $0x28] sm:$0xf]
        %v946 = vld [vmem:[%s8 + $0x2c] sm:$0xf]
        %v947 = vld [vmem:[%s8 + $0x30] sm:$0xf]
        %v948 = vld [vmem:[%s8 + $0x34] sm:$0xf]
        %v949 = vld [vmem:[%s8 + $0x38] sm:$0xf]
        %v950 = vld [vmem:[%s8 + $0x3c] sm:$0xf]
        %v951 = vld [vmem:[%s9] sm:$0x1]
        %v953 = vlaneseq
        %v954 = vshrl.u32 %v953, 7
        %v955 = vsub.s32 0, %v954
        %v956 = vrot.slane %v951, %v955
        %v974 = vunpack.c.l.b16 %v935
        %v975 = vunpack.c.l.b16 %v936
        %v976 = vunpack.c.l.b16 %v937
        %v977 = vunpack.c.l.b16 %v938
        %v978 = vunpack.c.l.b16 %v939
        %v979 = vunpack.c.l.b16 %v940
        %v980 = vunpack.c.l.b16 %v941
        %v981 = vunpack.c.l.b16 %v942
        %v982 = vunpack.c.l.b16 %v943
        %v983 = vunpack.c.l.b16 %v944
        %v984 = vunpack.c.l.b16 %v945
        %v985 = vunpack.c.l.b16 %v946
        %v986 = vunpack.c.l.b16 %v947
        %v987 = vunpack.c.l.b16 %v948
        %v988 = vunpack.c.l.b16 %v949
        %v989 = vunpack.c.l.b16 %v950
        %v990 = vpack.c.b16 %v975, %v974
        %v991 = vpack.c.b16 %v977, %v976
        %v992 = vpack.c.b16 %v979, %v978
        %v993 = vpack.c.b16 %v981, %v980
        %v994 = vpack.c.b16 %v983, %v982
        %v995 = vpack.c.b16 %v985, %v984
        %v996 = vpack.c.b16 %v987, %v986
        %v997 = vpack.c.b16 %v989, %v988
        %1006 = vmatprep.subr.bf16.mxu0 0
        %1007 = vmatpush1.bf16.msra.mxu0 %v990
        %1008 = vmatprep.subr.bf16.mxu0 0
        %1009 = vmatpush1.bf16.msra.mxu0 %v991
        %1010 = vmatprep.subr.bf16.mxu0 0
        %1011 = vmatpush1.bf16.msra.mxu0 %v992
        %1012 = vmatprep.subr.bf16.mxu0 0
        %1013 = vmatpush1.bf16.msra.mxu0 %v993
        %1014 = vmatprep.subr.bf16.mxu0 0
        %1015 = vmatpush1.bf16.msra.mxu0 %v994
        %1016 = vmatprep.subr.bf16.mxu0 0
        %1017 = vmatpush1.bf16.msra.mxu0 %v995
        %1018 = vmatprep.subr.bf16.mxu0 0
        %1019 = vmatpush1.bf16.msra.mxu0 %v996
        %1020 = vmatprep.subr.bf16.mxu0 0
        %1021 = vmatpush1.bf16.msra.mxu0 %v997
        %1022 = vmatprep.subr.bf16.mxu0 0
        %1023 = vmatpush1.bf16.msra.mxu0 0
        %1024 = vmatprep.subr.bf16.mxu0 0
        %1025 = vmatpush1.bf16.msra.mxu0 0
        %1026 = vmatprep.subr.bf16.mxu0 0
        %1027 = vmatpush1.bf16.msra.mxu0 0
        %1028 = vmatprep.subr.bf16.mxu0 0
        %1029 = vmatpush1.bf16.msra.mxu0 0
        %1030 = vmatprep.subr.bf16.mxu0 0
        %1031 = vmatpush1.bf16.msra.mxu0 0
        %1032 = vmatprep.subr.bf16.mxu0 0
        %1033 = vmatpush1.bf16.msra.mxu0 0
        %1034 = vmatprep.subr.bf16.mxu0 0
        %1035 = vmatpush1.bf16.msra.mxu0 0
        %1036 = vmatprep.subr.bf16.mxu0 0
        %1037 = vmatpush1.bf16.msra.mxu0 0
        %1038 = vmatprep.mubr.bf16.mxu0 0
        %1039 = vmatmul.mubr.bf16.gmra.mrb[0].mxu0 %v710
        %v1040 = vpop.f32.mrb[0].mxu0
        %v1041 = vadd.f32 %v956, %v1040
        %v1042 = vpop.f32.mrb[0].mxu0
        %v1043 = vpop.f32.mrb[0].mxu0
        %v1044 = vpop.f32.mrb[0].mxu0
        %1045 = vdwg.mxu0
        %v1046 = vpack.c.bf16 %v1041, %v1041
        %vm1047 = vcmask 130048
        %v1049 = vsel %vm1047, %v822, 0
        %v1052 = vsel %vm1047, %v934, 0
        %1054 = vmatprep.subr.bf16.mxu0 0
        %1055 = vmatpush1.bf16.xpose.msra.mxu0 %v1052
        %1056 = vmatprep.subr.bf16.mxu0 0
        %1057 = vmatpush1.bf16.xpose.msra.mxu0 0
        %1058 = vmatprep.subr.bf16.mxu0 0
        %1059 = vmatpush1.bf16.xpose.msra.mxu0 0
        %1060 = vmatprep.subr.bf16.mxu0 0
        %1061 = vmatpush1.bf16.xpose.msra.mxu0 0
        %1062 = vmatprep.subr.bf16.mxu0 0
        %1063 = vmatpush1.bf16.xpose.msra.mxu0 0
        %1064 = vmatprep.subr.bf16.mxu0 0
        %1065 = vmatpush1.bf16.xpose.msra.mxu0 0
        %1066 = vmatprep.subr.bf16.mxu0 0
        %1067 = vmatpush1.bf16.xpose.msra.mxu0 0
        %1068 = vmatprep.subr.bf16.mxu0 0
        %1069 = vmatpush1.bf16.xpose.msra.mxu0 0
        %1070 = vmatprep.subr.bf16.mxu0 0
        %1071 = vmatpush1.bf16.xpose.msra.mxu0 0
        %1072 = vmatprep.subr.bf16.mxu0 0
        %1073 = vmatpush1.bf16.xpose.msra.mxu0 0
        %1074 = vmatprep.subr.bf16.mxu0 0
        %1075 = vmatpush1.bf16.xpose.msra.mxu0 0
        %1076 = vmatprep.subr.bf16.mxu0 0
        %1077 = vmatpush1.bf16.xpose.msra.mxu0 0
        %1078 = vmatprep.subr.bf16.mxu0 0
        %1079 = vmatpush1.bf16.xpose.msra.mxu0 0
        %1080 = vmatprep.subr.bf16.mxu0 0
        %1081 = vmatpush1.bf16.xpose.msra.mxu0 0
        %1082 = vmatprep.subr.bf16.mxu0 0
        %1083 = vmatpush1.bf16.xpose.msra.mxu0 0
        %1084 = vmatprep.subr.bf16.mxu0 0
        %1085 = vmatpush1.bf16.xpose.msra.mxu0 0
        %1086 = vmatprep.mubr.bf16.mxu0 0
        %1087 = vmatmul.mubr.bf16.gmra.mrb[0].mxu0 %v1049
        %v1088 = vpop.f32.mrb[0].mxu0
        %v1089 = vadd.f32 %v678, %v1088
        %v1090 = vpop.f32.mrb[0].mxu0
        %v1091 = vpop.f32.mrb[0].mxu0
        %v1092 = vpop.f32.mrb[0].mxu0
        %1093 = vdwg.mxu0
        %vm1094 = vcmask 64512
        %v1095 = vsel %vm1094, %v1089, -inf
        %1096 = vmax.xlane.f32.xlu0 %v1095
        %v1097 = vpop.xlane.xlu0 %1096
        %v1098 = vsub.f32 %v1089, %v1097
        %v1099 = vmul.f32 %v1098, 1.442695
        %v1100 = vpow.pop %v1099
        %v1101 = vsel %vm1094, %v1100, 0.0
        %1102 = vadd.xlane.f32.xlu0 %v1101
        %v1103 = vpop.xlane.xlu0 %1102
        %v1104 = vrcp.pop %v1103
        %v1105 = vmul.f32 %v1100, %v1104
        %v1106 = vpack.c.bf16 %v1105, %v1105
        %v1108 = vsel %vm1094, %v1106, 0
        %vm1110 = vcmask 1043456
        %v1112 = vsel %vm1110, %v1046, 0
        %1114 = vmatprep.subr.bf16.mxu0 0
        %1115 = vmatpush1.bf16.msra.mxu0 %v1112
        %1116 = vmatprep.subr.bf16.mxu0 0
        %1117 = vmatpush1.bf16.msra.mxu0 0
        %1118 = vmatprep.subr.bf16.mxu0 0
        %1119 = vmatpush1.bf16.msra.mxu0 0
        %1120 = vmatprep.subr.bf16.mxu0 0
        %1121 = vmatpush1.bf16.msra.mxu0 0
        %1122 = vmatprep.subr.bf16.mxu0 0
        %1123 = vmatpush1.bf16.msra.mxu0 0
        %1124 = vmatprep.subr.bf16.mxu0 0
        %1125 = vmatpush1.bf16.msra.mxu0 0
        %1126 = vmatprep.subr.bf16.mxu0 0
        %1127 = vmatpush1.bf16.msra.mxu0 0
        %1128 = vmatprep.subr.bf16.mxu0 0
        %1129 = vmatpush1.bf16.msra.mxu0 0
        %1130 = vmatprep.subr.bf16.mxu0 0
        %1131 = vmatpush1.bf16.msra.mxu0 0
        %1132 = vmatprep.subr.bf16.mxu0 0
        %1133 = vmatpush1.bf16.msra.mxu0 0
        %1134 = vmatprep.subr.bf16.mxu0 0
        %1135 = vmatpush1.bf16.msra.mxu0 0
        %1136 = vmatprep.subr.bf16.mxu0 0
        %1137 = vmatpush1.bf16.msra.mxu0 0
        %1138 = vmatprep.subr.bf16.mxu0 0
        %1139 = vmatpush1.bf16.msra.mxu0 0
        %1140 = vmatprep.subr.bf16.mxu0 0
        %1141 = vmatpush1.bf16.msra.mxu0 0
        %1142 = vmatprep.subr.bf16.mxu0 0
        %1143 = vmatpush1.bf16.msra.mxu0 0
        %1144 = vmatprep.subr.bf16.mxu0 0
        %1145 = vmatpush1.bf16.msra.mxu0 0
        %1146 = vmatprep.mubr.bf16.mxu0 0
        %1147 = vmatmul.mubr.bf16.gmra.mrb[0].mxu0 %v1108
        %v1148 = vpop.f32.mrb[0].mxu0
        %v1149 = vadd.f32 0.0, %v1148
        %v1150 = vpop.f32.mrb[0].mxu0
        %v1151 = vpop.f32.mrb[0].mxu0
        %v1152 = vpop.f32.mrb[0].mxu0
        %1153 = vdwg.mxu0
        %v1154 = vpack.c.bf16 %v1149, %v1149
        %v1155 = vld [vmem:[%s10] sm:$0xf]
        %v1156 = vld [vmem:[%s10 + $0x4] sm:$0xf]
        %s1157 = scalar_lea.vmem %s4, 64
        %v1158 = vld [vmem:[%s1157] sm:$0xf]
        %v1159 = vld [vmem:[%s1157 + $0x4] sm:$0xf]
        %v1160 = vld [vmem:[%s1157 + $0x8] sm:$0xf]
        %v1161 = vld [vmem:[%s1157 + $0xc] sm:$0xf]
        %v1162 = vld [vmem:[%s1157 + $0x10] sm:$0xf]
        %v1163 = vld [vmem:[%s1157 + $0x14] sm:$0xf]
        %v1164 = vld [vmem:[%s1157 + $0x18] sm:$0xf]
        %v1165 = vld [vmem:[%s1157 + $0x1c] sm:$0xf]
        %v1166 = vld [vmem:[%s1157 + $0x20] sm:$0xf]
        %v1167 = vld [vmem:[%s1157 + $0x24] sm:$0xf]
        %v1168 = vld [vmem:[%s1157 + $0x28] sm:$0xf]
        %v1169 = vld [vmem:[%s1157 + $0x2c] sm:$0xf]
        %v1170 = vld [vmem:[%s1157 + $0x30] sm:$0xf]
        %v1171 = vld [vmem:[%s1157 + $0x34] sm:$0xf]
        %v1172 = vld [vmem:[%s1157 + $0x38] sm:$0xf]
        %v1173 = vld [vmem:[%s1157 + $0x3c] sm:$0xf]
        %s1174 = scalar_lea.vmem %s5, 1
        %v1175 = vld [vmem:[%s1174] sm:$0x1]
        %v1177 = vlaneseq
        %v1178 = vshrl.u32 %v1177, 7
        %v1179 = vsub.s32 0, %v1178
        %v1180 = vrot.slane %v1175, %v1179
        %v1198 = vunpack.c.l.b16 %v1158
        %v1199 = vunpack.c.l.b16 %v1159
        %v1200 = vunpack.c.l.b16 %v1160
        %v1201 = vunpack.c.l.b16 %v1161
        %v1202 = vunpack.c.l.b16 %v1162
        %v1203 = vunpack.c.l.b16 %v1163
        %v1204 = vunpack.c.l.b16 %v1164
        %v1205 = vunpack.c.l.b16 %v1165
        %v1206 = vunpack.c.l.b16 %v1166
        %v1207 = vunpack.c.l.b16 %v1167
        %v1208 = vunpack.c.l.b16 %v1168
        %v1209 = vunpack.c.l.b16 %v1169
        %v1210 = vunpack.c.l.b16 %v1170
        %v1211 = vunpack.c.l.b16 %v1171
        %v1212 = vunpack.c.l.b16 %v1172
        %v1213 = vunpack.c.l.b16 %v1173
        %v1214 = vpack.c.b16 %v1199, %v1198
        %v1215 = vpack.c.b16 %v1201, %v1200
        %v1216 = vpack.c.b16 %v1203, %v1202
        %v1217 = vpack.c.b16 %v1205, %v1204
        %v1218 = vpack.c.b16 %v1207, %v1206
        %v1219 = vpack.c.b16 %v1209, %v1208
        %v1220 = vpack.c.b16 %v1211, %v1210
        %v1221 = vpack.c.b16 %v1213, %v1212
        %1230 = vmatprep.subr.bf16.mxu0 0
        %1231 = vmatpush1.bf16.msra.mxu0 %v1214
        %1232 = vmatprep.subr.bf16.mxu0 0
        %1233 = vmatpush1.bf16.msra.mxu0 %v1215
        %1234 = vmatprep.subr.bf16.mxu0 0
        %1235 = vmatpush1.bf16.msra.mxu0 %v1216
        %1236 = vmatprep.subr.bf16.mxu0 0
        %1237 = vmatpush1.bf16.msra.mxu0 %v1217
        %1238 = vmatprep.subr.bf16.mxu0 0
        %1239 = vmatpush1.bf16.msra.mxu0 %v1218
        %1240 = vmatprep.subr.bf16.mxu0 0
        %1241 = vmatpush1.bf16.msra.mxu0 %v1219
        %1242 = vmatprep.subr.bf16.mxu0 0
        %1243 = vmatpush1.bf16.msra.mxu0 %v1220
        %1244 = vmatprep.subr.bf16.mxu0 0
        %1245 = vmatpush1.bf16.msra.mxu0 %v1221
        %1246 = vmatprep.subr.bf16.mxu0 0
        %1247 = vmatpush1.bf16.msra.mxu0 0
        %1248 = vmatprep.subr.bf16.mxu0 0
        %1249 = vmatpush1.bf16.msra.mxu0 0
        %1250 = vmatprep.subr.bf16.mxu0 0
        %1251 = vmatpush1.bf16.msra.mxu0 0
        %1252 = vmatprep.subr.bf16.mxu0 0
        %1253 = vmatpush1.bf16.msra.mxu0 0
        %1254 = vmatprep.subr.bf16.mxu0 0
        %1255 = vmatpush1.bf16.msra.mxu0 0
        %1256 = vmatprep.subr.bf16.mxu0 0
        %1257 = vmatpush1.bf16.msra.mxu0 0
        %1258 = vmatprep.subr.bf16.mxu0 0
        %1259 = vmatpush1.bf16.msra.mxu0 0
        %1260 = vmatprep.subr.bf16.mxu0 0
        %1261 = vmatpush1.bf16.msra.mxu0 0
        %1262 = vmatprep.mubr.bf16.mxu0 0
        %1263 = vmatmul.mubr.bf16.gmra.mrb[0].mxu0 %v710
        %v1264 = vpop.f32.mrb[0].mxu0
        %v1265 = vadd.f32 %v1180, %v1264
        %v1266 = vpop.f32.mrb[0].mxu0
        %v1267 = vpop.f32.mrb[0].mxu0
        %v1268 = vpop.f32.mrb[0].mxu0
        %1269 = vdwg.mxu0
        %v1270 = vpack.c.bf16 %v1265, %v1265
        %s1271 = scalar_lea.vmem %s6, 64
        %v1272 = vld [vmem:[%s1271] sm:$0xf]
        %v1273 = vld [vmem:[%s1271 + $0x4] sm:$0xf]
        %v1274 = vld [vmem:[%s1271 + $0x8] sm:$0xf]
        %v1275 = vld [vmem:[%s1271 + $0xc] sm:$0xf]
        %v1276 = vld [vmem:[%s1271 + $0x10] sm:$0xf]
        %v1277 = vld [vmem:[%s1271 + $0x14] sm:$0xf]
        %v1278 = vld [vmem:[%s1271 + $0x18] sm:$0xf]
        %v1279 = vld [vmem:[%s1271 + $0x1c] sm:$0xf]
        %v1280 = vld [vmem:[%s1271 + $0x20] sm:$0xf]
        %v1281 = vld [vmem:[%s1271 + $0x24] sm:$0xf]
        %v1282 = vld [vmem:[%s1271 + $0x28] sm:$0xf]
        %v1283 = vld [vmem:[%s1271 + $0x2c] sm:$0xf]
        %v1284 = vld [vmem:[%s1271 + $0x30] sm:$0xf]
        %v1285 = vld [vmem:[%s1271 + $0x34] sm:$0xf]
        %v1286 = vld [vmem:[%s1271 + $0x38] sm:$0xf]
        %v1287 = vld [vmem:[%s1271 + $0x3c] sm:$0xf]
        %s1288 = scalar_lea.vmem %s7, 1
        %v1289 = vld [vmem:[%s1288] sm:$0x1]
        %v1291 = vlaneseq
        %v1292 = vshrl.u32 %v1291, 7
        %v1293 = vsub.s32 0, %v1292
        %v1294 = vrot.slane %v1289, %v1293
        %v1312 = vunpack.c.l.b16 %v1272
        %v1313 = vunpack.c.l.b16 %v1273
        %v1314 = vunpack.c.l.b16 %v1274
        %v1315 = vunpack.c.l.b16 %v1275
        %v1316 = vunpack.c.l.b16 %v1276
        %v1317 = vunpack.c.l.b16 %v1277
        %v1318 = vunpack.c.l.b16 %v1278
        %v1319 = vunpack.c.l.b16 %v1279
        %v1320 = vunpack.c.l.b16 %v1280
        %v1321 = vunpack.c.l.b16 %v1281
        %v1322 = vunpack.c.l.b16 %v1282
        %v1323 = vunpack.c.l.b16 %v1283
        %v1324 = vunpack.c.l.b16 %v1284
        %v1325 = vunpack.c.l.b16 %v1285
        %v1326 = vunpack.c.l.b16 %v1286
        %v1327 = vunpack.c.l.b16 %v1287
        %v1328 = vpack.c.b16 %v1313, %v1312
        %v1329 = vpack.c.b16 %v1315, %v1314
        %v1330 = vpack.c.b16 %v1317, %v1316
        %v1331 = vpack.c.b16 %v1319, %v1318
        %v1332 = vpack.c.b16 %v1321, %v1320
        %v1333 = vpack.c.b16 %v1323, %v1322
        %v1334 = vpack.c.b16 %v1325, %v1324
        %v1335 = vpack.c.b16 %v1327, %v1326
        %1344 = vmatprep.subr.bf16.mxu0 0
        %1345 = vmatpush1.bf16.msra.mxu0 %v1328
        %1346 = vmatprep.subr.bf16.mxu0 0
        %1347 = vmatpush1.bf16.msra.mxu0 %v1329
        %1348 = vmatprep.subr.bf16.mxu0 0
        %1349 = vmatpush1.bf16.msra.mxu0 %v1330
        %1350 = vmatprep.subr.bf16.mxu0 0
        %1351 = vmatpush1.bf16.msra.mxu0 %v1331
        %1352 = vmatprep.subr.bf16.mxu0 0
        %1353 = vmatpush1.bf16.msra.mxu0 %v1332
        %1354 = vmatprep.subr.bf16.mxu0 0
        %1355 = vmatpush1.bf16.msra.mxu0 %v1333
        %1356 = vmatprep.subr.bf16.mxu0 0
        %1357 = vmatpush1.bf16.msra.mxu0 %v1334
        %1358 = vmatprep.subr.bf16.mxu0 0
        %1359 = vmatpush1.bf16.msra.mxu0 %v1335
        %1360 = vmatprep.subr.bf16.mxu0 0
        %1361 = vmatpush1.bf16.msra.mxu0 0
        %1362 = vmatprep.subr.bf16.mxu0 0
        %1363 = vmatpush1.bf16.msra.mxu0 0
        %1364 = vmatprep.subr.bf16.mxu0 0
        %1365 = vmatpush1.bf16.msra.mxu0 0
        %1366 = vmatprep.subr.bf16.mxu0 0
        %1367 = vmatpush1.bf16.msra.mxu0 0
        %1368 = vmatprep.subr.bf16.mxu0 0
        %1369 = vmatpush1.bf16.msra.mxu0 0
        %1370 = vmatprep.subr.bf16.mxu0 0
        %1371 = vmatpush1.bf16.msra.mxu0 0
        %1372 = vmatprep.subr.bf16.mxu0 0
        %1373 = vmatpush1.bf16.msra.mxu0 0
        %1374 = vmatprep.subr.bf16.mxu0 0
        %1375 = vmatpush1.bf16.msra.mxu0 0
        %1376 = vmatprep.mubr.bf16.mxu0 0
        %1377 = vmatmul.mubr.bf16.gmra.mrb[0].mxu0 %v710
        %v1378 = vpop.f32.mrb[0].mxu0
        %v1379 = vadd.f32 %v1294, %v1378
        %v1380 = vpop.f32.mrb[0].mxu0
        %v1381 = vpop.f32.mrb[0].mxu0
        %v1382 = vpop.f32.mrb[0].mxu0
        %1383 = vdwg.mxu0
        %v1384 = vpack.c.bf16 %v1379, %v1379
        %s1385 = scalar_lea.vmem %s8, 64
        %v1386 = vld [vmem:[%s1385] sm:$0xf]
        %v1387 = vld [vmem:[%s1385 + $0x4] sm:$0xf]
        %v1388 = vld [vmem:[%s1385 + $0x8] sm:$0xf]
        %v1389 = vld [vmem:[%s1385 + $0xc] sm:$0xf]
        %v1390 = vld [vmem:[%s1385 + $0x10] sm:$0xf]
        %v1391 = vld [vmem:[%s1385 + $0x14] sm:$0xf]
        %v1392 = vld [vmem:[%s1385 + $0x18] sm:$0xf]
        %v1393 = vld [vmem:[%s1385 + $0x1c] sm:$0xf]
        %v1394 = vld [vmem:[%s1385 + $0x20] sm:$0xf]
        %v1395 = vld [vmem:[%s1385 + $0x24] sm:$0xf]
        %v1396 = vld [vmem:[%s1385 + $0x28] sm:$0xf]
        %v1397 = vld [vmem:[%s1385 + $0x2c] sm:$0xf]
        %v1398 = vld [vmem:[%s1385 + $0x30] sm:$0xf]
        %v1399 = vld [vmem:[%s1385 + $0x34] sm:$0xf]
        %v1400 = vld [vmem:[%s1385 + $0x38] sm:$0xf]
        %v1401 = vld [vmem:[%s1385 + $0x3c] sm:$0xf]
        %s1402 = scalar_lea.vmem %s9, 1
        %v1403 = vld [vmem:[%s1402] sm:$0x1]
        %v1405 = vlaneseq
        %v1406 = vshrl.u32 %v1405, 7
        %v1407 = vsub.s32 0, %v1406
        %v1408 = vrot.slane %v1403, %v1407
        %v1426 = vunpack.c.l.b16 %v1386
        %v1427 = vunpack.c.l.b16 %v1387
        %v1428 = vunpack.c.l.b16 %v1388
        %v1429 = vunpack.c.l.b16 %v1389
        %v1430 = vunpack.c.l.b16 %v1390
        %v1431 = vunpack.c.l.b16 %v1391
        %v1432 = vunpack.c.l.b16 %v1392
        %v1433 = vunpack.c.l.b16 %v1393
        %v1434 = vunpack.c.l.b16 %v1394
        %v1435 = vunpack.c.l.b16 %v1395
        %v1436 = vunpack.c.l.b16 %v1396
        %v1437 = vunpack.c.l.b16 %v1397
        %v1438 = vunpack.c.l.b16 %v1398
        %v1439 = vunpack.c.l.b16 %v1399
        %v1440 = vunpack.c.l.b16 %v1400
        %v1441 = vunpack.c.l.b16 %v1401
        %v1442 = vpack.c.b16 %v1427, %v1426
        %v1443 = vpack.c.b16 %v1429, %v1428
        %v1444 = vpack.c.b16 %v1431, %v1430
        %v1445 = vpack.c.b16 %v1433, %v1432
        %v1446 = vpack.c.b16 %v1435, %v1434
        %v1447 = vpack.c.b16 %v1437, %v1436
        %v1448 = vpack.c.b16 %v1439, %v1438
        %v1449 = vpack.c.b16 %v1441, %v1440
        %1458 = vmatprep.subr.bf16.mxu0 0
        %1459 = vmatpush1.bf16.msra.mxu0 %v1442
        %1460 = vmatprep.subr.bf16.mxu0 0
        %1461 = vmatpush1.bf16.msra.mxu0 %v1443
        %1462 = vmatprep.subr.bf16.mxu0 0
        %1463 = vmatpush1.bf16.msra.mxu0 %v1444
        %1464 = vmatprep.subr.bf16.mxu0 0
        %1465 = vmatpush1.bf16.msra.mxu0 %v1445
        %1466 = vmatprep.subr.bf16.mxu0 0
        %1467 = vmatpush1.bf16.msra.mxu0 %v1446
        %1468 = vmatprep.subr.bf16.mxu0 0
        %1469 = vmatpush1.bf16.msra.mxu0 %v1447
        %1470 = vmatprep.subr.bf16.mxu0 0
        %1471 = vmatpush1.bf16.msra.mxu0 %v1448
        %1472 = vmatprep.subr.bf16.mxu0 0
        %1473 = vmatpush1.bf16.msra.mxu0 %v1449
        %1474 = vmatprep.subr.bf16.mxu0 0
        %1475 = vmatpush1.bf16.msra.mxu0 0
        %1476 = vmatprep.subr.bf16.mxu0 0
        %1477 = vmatpush1.bf16.msra.mxu0 0
        %1478 = vmatprep.subr.bf16.mxu0 0
        %1479 = vmatpush1.bf16.msra.mxu0 0
        %1480 = vmatprep.subr.bf16.mxu0 0
        %1481 = vmatpush1.bf16.msra.mxu0 0
        %1482 = vmatprep.subr.bf16.mxu0 0
        %1483 = vmatpush1.bf16.msra.mxu0 0
        %1484 = vmatprep.subr.bf16.mxu0 0
        %1485 = vmatpush1.bf16.msra.mxu0 0
        %1486 = vmatprep.subr.bf16.mxu0 0
        %1487 = vmatpush1.bf16.msra.mxu0 0
        %1488 = vmatprep.subr.bf16.mxu0 0
        %1489 = vmatpush1.bf16.msra.mxu0 0
        %1490 = vmatprep.mubr.bf16.mxu0 0
        %1491 = vmatmul.mubr.bf16.gmra.mrb[0].mxu0 %v710
        %v1492 = vpop.f32.mrb[0].mxu0
        %v1493 = vadd.f32 %v1408, %v1492
        %v1494 = vpop.f32.mrb[0].mxu0
        %v1495 = vpop.f32.mrb[0].mxu0
        %v1496 = vpop.f32.mrb[0].mxu0
        %1497 = vdwg.mxu0
        %v1498 = vpack.c.bf16 %v1493, %v1493
        %v1500 = vsel %vm1047, %v1270, 0
        %v1503 = vsel %vm1047, %v1384, 0
        %1505 = vmatprep.subr.bf16.mxu0 0
        %1506 = vmatpush1.bf16.xpose.msra.mxu0 %v1503
        %1507 = vmatprep.subr.bf16.mxu0 0
        %1508 = vmatpush1.bf16.xpose.msra.mxu0 0
        %1509 = vmatprep.subr.bf16.mxu0 0
        %1510 = vmatpush1.bf16.xpose.msra.mxu0 0
        %1511 = vmatprep.subr.bf16.mxu0 0
        %1512 = vmatpush1.bf16.xpose.msra.mxu0 0
        %1513 = vmatprep.subr.bf16.mxu0 0
        %1514 = vmatpush1.bf16.xpose.msra.mxu0 0
        %1515 = vmatprep.subr.bf16.mxu0 0
        %1516 = vmatpush1.bf16.xpose.msra.mxu0 0
        %1517 = vmatprep.subr.bf16.mxu0 0
        %1518 = vmatpush1.bf16.xpose.msra.mxu0 0
        %1519 = vmatprep.subr.bf16.mxu0 0
        %1520 = vmatpush1.bf16.xpose.msra.mxu0 0
        %1521 = vmatprep.subr.bf16.mxu0 0
        %1522 = vmatpush1.bf16.xpose.msra.mxu0 0
        %1523 = vmatprep.subr.bf16.mxu0 0
        %1524 = vmatpush1.bf16.xpose.msra.mxu0 0
        %1525 = vmatprep.subr.bf16.mxu0 0
        %1526 = vmatpush1.bf16.xpose.msra.mxu0 0
        %1527 = vmatprep.subr.bf16.mxu0 0
        %1528 = vmatpush1.bf16.xpose.msra.mxu0 0
        %1529 = vmatprep.subr.bf16.mxu0 0
        %1530 = vmatpush1.bf16.xpose.msra.mxu0 0
        %1531 = vmatprep.subr.bf16.mxu0 0
        %1532 = vmatpush1.bf16.xpose.msra.mxu0 0
        %1533 = vmatprep.subr.bf16.mxu0 0
        %1534 = vmatpush1.bf16.xpose.msra.mxu0 0
        %1535 = vmatprep.subr.bf16.mxu0 0
        %1536 = vmatpush1.bf16.xpose.msra.mxu0 0
        %1537 = vmatprep.mubr.bf16.mxu0 0
        %1538 = vmatmul.mubr.bf16.gmra.mrb[0].mxu0 %v1500
        %v1539 = vpop.f32.mrb[0].mxu0
        %v1540 = vadd.f32 %v678, %v1539
        %v1541 = vpop.f32.mrb[0].mxu0
        %v1542 = vpop.f32.mrb[0].mxu0
        %v1543 = vpop.f32.mrb[0].mxu0
        %1544 = vdwg.mxu0
        %v1545 = vsel %vm1094, %v1540, -inf
        %1546 = vmax.xlane.f32.xlu0 %v1545
        %v1547 = vpop.xlane.xlu0 %1546
        %v1548 = vsub.f32 %v1540, %v1547
        %v1549 = vmul.f32 %v1548, 1.442695
        %v1550 = vpow.pop %v1549
        %v1551 = vsel %vm1094, %v1550, 0.0
        %1552 = vadd.xlane.f32.xlu0 %v1551
        %v1553 = vpop.xlane.xlu0 %1552
        %v1554 = vrcp.pop %v1553
        %v1555 = vmul.f32 %v1550, %v1554
        %v1556 = vpack.c.bf16 %v1555, %v1555
        %v1558 = vsel %vm1094, %v1556, 0
        %v1561 = vsel %vm1110, %v1498, 0
        %1563 = vmatprep.subr.bf16.mxu0 0
        %1564 = vmatpush1.bf16.msra.mxu0 %v1561
        %1565 = vmatprep.subr.bf16.mxu0 0
        %1566 = vmatpush1.bf16.msra.mxu0 0
        %1567 = vmatprep.subr.bf16.mxu0 0
        %1568 = vmatpush1.bf16.msra.mxu0 0
        %1569 = vmatprep.subr.bf16.mxu0 0
        %1570 = vmatpush1.bf16.msra.mxu0 0
        %1571 = vmatprep.subr.bf16.mxu0 0
        %1572 = vmatpush1.bf16.msra.mxu0 0
        %1573 = vmatprep.subr.bf16.mxu0 0
        %1574 = vmatpush1.bf16.msra.mxu0 0
        %1575 = vmatprep.subr.bf16.mxu0 0
        %1576 = vmatpush1.bf16.msra.mxu0 0
        %1577 = vmatprep.subr.bf16.mxu0 0
        %1578 = vmatpush1.bf16.msra.mxu0 0
        %1579 = vmatprep.subr.bf16.mxu0 0
        %1580 = vmatpush1.bf16.msra.mxu0 0
        %1581 = vmatprep.subr.bf16.mxu0 0
        %1582 = vmatpush1.bf16.msra.mxu0 0
        %1583 = vmatprep.subr.bf16.mxu0 0
        %1584 = vmatpush1.bf16.msra.mxu0 0
        %1585 = vmatprep.subr.bf16.mxu0 0
        %1586 = vmatpush1.bf16.msra.mxu0 0
        %1587 = vmatprep.subr.bf16.mxu0 0
        %1588 = vmatpush1.bf16.msra.mxu0 0
        %1589 = vmatprep.subr.bf16.mxu0 0
        %1590 = vmatpush1.bf16.msra.mxu0 0
        %1591 = vmatprep.subr.bf16.mxu0 0
        %1592 = vmatpush1.bf16.msra.mxu0 0
        %1593 = vmatprep.subr.bf16.mxu0 0
        %1594 = vmatpush1.bf16.msra.mxu0 0
        %1595 = vmatprep.mubr.bf16.mxu0 0
        %1596 = vmatmul.mubr.bf16.gmra.mrb[0].mxu0 %v1558
        %v1597 = vpop.f32.mrb[0].mxu0
        %v1598 = vadd.f32 0.0, %v1597
        %v1599 = vpop.f32.mrb[0].mxu0
        %v1600 = vpop.f32.mrb[0].mxu0
        %v1601 = vpop.f32.mrb[0].mxu0
        %1602 = vdwg.mxu0
        %v1603 = vpack.c.bf16 %v1598, %v1598
        %s1604 = scalar_lea.vmem %s10, 8
        %v1605 = vld [vmem:[%s1604] sm:$0xf]
        %v1606 = vld [vmem:[%s1604 + $0x4] sm:$0xf]
        %v1609 = vunpack.c.l.b16 %v1605
        %v1610 = vunpack.c.l.b16 %v1606
        %v1611 = vpack.c.b16 %v1610, %v1609
        %v1614 = vsel %vm1047, %v1603, 0
        %1616 = vmatprep.subr.bf16.mxu0 0
        %1617 = vmatpush1.bf16.msra.mxu0 %v1611
        %1618 = vmatprep.subr.bf16.mxu0 0
        %1619 = vmatpush1.bf16.msra.mxu0 0
        %1620 = vmatprep.subr.bf16.mxu0 0
        %1621 = vmatpush1.bf16.msra.mxu0 0
        %1622 = vmatprep.subr.bf16.mxu0 0
        %1623 = vmatpush1.bf16.msra.mxu0 0
        %1624 = vmatprep.subr.bf16.mxu0 0
        %1625 = vmatpush1.bf16.msra.mxu0 0
        %1626 = vmatprep.subr.bf16.mxu0 0
        %1627 = vmatpush1.bf16.msra.mxu0 0
        %1628 = vmatprep.subr.bf16.mxu0 0
        %1629 = vmatpush1.bf16.msra.mxu0 0
        %1630 = vmatprep.subr.bf16.mxu0 0
        %1631 = vmatpush1.bf16.msra.mxu0 0
        %1632 = vmatprep.subr.bf16.mxu0 0
        %1633 = vmatpush1.bf16.msra.mxu0 0
        %1634 = vmatprep.subr.bf16.mxu0 0
        %1635 = vmatpush1.bf16.msra.mxu0 0
        %1636 = vmatprep.subr.bf16.mxu0 0
        %1637 = vmatpush1.bf16.msra.mxu0 0
        %1638 = vmatprep.subr.bf16.mxu0 0
        %1639 = vmatpush1.bf16.msra.mxu0 0
        %1640 = vmatprep.subr.bf16.mxu0 0
        %1641 = vmatpush1.bf16.msra.mxu0 0
        %1642 = vmatprep.subr.bf16.mxu0 0
        %1643 = vmatpush1.bf16.msra.mxu0 0
        %1644 = vmatprep.subr.bf16.mxu0 0
        %1645 = vmatpush1.bf16.msra.mxu0 0
        %1646 = vmatprep.subr.bf16.mxu0 0
        %1647 = vmatpush1.bf16.msra.mxu0 0
        %1648 = vmatprep.mubr.bf16.mxu0 0
        %1649 = vmatmul.mubr.bf16.gmra.mrb[0].mxu0 %v1614
        %v1650 = vpop.f32.mrb[0].mxu0
        %v1651 = vadd.f32 0.0, %v1650
        %v1652 = vpop.f32.mrb[0].mxu0
        %v1653 = vpop.f32.mrb[0].mxu0
        %v1654 = vpop.f32.mrb[0].mxu0
        %1655 = vdwg.mxu0
        %v1658 = vunpack.c.l.b16 %v1155
        %v1659 = vunpack.c.l.b16 %v1156
        %v1660 = vpack.c.b16 %v1659, %v1658
        %v1663 = vsel %vm1047, %v1154, 0
        %1665 = vmatprep.subr.bf16.mxu0 0
        %1666 = vmatpush1.bf16.msra.mxu0 %v1660
        %1667 = vmatprep.subr.bf16.mxu0 0
        %1668 = vmatpush1.bf16.msra.mxu0 0
        %1669 = vmatprep.subr.bf16.mxu0 0
        %1670 = vmatpush1.bf16.msra.mxu0 0
        %1671 = vmatprep.subr.bf16.mxu0 0
        %1672 = vmatpush1.bf16.msra.mxu0 0
        %1673 = vmatprep.subr.bf16.mxu0 0
        %1674 = vmatpush1.bf16.msra.mxu0 0
        %1675 = vmatprep.subr.bf16.mxu0 0
        %1676 = vmatpush1.bf16.msra.mxu0 0
        %1677 = vmatprep.subr.bf16.mxu0 0
        %1678 = vmatpush1.bf16.msra.mxu0 0
        %1679 = vmatprep.subr.bf16.mxu0 0
        %1680 = vmatpush1.bf16.msra.mxu0 0
        %1681 = vmatprep.subr.bf16.mxu0 0
        %1682 = vmatpush1.bf16.msra.mxu0 0
        %1683 = vmatprep.subr.bf16.mxu0 0
        %1684 = vmatpush1.bf16.msra.mxu0 0
        %1685 = vmatprep.subr.bf16.mxu0 0
        %1686 = vmatpush1.bf16.msra.mxu0 0
        %1687 = vmatprep.subr.bf16.mxu0 0
        %1688 = vmatpush1.bf16.msra.mxu0 0
        %1689 = vmatprep.subr.bf16.mxu0 0
        %1690 = vmatpush1.bf16.msra.mxu0 0
        %1691 = vmatprep.subr.bf16.mxu0 0
        %1692 = vmatpush1.bf16.msra.mxu0 0
        %1693 = vmatprep.subr.bf16.mxu0 0
        %1694 = vmatpush1.bf16.msra.mxu0 0
        %1695 = vmatprep.subr.bf16.mxu0 0
        %1696 = vmatpush1.bf16.msra.mxu0 0
        %1697 = vmatprep.mubr.bf16.mxu0 0
        %1698 = vmatmul.mubr.bf16.gmra.mrb[0].mxu0 %v1663
        %v1699 = vpop.f32.mrb[0].mxu0
        %v1700 = vadd.f32 %v1651, %v1699
        %v1701 = vpop.f32.mrb[0].mxu0
        %v1702 = vpop.f32.mrb[0].mxu0
        %v1703 = vpop.f32.mrb[0].mxu0
        %1704 = vdwg.mxu0
        %s1705 = scalar_lea.vmem %s4, 128
        %v1706 = vld [vmem:[%s1705] sm:$0xf]
        %v1707 = vld [vmem:[%s1705 + $0x4] sm:$0xf]
        %v1708 = vld [vmem:[%s1705 + $0x8] sm:$0xf]
        %v1709 = vld [vmem:[%s1705 + $0xc] sm:$0xf]
        %v1710 = vld [vmem:[%s1705 + $0x10] sm:$0xf]
        %v1711 = vld [vmem:[%s1705 + $0x14] sm:$0xf]
        %v1712 = vld [vmem:[%s1705 + $0x18] sm:$0xf]
        %v1713 = vld [vmem:[%s1705 + $0x1c] sm:$0xf]
        %v1714 = vld [vmem:[%s1705 + $0x20] sm:$0xf]
        %v1715 = vld [vmem:[%s1705 + $0x24] sm:$0xf]
        %v1716 = vld [vmem:[%s1705 + $0x28] sm:$0xf]
        %v1717 = vld [vmem:[%s1705 + $0x2c] sm:$0xf]
        %v1718 = vld [vmem:[%s1705 + $0x30] sm:$0xf]
        %v1719 = vld [vmem:[%s1705 + $0x34] sm:$0xf]
        %v1720 = vld [vmem:[%s1705 + $0x38] sm:$0xf]
        %v1721 = vld [vmem:[%s1705 + $0x3c] sm:$0xf]
        %s1722 = scalar_lea.vmem %s5, 2
        %v1723 = vld [vmem:[%s1722] sm:$0x1]
        %v1725 = vlaneseq
        %v1726 = vshrl.u32 %v1725, 7
        %v1727 = vsub.s32 0, %v1726
        %v1728 = vrot.slane %v1723, %v1727
        %v1746 = vunpack.c.l.b16 %v1706
        %v1747 = vunpack.c.l.b16 %v1707
        %v1748 = vunpack.c.l.b16 %v1708
        %v1749 = vunpack.c.l.b16 %v1709
        %v1750 = vunpack.c.l.b16 %v1710
        %v1751 = vunpack.c.l.b16 %v1711
        %v1752 = vunpack.c.l.b16 %v1712
        %v1753 = vunpack.c.l.b16 %v1713
        %v1754 = vunpack.c.l.b16 %v1714
        %v1755 = vunpack.c.l.b16 %v1715
        %v1756 = vunpack.c.l.b16 %v1716
        %v1757 = vunpack.c.l.b16 %v1717
        %v1758 = vunpack.c.l.b16 %v1718
        %v1759 = vunpack.c.l.b16 %v1719
        %v1760 = vunpack.c.l.b16 %v1720
        %v1761 = vunpack.c.l.b16 %v1721
        %v1762 = vpack.c.b16 %v1747, %v1746
        %v1763 = vpack.c.b16 %v1749, %v1748
        %v1764 = vpack.c.b16 %v1751, %v1750
        %v1765 = vpack.c.b16 %v1753, %v1752
        %v1766 = vpack.c.b16 %v1755, %v1754
        %v1767 = vpack.c.b16 %v1757, %v1756
        %v1768 = vpack.c.b16 %v1759, %v1758
        %v1769 = vpack.c.b16 %v1761, %v1760
        %1778 = vmatprep.subr.bf16.mxu0 0
        %1779 = vmatpush1.bf16.msra.mxu0 %v1762
        %1780 = vmatprep.subr.bf16.mxu0 0
        %1781 = vmatpush1.bf16.msra.mxu0 %v1763
        %1782 = vmatprep.subr.bf16.mxu0 0
        %1783 = vmatpush1.bf16.msra.mxu0 %v1764
        %1784 = vmatprep.subr.bf16.mxu0 0
        %1785 = vmatpush1.bf16.msra.mxu0 %v1765
        %1786 = vmatprep.subr.bf16.mxu0 0
        %1787 = vmatpush1.bf16.msra.mxu0 %v1766
        %1788 = vmatprep.subr.bf16.mxu0 0
        %1789 = vmatpush1.bf16.msra.mxu0 %v1767
        %1790 = vmatprep.subr.bf16.mxu0 0
        %1791 = vmatpush1.bf16.msra.mxu0 %v1768
        %1792 = vmatprep.subr.bf16.mxu0 0
        %1793 = vmatpush1.bf16.msra.mxu0 %v1769
        %1794 = vmatprep.subr.bf16.mxu0 0
        %1795 = vmatpush1.bf16.msra.mxu0 0
        %1796 = vmatprep.subr.bf16.mxu0 0
        %1797 = vmatpush1.bf16.msra.mxu0 0
        %1798 = vmatprep.subr.bf16.mxu0 0
        %1799 = vmatpush1.bf16.msra.mxu0 0
        %1800 = vmatprep.subr.bf16.mxu0 0
        %1801 = vmatpush1.bf16.msra.mxu0 0
        %1802 = vmatprep.subr.bf16.mxu0 0
        %1803 = vmatpush1.bf16.msra.mxu0 0
        %1804 = vmatprep.subr.bf16.mxu0 0
        %1805 = vmatpush1.bf16.msra.mxu0 0
        %1806 = vmatprep.subr.bf16.mxu0 0
        %1807 = vmatpush1.bf16.msra.mxu0 0
        %1808 = vmatprep.subr.bf16.mxu0 0
        %1809 = vmatpush1.bf16.msra.mxu0 0
        %1810 = vmatprep.mubr.bf16.mxu0 0
        %1811 = vmatmul.mubr.bf16.gmra.mrb[0].mxu0 %v710
        %v1812 = vpop.f32.mrb[0].mxu0
        %v1813 = vadd.f32 %v1728, %v1812
        %v1814 = vpop.f32.mrb[0].mxu0
        %v1815 = vpop.f32.mrb[0].mxu0
        %v1816 = vpop.f32.mrb[0].mxu0
        %1817 = vdwg.mxu0
        %v1818 = vpack.c.bf16 %v1813, %v1813
        %s1819 = scalar_lea.vmem %s6, 128
        %v1820 = vld [vmem:[%s1819] sm:$0xf]
        %v1821 = vld [vmem:[%s1819 + $0x4] sm:$0xf]
        %v1822 = vld [vmem:[%s1819 + $0x8] sm:$0xf]
        %v1823 = vld [vmem:[%s1819 + $0xc] sm:$0xf]
        %v1824 = vld [vmem:[%s1819 + $0x10] sm:$0xf]
        %v1825 = vld [vmem:[%s1819 + $0x14] sm:$0xf]
        %v1826 = vld [vmem:[%s1819 + $0x18] sm:$0xf]
        %v1827 = vld [vmem:[%s1819 + $0x1c] sm:$0xf]
        %v1828 = vld [vmem:[%s1819 + $0x20] sm:$0xf]
        %v1829 = vld [vmem:[%s1819 + $0x24] sm:$0xf]
        %v1830 = vld [vmem:[%s1819 + $0x28] sm:$0xf]
        %v1831 = vld [vmem:[%s1819 + $0x2c] sm:$0xf]
        %v1832 = vld [vmem:[%s1819 + $0x30] sm:$0xf]
        %v1833 = vld [vmem:[%s1819 + $0x34] sm:$0xf]
        %v1834 = vld [vmem:[%s1819 + $0x38] sm:$0xf]
        %v1835 = vld [vmem:[%s1819 + $0x3c] sm:$0xf]
        %s1836 = scalar_lea.vmem %s7, 2
        %v1837 = vld [vmem:[%s1836] sm:$0x1]
        %v1839 = vlaneseq
        %v1840 = vshrl.u32 %v1839, 7
        %v1841 = vsub.s32 0, %v1840
        %v1842 = vrot.slane %v1837, %v1841
        %v1860 = vunpack.c.l.b16 %v1820
        %v1861 = vunpack.c.l.b16 %v1821
        %v1862 = vunpack.c.l.b16 %v1822
        %v1863 = vunpack.c.l.b16 %v1823
        %v1864 = vunpack.c.l.b16 %v1824
        %v1865 = vunpack.c.l.b16 %v1825
        %v1866 = vunpack.c.l.b16 %v1826
        %v1867 = vunpack.c.l.b16 %v1827
        %v1868 = vunpack.c.l.b16 %v1828
        %v1869 = vunpack.c.l.b16 %v1829
        %v1870 = vunpack.c.l.b16 %v1830
        %v1871 = vunpack.c.l.b16 %v1831
        %v1872 = vunpack.c.l.b16 %v1832
        %v1873 = vunpack.c.l.b16 %v1833
        %v1874 = vunpack.c.l.b16 %v1834
        %v1875 = vunpack.c.l.b16 %v1835
        %v1876 = vpack.c.b16 %v1861, %v1860
        %v1877 = vpack.c.b16 %v1863, %v1862
        %v1878 = vpack.c.b16 %v1865, %v1864
        %v1879 = vpack.c.b16 %v1867, %v1866
        %v1880 = vpack.c.b16 %v1869, %v1868
        %v1881 = vpack.c.b16 %v1871, %v1870
        %v1882 = vpack.c.b16 %v1873, %v1872
        %v1883 = vpack.c.b16 %v1875, %v1874
        %1892 = vmatprep.subr.bf16.mxu0 0
        %1893 = vmatpush1.bf16.msra.mxu0 %v1876
        %1894 = vmatprep.subr.bf16.mxu0 0
        %1895 = vmatpush1.bf16.msra.mxu0 %v1877
        %1896 = vmatprep.subr.bf16.mxu0 0
        %1897 = vmatpush1.bf16.msra.mxu0 %v1878
        %1898 = vmatprep.subr.bf16.mxu0 0
        %1899 = vmatpush1.bf16.msra.mxu0 %v1879
        %1900 = vmatprep.subr.bf16.mxu0 0
        %1901 = vmatpush1.bf16.msra.mxu0 %v1880
        %1902 = vmatprep.subr.bf16.mxu0 0
        %1903 = vmatpush1.bf16.msra.mxu0 %v1881
        %1904 = vmatprep.subr.bf16.mxu0 0
        %1905 = vmatpush1.bf16.msra.mxu0 %v1882
        %1906 = vmatprep.subr.bf16.mxu0 0
        %1907 = vmatpush1.bf16.msra.mxu0 %v1883
        %1908 = vmatprep.subr.bf16.mxu0 0
        %1909 = vmatpush1.bf16.msra.mxu0 0
        %1910 = vmatprep.subr.bf16.mxu0 0
        %1911 = vmatpush1.bf16.msra.mxu0 0
        %1912 = vmatprep.subr.bf16.mxu0 0
        %1913 = vmatpush1.bf16.msra.mxu0 0
        %1914 = vmatprep.subr.bf16.mxu0 0
        %1915 = vmatpush1.bf16.msra.mxu0 0
        %1916 = vmatprep.subr.bf16.mxu0 0
        %1917 = vmatpush1.bf16.msra.mxu0 0
        %1918 = vmatprep.subr.bf16.mxu0 0
        %1919 = vmatpush1.bf16.msra.mxu0 0
        %1920 = vmatprep.subr.bf16.mxu0 0
        %1921 = vmatpush1.bf16.msra.mxu0 0
        %1922 = vmatprep.subr.bf16.mxu0 0
        %1923 = vmatpush1.bf16.msra.mxu0 0
        %1924 = vmatprep.mubr.bf16.mxu0 0
        %1925 = vmatmul.mubr.bf16.gmra.mrb[0].mxu0 %v710
        %v1926 = vpop.f32.mrb[0].mxu0
        %v1927 = vadd.f32 %v1842, %v1926
        %v1928 = vpop.f32.mrb[0].mxu0
        %v1929 = vpop.f32.mrb[0].mxu0
        %v1930 = vpop.f32.mrb[0].mxu0
        %1931 = vdwg.mxu0
        %v1932 = vpack.c.bf16 %v1927, %v1927
        %s1933 = scalar_lea.vmem %s8, 128
        %v1934 = vld [vmem:[%s1933] sm:$0xf]
        %v1935 = vld [vmem:[%s1933 + $0x4] sm:$0xf]
        %v1936 = vld [vmem:[%s1933 + $0x8] sm:$0xf]
        %v1937 = vld [vmem:[%s1933 + $0xc] sm:$0xf]
        %v1938 = vld [vmem:[%s1933 + $0x10] sm:$0xf]
        %v1939 = vld [vmem:[%s1933 + $0x14] sm:$0xf]
        %v1940 = vld [vmem:[%s1933 + $0x18] sm:$0xf]
        %v1941 = vld [vmem:[%s1933 + $0x1c] sm:$0xf]
        %v1942 = vld [vmem:[%s1933 + $0x20] sm:$0xf]
        %v1943 = vld [vmem:[%s1933 + $0x24] sm:$0xf]
        %v1944 = vld [vmem:[%s1933 + $0x28] sm:$0xf]
        %v1945 = vld [vmem:[%s1933 + $0x2c] sm:$0xf]
        %v1946 = vld [vmem:[%s1933 + $0x30] sm:$0xf]
        %v1947 = vld [vmem:[%s1933 + $0x34] sm:$0xf]
        %v1948 = vld [vmem:[%s1933 + $0x38] sm:$0xf]
        %v1949 = vld [vmem:[%s1933 + $0x3c] sm:$0xf]
        %s1950 = scalar_lea.vmem %s9, 2
        %v1951 = vld [vmem:[%s1950] sm:$0x1]
        %v1953 = vlaneseq
        %v1954 = vshrl.u32 %v1953, 7
        %v1955 = vsub.s32 0, %v1954
        %v1956 = vrot.slane %v1951, %v1955
        %v1974 = vunpack.c.l.b16 %v1934
        %v1975 = vunpack.c.l.b16 %v1935
        %v1976 = vunpack.c.l.b16 %v1936
        %v1977 = vunpack.c.l.b16 %v1937
        %v1978 = vunpack.c.l.b16 %v1938
        %v1979 = vunpack.c.l.b16 %v1939
        %v1980 = vunpack.c.l.b16 %v1940
        %v1981 = vunpack.c.l.b16 %v1941
        %v1982 = vunpack.c.l.b16 %v1942
        %v1983 = vunpack.c.l.b16 %v1943
        %v1984 = vunpack.c.l.b16 %v1944
        %v1985 = vunpack.c.l.b16 %v1945
        %v1986 = vunpack.c.l.b16 %v1946
        %v1987 = vunpack.c.l.b16 %v1947
        %v1988 = vunpack.c.l.b16 %v1948
        %v1989 = vunpack.c.l.b16 %v1949
        %v1990 = vpack.c.b16 %v1975, %v1974
        %v1991 = vpack.c.b16 %v1977, %v1976
        %v1992 = vpack.c.b16 %v1979, %v1978
        %v1993 = vpack.c.b16 %v1981, %v1980
        %v1994 = vpack.c.b16 %v1983, %v1982
        %v1995 = vpack.c.b16 %v1985, %v1984
        %v1996 = vpack.c.b16 %v1987, %v1986
        %v1997 = vpack.c.b16 %v1989, %v1988
        %2006 = vmatprep.subr.bf16.mxu0 0
        %2007 = vmatpush1.bf16.msra.mxu0 %v1990
        %2008 = vmatprep.subr.bf16.mxu0 0
        %2009 = vmatpush1.bf16.msra.mxu0 %v1991
        %2010 = vmatprep.subr.bf16.mxu0 0
        %2011 = vmatpush1.bf16.msra.mxu0 %v1992
        %2012 = vmatprep.subr.bf16.mxu0 0
        %2013 = vmatpush1.bf16.msra.mxu0 %v1993
        %2014 = vmatprep.subr.bf16.mxu0 0
        %2015 = vmatpush1.bf16.msra.mxu0 %v1994
        %2016 = vmatprep.subr.bf16.mxu0 0
        %2017 = vmatpush1.bf16.msra.mxu0 %v1995
        %2018 = vmatprep.subr.bf16.mxu0 0
        %2019 = vmatpush1.bf16.msra.mxu0 %v1996
        %2020 = vmatprep.subr.bf16.mxu0 0
        %2021 = vmatpush1.bf16.msra.mxu0 %v1997
        %2022 = vmatprep.subr.bf16.mxu0 0
        %2023 = vmatpush1.bf16.msra.mxu0 0
        %2024 = vmatprep.subr.bf16.mxu0 0
        %2025 = vmatpush1.bf16.msra.mxu0 0
        %2026 = vmatprep.subr.bf16.mxu0 0
        %2027 = vmatpush1.bf16.msra.mxu0 0
        %2028 = vmatprep.subr.bf16.mxu0 0
        %2029 = vmatpush1.bf16.msra.mxu0 0
        %2030 = vmatprep.subr.bf16.mxu0 0
        %2031 = vmatpush1.bf16.msra.mxu0 0
        %2032 = vmatprep.subr.bf16.mxu0 0
        %2033 = vmatpush1.bf16.msra.mxu0 0
        %2034 = vmatprep.subr.bf16.mxu0 0
        %2035 = vmatpush1.bf16.msra.mxu0 0
        %2036 = vmatprep.subr.bf16.mxu0 0
        %2037 = vmatpush1.bf16.msra.mxu0 0
        %2038 = vmatprep.mubr.bf16.mxu0 0
        %2039 = vmatmul.mubr.bf16.gmra.mrb[0].mxu0 %v710
        %v2040 = vpop.f32.mrb[0].mxu0
        %v2041 = vadd.f32 %v1956, %v2040
        %v2042 = vpop.f32.mrb[0].mxu0
        %v2043 = vpop.f32.mrb[0].mxu0
        %v2044 = vpop.f32.mrb[0].mxu0
        %2045 = vdwg.mxu0
        %v2046 = vpack.c.bf16 %v2041, %v2041
        %v2048 = vsel %vm1047, %v1818, 0
        %v2051 = vsel %vm1047, %v1932, 0
        %2053 = vmatprep.subr.bf16.mxu0 0
        %2054 = vmatpush1.bf16.xpose.msra.mxu0 %v2051
        %2055 = vmatprep.subr.bf16.mxu0 0
        %2056 = vmatpush1.bf16.xpose.msra.mxu0 0
        %2057 = vmatprep.subr.bf16.mxu0 0
        %2058 = vmatpush1.bf16.xpose.msra.mxu0 0
        %2059 = vmatprep.subr.bf16.mxu0 0
        %2060 = vmatpush1.bf16.xpose.msra.mxu0 0
        %2061 = vmatprep.subr.bf16.mxu0 0
        %2062 = vmatpush1.bf16.xpose.msra.mxu0 0
        %2063 = vmatprep.subr.bf16.mxu0 0
        %2064 = vmatpush1.bf16.xpose.msra.mxu0 0
        %2065 = vmatprep.subr.bf16.mxu0 0
        %2066 = vmatpush1.bf16.xpose.msra.mxu0 0
        %2067 = vmatprep.subr.bf16.mxu0 0
        %2068 = vmatpush1.bf16.xpose.msra.mxu0 0
        %2069 = vmatprep.subr.bf16.mxu0 0
        %2070 = vmatpush1.bf16.xpose.msra.mxu0 0
        %2071 = vmatprep.subr.bf16.mxu0 0
        %2072 = vmatpush1.bf16.xpose.msra.mxu0 0
        %2073 = vmatprep.subr.bf16.mxu0 0
        %2074 = vmatpush1.bf16.xpose.msra.mxu0 0
        %2075 = vmatprep.subr.bf16.mxu0 0
        %2076 = vmatpush1.bf16.xpose.msra.mxu0 0
        %2077 = vmatprep.subr.bf16.mxu0 0
        %2078 = vmatpush1.bf16.xpose.msra.mxu0 0
        %2079 = vmatprep.subr.bf16.mxu0 0
        %2080 = vmatpush1.bf16.xpose.msra.mxu0 0
        %2081 = vmatprep.subr.bf16.mxu0 0
        %2082 = vmatpush1.bf16.xpose.msra.mxu0 0
        %2083 = vmatprep.subr.bf16.mxu0 0
        %2084 = vmatpush1.bf16.xpose.msra.mxu0 0
        %2085 = vmatprep.mubr.bf16.mxu0 0
        %2086 = vmatmul.mubr.bf16.gmra.mrb[0].mxu0 %v2048
        %v2087 = vpop.f32.mrb[0].mxu0
        %v2088 = vadd.f32 %v678, %v2087
        %v2089 = vpop.f32.mrb[0].mxu0
        %v2090 = vpop.f32.mrb[0].mxu0
        %v2091 = vpop.f32.mrb[0].mxu0
        %2092 = vdwg.mxu0
        %v2093 = vsel %vm1094, %v2088, -inf
        %2094 = vmax.xlane.f32.xlu0 %v2093
        %v2095 = vpop.xlane.xlu0 %2094
        %v2096 = vsub.f32 %v2088, %v2095
        %v2097 = vmul.f32 %v2096, 1.442695
        %v2098 = vpow.pop %v2097
        %v2099 = vsel %vm1094, %v2098, 0.0
        %2100 = vadd.xlane.f32.xlu0 %v2099
        %v2101 = vpop.xlane.xlu0 %2100
        %v2102 = vrcp.pop %v2101
        %v2103 = vmul.f32 %v2098, %v2102
        %v2104 = vpack.c.bf16 %v2103, %v2103
        %v2106 = vsel %vm1094, %v2104, 0
        %v2109 = vsel %vm1110, %v2046, 0
        %2111 = vmatprep.subr.bf16.mxu0 0
        %2112 = vmatpush1.bf16.msra.mxu0 %v2109
        %2113 = vmatprep.subr.bf16.mxu0 0
        %2114 = vmatpush1.bf16.msra.mxu0 0
        %2115 = vmatprep.subr.bf16.mxu0 0
        %2116 = vmatpush1.bf16.msra.mxu0 0
        %2117 = vmatprep.subr.bf16.mxu0 0
        %2118 = vmatpush1.bf16.msra.mxu0 0
        %2119 = vmatprep.subr.bf16.mxu0 0
        %2120 = vmatpush1.bf16.msra.mxu0 0
        %2121 = vmatprep.subr.bf16.mxu0 0
        %2122 = vmatpush1.bf16.msra.mxu0 0
        %2123 = vmatprep.subr.bf16.mxu0 0
        %2124 = vmatpush1.bf16.msra.mxu0 0
        %2125 = vmatprep.subr.bf16.mxu0 0
        %2126 = vmatpush1.bf16.msra.mxu0 0
        %2127 = vmatprep.subr.bf16.mxu0 0
        %2128 = vmatpush1.bf16.msra.mxu0 0
        %2129 = vmatprep.subr.bf16.mxu0 0
        %2130 = vmatpush1.bf16.msra.mxu0 0
        %2131 = vmatprep.subr.bf16.mxu0 0
        %2132 = vmatpush1.bf16.msra.mxu0 0
        %2133 = vmatprep.subr.bf16.mxu0 0
        %2134 = vmatpush1.bf16.msra.mxu0 0
        %2135 = vmatprep.subr.bf16.mxu0 0
        %2136 = vmatpush1.bf16.msra.mxu0 0
        %2137 = vmatprep.subr.bf16.mxu0 0
        %2138 = vmatpush1.bf16.msra.mxu0 0
        %2139 = vmatprep.subr.bf16.mxu0 0
        %2140 = vmatpush1.bf16.msra.mxu0 0
        %2141 = vmatprep.subr.bf16.mxu0 0
        %2142 = vmatpush1.bf16.msra.mxu0 0
        %2143 = vmatprep.mubr.bf16.mxu0 0
        %2144 = vmatmul.mubr.bf16.gmra.mrb[0].mxu0 %v2106
        %v2145 = vpop.f32.mrb[0].mxu0
        %v2146 = vadd.f32 0.0, %v2145
        %v2147 = vpop.f32.mrb[0].mxu0
        %v2148 = vpop.f32.mrb[0].mxu0
        %v2149 = vpop.f32.mrb[0].mxu0
        %2150 = vdwg.mxu0
        %v2151 = vpack.c.bf16 %v2146, %v2146
        %s2152 = scalar_lea.vmem %s10, 16
        %v2153 = vld [vmem:[%s2152] sm:$0xf]
        %v2154 = vld [vmem:[%s2152 + $0x4] sm:$0xf]
        %v2157 = vunpack.c.l.b16 %v2153
        %v2158 = vunpack.c.l.b16 %v2154
        %v2159 = vpack.c.b16 %v2158, %v2157
        %v2162 = vsel %vm1047, %v2151, 0
        %2164 = vmatprep.subr.bf16.mxu0 0
        %2165 = vmatpush1.bf16.msra.mxu0 %v2159
        %2166 = vmatprep.subr.bf16.mxu0 0
        %2167 = vmatpush1.bf16.msra.mxu0 0
        %2168 = vmatprep.subr.bf16.mxu0 0
        %2169 = vmatpush1.bf16.msra.mxu0 0
        %2170 = vmatprep.subr.bf16.mxu0 0
        %2171 = vmatpush1.bf16.msra.mxu0 0
        %2172 = vmatprep.subr.bf16.mxu0 0
        %2173 = vmatpush1.bf16.msra.mxu0 0
        %2174 = vmatprep.subr.bf16.mxu0 0
        %2175 = vmatpush1.bf16.msra.mxu0 0
        %2176 = vmatprep.subr.bf16.mxu0 0
        %2177 = vmatpush1.bf16.msra.mxu0 0
        %2178 = vmatprep.subr.bf16.mxu0 0
        %2179 = vmatpush1.bf16.msra.mxu0 0
        %2180 = vmatprep.subr.bf16.mxu0 0
        %2181 = vmatpush1.bf16.msra.mxu0 0
        %2182 = vmatprep.subr.bf16.mxu0 0
        %2183 = vmatpush1.bf16.msra.mxu0 0
        %2184 = vmatprep.subr.bf16.mxu0 0
        %2185 = vmatpush1.bf16.msra.mxu0 0
        %2186 = vmatprep.subr.bf16.mxu0 0
        %2187 = vmatpush1.bf16.msra.mxu0 0
        %2188 = vmatprep.subr.bf16.mxu0 0
        %2189 = vmatpush1.bf16.msra.mxu0 0
        %2190 = vmatprep.subr.bf16.mxu0 0
        %2191 = vmatpush1.bf16.msra.mxu0 0
        %2192 = vmatprep.subr.bf16.mxu0 0
        %2193 = vmatpush1.bf16.msra.mxu0 0
        %2194 = vmatprep.subr.bf16.mxu0 0
        %2195 = vmatpush1.bf16.msra.mxu0 0
        %2196 = vmatprep.mubr.bf16.mxu0 0
        %2197 = vmatmul.mubr.bf16.gmra.mrb[0].mxu0 %v2162
        %v2198 = vpop.f32.mrb[0].mxu0
        %v2199 = vadd.f32 0.0, %v2198
        %v2200 = vpop.f32.mrb[0].mxu0
        %v2201 = vpop.f32.mrb[0].mxu0
        %v2202 = vpop.f32.mrb[0].mxu0
        %2203 = vdwg.mxu0
        %v2204 = vadd.f32 %v1700, %v2199
        %s2205 = scalar_lea.vmem %s4, 192
        %v2206 = vld [vmem:[%s2205] sm:$0xf]
        %v2207 = vld [vmem:[%s2205 + $0x4] sm:$0xf]
        %v2208 = vld [vmem:[%s2205 + $0x8] sm:$0xf]
        %v2209 = vld [vmem:[%s2205 + $0xc] sm:$0xf]
        %v2210 = vld [vmem:[%s2205 + $0x10] sm:$0xf]
        %v2211 = vld [vmem:[%s2205 + $0x14] sm:$0xf]
        %v2212 = vld [vmem:[%s2205 + $0x18] sm:$0xf]
        %v2213 = vld [vmem:[%s2205 + $0x1c] sm:$0xf]
        %v2214 = vld [vmem:[%s2205 + $0x20] sm:$0xf]
        %v2215 = vld [vmem:[%s2205 + $0x24] sm:$0xf]
        %v2216 = vld [vmem:[%s2205 + $0x28] sm:$0xf]
        %v2217 = vld [vmem:[%s2205 + $0x2c] sm:$0xf]
        %v2218 = vld [vmem:[%s2205 + $0x30] sm:$0xf]
        %v2219 = vld [vmem:[%s2205 + $0x34] sm:$0xf]
        %v2220 = vld [vmem:[%s2205 + $0x38] sm:$0xf]
        %v2221 = vld [vmem:[%s2205 + $0x3c] sm:$0xf]
        %s2222 = scalar_lea.vmem %s5, 3
        %v2223 = vld [vmem:[%s2222] sm:$0x1]
        %v2225 = vlaneseq
        %v2226 = vshrl.u32 %v2225, 7
        %v2227 = vsub.s32 0, %v2226
        %v2228 = vrot.slane %v2223, %v2227
        %v2246 = vunpack.c.l.b16 %v2206
        %v2247 = vunpack.c.l.b16 %v2207
        %v2248 = vunpack.c.l.b16 %v2208
        %v2249 = vunpack.c.l.b16 %v2209
        %v2250 = vunpack.c.l.b16 %v2210
        %v2251 = vunpack.c.l.b16 %v2211
        %v2252 = vunpack.c.l.b16 %v2212
        %v2253 = vunpack.c.l.b16 %v2213
        %v2254 = vunpack.c.l.b16 %v2214
        %v2255 = vunpack.c.l.b16 %v2215
        %v2256 = vunpack.c.l.b16 %v2216
        %v2257 = vunpack.c.l.b16 %v2217
        %v2258 = vunpack.c.l.b16 %v2218
        %v2259 = vunpack.c.l.b16 %v2219
        %v2260 = vunpack.c.l.b16 %v2220
        %v2261 = vunpack.c.l.b16 %v2221
        %v2262 = vpack.c.b16 %v2247, %v2246
        %v2263 = vpack.c.b16 %v2249, %v2248
        %v2264 = vpack.c.b16 %v2251, %v2250
        %v2265 = vpack.c.b16 %v2253, %v2252
        %v2266 = vpack.c.b16 %v2255, %v2254
        %v2267 = vpack.c.b16 %v2257, %v2256
        %v2268 = vpack.c.b16 %v2259, %v2258
        %v2269 = vpack.c.b16 %v2261, %v2260
        %2278 = vmatprep.subr.bf16.mxu0 0
        %2279 = vmatpush1.bf16.msra.mxu0 %v2262
        %2280 = vmatprep.subr.bf16.mxu0 0
        %2281 = vmatpush1.bf16.msra.mxu0 %v2263
        %2282 = vmatprep.subr.bf16.mxu0 0
        %2283 = vmatpush1.bf16.msra.mxu0 %v2264
        %2284 = vmatprep.subr.bf16.mxu0 0
        %2285 = vmatpush1.bf16.msra.mxu0 %v2265
        %2286 = vmatprep.subr.bf16.mxu0 0
        %2287 = vmatpush1.bf16.msra.mxu0 %v2266
        %2288 = vmatprep.subr.bf16.mxu0 0
        %2289 = vmatpush1.bf16.msra.mxu0 %v2267
        %2290 = vmatprep.subr.bf16.mxu0 0
        %2291 = vmatpush1.bf16.msra.mxu0 %v2268
        %2292 = vmatprep.subr.bf16.mxu0 0
        %2293 = vmatpush1.bf16.msra.mxu0 %v2269
        %2294 = vmatprep.subr.bf16.mxu0 0
        %2295 = vmatpush1.bf16.msra.mxu0 0
        %2296 = vmatprep.subr.bf16.mxu0 0
        %2297 = vmatpush1.bf16.msra.mxu0 0
        %2298 = vmatprep.subr.bf16.mxu0 0
        %2299 = vmatpush1.bf16.msra.mxu0 0
        %2300 = vmatprep.subr.bf16.mxu0 0
        %2301 = vmatpush1.bf16.msra.mxu0 0
        %2302 = vmatprep.subr.bf16.mxu0 0
        %2303 = vmatpush1.bf16.msra.mxu0 0
        %2304 = vmatprep.subr.bf16.mxu0 0
        %2305 = vmatpush1.bf16.msra.mxu0 0
        %2306 = vmatprep.subr.bf16.mxu0 0
        %2307 = vmatpush1.bf16.msra.mxu0 0
        %2308 = vmatprep.subr.bf16.mxu0 0
        %2309 = vmatpush1.bf16.msra.mxu0 0
        %2310 = vmatprep.mubr.bf16.mxu0 0
        %2311 = vmatmul.mubr.bf16.gmra.mrb[0].mxu0 %v710
        %v2312 = vpop.f32.mrb[0].mxu0
        %v2313 = vadd.f32 %v2228, %v2312
        %v2314 = vpop.f32.mrb[0].mxu0
        %v2315 = vpop.f32.mrb[0].mxu0
        %v2316 = vpop.f32.mrb[0].mxu0
        %2317 = vdwg.mxu0
        %v2318 = vpack.c.bf16 %v2313, %v2313
        %s2319 = scalar_lea.vmem %s6, 192
        %v2320 = vld [vmem:[%s2319] sm:$0xf]
        %v2321 = vld [vmem:[%s2319 + $0x4] sm:$0xf]
        %v2322 = vld [vmem:[%s2319 + $0x8] sm:$0xf]
        %v2323 = vld [vmem:[%s2319 + $0xc] sm:$0xf]
        %v2324 = vld [vmem:[%s2319 + $0x10] sm:$0xf]
        %v2325 = vld [vmem:[%s2319 + $0x14] sm:$0xf]
        %v2326 = vld [vmem:[%s2319 + $0x18] sm:$0xf]
        %v2327 = vld [vmem:[%s2319 + $0x1c] sm:$0xf]
        %v2328 = vld [vmem:[%s2319 + $0x20] sm:$0xf]
        %v2329 = vld [vmem:[%s2319 + $0x24] sm:$0xf]
        %v2330 = vld [vmem:[%s2319 + $0x28] sm:$0xf]
        %v2331 = vld [vmem:[%s2319 + $0x2c] sm:$0xf]
        %v2332 = vld [vmem:[%s2319 + $0x30] sm:$0xf]
        %v2333 = vld [vmem:[%s2319 + $0x34] sm:$0xf]
        %v2334 = vld [vmem:[%s2319 + $0x38] sm:$0xf]
        %v2335 = vld [vmem:[%s2319 + $0x3c] sm:$0xf]
        %s2336 = scalar_lea.vmem %s7, 3
        %v2337 = vld [vmem:[%s2336] sm:$0x1]
        %v2339 = vlaneseq
        %v2340 = vshrl.u32 %v2339, 7
        %v2341 = vsub.s32 0, %v2340
        %v2342 = vrot.slane %v2337, %v2341
        %v2360 = vunpack.c.l.b16 %v2320
        %v2361 = vunpack.c.l.b16 %v2321
        %v2362 = vunpack.c.l.b16 %v2322
        %v2363 = vunpack.c.l.b16 %v2323
        %v2364 = vunpack.c.l.b16 %v2324
        %v2365 = vunpack.c.l.b16 %v2325
        %v2366 = vunpack.c.l.b16 %v2326
        %v2367 = vunpack.c.l.b16 %v2327
        %v2368 = vunpack.c.l.b16 %v2328
        %v2369 = vunpack.c.l.b16 %v2329
        %v2370 = vunpack.c.l.b16 %v2330
        %v2371 = vunpack.c.l.b16 %v2331
        %v2372 = vunpack.c.l.b16 %v2332
        %v2373 = vunpack.c.l.b16 %v2333
        %v2374 = vunpack.c.l.b16 %v2334
        %v2375 = vunpack.c.l.b16 %v2335
        %v2376 = vpack.c.b16 %v2361, %v2360
        %v2377 = vpack.c.b16 %v2363, %v2362
        %v2378 = vpack.c.b16 %v2365, %v2364
        %v2379 = vpack.c.b16 %v2367, %v2366
        %v2380 = vpack.c.b16 %v2369, %v2368
        %v2381 = vpack.c.b16 %v2371, %v2370
        %v2382 = vpack.c.b16 %v2373, %v2372
        %v2383 = vpack.c.b16 %v2375, %v2374
        %2392 = vmatprep.subr.bf16.mxu0 0
        %2393 = vmatpush1.bf16.msra.mxu0 %v2376
        %2394 = vmatprep.subr.bf16.mxu0 0
        %2395 = vmatpush1.bf16.msra.mxu0 %v2377
        %2396 = vmatprep.subr.bf16.mxu0 0
        %2397 = vmatpush1.bf16.msra.mxu0 %v2378
        %2398 = vmatprep.subr.bf16.mxu0 0
        %2399 = vmatpush1.bf16.msra.mxu0 %v2379
        %2400 = vmatprep.subr.bf16.mxu0 0
        %2401 = vmatpush1.bf16.msra.mxu0 %v2380
        %2402 = vmatprep.subr.bf16.mxu0 0
        %2403 = vmatpush1.bf16.msra.mxu0 %v2381
        %2404 = vmatprep.subr.bf16.mxu0 0
        %2405 = vmatpush1.bf16.msra.mxu0 %v2382
        %2406 = vmatprep.subr.bf16.mxu0 0
        %2407 = vmatpush1.bf16.msra.mxu0 %v2383
        %2408 = vmatprep.subr.bf16.mxu0 0
        %2409 = vmatpush1.bf16.msra.mxu0 0
        %2410 = vmatprep.subr.bf16.mxu0 0
        %2411 = vmatpush1.bf16.msra.mxu0 0
        %2412 = vmatprep.subr.bf16.mxu0 0
        %2413 = vmatpush1.bf16.msra.mxu0 0
        %2414 = vmatprep.subr.bf16.mxu0 0
        %2415 = vmatpush1.bf16.msra.mxu0 0
        %2416 = vmatprep.subr.bf16.mxu0 0
        %2417 = vmatpush1.bf16.msra.mxu0 0
        %2418 = vmatprep.subr.bf16.mxu0 0
        %2419 = vmatpush1.bf16.msra.mxu0 0
        %2420 = vmatprep.subr.bf16.mxu0 0
        %2421 = vmatpush1.bf16.msra.mxu0 0
        %2422 = vmatprep.subr.bf16.mxu0 0
        %2423 = vmatpush1.bf16.msra.mxu0 0
        %2424 = vmatprep.mubr.bf16.mxu0 0
        %2425 = vmatmul.mubr.bf16.gmra.mrb[0].mxu0 %v710
        %v2426 = vpop.f32.mrb[0].mxu0
        %v2427 = vadd.f32 %v2342, %v2426
        %v2428 = vpop.f32.mrb[0].mxu0
        %v2429 = vpop.f32.mrb[0].mxu0
        %v2430 = vpop.f32.mrb[0].mxu0
        %2431 = vdwg.mxu0
        %v2432 = vpack.c.bf16 %v2427, %v2427
        %s2433 = scalar_lea.vmem %s8, 192
        %v2434 = vld [vmem:[%s2433] sm:$0xf]
        %v2435 = vld [vmem:[%s2433 + $0x4] sm:$0xf]
        %v2436 = vld [vmem:[%s2433 + $0x8] sm:$0xf]
        %v2437 = vld [vmem:[%s2433 + $0xc] sm:$0xf]
        %v2438 = vld [vmem:[%s2433 + $0x10] sm:$0xf]
        %v2439 = vld [vmem:[%s2433 + $0x14] sm:$0xf]
        %v2440 = vld [vmem:[%s2433 + $0x18] sm:$0xf]
        %v2441 = vld [vmem:[%s2433 + $0x1c] sm:$0xf]
        %v2442 = vld [vmem:[%s2433 + $0x20] sm:$0xf]
        %v2443 = vld [vmem:[%s2433 + $0x24] sm:$0xf]
        %v2444 = vld [vmem:[%s2433 + $0x28] sm:$0xf]
        %v2445 = vld [vmem:[%s2433 + $0x2c] sm:$0xf]
        %v2446 = vld [vmem:[%s2433 + $0x30] sm:$0xf]
        %v2447 = vld [vmem:[%s2433 + $0x34] sm:$0xf]
        %v2448 = vld [vmem:[%s2433 + $0x38] sm:$0xf]
        %v2449 = vld [vmem:[%s2433 + $0x3c] sm:$0xf]
        %s2450 = scalar_lea.vmem %s9, 3
        %v2451 = vld [vmem:[%s2450] sm:$0x1]
        %v2453 = vlaneseq
        %v2454 = vshrl.u32 %v2453, 7
        %v2455 = vsub.s32 0, %v2454
        %v2456 = vrot.slane %v2451, %v2455
        %v2474 = vunpack.c.l.b16 %v2434
        %v2475 = vunpack.c.l.b16 %v2435
        %v2476 = vunpack.c.l.b16 %v2436
        %v2477 = vunpack.c.l.b16 %v2437
        %v2478 = vunpack.c.l.b16 %v2438
        %v2479 = vunpack.c.l.b16 %v2439
        %v2480 = vunpack.c.l.b16 %v2440
        %v2481 = vunpack.c.l.b16 %v2441
        %v2482 = vunpack.c.l.b16 %v2442
        %v2483 = vunpack.c.l.b16 %v2443
        %v2484 = vunpack.c.l.b16 %v2444
        %v2485 = vunpack.c.l.b16 %v2445
        %v2486 = vunpack.c.l.b16 %v2446
        %v2487 = vunpack.c.l.b16 %v2447
        %v2488 = vunpack.c.l.b16 %v2448
        %v2489 = vunpack.c.l.b16 %v2449
        %v2490 = vpack.c.b16 %v2475, %v2474
        %v2491 = vpack.c.b16 %v2477, %v2476
        %v2492 = vpack.c.b16 %v2479, %v2478
        %v2493 = vpack.c.b16 %v2481, %v2480
        %v2494 = vpack.c.b16 %v2483, %v2482
        %v2495 = vpack.c.b16 %v2485, %v2484
        %v2496 = vpack.c.b16 %v2487, %v2486
        %v2497 = vpack.c.b16 %v2489, %v2488
        %2506 = vmatprep.subr.bf16.mxu0 0
        %2507 = vmatpush1.bf16.msra.mxu0 %v2490
        %2508 = vmatprep.subr.bf16.mxu0 0
        %2509 = vmatpush1.bf16.msra.mxu0 %v2491
        %2510 = vmatprep.subr.bf16.mxu0 0
        %2511 = vmatpush1.bf16.msra.mxu0 %v2492
        %2512 = vmatprep.subr.bf16.mxu0 0
        %2513 = vmatpush1.bf16.msra.mxu0 %v2493
        %2514 = vmatprep.subr.bf16.mxu0 0
        %2515 = vmatpush1.bf16.msra.mxu0 %v2494
        %2516 = vmatprep.subr.bf16.mxu0 0
        %2517 = vmatpush1.bf16.msra.mxu0 %v2495
        %2518 = vmatprep.subr.bf16.mxu0 0
        %2519 = vmatpush1.bf16.msra.mxu0 %v2496
        %2520 = vmatprep.subr.bf16.mxu0 0
        %2521 = vmatpush1.bf16.msra.mxu0 %v2497
        %2522 = vmatprep.subr.bf16.mxu0 0
        %2523 = vmatpush1.bf16.msra.mxu0 0
        %2524 = vmatprep.subr.bf16.mxu0 0
        %2525 = vmatpush1.bf16.msra.mxu0 0
        %2526 = vmatprep.subr.bf16.mxu0 0
        %2527 = vmatpush1.bf16.msra.mxu0 0
        %2528 = vmatprep.subr.bf16.mxu0 0
        %2529 = vmatpush1.bf16.msra.mxu0 0
        %2530 = vmatprep.subr.bf16.mxu0 0
        %2531 = vmatpush1.bf16.msra.mxu0 0
        %2532 = vmatprep.subr.bf16.mxu0 0
        %2533 = vmatpush1.bf16.msra.mxu0 0
        %2534 = vmatprep.subr.bf16.mxu0 0
        %2535 = vmatpush1.bf16.msra.mxu0 0
        %2536 = vmatprep.subr.bf16.mxu0 0
        %2537 = vmatpush1.bf16.msra.mxu0 0
        %2538 = vmatprep.mubr.bf16.mxu0 0
        %2539 = vmatmul.mubr.bf16.gmra.mrb[0].mxu0 %v710
        %v2540 = vpop.f32.mrb[0].mxu0
        %v2541 = vadd.f32 %v2456, %v2540
        %v2542 = vpop.f32.mrb[0].mxu0
        %v2543 = vpop.f32.mrb[0].mxu0
        %v2544 = vpop.f32.mrb[0].mxu0
        %2545 = vdwg.mxu0
        %v2546 = vpack.c.bf16 %v2541, %v2541
        %v2548 = vsel %vm1047, %v2318, 0
        %v2551 = vsel %vm1047, %v2432, 0
        %2553 = vmatprep.subr.bf16.mxu0 0
        %2554 = vmatpush1.bf16.xpose.msra.mxu0 %v2551
        %2555 = vmatprep.subr.bf16.mxu0 0
        %2556 = vmatpush1.bf16.xpose.msra.mxu0 0
        %2557 = vmatprep.subr.bf16.mxu0 0
        %2558 = vmatpush1.bf16.xpose.msra.mxu0 0
        %2559 = vmatprep.subr.bf16.mxu0 0
        %2560 = vmatpush1.bf16.xpose.msra.mxu0 0
        %2561 = vmatprep.subr.bf16.mxu0 0
        %2562 = vmatpush1.bf16.xpose.msra.mxu0 0
        %2563 = vmatprep.subr.bf16.mxu0 0
        %2564 = vmatpush1.bf16.xpose.msra.mxu0 0
        %2565 = vmatprep.subr.bf16.mxu0 0
        %2566 = vmatpush1.bf16.xpose.msra.mxu0 0
        %2567 = vmatprep.subr.bf16.mxu0 0
        %2568 = vmatpush1.bf16.xpose.msra.mxu0 0
        %2569 = vmatprep.subr.bf16.mxu0 0
        %2570 = vmatpush1.bf16.xpose.msra.mxu0 0
        %2571 = vmatprep.subr.bf16.mxu0 0
        %2572 = vmatpush1.bf16.xpose.msra.mxu0 0
        %2573 = vmatprep.subr.bf16.mxu0 0
        %2574 = vmatpush1.bf16.xpose.msra.mxu0 0
        %2575 = vmatprep.subr.bf16.mxu0 0
        %2576 = vmatpush1.bf16.xpose.msra.mxu0 0
        %2577 = vmatprep.subr.bf16.mxu0 0
        %2578 = vmatpush1.bf16.xpose.msra.mxu0 0
        %2579 = vmatprep.subr.bf16.mxu0 0
        %2580 = vmatpush1.bf16.xpose.msra.mxu0 0
        %2581 = vmatprep.subr.bf16.mxu0 0
        %2582 = vmatpush1.bf16.xpose.msra.mxu0 0
        %2583 = vmatprep.subr.bf16.mxu0 0
        %2584 = vmatpush1.bf16.xpose.msra.mxu0 0
        %2585 = vmatprep.mubr.bf16.mxu0 0
        %2586 = vmatmul.mubr.bf16.gmra.mrb[0].mxu0 %v2548
        %v2587 = vpop.f32.mrb[0].mxu0
        %v2588 = vadd.f32 %v678, %v2587
        %v2589 = vpop.f32.mrb[0].mxu0
        %v2590 = vpop.f32.mrb[0].mxu0
        %v2591 = vpop.f32.mrb[0].mxu0
        %2592 = vdwg.mxu0
        %v2593 = vsel %vm1094, %v2588, -inf
        %2594 = vmax.xlane.f32.xlu0 %v2593
        %v2595 = vpop.xlane.xlu0 %2594
        %v2596 = vsub.f32 %v2588, %v2595
        %v2597 = vmul.f32 %v2596, 1.442695
        %v2598 = vpow.pop %v2597
        %v2599 = vsel %vm1094, %v2598, 0.0
        %2600 = vadd.xlane.f32.xlu0 %v2599
        %v2601 = vpop.xlane.xlu0 %2600
        %v2602 = vrcp.pop %v2601
        %v2603 = vmul.f32 %v2598, %v2602
        %v2604 = vpack.c.bf16 %v2603, %v2603
        %v2606 = vsel %vm1094, %v2604, 0
        %v2609 = vsel %vm1110, %v2546, 0
        %2611 = vmatprep.subr.bf16.mxu0 0
        %2612 = vmatpush1.bf16.msra.mxu0 %v2609
        %2613 = vmatprep.subr.bf16.mxu0 0
        %2614 = vmatpush1.bf16.msra.mxu0 0
        %2615 = vmatprep.subr.bf16.mxu0 0
        %2616 = vmatpush1.bf16.msra.mxu0 0
        %2617 = vmatprep.subr.bf16.mxu0 0
        %2618 = vmatpush1.bf16.msra.mxu0 0
        %2619 = vmatprep.subr.bf16.mxu0 0
        %2620 = vmatpush1.bf16.msra.mxu0 0
        %2621 = vmatprep.subr.bf16.mxu0 0
        %2622 = vmatpush1.bf16.msra.mxu0 0
        %2623 = vmatprep.subr.bf16.mxu0 0
        %2624 = vmatpush1.bf16.msra.mxu0 0
        %2625 = vmatprep.subr.bf16.mxu0 0
        %2626 = vmatpush1.bf16.msra.mxu0 0
        %2627 = vmatprep.subr.bf16.mxu0 0
        %2628 = vmatpush1.bf16.msra.mxu0 0
        %2629 = vmatprep.subr.bf16.mxu0 0
        %2630 = vmatpush1.bf16.msra.mxu0 0
        %2631 = vmatprep.subr.bf16.mxu0 0
        %2632 = vmatpush1.bf16.msra.mxu0 0
        %2633 = vmatprep.subr.bf16.mxu0 0
        %2634 = vmatpush1.bf16.msra.mxu0 0
        %2635 = vmatprep.subr.bf16.mxu0 0
        %2636 = vmatpush1.bf16.msra.mxu0 0
        %2637 = vmatprep.subr.bf16.mxu0 0
        %2638 = vmatpush1.bf16.msra.mxu0 0
        %2639 = vmatprep.subr.bf16.mxu0 0
        %2640 = vmatpush1.bf16.msra.mxu0 0
        %2641 = vmatprep.subr.bf16.mxu0 0
        %2642 = vmatpush1.bf16.msra.mxu0 0
        %2643 = vmatprep.mubr.bf16.mxu0 0
        %2644 = vmatmul.mubr.bf16.gmra.mrb[0].mxu0 %v2606
        %v2645 = vpop.f32.mrb[0].mxu0
        %v2646 = vadd.f32 0.0, %v2645
        %v2647 = vpop.f32.mrb[0].mxu0
        %v2648 = vpop.f32.mrb[0].mxu0
        %v2649 = vpop.f32.mrb[0].mxu0
        %2650 = vdwg.mxu0
        %v2651 = vpack.c.bf16 %v2646, %v2646
        %s2652 = scalar_lea.vmem %s10, 24
        %v2653 = vld [vmem:[%s2652] sm:$0xf]
        %v2654 = vld [vmem:[%s2652 + $0x4] sm:$0xf]
        %v2657 = vunpack.c.l.b16 %v2653
        %v2658 = vunpack.c.l.b16 %v2654
        %v2659 = vpack.c.b16 %v2658, %v2657
        %v2662 = vsel %vm1047, %v2651, 0
        %2664 = vmatprep.subr.bf16.mxu0 0
        %2665 = vmatpush1.bf16.msra.mxu0 %v2659
        %2666 = vmatprep.subr.bf16.mxu0 0
        %2667 = vmatpush1.bf16.msra.mxu0 0
        %2668 = vmatprep.subr.bf16.mxu0 0
        %2669 = vmatpush1.bf16.msra.mxu0 0
        %2670 = vmatprep.subr.bf16.mxu0 0
        %2671 = vmatpush1.bf16.msra.mxu0 0
        %2672 = vmatprep.subr.bf16.mxu0 0
        %2673 = vmatpush1.bf16.msra.mxu0 0
        %2674 = vmatprep.subr.bf16.mxu0 0
        %2675 = vmatpush1.bf16.msra.mxu0 0
        %2676 = vmatprep.subr.bf16.mxu0 0
        %2677 = vmatpush1.bf16.msra.mxu0 0
        %2678 = vmatprep.subr.bf16.mxu0 0
        %2679 = vmatpush1.bf16.msra.mxu0 0
        %2680 = vmatprep.subr.bf16.mxu0 0
        %2681 = vmatpush1.bf16.msra.mxu0 0
        %2682 = vmatprep.subr.bf16.mxu0 0
        %2683 = vmatpush1.bf16.msra.mxu0 0
        %2684 = vmatprep.subr.bf16.mxu0 0
        %2685 = vmatpush1.bf16.msra.mxu0 0
        %2686 = vmatprep.subr.bf16.mxu0 0
        %2687 = vmatpush1.bf16.msra.mxu0 0
        %2688 = vmatprep.subr.bf16.mxu0 0
        %2689 = vmatpush1.bf16.msra.mxu0 0
        %2690 = vmatprep.subr.bf16.mxu0 0
        %2691 = vmatpush1.bf16.msra.mxu0 0
        %2692 = vmatprep.subr.bf16.mxu0 0
        %2693 = vmatpush1.bf16.msra.mxu0 0
        %2694 = vmatprep.subr.bf16.mxu0 0
        %2695 = vmatpush1.bf16.msra.mxu0 0
        %2696 = vmatprep.mubr.bf16.mxu0 0
        %2697 = vmatmul.mubr.bf16.gmra.mrb[0].mxu0 %v2662
        %v2698 = vpop.f32.mrb[0].mxu0
        %v2699 = vadd.f32 0.0, %v2698
        %v2700 = vpop.f32.mrb[0].mxu0
        %v2701 = vpop.f32.mrb[0].mxu0
        %v2702 = vpop.f32.mrb[0].mxu0
        %2703 = vdwg.mxu0
        %v2704 = vadd.f32 %v2204, %v2699
        %v2705 = vld [vmem:[%s11] sm:$0x1]
        %v2707 = vlaneseq
        %v2708 = vshrl.u32 %v2707, 7
        %v2709 = vsub.s32 0, %v2708
        %v2710 = vrot.slane %v2705, %v2709
        %v2712 = vadd.f32 %v2704, %v2710
        %v2713 = vadd.f32 %v709, %v2712
        %v2714 = vld [vmem:[%s12] sm:$0x1]
        %v2715 = vld [vmem:[%s13] sm:$0x1]
        %2716 = vadd.xlane.f32.xlu0 %v2713
        %v2717 = vpop.xlane.xlu0 %2716
        %v2718 = vmul.f32 %v2717, 0.015625
        %v2719 = vmul.f32 %v2713, %v2713
        %2720 = vadd.xlane.f32.xlu0 %v2719
        %v2721 = vpop.xlane.xlu0 %2720
        %v2722 = vmul.f32 %v2721, 0.015625
        %v2723 = vmul.f32 %v2718, %v2718
        %v2724 = vsub.f32 %v2722, %v2723
        %v2725 = vmax.f32 %v2724, 0.0
        %v2726 = vsub.f32 %v2713, %v2718
        %v2727 = vadd.f32 %v2725, 1e-12
        %v2728 = vrsqrt.pop %v2727
        %v2729 = vmul.f32 %v2726, %v2728
        %v2731 = vlaneseq
        %v2732 = vshrl.u32 %v2731, 7
        %v2733 = vsub.s32 0, %v2732
        %v2734 = vrot.slane %v2714, %v2733
        %v2736 = vmul.f32 %v2729, %v2734
        %v2738 = vlaneseq
        %v2739 = vshrl.u32 %v2738, 7
        %v2740 = vsub.s32 0, %v2739
        %v2741 = vrot.slane %v2715, %v2740
        %v2743 = vadd.f32 %v2736, %v2741
        %v2744 = vpack.c.bf16 %v2743, %v2743
        %v2745 = vld [vmem:[%s14] sm:$0xf]
        %v2746 = vld [vmem:[%s14 + $0x4] sm:$0xf]
        %v2747 = vld [vmem:[%s14 + $0x8] sm:$0xf]
        %v2748 = vld [vmem:[%s14 + $0xc] sm:$0xf]
        %v2749 = vld [vmem:[%s14 + $0x10] sm:$0xf]
        %v2750 = vld [vmem:[%s14 + $0x14] sm:$0xf]
        %v2751 = vld [vmem:[%s14 + $0x18] sm:$0xf]
        %v2752 = vld [vmem:[%s14 + $0x1c] sm:$0xf]
        %v2753 = vld [vmem:[%s14 + $0x20] sm:$0xf]
        %v2754 = vld [vmem:[%s14 + $0x24] sm:$0xf]
        %v2755 = vld [vmem:[%s14 + $0x28] sm:$0xf]
        %v2756 = vld [vmem:[%s14 + $0x2c] sm:$0xf]
        %v2757 = vld [vmem:[%s14 + $0x30] sm:$0xf]
        %v2758 = vld [vmem:[%s14 + $0x34] sm:$0xf]
        %v2759 = vld [vmem:[%s14 + $0x38] sm:$0xf]
        %v2760 = vld [vmem:[%s14 + $0x3c] sm:$0xf]
        %v2761 = vld [vmem:[%s15] sm:$0x1]
        %v2763 = vlaneseq
        %v2764 = vshrl.u32 %v2763, 7
        %v2765 = vsub.s32 0, %v2764
        %v2766 = vrot.slane %v2761, %v2765
        %v2784 = vunpack.c.l.b16 %v2745
        %v2785 = vunpack.c.l.b16 %v2746
        %v2786 = vunpack.c.l.b16 %v2747
        %v2787 = vunpack.c.l.b16 %v2748
        %v2788 = vunpack.c.l.b16 %v2749
        %v2789 = vunpack.c.l.b16 %v2750
        %v2790 = vunpack.c.l.b16 %v2751
        %v2791 = vunpack.c.l.b16 %v2752
        %v2792 = vunpack.c.l.b16 %v2753
        %v2793 = vunpack.c.l.b16 %v2754
        %v2794 = vunpack.c.l.b16 %v2755
        %v2795 = vunpack.c.l.b16 %v2756
        %v2796 = vunpack.c.l.b16 %v2757
        %v2797 = vunpack.c.l.b16 %v2758
        %v2798 = vunpack.c.l.b16 %v2759
        %v2799 = vunpack.c.l.b16 %v2760
        %v2800 = vpack.c.b16 %v2785, %v2784
        %v2801 = vpack.c.b16 %v2787, %v2786
        %v2802 = vpack.c.b16 %v2789, %v2788
        %v2803 = vpack.c.b16 %v2791, %v2790
        %v2804 = vpack.c.b16 %v2793, %v2792
        %v2805 = vpack.c.b16 %v2795, %v2794
        %v2806 = vpack.c.b16 %v2797, %v2796
        %v2807 = vpack.c.b16 %v2799, %v2798
        %2816 = vmatprep.subr.bf16.mxu0 0
        %2817 = vmatpush1.bf16.msra.mxu0 %v2800
        %2818 = vmatprep.subr.bf16.mxu0 0
        %2819 = vmatpush1.bf16.msra.mxu0 %v2801
        %2820 = vmatprep.subr.bf16.mxu0 0
        %2821 = vmatpush1.bf16.msra.mxu0 %v2802
        %2822 = vmatprep.subr.bf16.mxu0 0
        %2823 = vmatpush1.bf16.msra.mxu0 %v2803
        %2824 = vmatprep.subr.bf16.mxu0 0
        %2825 = vmatpush1.bf16.msra.mxu0 %v2804
        %2826 = vmatprep.subr.bf16.mxu0 0
        %2827 = vmatpush1.bf16.msra.mxu0 %v2805
        %2828 = vmatprep.subr.bf16.mxu0 0
        %2829 = vmatpush1.bf16.msra.mxu0 %v2806
        %2830 = vmatprep.subr.bf16.mxu0 0
        %2831 = vmatpush1.bf16.msra.mxu0 %v2807
        %2832 = vmatprep.subr.bf16.mxu0 0
        %2833 = vmatpush1.bf16.msra.mxu0 0
        %2834 = vmatprep.subr.bf16.mxu0 0
        %2835 = vmatpush1.bf16.msra.mxu0 0
        %2836 = vmatprep.subr.bf16.mxu0 0
        %2837 = vmatpush1.bf16.msra.mxu0 0
        %2838 = vmatprep.subr.bf16.mxu0 0
        %2839 = vmatpush1.bf16.msra.mxu0 0
        %2840 = vmatprep.subr.bf16.mxu0 0
        %2841 = vmatpush1.bf16.msra.mxu0 0
        %2842 = vmatprep.subr.bf16.mxu0 0
        %2843 = vmatpush1.bf16.msra.mxu0 0
        %2844 = vmatprep.subr.bf16.mxu0 0
        %2845 = vmatpush1.bf16.msra.mxu0 0
        %2846 = vmatprep.subr.bf16.mxu0 0
        %2847 = vmatpush1.bf16.msra.mxu0 0
        %2848 = vmatprep.mubr.bf16.mxu0 0
        %2849 = vmatmul.mubr.bf16.gmra.mrb[0].mxu0 %v2744
        %v2850 = vpop.f32.mrb[0].mxu0
        %v2851 = vadd.f32 %v2766, %v2850
        %v2852 = vpop.f32.mrb[0].mxu0
        %v2853 = vpop.f32.mrb[0].mxu0
        %v2854 = vpop.f32.mrb[0].mxu0
        %2855 = vdwg.mxu0
        %v2856 = vmul.f32 %v2851, %v2851
        %v2857 = vmul.f32 %v2851, %v2856
        %v2858 = vmul.f32 %v2857, 0.044715
        %v2859 = vadd.f32 %v2851, %v2858
        %v2860 = vmul.f32 %v2859, 0.7978846
        %v2861 = vtanh.pop %v2860
        %v2862 = vadd.f32 %v2861, 1.0
        %v2863 = vmul.f32 %v2862, 0.5
        %v2864 = vmul.f32 %v2851, %v2863
        %v2865 = vpack.c.bf16 %v2864, %v2864
        %v2866 = vld [vmem:[%s16] sm:$0xf]
        %v2867 = vld [vmem:[%s16 + $0x4] sm:$0xf]
        %v2868 = vld [vmem:[%s16 + $0x8] sm:$0xf]
        %v2869 = vld [vmem:[%s16 + $0xc] sm:$0xf]
        %v2870 = vld [vmem:[%s16 + $0x10] sm:$0xf]
        %v2871 = vld [vmem:[%s16 + $0x14] sm:$0xf]
        %v2872 = vld [vmem:[%s16 + $0x18] sm:$0xf]
        %v2873 = vld [vmem:[%s16 + $0x1c] sm:$0xf]
        %v2874 = vld [vmem:[%s16 + $0x20] sm:$0xf]
        %v2875 = vld [vmem:[%s16 + $0x24] sm:$0xf]
        %v2876 = vld [vmem:[%s16 + $0x28] sm:$0xf]
        %v2877 = vld [vmem:[%s16 + $0x2c] sm:$0xf]
        %v2878 = vld [vmem:[%s16 + $0x30] sm:$0xf]
        %v2879 = vld [vmem:[%s16 + $0x34] sm:$0xf]
        %v2880 = vld [vmem:[%s16 + $0x38] sm:$0xf]
        %v2881 = vld [vmem:[%s16 + $0x3c] sm:$0xf]
        %v2882 = vld [vmem:[%s17] sm:$0x1]
        %v2884 = vlaneseq
        %v2885 = vshrl.u32 %v2884, 7
        %v2886 = vsub.s32 0, %v2885
        %v2887 = vrot.slane %v2882, %v2886
        %v2905 = vunpack.c.l.b16 %v2866
        %v2906 = vunpack.c.l.b16 %v2867
        %v2907 = vunpack.c.l.b16 %v2868
        %v2908 = vunpack.c.l.b16 %v2869
        %v2909 = vunpack.c.l.b16 %v2870
        %v2910 = vunpack.c.l.b16 %v2871
        %v2911 = vunpack.c.l.b16 %v2872
        %v2912 = vunpack.c.l.b16 %v2873
        %v2913 = vunpack.c.l.b16 %v2874
        %v2914 = vunpack.c.l.b16 %v2875
        %v2915 = vunpack.c.l.b16 %v2876
        %v2916 = vunpack.c.l.b16 %v2877
        %v2917 = vunpack.c.l.b16 %v2878
        %v2918 = vunpack.c.l.b16 %v2879
        %v2919 = vunpack.c.l.b16 %v2880
        %v2920 = vunpack.c.l.b16 %v2881
        %v2921 = vpack.c.b16 %v2906, %v2905
        %v2922 = vpack.c.b16 %v2908, %v2907
        %v2923 = vpack.c.b16 %v2910, %v2909
        %v2924 = vpack.c.b16 %v2912, %v2911
        %v2925 = vpack.c.b16 %v2914, %v2913
        %v2926 = vpack.c.b16 %v2916, %v2915
        %v2927 = vpack.c.b16 %v2918, %v2917
        %v2928 = vpack.c.b16 %v2920, %v2919
        %2937 = vmatprep.subr.bf16.mxu0 0
        %2938 = vmatpush1.bf16.msra.mxu0 %v2921
        %2939 = vmatprep.subr.bf16.mxu0 0
        %2940 = vmatpush1.bf16.msra.mxu0 %v2922
        %2941 = vmatprep.subr.bf16.mxu0 0
        %2942 = vmatpush1.bf16.msra.mxu0 %v2923
        %2943 = vmatprep.subr.bf16.mxu0 0
        %2944 = vmatpush1.bf16.msra.mxu0 %v2924
        %2945 = vmatprep.subr.bf16.mxu0 0
        %2946 = vmatpush1.bf16.msra.mxu0 %v2925
        %2947 = vmatprep.subr.bf16.mxu0 0
        %2948 = vmatpush1.bf16.msra.mxu0 %v2926
        %2949 = vmatprep.subr.bf16.mxu0 0
        %2950 = vmatpush1.bf16.msra.mxu0 %v2927
        %2951 = vmatprep.subr.bf16.mxu0 0
        %2952 = vmatpush1.bf16.msra.mxu0 %v2928
        %2953 = vmatprep.subr.bf16.mxu0 0
        %2954 = vmatpush1.bf16.msra.mxu0 0
        %2955 = vmatprep.subr.bf16.mxu0 0
        %2956 = vmatpush1.bf16.msra.mxu0 0
        %2957 = vmatprep.subr.bf16.mxu0 0
        %2958 = vmatpush1.bf16.msra.mxu0 0
        %2959 = vmatprep.subr.bf16.mxu0 0
        %2960 = vmatpush1.bf16.msra.mxu0 0
        %2961 = vmatprep.subr.bf16.mxu0 0
        %2962 = vmatpush1.bf16.msra.mxu0 0
        %2963 = vmatprep.subr.bf16.mxu0 0
        %2964 = vmatpush1.bf16.msra.mxu0 0
        %2965 = vmatprep.subr.bf16.mxu0 0
        %2966 = vmatpush1.bf16.msra.mxu0 0
        %2967 = vmatprep.subr.bf16.mxu0 0
        %2968 = vmatpush1.bf16.msra.mxu0 0
        %2969 = vmatprep.mubr.bf16.mxu0 0
        %2970 = vmatmul.mubr.bf16.gmra.mrb[0].mxu0 %v2865
        %v2971 = vpop.f32.mrb[0].mxu0
        %v2972 = vadd.f32 %v2887, %v2971
        %v2973 = vpop.f32.mrb[0].mxu0
        %v2974 = vpop.f32.mrb[0].mxu0
        %v2975 = vpop.f32.mrb[0].mxu0
        %2976 = vdwg.mxu0
        %v2977 = vadd.f32 %v2743, %v2972
        %v2978 = vld [vmem:[%s18] sm:$0x1]
        %v2979 = vld [vmem:[%s19] sm:$0x1]
        %2980 = vadd.xlane.f32.xlu0 %v2977
        %v2981 = vpop.xlane.xlu0 %2980
        %v2982 = vmul.f32 %v2981, 0.015625
        %v2983 = vmul.f32 %v2977, %v2977
        %2984 = vadd.xlane.f32.xlu0 %v2983
        %v2985 = vpop.xlane.xlu0 %2984
        %v2986 = vmul.f32 %v2985, 0.015625
        %v2987 = vmul.f32 %v2982, %v2982
        %v2988 = vsub.f32 %v2986, %v2987
        %v2989 = vmax.f32 %v2988, 0.0
        %v2990 = vsub.f32 %v2977, %v2982
        %v2991 = vadd.f32 %v2989, 1e-12
        %v2992 = vrsqrt.pop %v2991
        %v2993 = vmul.f32 %v2990, %v2992
        %v2995 = vlaneseq
        %v2996 = vshrl.u32 %v2995, 7
        %v2997 = vsub.s32 0, %v2996
        %v2998 = vrot.slane %v2978, %v2997
        %v3000 = vmul.f32 %v2993, %v2998
        %v3002 = vlaneseq
        %v3003 = vshrl.u32 %v3002, 7
        %v3004 = vsub.s32 0, %v3003
        %v3005 = vrot.slane %v2979, %v3004
        %v3007 = vadd.f32 %v3000, %v3005
        %v3008 = vpack.c.bf16 %v3007, %v3007
        %s3009 = scalar_lea.vmem %s4, 256
        %v3010 = vld [vmem:[%s3009] sm:$0xf]
        %v3011 = vld [vmem:[%s3009 + $0x4] sm:$0xf]
        %v3012 = vld [vmem:[%s3009 + $0x8] sm:$0xf]
        %v3013 = vld [vmem:[%s3009 + $0xc] sm:$0xf]
        %v3014 = vld [vmem:[%s3009 + $0x10] sm:$0xf]
        %v3015 = vld [vmem:[%s3009 + $0x14] sm:$0xf]
        %v3016 = vld [vmem:[%s3009 + $0x18] sm:$0xf]
        %v3017 = vld [vmem:[%s3009 + $0x1c] sm:$0xf]
        %v3018 = vld [vmem:[%s3009 + $0x20] sm:$0xf]
        %v3019 = vld [vmem:[%s3009 + $0x24] sm:$0xf]
        %v3020 = vld [vmem:[%s3009 + $0x28] sm:$0xf]
        %v3021 = vld [vmem:[%s3009 + $0x2c] sm:$0xf]
        %v3022 = vld [vmem:[%s3009 + $0x30] sm:$0xf]
        %v3023 = vld [vmem:[%s3009 + $0x34] sm:$0xf]
        %v3024 = vld [vmem:[%s3009 + $0x38] sm:$0xf]
        %v3025 = vld [vmem:[%s3009 + $0x3c] sm:$0xf]
        %s3026 = scalar_lea.vmem %s5, 4
        %v3027 = vld [vmem:[%s3026] sm:$0x1]
        %v3029 = vlaneseq
        %v3030 = vshrl.u32 %v3029, 7
        %v3031 = vsub.s32 0, %v3030
        %v3032 = vrot.slane %v3027, %v3031
        %v3050 = vunpack.c.l.b16 %v3010
        %v3051 = vunpack.c.l.b16 %v3011
        %v3052 = vunpack.c.l.b16 %v3012
        %v3053 = vunpack.c.l.b16 %v3013
        %v3054 = vunpack.c.l.b16 %v3014
        %v3055 = vunpack.c.l.b16 %v3015
        %v3056 = vunpack.c.l.b16 %v3016
        %v3057 = vunpack.c.l.b16 %v3017
        %v3058 = vunpack.c.l.b16 %v3018
        %v3059 = vunpack.c.l.b16 %v3019
        %v3060 = vunpack.c.l.b16 %v3020
        %v3061 = vunpack.c.l.b16 %v3021
        %v3062 = vunpack.c.l.b16 %v3022
        %v3063 = vunpack.c.l.b16 %v3023
        %v3064 = vunpack.c.l.b16 %v3024
        %v3065 = vunpack.c.l.b16 %v3025
        %v3066 = vpack.c.b16 %v3051, %v3050
        %v3067 = vpack.c.b16 %v3053, %v3052
        %v3068 = vpack.c.b16 %v3055, %v3054
        %v3069 = vpack.c.b16 %v3057, %v3056
        %v3070 = vpack.c.b16 %v3059, %v3058
        %v3071 = vpack.c.b16 %v3061, %v3060
        %v3072 = vpack.c.b16 %v3063, %v3062
        %v3073 = vpack.c.b16 %v3065, %v3064
        %3082 = vmatprep.subr.bf16.mxu0 0
        %3083 = vmatpush1.bf16.msra.mxu0 %v3066
        %3084 = vmatprep.subr.bf16.mxu0 0
        %3085 = vmatpush1.bf16.msra.mxu0 %v3067
        %3086 = vmatprep.subr.bf16.mxu0 0
        %3087 = vmatpush1.bf16.msra.mxu0 %v3068
        %3088 = vmatprep.subr.bf16.mxu0 0
        %3089 = vmatpush1.bf16.msra.mxu0 %v3069
        %3090 = vmatprep.subr.bf16.mxu0 0
        %3091 = vmatpush1.bf16.msra.mxu0 %v3070
        %3092 = vmatprep.subr.bf16.mxu0 0
        %3093 = vmatpush1.bf16.msra.mxu0 %v3071
        %3094 = vmatprep.subr.bf16.mxu0 0
        %3095 = vmatpush1.bf16.msra.mxu0 %v3072
        %3096 = vmatprep.subr.bf16.mxu0 0
        %3097 = vmatpush1.bf16.msra.mxu0 %v3073
        %3098 = vmatprep.subr.bf16.mxu0 0
        %3099 = vmatpush1.bf16.msra.mxu0 0
        %3100 = vmatprep.subr.bf16.mxu0 0
        %3101 = vmatpush1.bf16.msra.mxu0 0
        %3102 = vmatprep.subr.bf16.mxu0 0
        %3103 = vmatpush1.bf16.msra.mxu0 0
        %3104 = vmatprep.subr.bf16.mxu0 0
        %3105 = vmatpush1.bf16.msra.mxu0 0
        %3106 = vmatprep.subr.bf16.mxu0 0
        %3107 = vmatpush1.bf16.msra.mxu0 0
        %3108 = vmatprep.subr.bf16.mxu0 0
        %3109 = vmatpush1.bf16.msra.mxu0 0
        %3110 = vmatprep.subr.bf16.mxu0 0
        %3111 = vmatpush1.bf16.msra.mxu0 0
        %3112 = vmatprep.subr.bf16.mxu0 0
        %3113 = vmatpush1.bf16.msra.mxu0 0
        %3114 = vmatprep.mubr.bf16.mxu0 0
        %3115 = vmatmul.mubr.bf16.gmra.mrb[0].mxu0 %v3008
        %v3116 = vpop.f32.mrb[0].mxu0
        %v3117 = vadd.f32 %v3032, %v3116
        %v3118 = vpop.f32.mrb[0].mxu0
        %v3119 = vpop.f32.mrb[0].mxu0
        %v3120 = vpop.f32.mrb[0].mxu0
        %3121 = vdwg.mxu0
        %v3122 = vpack.c.bf16 %v3117, %v3117
        %s3123 = scalar_lea.vmem %s6, 256
        %v3124 = vld [vmem:[%s3123] sm:$0xf]
        %v3125 = vld [vmem:[%s3123 + $0x4] sm:$0xf]
        %v3126 = vld [vmem:[%s3123 + $0x8] sm:$0xf]
        %v3127 = vld [vmem:[%s3123 + $0xc] sm:$0xf]
        %v3128 = vld [vmem:[%s3123 + $0x10] sm:$0xf]
        %v3129 = vld [vmem:[%s3123 + $0x14] sm:$0xf]
        %v3130 = vld [vmem:[%s3123 + $0x18] sm:$0xf]
        %v3131 = vld [vmem:[%s3123 + $0x1c] sm:$0xf]
        %v3132 = vld [vmem:[%s3123 + $0x20] sm:$0xf]
        %v3133 = vld [vmem:[%s3123 + $0x24] sm:$0xf]
        %v3134 = vld [vmem:[%s3123 + $0x28] sm:$0xf]
        %v3135 = vld [vmem:[%s3123 + $0x2c] sm:$0xf]
        %v3136 = vld [vmem:[%s3123 + $0x30] sm:$0xf]
        %v3137 = vld [vmem:[%s3123 + $0x34] sm:$0xf]
        %v3138 = vld [vmem:[%s3123 + $0x38] sm:$0xf]
        %v3139 = vld [vmem:[%s3123 + $0x3c] sm:$0xf]
        %s3140 = scalar_lea.vmem %s7, 4
        %v3141 = vld [vmem:[%s3140] sm:$0x1]
        %v3143 = vlaneseq
        %v3144 = vshrl.u32 %v3143, 7
        %v3145 = vsub.s32 0, %v3144
        %v3146 = vrot.slane %v3141, %v3145
        %v3164 = vunpack.c.l.b16 %v3124
        %v3165 = vunpack.c.l.b16 %v3125
        %v3166 = vunpack.c.l.b16 %v3126
        %v3167 = vunpack.c.l.b16 %v3127
        %v3168 = vunpack.c.l.b16 %v3128
        %v3169 = vunpack.c.l.b16 %v3129
        %v3170 = vunpack.c.l.b16 %v3130
        %v3171 = vunpack.c.l.b16 %v3131
        %v3172 = vunpack.c.l.b16 %v3132
        %v3173 = vunpack.c.l.b16 %v3133
        %v3174 = vunpack.c.l.b16 %v3134
        %v3175 = vunpack.c.l.b16 %v3135
        %v3176 = vunpack.c.l.b16 %v3136
        %v3177 = vunpack.c.l.b16 %v3137
        %v3178 = vunpack.c.l.b16 %v3138
        %v3179 = vunpack.c.l.b16 %v3139
        %v3180 = vpack.c.b16 %v3165, %v3164
        %v3181 = vpack.c.b16 %v3167, %v3166
        %v3182 = vpack.c.b16 %v3169, %v3168
        %v3183 = vpack.c.b16 %v3171, %v3170
        %v3184 = vpack.c.b16 %v3173, %v3172
        %v3185 = vpack.c.b16 %v3175, %v3174
        %v3186 = vpack.c.b16 %v3177, %v3176
        %v3187 = vpack.c.b16 %v3179, %v3178
        %3196 = vmatprep.subr.bf16.mxu0 0
        %3197 = vmatpush1.bf16.msra.mxu0 %v3180
        %3198 = vmatprep.subr.bf16.mxu0 0
        %3199 = vmatpush1.bf16.msra.mxu0 %v3181
        %3200 = vmatprep.subr.bf16.mxu0 0
        %3201 = vmatpush1.bf16.msra.mxu0 %v3182
        %3202 = vmatprep.subr.bf16.mxu0 0
        %3203 = vmatpush1.bf16.msra.mxu0 %v3183
        %3204 = vmatprep.subr.bf16.mxu0 0
        %3205 = vmatpush1.bf16.msra.mxu0 %v3184
        %3206 = vmatprep.subr.bf16.mxu0 0
        %3207 = vmatpush1.bf16.msra.mxu0 %v3185
        %3208 = vmatprep.subr.bf16.mxu0 0
        %3209 = vmatpush1.bf16.msra.mxu0 %v3186
        %3210 = vmatprep.subr.bf16.mxu0 0
        %3211 = vmatpush1.bf16.msra.mxu0 %v3187
        %3212 = vmatprep.subr.bf16.mxu0 0
        %3213 = vmatpush1.bf16.msra.mxu0 0
        %3214 = vmatprep.subr.bf16.mxu0 0
        %3215 = vmatpush1.bf16.msra.mxu0 0
        %3216 = vmatprep.subr.bf16.mxu0 0
        %3217 = vmatpush1.bf16.msra.mxu0 0
        %3218 = vmatprep.subr.bf16.mxu0 0
        %3219 = vmatpush1.bf16.msra.mxu0 0
        %3220 = vmatprep.subr.bf16.mxu0 0
        %3221 = vmatpush1.bf16.msra.mxu0 0
        %3222 = vmatprep.subr.bf16.mxu0 0
        %3223 = vmatpush1.bf16.msra.mxu0 0
        %3224 = vmatprep.subr.bf16.mxu0 0
        %3225 = vmatpush1.bf16.msra.mxu0 0
        %3226 = vmatprep.subr.bf16.mxu0 0
        %3227 = vmatpush1.bf16.msra.mxu0 0
        %3228 = vmatprep.mubr.bf16.mxu0 0
        %3229 = vmatmul.mubr.bf16.gmra.mrb[0].mxu0 %v3008
        %v3230 = vpop.f32.mrb[0].mxu0
        %v3231 = vadd.f32 %v3146, %v3230
        %v3232 = vpop.f32.mrb[0].mxu0
        %v3233 = vpop.f32.mrb[0].mxu0
        %v3234 = vpop.f32.mrb[0].mxu0
        %3235 = vdwg.mxu0
        %v3236 = vpack.c.bf16 %v3231, %v3231
        %s3237 = scalar_lea.vmem %s8, 256
        %v3238 = vld [vmem:[%s3237] sm:$0xf]
        %v3239 = vld [vmem:[%s3237 + $0x4] sm:$0xf]
        %v3240 = vld [vmem:[%s3237 + $0x8] sm:$0xf]
        %v3241 = vld [vmem:[%s3237 + $0xc] sm:$0xf]
        %v3242 = vld [vmem:[%s3237 + $0x10] sm:$0xf]
        %v3243 = vld [vmem:[%s3237 + $0x14] sm:$0xf]
        %v3244 = vld [vmem:[%s3237 + $0x18] sm:$0xf]
        %v3245 = vld [vmem:[%s3237 + $0x1c] sm:$0xf]
        %v3246 = vld [vmem:[%s3237 + $0x20] sm:$0xf]
        %v3247 = vld [vmem:[%s3237 + $0x24] sm:$0xf]
        %v3248 = vld [vmem:[%s3237 + $0x28] sm:$0xf]
        %v3249 = vld [vmem:[%s3237 + $0x2c] sm:$0xf]
        %v3250 = vld [vmem:[%s3237 + $0x30] sm:$0xf]
        %v3251 = vld [vmem:[%s3237 + $0x34] sm:$0xf]
        %v3252 = vld [vmem:[%s3237 + $0x38] sm:$0xf]
        %v3253 = vld [vmem:[%s3237 + $0x3c] sm:$0xf]
        %s3254 = scalar_lea.vmem %s9, 4
        %v3255 = vld [vmem:[%s3254] sm:$0x1]
        %v3257 = vlaneseq
        %v3258 = vshrl.u32 %v3257, 7
        %v3259 = vsub.s32 0, %v3258
        %v3260 = vrot.slane %v3255, %v3259
        %v3278 = vunpack.c.l.b16 %v3238
        %v3279 = vunpack.c.l.b16 %v3239
        %v3280 = vunpack.c.l.b16 %v3240
        %v3281 = vunpack.c.l.b16 %v3241
        %v3282 = vunpack.c.l.b16 %v3242
        %v3283 = vunpack.c.l.b16 %v3243
        %v3284 = vunpack.c.l.b16 %v3244
        %v3285 = vunpack.c.l.b16 %v3245
        %v3286 = vunpack.c.l.b16 %v3246
        %v3287 = vunpack.c.l.b16 %v3247
        %v3288 = vunpack.c.l.b16 %v3248
        %v3289 = vunpack.c.l.b16 %v3249
        %v3290 = vunpack.c.l.b16 %v3250
        %v3291 = vunpack.c.l.b16 %v3251
        %v3292 = vunpack.c.l.b16 %v3252
        %v3293 = vunpack.c.l.b16 %v3253
        %v3294 = vpack.c.b16 %v3279, %v3278
        %v3295 = vpack.c.b16 %v3281, %v3280
        %v3296 = vpack.c.b16 %v3283, %v3282
        %v3297 = vpack.c.b16 %v3285, %v3284
        %v3298 = vpack.c.b16 %v3287, %v3286
        %v3299 = vpack.c.b16 %v3289, %v3288
        %v3300 = vpack.c.b16 %v3291, %v3290
        %v3301 = vpack.c.b16 %v3293, %v3292
        %3310 = vmatprep.subr.bf16.mxu0 0
        %3311 = vmatpush1.bf16.msra.mxu0 %v3294
        %3312 = vmatprep.subr.bf16.mxu0 0
        %3313 = vmatpush1.bf16.msra.mxu0 %v3295
        %3314 = vmatprep.subr.bf16.mxu0 0
        %3315 = vmatpush1.bf16.msra.mxu0 %v3296
        %3316 = vmatprep.subr.bf16.mxu0 0
        %3317 = vmatpush1.bf16.msra.mxu0 %v3297
        %3318 = vmatprep.subr.bf16.mxu0 0
        %3319 = vmatpush1.bf16.msra.mxu0 %v3298
        %3320 = vmatprep.subr.bf16.mxu0 0
        %3321 = vmatpush1.bf16.msra.mxu0 %v3299
        %3322 = vmatprep.subr.bf16.mxu0 0
        %3323 = vmatpush1.bf16.msra.mxu0 %v3300
        %3324 = vmatprep.subr.bf16.mxu0 0
        %3325 = vmatpush1.bf16.msra.mxu0 %v3301
        %3326 = vmatprep.subr.bf16.mxu0 0
        %3327 = vmatpush1.bf16.msra.mxu0 0
        %3328 = vmatprep.subr.bf16.mxu0 0
        %3329 = vmatpush1.bf16.msra.mxu0 0
        %3330 = vmatprep.subr.bf16.mxu0 0
        %3331 = vmatpush1.bf16.msra.mxu0 0
        %3332 = vmatprep.subr.bf16.mxu0 0
        %3333 = vmatpush1.bf16.msra.mxu0 0
        %3334 = vmatprep.subr.bf16.mxu0 0
        %3335 = vmatpush1.bf16.msra.mxu0 0
        %3336 = vmatprep.subr.bf16.mxu0 0
        %3337 = vmatpush1.bf16.msra.mxu0 0
        %3338 = vmatprep.subr.bf16.mxu0 0
        %3339 = vmatpush1.bf16.msra.mxu0 0
        %3340 = vmatprep.subr.bf16.mxu0 0
        %3341 = vmatpush1.bf16.msra.mxu0 0
        %3342 = vmatprep.mubr.bf16.mxu0 0
        %3343 = vmatmul.mubr.bf16.gmra.mrb[0].mxu0 %v3008
        %v3344 = vpop.f32.mrb[0].mxu0
        %v3345 = vadd.f32 %v3260, %v3344
        %v3346 = vpop.f32.mrb[0].mxu0
        %v3347 = vpop.f32.mrb[0].mxu0
        %v3348 = vpop.f32.mrb[0].mxu0
        %3349 = vdwg.mxu0
        %v3350 = vpack.c.bf16 %v3345, %v3345
        %v3352 = vsel %vm1047, %v3122, 0
        %v3355 = vsel %vm1047, %v3236, 0
        %3357 = vmatprep.subr.bf16.mxu0 0
        %3358 = vmatpush1.bf16.xpose.msra.mxu0 %v3355
        %3359 = vmatprep.subr.bf16.mxu0 0
        %3360 = vmatpush1.bf16.xpose.msra.mxu0 0
        %3361 = vmatprep.subr.bf16.mxu0 0
        %3362 = vmatpush1.bf16.xpose.msra.mxu0 0
        %3363 = vmatprep.subr.bf16.mxu0 0
        %3364 = vmatpush1.bf16.xpose.msra.mxu0 0
        %3365 = vmatprep.subr.bf16.mxu0 0
        %3366 = vmatpush1.bf16.xpose.msra.mxu0 0
        %3367 = vmatprep.subr.bf16.mxu0 0
        %3368 = vmatpush1.bf16.xpose.msra.mxu0 0
        %3369 = vmatprep.subr.bf16.mxu0 0
        %3370 = vmatpush1.bf16.xpose.msra.mxu0 0
        %3371 = vmatprep.subr.bf16.mxu0 0
        %3372 = vmatpush1.bf16.xpose.msra.mxu0 0
        %3373 = vmatprep.subr.bf16.mxu0 0
        %3374 = vmatpush1.bf16.xpose.msra.mxu0 0
        %3375 = vmatprep.subr.bf16.mxu0 0
        %3376 = vmatpush1.bf16.xpose.msra.mxu0 0
        %3377 = vmatprep.subr.bf16.mxu0 0
        %3378 = vmatpush1.bf16.xpose.msra.mxu0 0
        %3379 = vmatprep.subr.bf16.mxu0 0
        %3380 = vmatpush1.bf16.xpose.msra.mxu0 0
        %3381 = vmatprep.subr.bf16.mxu0 0
        %3382 = vmatpush1.bf16.xpose.msra.mxu0 0
        %3383 = vmatprep.subr.bf16.mxu0 0
        %3384 = vmatpush1.bf16.xpose.msra.mxu0 0
        %3385 = vmatprep.subr.bf16.mxu0 0
        %3386 = vmatpush1.bf16.xpose.msra.mxu0 0
        %3387 = vmatprep.subr.bf16.mxu0 0
        %3388 = vmatpush1.bf16.xpose.msra.mxu0 0
        %3389 = vmatprep.mubr.bf16.mxu0 0
        %3390 = vmatmul.mubr.bf16.gmra.mrb[0].mxu0 %v3352
        %v3391 = vpop.f32.mrb[0].mxu0
        %v3392 = vadd.f32 %v678, %v3391
        %v3393 = vpop.f32.mrb[0].mxu0
        %v3394 = vpop.f32.mrb[0].mxu0
        %v3395 = vpop.f32.mrb[0].mxu0
        %3396 = vdwg.mxu0
        %v3397 = vsel %vm1094, %v3392, -inf
        %3398 = vmax.xlane.f32.xlu0 %v3397
        %v3399 = vpop.xlane.xlu0 %3398
        %v3400 = vsub.f32 %v3392, %v3399
        %v3401 = vmul.f32 %v3400, 1.442695
        %v3402 = vpow.pop %v3401
        %v3403 = vsel %vm1094, %v3402, 0.0
        %3404 = vadd.xlane.f32.xlu0 %v3403
        %v3405 = vpop.xlane.xlu0 %3404
        %v3406 = vrcp.pop %v3405
        %v3407 = vmul.f32 %v3402, %v3406
        %v3408 = vpack.c.bf16 %v3407, %v3407
        %v3410 = vsel %vm1094, %v3408, 0
        %v3413 = vsel %vm1110, %v3350, 0
        %3415 = vmatprep.subr.bf16.mxu0 0
        %3416 = vmatpush1.bf16.msra.mxu0 %v3413
        %3417 = vmatprep.subr.bf16.mxu0 0
        %3418 = vmatpush1.bf16.msra.mxu0 0
        %3419 = vmatprep.subr.bf16.mxu0 0
        %3420 = vmatpush1.bf16.msra.mxu0 0
        %3421 = vmatprep.subr.bf16.mxu0 0
        %3422 = vmatpush1.bf16.msra.mxu0 0
        %3423 = vmatprep.subr.bf16.mxu0 0
        %3424 = vmatpush1.bf16.msra.mxu0 0
        %3425 = vmatprep.subr.bf16.mxu0 0
        %3426 = vmatpush1.bf16.msra.mxu0 0
        %3427 = vmatprep.subr.bf16.mxu0 0
        %3428 = vmatpush1.bf16.msra.mxu0 0
        %3429 = vmatprep.subr.bf16.mxu0 0
        %3430 = vmatpush1.bf16.msra.mxu0 0
        %3431 = vmatprep.subr.bf16.mxu0 0
        %3432 = vmatpush1.bf16.msra.mxu0 0
        %3433 = vmatprep.subr.bf16.mxu0 0
        %3434 = vmatpush1.bf16.msra.mxu0 0
        %3435 = vmatprep.subr.bf16.mxu0 0
        %3436 = vmatpush1.bf16.msra.mxu0 0
        %3437 = vmatprep.subr.bf16.mxu0 0
        %3438 = vmatpush1.bf16.msra.mxu0 0
        %3439 = vmatprep.subr.bf16.mxu0 0
        %3440 = vmatpush1.bf16.msra.mxu0 0
        %3441 = vmatprep.subr.bf16.mxu0 0
        %3442 = vmatpush1.bf16.msra.mxu0 0
        %3443 = vmatprep.subr.bf16.mxu0 0
        %3444 = vmatpush1.bf16.msra.mxu0 0
        %3445 = vmatprep.subr.bf16.mxu0 0
        %3446 = vmatpush1.bf16.msra.mxu0 0
        %3447 = vmatprep.mubr.bf16.mxu0 0
        %3448 = vmatmul.mubr.bf16.gmra.mrb[0].mxu0 %v3410
        %v3449 = vpop.f32.mrb[0].mxu0
        %v3450 = vadd.f32 0.0, %v3449
        %v3451 = vpop.f32.mrb[0].mxu0
        %v3452 = vpop.f32.mrb[0].mxu0
        %v3453 = vpop.f32.mrb[0].mxu0
        %3454 = vdwg.mxu0
        %v3455 = vpack.c.bf16 %v3450, %v3450
        %s3456 = scalar_lea.vmem %s10, 32
        %v3457 = vld [vmem:[%s3456] sm:$0xf]
        %v3458 = vld [vmem:[%s3456 + $0x4] sm:$0xf]
        %s3459 = scalar_lea.vmem %s4, 320
        %v3460 = vld [vmem:[%s3459] sm:$0xf]
        %v3461 = vld [vmem:[%s3459 + $0x4] sm:$0xf]
        %v3462 = vld [vmem:[%s3459 + $0x8] sm:$0xf]
        %v3463 = vld [vmem:[%s3459 + $0xc] sm:$0xf]
        %v3464 = vld [vmem:[%s3459 + $0x10] sm:$0xf]
        %v3465 = vld [vmem:[%s3459 + $0x14] sm:$0xf]
        %v3466 = vld [vmem:[%s3459 + $0x18] sm:$0xf]
        %v3467 = vld [vmem:[%s3459 + $0x1c] sm:$0xf]
        %v3468 = vld [vmem:[%s3459 + $0x20] sm:$0xf]
        %v3469 = vld [vmem:[%s3459 + $0x24] sm:$0xf]
        %v3470 = vld [vmem:[%s3459 + $0x28] sm:$0xf]
        %v3471 = vld [vmem:[%s3459 + $0x2c] sm:$0xf]
        %v3472 = vld [vmem:[%s3459 + $0x30] sm:$0xf]
        %v3473 = vld [vmem:[%s3459 + $0x34] sm:$0xf]
        %v3474 = vld [vmem:[%s3459 + $0x38] sm:$0xf]
        %v3475 = vld [vmem:[%s3459 + $0x3c] sm:$0xf]
        %s3476 = scalar_lea.vmem %s5, 5
        %v3477 = vld [vmem:[%s3476] sm:$0x1]
        %v3479 = vlaneseq
        %v3480 = vshrl.u32 %v3479, 7
        %v3481 = vsub.s32 0, %v3480
        %v3482 = vrot.slane %v3477, %v3481
        %v3500 = vunpack.c.l.b16 %v3460
        %v3501 = vunpack.c.l.b16 %v3461
        %v3502 = vunpack.c.l.b16 %v3462
        %v3503 = vunpack.c.l.b16 %v3463
        %v3504 = vunpack.c.l.b16 %v3464
        %v3505 = vunpack.c.l.b16 %v3465
        %v3506 = vunpack.c.l.b16 %v3466
        %v3507 = vunpack.c.l.b16 %v3467
        %v3508 = vunpack.c.l.b16 %v3468
        %v3509 = vunpack.c.l.b16 %v3469
        %v3510 = vunpack.c.l.b16 %v3470
        %v3511 = vunpack.c.l.b16 %v3471
        %v3512 = vunpack.c.l.b16 %v3472
        %v3513 = vunpack.c.l.b16 %v3473
        %v3514 = vunpack.c.l.b16 %v3474
        %v3515 = vunpack.c.l.b16 %v3475
        %v3516 = vpack.c.b16 %v3501, %v3500
        %v3517 = vpack.c.b16 %v3503, %v3502
        %v3518 = vpack.c.b16 %v3505, %v3504
        %v3519 = vpack.c.b16 %v3507, %v3506
        %v3520 = vpack.c.b16 %v3509, %v3508
        %v3521 = vpack.c.b16 %v3511, %v3510
        %v3522 = vpack.c.b16 %v3513, %v3512
        %v3523 = vpack.c.b16 %v3515, %v3514
        %3532 = vmatprep.subr.bf16.mxu0 0
        %3533 = vmatpush1.bf16.msra.mxu0 %v3516
        %3534 = vmatprep.subr.bf16.mxu0 0
        %3535 = vmatpush1.bf16.msra.mxu0 %v3517
        %3536 = vmatprep.subr.bf16.mxu0 0
        %3537 = vmatpush1.bf16.msra.mxu0 %v3518
        %3538 = vmatprep.subr.bf16.mxu0 0
        %3539 = vmatpush1.bf16.msra.mxu0 %v3519
        %3540 = vmatprep.subr.bf16.mxu0 0
        %3541 = vmatpush1.bf16.msra.mxu0 %v3520
        %3542 = vmatprep.subr.bf16.mxu0 0
        %3543 = vmatpush1.bf16.msra.mxu0 %v3521
        %3544 = vmatprep.subr.bf16.mxu0 0
        %3545 = vmatpush1.bf16.msra.mxu0 %v3522
        %3546 = vmatprep.subr.bf16.mxu0 0
        %3547 = vmatpush1.bf16.msra.mxu0 %v3523
        %3548 = vmatprep.subr.bf16.mxu0 0
        %3549 = vmatpush1.bf16.msra.mxu0 0
        %3550 = vmatprep.subr.bf16.mxu0 0
        %3551 = vmatpush1.bf16.msra.mxu0 0
        %3552 = vmatprep.subr.bf16.mxu0 0
        %3553 = vmatpush1.bf16.msra.mxu0 0
        %3554 = vmatprep.subr.bf16.mxu0 0
        %3555 = vmatpush1.bf16.msra.mxu0 0
        %3556 = vmatprep.subr.bf16.mxu0 0
        %3557 = vmatpush1.bf16.msra.mxu0 0
        %3558 = vmatprep.subr.bf16.mxu0 0
        %3559 = vmatpush1.bf16.msra.mxu0 0
        %3560 = vmatprep.subr.bf16.mxu0 0
        %3561 = vmatpush1.bf16.msra.mxu0 0
        %3562 = vmatprep.subr.bf16.mxu0 0
        %3563 = vmatpush1.bf16.msra.mxu0 0
        %3564 = vmatprep.mubr.bf16.mxu0 0
        %3565 = vmatmul.mubr.bf16.gmra.mrb[0].mxu0 %v3008
        %v3566 = vpop.f32.mrb[0].mxu0
        %v3567 = vadd.f32 %v3482, %v3566
        %v3568 = vpop.f32.mrb[0].mxu0
        %v3569 = vpop.f32.mrb[0].mxu0
        %v3570 = vpop.f32.mrb[0].mxu0
        %3571 = vdwg.mxu0
        %v3572 = vpack.c.bf16 %v3567, %v3567
        %s3573 = scalar_lea.vmem %s6, 320
        %v3574 = vld [vmem:[%s3573] sm:$0xf]
        %v3575 = vld [vmem:[%s3573 + $0x4] sm:$0xf]
        %v3576 = vld [vmem:[%s3573 + $0x8] sm:$0xf]
        %v3577 = vld [vmem:[%s3573 + $0xc] sm:$0xf]
        %v3578 = vld [vmem:[%s3573 + $0x10] sm:$0xf]
        %v3579 = vld [vmem:[%s3573 + $0x14] sm:$0xf]
        %v3580 = vld [vmem:[%s3573 + $0x18] sm:$0xf]
        %v3581 = vld [vmem:[%s3573 + $0x1c] sm:$0xf]
        %v3582 = vld [vmem:[%s3573 + $0x20] sm:$0xf]
        %v3583 = vld [vmem:[%s3573 + $0x24] sm:$0xf]
        %v3584 = vld [vmem:[%s3573 + $0x28] sm:$0xf]
        %v3585 = vld [vmem:[%s3573 + $0x2c] sm:$0xf]
        %v3586 = vld [vmem:[%s3573 + $0x30] sm:$0xf]
        %v3587 = vld [vmem:[%s3573 + $0x34] sm:$0xf]
        %v3588 = vld [vmem:[%s3573 + $0x38] sm:$0xf]
        %v3589 = vld [vmem:[%s3573 + $0x3c] sm:$0xf]
        %s3590 = scalar_lea.vmem %s7, 5
        %v3591 = vld [vmem:[%s3590] sm:$0x1]
        %v3593 = vlaneseq
        %v3594 = vshrl.u32 %v3593, 7
        %v3595 = vsub.s32 0, %v3594
        %v3596 = vrot.slane %v3591, %v3595
        %v3614 = vunpack.c.l.b16 %v3574
        %v3615 = vunpack.c.l.b16 %v3575
        %v3616 = vunpack.c.l.b16 %v3576
        %v3617 = vunpack.c.l.b16 %v3577
        %v3618 = vunpack.c.l.b16 %v3578
        %v3619 = vunpack.c.l.b16 %v3579
        %v3620 = vunpack.c.l.b16 %v3580
        %v3621 = vunpack.c.l.b16 %v3581
        %v3622 = vunpack.c.l.b16 %v3582
        %v3623 = vunpack.c.l.b16 %v3583
        %v3624 = vunpack.c.l.b16 %v3584
        %v3625 = vunpack.c.l.b16 %v3585
        %v3626 = vunpack.c.l.b16 %v3586
        %v3627 = vunpack.c.l.b16 %v3587
        %v3628 = vunpack.c.l.b16 %v3588
        %v3629 = vunpack.c.l.b16 %v3589
        %v3630 = vpack.c.b16 %v3615, %v3614
        %v3631 = vpack.c.b16 %v3617, %v3616
        %v3632 = vpack.c.b16 %v3619, %v3618
        %v3633 = vpack.c.b16 %v3621, %v3620
        %v3634 = vpack.c.b16 %v3623, %v3622
        %v3635 = vpack.c.b16 %v3625, %v3624
        %v3636 = vpack.c.b16 %v3627, %v3626
        %v3637 = vpack.c.b16 %v3629, %v3628
        %3646 = vmatprep.subr.bf16.mxu0 0
        %3647 = vmatpush1.bf16.msra.mxu0 %v3630
        %3648 = vmatprep.subr.bf16.mxu0 0
        %3649 = vmatpush1.bf16.msra.mxu0 %v3631
        %3650 = vmatprep.subr.bf16.mxu0 0
        %3651 = vmatpush1.bf16.msra.mxu0 %v3632
        %3652 = vmatprep.subr.bf16.mxu0 0
        %3653 = vmatpush1.bf16.msra.mxu0 %v3633
        %3654 = vmatprep.subr.bf16.mxu0 0
        %3655 = vmatpush1.bf16.msra.mxu0 %v3634
        %3656 = vmatprep.subr.bf16.mxu0 0
        %3657 = vmatpush1.bf16.msra.mxu0 %v3635
        %3658 = vmatprep.subr.bf16.mxu0 0
        %3659 = vmatpush1.bf16.msra.mxu0 %v3636
        %3660 = vmatprep.subr.bf16.mxu0 0
        %3661 = vmatpush1.bf16.msra.mxu0 %v3637
        %3662 = vmatprep.subr.bf16.mxu0 0
        %3663 = vmatpush1.bf16.msra.mxu0 0
        %3664 = vmatprep.subr.bf16.mxu0 0
        %3665 = vmatpush1.bf16.msra.mxu0 0
        %3666 = vmatprep.subr.bf16.mxu0 0
        %3667 = vmatpush1.bf16.msra.mxu0 0
        %3668 = vmatprep.subr.bf16.mxu0 0
        %3669 = vmatpush1.bf16.msra.mxu0 0
        %3670 = vmatprep.subr.bf16.mxu0 0
        %3671 = vmatpush1.bf16.msra.mxu0 0
        %3672 = vmatprep.subr.bf16.mxu0 0
        %3673 = vmatpush1.bf16.msra.mxu0 0
        %3674 = vmatprep.subr.bf16.mxu0 0
        %3675 = vmatpush1.bf16.msra.mxu0 0
        %3676 = vmatprep.subr.bf16.mxu0 0
        %3677 = vmatpush1.bf16.msra.mxu0 0
        %3678 = vmatprep.mubr.bf16.mxu0 0
        %3679 = vmatmul.mubr.bf16.gmra.mrb[0].mxu0 %v3008
        %v3680 = vpop.f32.mrb[0].mxu0
        %v3681 = vadd.f32 %v3596, %v3680
        %v3682 = vpop.f32.mrb[0].mxu0
        %v3683 = vpop.f32.mrb[0].mxu0
        %v3684 = vpop.f32.mrb[0].mxu0
        %3685 = vdwg.mxu0
        %v3686 = vpack.c.bf16 %v3681, %v3681
        %s3687 = scalar_lea.vmem %s8, 320
        %v3688 = vld [vmem:[%s3687] sm:$0xf]
        %v3689 = vld [vmem:[%s3687 + $0x4] sm:$0xf]
        %v3690 = vld [vmem:[%s3687 + $0x8] sm:$0xf]
        %v3691 = vld [vmem:[%s3687 + $0xc] sm:$0xf]
        %v3692 = vld [vmem:[%s3687 + $0x10] sm:$0xf]
        %v3693 = vld [vmem:[%s3687 + $0x14] sm:$0xf]
        %v3694 = vld [vmem:[%s3687 + $0x18] sm:$0xf]
        %v3695 = vld [vmem:[%s3687 + $0x1c] sm:$0xf]
        %v3696 = vld [vmem:[%s3687 + $0x20] sm:$0xf]
        %v3697 = vld [vmem:[%s3687 + $0x24] sm:$0xf]
        %v3698 = vld [vmem:[%s3687 + $0x28] sm:$0xf]
        %v3699 = vld [vmem:[%s3687 + $0x2c] sm:$0xf]
        %v3700 = vld [vmem:[%s3687 + $0x30] sm:$0xf]
        %v3701 = vld [vmem:[%s3687 + $0x34] sm:$0xf]
        %v3702 = vld [vmem:[%s3687 + $0x38] sm:$0xf]
        %v3703 = vld [vmem:[%s3687 + $0x3c] sm:$0xf]
        %s3704 = scalar_lea.vmem %s9, 5
        %v3705 = vld [vmem:[%s3704] sm:$0x1]
        %v3707 = vlaneseq
        %v3708 = vshrl.u32 %v3707, 7
        %v3709 = vsub.s32 0, %v3708
        %v3710 = vrot.slane %v3705, %v3709
        %v3728 = vunpack.c.l.b16 %v3688
        %v3729 = vunpack.c.l.b16 %v3689
        %v3730 = vunpack.c.l.b16 %v3690
        %v3731 = vunpack.c.l.b16 %v3691
        %v3732 = vunpack.c.l.b16 %v3692
        %v3733 = vunpack.c.l.b16 %v3693
        %v3734 = vunpack.c.l.b16 %v3694
        %v3735 = vunpack.c.l.b16 %v3695
        %v3736 = vunpack.c.l.b16 %v3696
        %v3737 = vunpack.c.l.b16 %v3697
        %v3738 = vunpack.c.l.b16 %v3698
        %v3739 = vunpack.c.l.b16 %v3699
        %v3740 = vunpack.c.l.b16 %v3700
        %v3741 = vunpack.c.l.b16 %v3701
        %v3742 = vunpack.c.l.b16 %v3702
        %v3743 = vunpack.c.l.b16 %v3703
        %v3744 = vpack.c.b16 %v3729, %v3728
        %v3745 = vpack.c.b16 %v3731, %v3730
        %v3746 = vpack.c.b16 %v3733, %v3732
        %v3747 = vpack.c.b16 %v3735, %v3734
        %v3748 = vpack.c.b16 %v3737, %v3736
        %v3749 = vpack.c.b16 %v3739, %v3738
        %v3750 = vpack.c.b16 %v3741, %v3740
        %v3751 = vpack.c.b16 %v3743, %v3742
        %3760 = vmatprep.subr.bf16.mxu0 0
        %3761 = vmatpush1.bf16.msra.mxu0 %v3744
        %3762 = vmatprep.subr.bf16.mxu0 0
        %3763 = vmatpush1.bf16.msra.mxu0 %v3745
        %3764 = vmatprep.subr.bf16.mxu0 0
        %3765 = vmatpush1.bf16.msra.mxu0 %v3746
        %3766 = vmatprep.subr.bf16.mxu0 0
        %3767 = vmatpush1.bf16.msra.mxu0 %v3747
        %3768 = vmatprep.subr.bf16.mxu0 0
        %3769 = vmatpush1.bf16.msra.mxu0 %v3748
        %3770 = vmatprep.subr.bf16.mxu0 0
        %3771 = vmatpush1.bf16.msra.mxu0 %v3749
        %3772 = vmatprep.subr.bf16.mxu0 0
        %3773 = vmatpush1.bf16.msra.mxu0 %v3750
        %3774 = vmatprep.subr.bf16.mxu0 0
        %3775 = vmatpush1.bf16.msra.mxu0 %v3751
        %3776 = vmatprep.subr.bf16.mxu0 0
        %3777 = vmatpush1.bf16.msra.mxu0 0
        %3778 = vmatprep.subr.bf16.mxu0 0
        %3779 = vmatpush1.bf16.msra.mxu0 0
        %3780 = vmatprep.subr.bf16.mxu0 0
        %3781 = vmatpush1.bf16.msra.mxu0 0
        %3782 = vmatprep.subr.bf16.mxu0 0
        %3783 = vmatpush1.bf16.msra.mxu0 0
        %3784 = vmatprep.subr.bf16.mxu0 0
        %3785 = vmatpush1.bf16.msra.mxu0 0
        %3786 = vmatprep.subr.bf16.mxu0 0
        %3787 = vmatpush1.bf16.msra.mxu0 0
        %3788 = vmatprep.subr.bf16.mxu0 0
        %3789 = vmatpush1.bf16.msra.mxu0 0
        %3790 = vmatprep.subr.bf16.mxu0 0
        %3791 = vmatpush1.bf16.msra.mxu0 0
        %3792 = vmatprep.mubr.bf16.mxu0 0
        %3793 = vmatmul.mubr.bf16.gmra.mrb[0].mxu0 %v3008
        %v3794 = vpop.f32.mrb[0].mxu0
        %v3795 = vadd.f32 %v3710, %v3794
        %v3796 = vpop.f32.mrb[0].mxu0
        %v3797 = vpop.f32.mrb[0].mxu0
        %v3798 = vpop.f32.mrb[0].mxu0
        %3799 = vdwg.mxu0
        %v3800 = vpack.c.bf16 %v3795, %v3795
        %v3802 = vsel %vm1047, %v3572, 0
        %v3805 = vsel %vm1047, %v3686, 0
        %3807 = vmatprep.subr.bf16.mxu0 0
        %3808 = vmatpush1.bf16.xpose.msra.mxu0 %v3805
        %3809 = vmatprep.subr.bf16.mxu0 0
        %3810 = vmatpush1.bf16.xpose.msra.mxu0 0
        %3811 = vmatprep.subr.bf16.mxu0 0
        %3812 = vmatpush1.bf16.xpose.msra.mxu0 0
        %3813 = vmatprep.subr.bf16.mxu0 0
        %3814 = vmatpush1.bf16.xpose.msra.mxu0 0
        %3815 = vmatprep.subr.bf16.mxu0 0
        %3816 = vmatpush1.bf16.xpose.msra.mxu0 0
        %3817 = vmatprep.subr.bf16.mxu0 0
        %3818 = vmatpush1.bf16.xpose.msra.mxu0 0
        %3819 = vmatprep.subr.bf16.mxu0 0
        %3820 = vmatpush1.bf16.xpose.msra.mxu0 0
        %3821 = vmatprep.subr.bf16.mxu0 0
        %3822 = vmatpush1.bf16.xpose.msra.mxu0 0
        %3823 = vmatprep.subr.bf16.mxu0 0
        %3824 = vmatpush1.bf16.xpose.msra.mxu0 0
        %3825 = vmatprep.subr.bf16.mxu0 0
        %3826 = vmatpush1.bf16.xpose.msra.mxu0 0
        %3827 = vmatprep.subr.bf16.mxu0 0
        %3828 = vmatpush1.bf16.xpose.msra.mxu0 0
        %3829 = vmatprep.subr.bf16.mxu0 0
        %3830 = vmatpush1.bf16.xpose.msra.mxu0 0
        %3831 = vmatprep.subr.bf16.mxu0 0
        %3832 = vmatpush1.bf16.xpose.msra.mxu0 0
        %3833 = vmatprep.subr.bf16.mxu0 0
        %3834 = vmatpush1.bf16.xpose.msra.mxu0 0
        %3835 = vmatprep.subr.bf16.mxu0 0
        %3836 = vmatpush1.bf16.xpose.msra.mxu0 0
        %3837 = vmatprep.subr.bf16.mxu0 0
        %3838 = vmatpush1.bf16.xpose.msra.mxu0 0
        %3839 = vmatprep.mubr.bf16.mxu0 0
        %3840 = vmatmul.mubr.bf16.gmra.mrb[0].mxu0 %v3802
        %v3841 = vpop.f32.mrb[0].mxu0
        %v3842 = vadd.f32 %v678, %v3841
        %v3843 = vpop.f32.mrb[0].mxu0
        %v3844 = vpop.f32.mrb[0].mxu0
        %v3845 = vpop.f32.mrb[0].mxu0
        %3846 = vdwg.mxu0
        %v3847 = vsel %vm1094, %v3842, -inf
        %3848 = vmax.xlane.f32.xlu0 %v3847
        %v3849 = vpop.xlane.xlu0 %3848
        %v3850 = vsub.f32 %v3842, %v3849
        %v3851 = vmul.f32 %v3850, 1.442695
        %v3852 = vpow.pop %v3851
        %v3853 = vsel %vm1094, %v3852, 0.0
        %3854 = vadd.xlane.f32.xlu0 %v3853
        %v3855 = vpop.xlane.xlu0 %3854
        %v3856 = vrcp.pop %v3855
        %v3857 = vmul.f32 %v3852, %v3856
        %v3858 = vpack.c.bf16 %v3857, %v3857
        %v3860 = vsel %vm1094, %v3858, 0
        %v3863 = vsel %vm1110, %v3800, 0
        %3865 = vmatprep.subr.bf16.mxu0 0
        %3866 = vmatpush1.bf16.msra.mxu0 %v3863
        %3867 = vmatprep.subr.bf16.mxu0 0
        %3868 = vmatpush1.bf16.msra.mxu0 0
        %3869 = vmatprep.subr.bf16.mxu0 0
        %3870 = vmatpush1.bf16.msra.mxu0 0
        %3871 = vmatprep.subr.bf16.mxu0 0
        %3872 = vmatpush1.bf16.msra.mxu0 0
        %3873 = vmatprep.subr.bf16.mxu0 0
        %3874 = vmatpush1.bf16.msra.mxu0 0
        %3875 = vmatprep.subr.bf16.mxu0 0
        %3876 = vmatpush1.bf16.msra.mxu0 0
        %3877 = vmatprep.subr.bf16.mxu0 0
        %3878 = vmatpush1.bf16.msra.mxu0 0
        %3879 = vmatprep.subr.bf16.mxu0 0
        %3880 = vmatpush1.bf16.msra.mxu0 0
        %3881 = vmatprep.subr.bf16.mxu0 0
        %3882 = vmatpush1.bf16.msra.mxu0 0
        %3883 = vmatprep.subr.bf16.mxu0 0
        %3884 = vmatpush1.bf16.msra.mxu0 0
        %3885 = vmatprep.subr.bf16.mxu0 0
        %3886 = vmatpush1.bf16.msra.mxu0 0
        %3887 = vmatprep.subr.bf16.mxu0 0
        %3888 = vmatpush1.bf16.msra.mxu0 0
        %3889 = vmatprep.subr.bf16.mxu0 0
        %3890 = vmatpush1.bf16.msra.mxu0 0
        %3891 = vmatprep.subr.bf16.mxu0 0
        %3892 = vmatpush1.bf16.msra.mxu0 0
        %3893 = vmatprep.subr.bf16.mxu0 0
        %3894 = vmatpush1.bf16.msra.mxu0 0
        %3895 = vmatprep.subr.bf16.mxu0 0
        %3896 = vmatpush1.bf16.msra.mxu0 0
        %3897 = vmatprep.mubr.bf16.mxu0 0
        %3898 = vmatmul.mubr.bf16.gmra.mrb[0].mxu0 %v3860
        %v3899 = vpop.f32.mrb[0].mxu0
        %v3900 = vadd.f32 0.0, %v3899
        %v3901 = vpop.f32.mrb[0].mxu0
        %v3902 = vpop.f32.mrb[0].mxu0
        %v3903 = vpop.f32.mrb[0].mxu0
        %3904 = vdwg.mxu0
        %v3905 = vpack.c.bf16 %v3900, %v3900
        %s3906 = scalar_lea.vmem %s10, 40
        %v3907 = vld [vmem:[%s3906] sm:$0xf]
        %v3908 = vld [vmem:[%s3906 + $0x4] sm:$0xf]
        %v3911 = vunpack.c.l.b16 %v3907
        %v3912 = vunpack.c.l.b16 %v3908
        %v3913 = vpack.c.b16 %v3912, %v3911
        %v3916 = vsel %vm1047, %v3905, 0
        %3918 = vmatprep.subr.bf16.mxu0 0
        %3919 = vmatpush1.bf16.msra.mxu0 %v3913
        %3920 = vmatprep.subr.bf16.mxu0 0
        %3921 = vmatpush1.bf16.msra.mxu0 0
        %3922 = vmatprep.subr.bf16.mxu0 0
        %3923 = vmatpush1.bf16.msra.mxu0 0
        %3924 = vmatprep.subr.bf16.mxu0 0
        %3925 = vmatpush1.bf16.msra.mxu0 0
        %3926 = vmatprep.subr.bf16.mxu0 0
        %3927 = vmatpush1.bf16.msra.mxu0 0
        %3928 = vmatprep.subr.bf16.mxu0 0
        %3929 = vmatpush1.bf16.msra.mxu0 0
        %3930 = vmatprep.subr.bf16.mxu0 0
        %3931 = vmatpush1.bf16.msra.mxu0 0
        %3932 = vmatprep.subr.bf16.mxu0 0
        %3933 = vmatpush1.bf16.msra.mxu0 0
        %3934 = vmatprep.subr.bf16.mxu0 0
        %3935 = vmatpush1.bf16.msra.mxu0 0
        %3936 = vmatprep.subr.bf16.mxu0 0
        %3937 = vmatpush1.bf16.msra.mxu0 0
        %3938 = vmatprep.subr.bf16.mxu0 0
        %3939 = vmatpush1.bf16.msra.mxu0 0
        %3940 = vmatprep.subr.bf16.mxu0 0
        %3941 = vmatpush1.bf16.msra.mxu0 0
        %3942 = vmatprep.subr.bf16.mxu0 0
        %3943 = vmatpush1.bf16.msra.mxu0 0
        %3944 = vmatprep.subr.bf16.mxu0 0
        %3945 = vmatpush1.bf16.msra.mxu0 0
        %3946 = vmatprep.subr.bf16.mxu0 0
        %3947 = vmatpush1.bf16.msra.mxu0 0
        %3948 = vmatprep.subr.bf16.mxu0 0
        %3949 = vmatpush1.bf16.msra.mxu0 0
        %3950 = vmatprep.mubr.bf16.mxu0 0
        %3951 = vmatmul.mubr.bf16.gmra.mrb[0].mxu0 %v3916
        %v3952 = vpop.f32.mrb[0].mxu0
        %v3953 = vadd.f32 0.0, %v3952
        %v3954 = vpop.f32.mrb[0].mxu0
        %v3955 = vpop.f32.mrb[0].mxu0
        %v3956 = vpop.f32.mrb[0].mxu0
        %3957 = vdwg.mxu0
        %v3960 = vunpack.c.l.b16 %v3457
        %v3961 = vunpack.c.l.b16 %v3458
        %v3962 = vpack.c.b16 %v3961, %v3960
        %v3965 = vsel %vm1047, %v3455, 0
        %3967 = vmatprep.subr.bf16.mxu0 0
        %3968 = vmatpush1.bf16.msra.mxu0 %v3962
        %3969 = vmatprep.subr.bf16.mxu0 0
        %3970 = vmatpush1.bf16.msra.mxu0 0
        %3971 = vmatprep.subr.bf16.mxu0 0
        %3972 = vmatpush1.bf16.msra.mxu0 0
        %3973 = vmatprep.subr.bf16.mxu0 0
        %3974 = vmatpush1.bf16.msra.mxu0 0
        %3975 = vmatprep.subr.bf16.mxu0 0
        %3976 = vmatpush1.bf16.msra.mxu0 0
        %3977 = vmatprep.subr.bf16.mxu0 0
        %3978 = vmatpush1.bf16.msra.mxu0 0
        %3979 = vmatprep.subr.bf16.mxu0 0
        %3980 = vmatpush1.bf16.msra.mxu0 0
        %3981 = vmatprep.subr.bf16.mxu0 0
        %3982 = vmatpush1.bf16.msra.mxu0 0
        %3983 = vmatprep.subr.bf16.mxu0 0
        %3984 = vmatpush1.bf16.msra.mxu0 0
        %3985 = vmatprep.subr.bf16.mxu0 0
        %3986 = vmatpush1.bf16.msra.mxu0 0
        %3987 = vmatprep.subr.bf16.mxu0 0
        %3988 = vmatpush1.bf16.msra.mxu0 0
        %3989 = vmatprep.subr.bf16.mxu0 0
        %3990 = vmatpush1.bf16.msra.mxu0 0
        %3991 = vmatprep.subr.bf16.mxu0 0
        %3992 = vmatpush1.bf16.msra.mxu0 0
        %3993 = vmatprep.subr.bf16.mxu0 0
        %3994 = vmatpush1.bf16.msra.mxu0 0
        %3995 = vmatprep.subr.bf16.mxu0 0
        %3996 = vmatpush1.bf16.msra.mxu0 0
        %3997 = vmatprep.subr.bf16.mxu0 0
        %3998 = vmatpush1.bf16.msra.mxu0 0
        %3999 = vmatprep.mubr.bf16.mxu0 0
        %4000 = vmatmul.mubr.bf16.gmra.mrb[0].mxu0 %v3965
        %v4001 = vpop.f32.mrb[0].mxu0
        %v4002 = vadd.f32 %v3953, %v4001
        %v4003 = vpop.f32.mrb[0].mxu0
        %v4004 = vpop.f32.mrb[0].mxu0
        %v4005 = vpop.f32.mrb[0].mxu0
        %4006 = vdwg.mxu0
        %s4007 = scalar_lea.vmem %s4, 384
        %v4008 = vld [vmem:[%s4007] sm:$0xf]
        %v4009 = vld [vmem:[%s4007 + $0x4] sm:$0xf]
        %v4010 = vld [vmem:[%s4007 + $0x8] sm:$0xf]
        %v4011 = vld [vmem:[%s4007 + $0xc] sm:$0xf]
        %v4012 = vld [vmem:[%s4007 + $0x10] sm:$0xf]
        %v4013 = vld [vmem:[%s4007 + $0x14] sm:$0xf]
        %v4014 = vld [vmem:[%s4007 + $0x18] sm:$0xf]
        %v4015 = vld [vmem:[%s4007 + $0x1c] sm:$0xf]
        %v4016 = vld [vmem:[%s4007 + $0x20] sm:$0xf]
        %v4017 = vld [vmem:[%s4007 + $0x24] sm:$0xf]
        %v4018 = vld [vmem:[%s4007 + $0x28] sm:$0xf]
        %v4019 = vld [vmem:[%s4007 + $0x2c] sm:$0xf]
        %v4020 = vld [vmem:[%s4007 + $0x30] sm:$0xf]
        %v4021 = vld [vmem:[%s4007 + $0x34] sm:$0xf]
        %v4022 = vld [vmem:[%s4007 + $0x38] sm:$0xf]
        %v4023 = vld [vmem:[%s4007 + $0x3c] sm:$0xf]
        %s4024 = scalar_lea.vmem %s5, 6
        %v4025 = vld [vmem:[%s4024] sm:$0x1]
        %v4027 = vlaneseq
        %v4028 = vshrl.u32 %v4027, 7
        %v4029 = vsub.s32 0, %v4028
        %v4030 = vrot.slane %v4025, %v4029
        %v4048 = vunpack.c.l.b16 %v4008
        %v4049 = vunpack.c.l.b16 %v4009
        %v4050 = vunpack.c.l.b16 %v4010
        %v4051 = vunpack.c.l.b16 %v4011
        %v4052 = vunpack.c.l.b16 %v4012
        %v4053 = vunpack.c.l.b16 %v4013
        %v4054 = vunpack.c.l.b16 %v4014
        %v4055 = vunpack.c.l.b16 %v4015
        %v4056 = vunpack.c.l.b16 %v4016
        %v4057 = vunpack.c.l.b16 %v4017
        %v4058 = vunpack.c.l.b16 %v4018
        %v4059 = vunpack.c.l.b16 %v4019
        %v4060 = vunpack.c.l.b16 %v4020
        %v4061 = vunpack.c.l.b16 %v4021
        %v4062 = vunpack.c.l.b16 %v4022
        %v4063 = vunpack.c.l.b16 %v4023
        %v4064 = vpack.c.b16 %v4049, %v4048
        %v4065 = vpack.c.b16 %v4051, %v4050
        %v4066 = vpack.c.b16 %v4053, %v4052
        %v4067 = vpack.c.b16 %v4055, %v4054
        %v4068 = vpack.c.b16 %v4057, %v4056
        %v4069 = vpack.c.b16 %v4059, %v4058
        %v4070 = vpack.c.b16 %v4061, %v4060
        %v4071 = vpack.c.b16 %v4063, %v4062
        %4080 = vmatprep.subr.bf16.mxu0 0
        %4081 = vmatpush1.bf16.msra.mxu0 %v4064
        %4082 = vmatprep.subr.bf16.mxu0 0
        %4083 = vmatpush1.bf16.msra.mxu0 %v4065
        %4084 = vmatprep.subr.bf16.mxu0 0
        %4085 = vmatpush1.bf16.msra.mxu0 %v4066
        %4086 = vmatprep.subr.bf16.mxu0 0
        %4087 = vmatpush1.bf16.msra.mxu0 %v4067
        %4088 = vmatprep.subr.bf16.mxu0 0
        %4089 = vmatpush1.bf16.msra.mxu0 %v4068
        %4090 = vmatprep.subr.bf16.mxu0 0
        %4091 = vmatpush1.bf16.msra.mxu0 %v4069
        %4092 = vmatprep.subr.bf16.mxu0 0
        %4093 = vmatpush1.bf16.msra.mxu0 %v4070
        %4094 = vmatprep.subr.bf16.mxu0 0
        %4095 = vmatpush1.bf16.msra.mxu0 %v4071
        %4096 = vmatprep.subr.bf16.mxu0 0
        %4097 = vmatpush1.bf16.msra.mxu0 0
        %4098 = vmatprep.subr.bf16.mxu0 0
        %4099 = vmatpush1.bf16.msra.mxu0 0
        %4100 = vmatprep.subr.bf16.mxu0 0
        %4101 = vmatpush1.bf16.msra.mxu0 0
        %4102 = vmatprep.subr.bf16.mxu0 0
        %4103 = vmatpush1.bf16.msra.mxu0 0
        %4104 = vmatprep.subr.bf16.mxu0 0
        %4105 = vmatpush1.bf16.msra.mxu0 0
        %4106 = vmatprep.subr.bf16.mxu0 0
        %4107 = vmatpush1.bf16.msra.mxu0 0
        %4108 = vmatprep.subr.bf16.mxu0 0
        %4109 = vmatpush1.bf16.msra.mxu0 0
        %4110 = vmatprep.subr.bf16.mxu0 0
        %4111 = vmatpush1.bf16.msra.mxu0 0
        %4112 = vmatprep.mubr.bf16.mxu0 0
        %4113 = vmatmul.mubr.bf16.gmra.mrb[0].mxu0 %v3008
        %v4114 = vpop.f32.mrb[0].mxu0
        %v4115 = vadd.f32 %v4030, %v4114
        %v4116 = vpop.f32.mrb[0].mxu0
        %v4117 = vpop.f32.mrb[0].mxu0
        %v4118 = vpop.f32.mrb[0].mxu0
        %4119 = vdwg.mxu0
        %v4120 = vpack.c.bf16 %v4115, %v4115
        %s4121 = scalar_lea.vmem %s6, 384
        %v4122 = vld [vmem:[%s4121] sm:$0xf]
        %v4123 = vld [vmem:[%s4121 + $0x4] sm:$0xf]
        %v4124 = vld [vmem:[%s4121 + $0x8] sm:$0xf]
        %v4125 = vld [vmem:[%s4121 + $0xc] sm:$0xf]
        %v4126 = vld [vmem:[%s4121 + $0x10] sm:$0xf]
        %v4127 = vld [vmem:[%s4121 + $0x14] sm:$0xf]
        %v4128 = vld [vmem:[%s4121 + $0x18] sm:$0xf]
        %v4129 = vld [vmem:[%s4121 + $0x1c] sm:$0xf]
        %v4130 = vld [vmem:[%s4121 + $0x20] sm:$0xf]
        %v4131 = vld [vmem:[%s4121 + $0x24] sm:$0xf]
        %v4132 = vld [vmem:[%s4121 + $0x28] sm:$0xf]
        %v4133 = vld [vmem:[%s4121 + $0x2c] sm:$0xf]
        %v4134 = vld [vmem:[%s4121 + $0x30] sm:$0xf]
        %v4135 = vld [vmem:[%s4121 + $0x34] sm:$0xf]
        %v4136 = vld [vmem:[%s4121 + $0x38] sm:$0xf]
        %v4137 = vld [vmem:[%s4121 + $0x3c] sm:$0xf]
        %s4138 = scalar_lea.vmem %s7, 6
        %v4139 = vld [vmem:[%s4138] sm:$0x1]
        %v4141 = vlaneseq
        %v4142 = vshrl.u32 %v4141, 7
        %v4143 = vsub.s32 0, %v4142
        %v4144 = vrot.slane %v4139, %v4143
        %v4162 = vunpack.c.l.b16 %v4122
        %v4163 = vunpack.c.l.b16 %v4123
        %v4164 = vunpack.c.l.b16 %v4124
        %v4165 = vunpack.c.l.b16 %v4125
        %v4166 = vunpack.c.l.b16 %v4126
        %v4167 = vunpack.c.l.b16 %v4127
        %v4168 = vunpack.c.l.b16 %v4128
        %v4169 = vunpack.c.l.b16 %v4129
        %v4170 = vunpack.c.l.b16 %v4130
        %v4171 = vunpack.c.l.b16 %v4131
        %v4172 = vunpack.c.l.b16 %v4132
        %v4173 = vunpack.c.l.b16 %v4133
        %v4174 = vunpack.c.l.b16 %v4134
        %v4175 = vunpack.c.l.b16 %v4135
        %v4176 = vunpack.c.l.b16 %v4136
        %v4177 = vunpack.c.l.b16 %v4137
        %v4178 = vpack.c.b16 %v4163, %v4162
        %v4179 = vpack.c.b16 %v4165, %v4164
        %v4180 = vpack.c.b16 %v4167, %v4166
        %v4181 = vpack.c.b16 %v4169, %v4168
        %v4182 = vpack.c.b16 %v4171, %v4170
        %v4183 = vpack.c.b16 %v4173, %v4172
        %v4184 = vpack.c.b16 %v4175, %v4174
        %v4185 = vpack.c.b16 %v4177, %v4176
        %4194 = vmatprep.subr.bf16.mxu0 0
        %4195 = vmatpush1.bf16.msra.mxu0 %v4178
        %4196 = vmatprep.subr.bf16.mxu0 0
        %4197 = vmatpush1.bf16.msra.mxu0 %v4179
        %4198 = vmatprep.subr.bf16.mxu0 0
        %4199 = vmatpush1.bf16.msra.mxu0 %v4180
        %4200 = vmatprep.subr.bf16.mxu0 0
        %4201 = vmatpush1.bf16.msra.mxu0 %v4181
        %4202 = vmatprep.subr.bf16.mxu0 0
        %4203 = vmatpush1.bf16.msra.mxu0 %v4182
        %4204 = vmatprep.subr.bf16.mxu0 0
        %4205 = vmatpush1.bf16.msra.mxu0 %v4183
        %4206 = vmatprep.subr.bf16.mxu0 0
        %4207 = vmatpush1.bf16.msra.mxu0 %v4184
        %4208 = vmatprep.subr.bf16.mxu0 0
        %4209 = vmatpush1.bf16.msra.mxu0 %v4185
        %4210 = vmatprep.subr.bf16.mxu0 0
        %4211 = vmatpush1.bf16.msra.mxu0 0
        %4212 = vmatprep.subr.bf16.mxu0 0
        %4213 = vmatpush1.bf16.msra.mxu0 0
        %4214 = vmatprep.subr.bf16.mxu0 0
        %4215 = vmatpush1.bf16.msra.mxu0 0
        %4216 = vmatprep.subr.bf16.mxu0 0
        %4217 = vmatpush1.bf16.msra.mxu0 0
        %4218 = vmatprep.subr.bf16.mxu0 0
        %4219 = vmatpush1.bf16.msra.mxu0 0
        %4220 = vmatprep.subr.bf16.mxu0 0
        %4221 = vmatpush1.bf16.msra.mxu0 0
        %4222 = vmatprep.subr.bf16.mxu0 0
        %4223 = vmatpush1.bf16.msra.mxu0 0
        %4224 = vmatprep.subr.bf16.mxu0 0
        %4225 = vmatpush1.bf16.msra.mxu0 0
        %4226 = vmatprep.mubr.bf16.mxu0 0
        %4227 = vmatmul.mubr.bf16.gmra.mrb[0].mxu0 %v3008
        %v4228 = vpop.f32.mrb[0].mxu0
        %v4229 = vadd.f32 %v4144, %v4228
        %v4230 = vpop.f32.mrb[0].mxu0
        %v4231 = vpop.f32.mrb[0].mxu0
        %v4232 = vpop.f32.mrb[0].mxu0
        %4233 = vdwg.mxu0
        %v4234 = vpack.c.bf16 %v4229, %v4229
        %s4235 = scalar_lea.vmem %s8, 384
        %v4236 = vld [vmem:[%s4235] sm:$0xf]
        %v4237 = vld [vmem:[%s4235 + $0x4] sm:$0xf]
        %v4238 = vld [vmem:[%s4235 + $0x8] sm:$0xf]
        %v4239 = vld [vmem:[%s4235 + $0xc] sm:$0xf]
        %v4240 = vld [vmem:[%s4235 + $0x10] sm:$0xf]
        %v4241 = vld [vmem:[%s4235 + $0x14] sm:$0xf]
        %v4242 = vld [vmem:[%s4235 + $0x18] sm:$0xf]
        %v4243 = vld [vmem:[%s4235 + $0x1c] sm:$0xf]
        %v4244 = vld [vmem:[%s4235 + $0x20] sm:$0xf]
        %v4245 = vld [vmem:[%s4235 + $0x24] sm:$0xf]
        %v4246 = vld [vmem:[%s4235 + $0x28] sm:$0xf]
        %v4247 = vld [vmem:[%s4235 + $0x2c] sm:$0xf]
        %v4248 = vld [vmem:[%s4235 + $0x30] sm:$0xf]
        %v4249 = vld [vmem:[%s4235 + $0x34] sm:$0xf]
        %v4250 = vld [vmem:[%s4235 + $0x38] sm:$0xf]
        %v4251 = vld [vmem:[%s4235 + $0x3c] sm:$0xf]
        %s4252 = scalar_lea.vmem %s9, 6
        %v4253 = vld [vmem:[%s4252] sm:$0x1]
        %v4255 = vlaneseq
        %v4256 = vshrl.u32 %v4255, 7
        %v4257 = vsub.s32 0, %v4256
        %v4258 = vrot.slane %v4253, %v4257
        %v4276 = vunpack.c.l.b16 %v4236
        %v4277 = vunpack.c.l.b16 %v4237
        %v4278 = vunpack.c.l.b16 %v4238
        %v4279 = vunpack.c.l.b16 %v4239
        %v4280 = vunpack.c.l.b16 %v4240
        %v4281 = vunpack.c.l.b16 %v4241
        %v4282 = vunpack.c.l.b16 %v4242
        %v4283 = vunpack.c.l.b16 %v4243
        %v4284 = vunpack.c.l.b16 %v4244
        %v4285 = vunpack.c.l.b16 %v4245
        %v4286 = vunpack.c.l.b16 %v4246
        %v4287 = vunpack.c.l.b16 %v4247
        %v4288 = vunpack.c.l.b16 %v4248
        %v4289 = vunpack.c.l.b16 %v4249
        %v4290 = vunpack.c.l.b16 %v4250
        %v4291 = vunpack.c.l.b16 %v4251
        %v4292 = vpack.c.b16 %v4277, %v4276
        %v4293 = vpack.c.b16 %v4279, %v4278
        %v4294 = vpack.c.b16 %v4281, %v4280
        %v4295 = vpack.c.b16 %v4283, %v4282
        %v4296 = vpack.c.b16 %v4285, %v4284
        %v4297 = vpack.c.b16 %v4287, %v4286
        %v4298 = vpack.c.b16 %v4289, %v4288
        %v4299 = vpack.c.b16 %v4291, %v4290
        %4308 = vmatprep.subr.bf16.mxu0 0
        %4309 = vmatpush1.bf16.msra.mxu0 %v4292
        %4310 = vmatprep.subr.bf16.mxu0 0
        %4311 = vmatpush1.bf16.msra.mxu0 %v4293
        %4312 = vmatprep.subr.bf16.mxu0 0
        %4313 = vmatpush1.bf16.msra.mxu0 %v4294
        %4314 = vmatprep.subr.bf16.mxu0 0
        %4315 = vmatpush1.bf16.msra.mxu0 %v4295
        %4316 = vmatprep.subr.bf16.mxu0 0
        %4317 = vmatpush1.bf16.msra.mxu0 %v4296
        %4318 = vmatprep.subr.bf16.mxu0 0
        %4319 = vmatpush1.bf16.msra.mxu0 %v4297
        %4320 = vmatprep.subr.bf16.mxu0 0
        %4321 = vmatpush1.bf16.msra.mxu0 %v4298
        %4322 = vmatprep.subr.bf16.mxu0 0
        %4323 = vmatpush1.bf16.msra.mxu0 %v4299
        %4324 = vmatprep.subr.bf16.mxu0 0
        %4325 = vmatpush1.bf16.msra.mxu0 0
        %4326 = vmatprep.subr.bf16.mxu0 0
        %4327 = vmatpush1.bf16.msra.mxu0 0
        %4328 = vmatprep.subr.bf16.mxu0 0
        %4329 = vmatpush1.bf16.msra.mxu0 0
        %4330 = vmatprep.subr.bf16.mxu0 0
        %4331 = vmatpush1.bf16.msra.mxu0 0
        %4332 = vmatprep.subr.bf16.mxu0 0
        %4333 = vmatpush1.bf16.msra.mxu0 0
        %4334 = vmatprep.subr.bf16.mxu0 0
        %4335 = vmatpush1.bf16.msra.mxu0 0
        %4336 = vmatprep.subr.bf16.mxu0 0
        %4337 = vmatpush1.bf16.msra.mxu0 0
        %4338 = vmatprep.subr.bf16.mxu0 0
        %4339 = vmatpush1.bf16.msra.mxu0 0
        %4340 = vmatprep.mubr.bf16.mxu0 0
        %4341 = vmatmul.mubr.bf16.gmra.mrb[0].mxu0 %v3008
        %v4342 = vpop.f32.mrb[0].mxu0
        %v4343 = vadd.f32 %v4258, %v4342
        %v4344 = vpop.f32.mrb[0].mxu0
        %v4345 = vpop.f32.mrb[0].mxu0
        %v4346 = vpop.f32.mrb[0].mxu0
        %4347 = vdwg.mxu0
        %v4348 = vpack.c.bf16 %v4343, %v4343
        %v4350 = vsel %vm1047, %v4120, 0
        %v4353 = vsel %vm1047, %v4234, 0
        %4355 = vmatprep.subr.bf16.mxu0 0
        %4356 = vmatpush1.bf16.xpose.msra.mxu0 %v4353
        %4357 = vmatprep.subr.bf16.mxu0 0
        %4358 = vmatpush1.bf16.xpose.msra.mxu0 0
        %4359 = vmatprep.subr.bf16.mxu0 0
        %4360 = vmatpush1.bf16.xpose.msra.mxu0 0
        %4361 = vmatprep.subr.bf16.mxu0 0
        %4362 = vmatpush1.bf16.xpose.msra.mxu0 0
        %4363 = vmatprep.subr.bf16.mxu0 0
        %4364 = vmatpush1.bf16.xpose.msra.mxu0 0
        %4365 = vmatprep.subr.bf16.mxu0 0
        %4366 = vmatpush1.bf16.xpose.msra.mxu0 0
        %4367 = vmatprep.subr.bf16.mxu0 0
        %4368 = vmatpush1.bf16.xpose.msra.mxu0 0
        %4369 = vmatprep.subr.bf16.mxu0 0
        %4370 = vmatpush1.bf16.xpose.msra.mxu0 0
        %4371 = vmatprep.subr.bf16.mxu0 0
        %4372 = vmatpush1.bf16.xpose.msra.mxu0 0
        %4373 = vmatprep.subr.bf16.mxu0 0
        %4374 = vmatpush1.bf16.xpose.msra.mxu0 0
        %4375 = vmatprep.subr.bf16.mxu0 0
        %4376 = vmatpush1.bf16.xpose.msra.mxu0 0
        %4377 = vmatprep.subr.bf16.mxu0 0
        %4378 = vmatpush1.bf16.xpose.msra.mxu0 0
        %4379 = vmatprep.subr.bf16.mxu0 0
        %4380 = vmatpush1.bf16.xpose.msra.mxu0 0
        %4381 = vmatprep.subr.bf16.mxu0 0
        %4382 = vmatpush1.bf16.xpose.msra.mxu0 0
        %4383 = vmatprep.subr.bf16.mxu0 0
        %4384 = vmatpush1.bf16.xpose.msra.mxu0 0
        %4385 = vmatprep.subr.bf16.mxu0 0
        %4386 = vmatpush1.bf16.xpose.msra.mxu0 0
        %4387 = vmatprep.mubr.bf16.mxu0 0
        %4388 = vmatmul.mubr.bf16.gmra.mrb[0].mxu0 %v4350
        %v4389 = vpop.f32.mrb[0].mxu0
        %v4390 = vadd.f32 %v678, %v4389
        %v4391 = vpop.f32.mrb[0].mxu0
        %v4392 = vpop.f32.mrb[0].mxu0
        %v4393 = vpop.f32.mrb[0].mxu0
        %4394 = vdwg.mxu0
        %v4395 = vsel %vm1094, %v4390, -inf
        %4396 = vmax.xlane.f32.xlu0 %v4395
        %v4397 = vpop.xlane.xlu0 %4396
        %v4398 = vsub.f32 %v4390, %v4397
        %v4399 = vmul.f32 %v4398, 1.442695
        %v4400 = vpow.pop %v4399
        %v4401 = vsel %vm1094, %v4400, 0.0
        %4402 = vadd.xlane.f32.xlu0 %v4401
        %v4403 = vpop.xlane.xlu0 %4402
        %v4404 = vrcp.pop %v4403
        %v4405 = vmul.f32 %v4400, %v4404
        %v4406 = vpack.c.bf16 %v4405, %v4405
        %v4408 = vsel %vm1094, %v4406, 0
        %v4411 = vsel %vm1110, %v4348, 0
        %4413 = vmatprep.subr.bf16.mxu0 0
        %4414 = vmatpush1.bf16.msra.mxu0 %v4411
        %4415 = vmatprep.subr.bf16.mxu0 0
        %4416 = vmatpush1.bf16.msra.mxu0 0
        %4417 = vmatprep.subr.bf16.mxu0 0
        %4418 = vmatpush1.bf16.msra.mxu0 0
        %4419 = vmatprep.subr.bf16.mxu0 0
        %4420 = vmatpush1.bf16.msra.mxu0 0
        %4421 = vmatprep.subr.bf16.mxu0 0
        %4422 = vmatpush1.bf16.msra.mxu0 0
        %4423 = vmatprep.subr.bf16.mxu0 0
        %4424 = vmatpush1.bf16.msra.mxu0 0
        %4425 = vmatprep.subr.bf16.mxu0 0
        %4426 = vmatpush1.bf16.msra.mxu0 0
        %4427 = vmatprep.subr.bf16.mxu0 0
        %4428 = vmatpush1.bf16.msra.mxu0 0
        %4429 = vmatprep.subr.bf16.mxu0 0
        %4430 = vmatpush1.bf16.msra.mxu0 0
        %4431 = vmatprep.subr.bf16.mxu0 0
        %4432 = vmatpush1.bf16.msra.mxu0 0
        %4433 = vmatprep.subr.bf16.mxu0 0
        %4434 = vmatpush1.bf16.msra.mxu0 0
        %4435 = vmatprep.subr.bf16.mxu0 0
        %4436 = vmatpush1.bf16.msra.mxu0 0
        %4437 = vmatprep.subr.bf16.mxu0 0
        %4438 = vmatpush1.bf16.msra.mxu0 0
        %4439 = vmatprep.subr.bf16.mxu0 0
        %4440 = vmatpush1.bf16.msra.mxu0 0
        %4441 = vmatprep.subr.bf16.mxu0 0
        %4442 = vmatpush1.bf16.msra.mxu0 0
        %4443 = vmatprep.subr.bf16.mxu0 0
        %4444 = vmatpush1.bf16.msra.mxu0 0
        %4445 = vmatprep.mubr.bf16.mxu0 0
        %4446 = vmatmul.mubr.bf16.gmra.mrb[0].mxu0 %v4408
        %v4447 = vpop.f32.mrb[0].mxu0
        %v4448 = vadd.f32 0.0, %v4447
        %v4449 = vpop.f32.mrb[0].mxu0
        %v4450 = vpop.f32.mrb[0].mxu0
        %v4451 = vpop.f32.mrb[0].mxu0
        %4452 = vdwg.mxu0
        %v4453 = vpack.c.bf16 %v4448, %v4448
        %s4454 = scalar_lea.vmem %s10, 48
        %v4455 = vld [vmem:[%s4454] sm:$0xf]
        %v4456 = vld [vmem:[%s4454 + $0x4] sm:$0xf]
        %v4459 = vunpack.c.l.b16 %v4455
        %v4460 = vunpack.c.l.b16 %v4456
        %v4461 = vpack.c.b16 %v4460, %v4459
        %v4464 = vsel %vm1047, %v4453, 0
        %4466 = vmatprep.subr.bf16.mxu0 0
        %4467 = vmatpush1.bf16.msra.mxu0 %v4461
        %4468 = vmatprep.subr.bf16.mxu0 0
        %4469 = vmatpush1.bf16.msra.mxu0 0
        %4470 = vmatprep.subr.bf16.mxu0 0
        %4471 = vmatpush1.bf16.msra.mxu0 0
        %4472 = vmatprep.subr.bf16.mxu0 0
        %4473 = vmatpush1.bf16.msra.mxu0 0
        %4474 = vmatprep.subr.bf16.mxu0 0
        %4475 = vmatpush1.bf16.msra.mxu0 0
        %4476 = vmatprep.subr.bf16.mxu0 0
        %4477 = vmatpush1.bf16.msra.mxu0 0
        %4478 = vmatprep.subr.bf16.mxu0 0
        %4479 = vmatpush1.bf16.msra.mxu0 0
        %4480 = vmatprep.subr.bf16.mxu0 0
        %4481 = vmatpush1.bf16.msra.mxu0 0
        %4482 = vmatprep.subr.bf16.mxu0 0
        %4483 = vmatpush1.bf16.msra.mxu0 0
        %4484 = vmatprep.subr.bf16.mxu0 0
        %4485 = vmatpush1.bf16.msra.mxu0 0
        %4486 = vmatprep.subr.bf16.mxu0 0
        %4487 = vmatpush1.bf16.msra.mxu0 0
        %4488 = vmatprep.subr.bf16.mxu0 0
        %4489 = vmatpush1.bf16.msra.mxu0 0
        %4490 = vmatprep.subr.bf16.mxu0 0
        %4491 = vmatpush1.bf16.msra.mxu0 0
        %4492 = vmatprep.subr.bf16.mxu0 0
        %4493 = vmatpush1.bf16.msra.mxu0 0
        %4494 = vmatprep.subr.bf16.mxu0 0
        %4495 = vmatpush1.bf16.msra.mxu0 0
        %4496 = vmatprep.subr.bf16.mxu0 0
        %4497 = vmatpush1.bf16.msra.mxu0 0
        %4498 = vmatprep.mubr.bf16.mxu0 0
        %4499 = vmatmul.mubr.bf16.gmra.mrb[0].mxu0 %v4464
        %v4500 = vpop.f32.mrb[0].mxu0
        %v4501 = vadd.f32 0.0, %v4500
        %v4502 = vpop.f32.mrb[0].mxu0
        %v4503 = vpop.f32.mrb[0].mxu0
        %v4504 = vpop.f32.mrb[0].mxu0
        %4505 = vdwg.mxu0
        %v4506 = vadd.f32 %v4002, %v4501
        %s4507 = scalar_lea.vmem %s4, 448
        %v4508 = vld [vmem:[%s4507] sm:$0xf]
        %v4509 = vld [vmem:[%s4507 + $0x4] sm:$0xf]
        %v4510 = vld [vmem:[%s4507 + $0x8] sm:$0xf]
        %v4511 = vld [vmem:[%s4507 + $0xc] sm:$0xf]
        %v4512 = vld [vmem:[%s4507 + $0x10] sm:$0xf]
        %v4513 = vld [vmem:[%s4507 + $0x14] sm:$0xf]
        %v4514 = vld [vmem:[%s4507 + $0x18] sm:$0xf]
        %v4515 = vld [vmem:[%s4507 + $0x1c] sm:$0xf]
        %v4516 = vld [vmem:[%s4507 + $0x20] sm:$0xf]
        %v4517 = vld [vmem:[%s4507 + $0x24] sm:$0xf]
        %v4518 = vld [vmem:[%s4507 + $0x28] sm:$0xf]
        %v4519 = vld [vmem:[%s4507 + $0x2c] sm:$0xf]
        %v4520 = vld [vmem:[%s4507 + $0x30] sm:$0xf]
        %v4521 = vld [vmem:[%s4507 + $0x34] sm:$0xf]
        %v4522 = vld [vmem:[%s4507 + $0x38] sm:$0xf]
        %v4523 = vld [vmem:[%s4507 + $0x3c] sm:$0xf]
        %s4524 = scalar_lea.vmem %s5, 7
        %v4525 = vld [vmem:[%s4524] sm:$0x1]
        %v4527 = vlaneseq
        %v4528 = vshrl.u32 %v4527, 7
        %v4529 = vsub.s32 0, %v4528
        %v4530 = vrot.slane %v4525, %v4529
        %v4548 = vunpack.c.l.b16 %v4508
        %v4549 = vunpack.c.l.b16 %v4509
        %v4550 = vunpack.c.l.b16 %v4510
        %v4551 = vunpack.c.l.b16 %v4511
        %v4552 = vunpack.c.l.b16 %v4512
        %v4553 = vunpack.c.l.b16 %v4513
        %v4554 = vunpack.c.l.b16 %v4514
        %v4555 = vunpack.c.l.b16 %v4515
        %v4556 = vunpack.c.l.b16 %v4516
        %v4557 = vunpack.c.l.b16 %v4517
        %v4558 = vunpack.c.l.b16 %v4518
        %v4559 = vunpack.c.l.b16 %v4519
        %v4560 = vunpack.c.l.b16 %v4520
        %v4561 = vunpack.c.l.b16 %v4521
        %v4562 = vunpack.c.l.b16 %v4522
        %v4563 = vunpack.c.l.b16 %v4523
        %v4564 = vpack.c.b16 %v4549, %v4548
        %v4565 = vpack.c.b16 %v4551, %v4550
        %v4566 = vpack.c.b16 %v4553, %v4552
        %v4567 = vpack.c.b16 %v4555, %v4554
        %v4568 = vpack.c.b16 %v4557, %v4556
        %v4569 = vpack.c.b16 %v4559, %v4558
        %v4570 = vpack.c.b16 %v4561, %v4560
        %v4571 = vpack.c.b16 %v4563, %v4562
        %4580 = vmatprep.subr.bf16.mxu0 0
        %4581 = vmatpush1.bf16.msra.mxu0 %v4564
        %4582 = vmatprep.subr.bf16.mxu0 0
        %4583 = vmatpush1.bf16.msra.mxu0 %v4565
        %4584 = vmatprep.subr.bf16.mxu0 0
        %4585 = vmatpush1.bf16.msra.mxu0 %v4566
        %4586 = vmatprep.subr.bf16.mxu0 0
        %4587 = vmatpush1.bf16.msra.mxu0 %v4567
        %4588 = vmatprep.subr.bf16.mxu0 0
        %4589 = vmatpush1.bf16.msra.mxu0 %v4568
        %4590 = vmatprep.subr.bf16.mxu0 0
        %4591 = vmatpush1.bf16.msra.mxu0 %v4569
        %4592 = vmatprep.subr.bf16.mxu0 0
        %4593 = vmatpush1.bf16.msra.mxu0 %v4570
        %4594 = vmatprep.subr.bf16.mxu0 0
        %4595 = vmatpush1.bf16.msra.mxu0 %v4571
        %4596 = vmatprep.subr.bf16.mxu0 0
        %4597 = vmatpush1.bf16.msra.mxu0 0
        %4598 = vmatprep.subr.bf16.mxu0 0
        %4599 = vmatpush1.bf16.msra.mxu0 0
        %4600 = vmatprep.subr.bf16.mxu0 0
        %4601 = vmatpush1.bf16.msra.mxu0 0
        %4602 = vmatprep.subr.bf16.mxu0 0
        %4603 = vmatpush1.bf16.msra.mxu0 0
        %4604 = vmatprep.subr.bf16.mxu0 0
        %4605 = vmatpush1.bf16.msra.mxu0 0
        %4606 = vmatprep.subr.bf16.mxu0 0
        %4607 = vmatpush1.bf16.msra.mxu0 0
        %4608 = vmatprep.subr.bf16.mxu0 0
        %4609 = vmatpush1.bf16.msra.mxu0 0
        %4610 = vmatprep.subr.bf16.mxu0 0
        %4611 = vmatpush1.bf16.msra.mxu0 0
        %4612 = vmatprep.mubr.bf16.mxu0 0
        %4613 = vmatmul.mubr.bf16.gmra.mrb[0].mxu0 %v3008
        %v4614 = vpop.f32.mrb[0].mxu0
        %v4615 = vadd.f32 %v4530, %v4614
        %v4616 = vpop.f32.mrb[0].mxu0
        %v4617 = vpop.f32.mrb[0].mxu0
        %v4618 = vpop.f32.mrb[0].mxu0
        %4619 = vdwg.mxu0
        %v4620 = vpack.c.bf16 %v4615, %v4615
        %s4621 = scalar_lea.vmem %s6, 448
        %v4622 = vld [vmem:[%s4621] sm:$0xf]
        %v4623 = vld [vmem:[%s4621 + $0x4] sm:$0xf]
        %v4624 = vld [vmem:[%s4621 + $0x8] sm:$0xf]
        %v4625 = vld [vmem:[%s4621 + $0xc] sm:$0xf]
        %v4626 = vld [vmem:[%s4621 + $0x10] sm:$0xf]
        %v4627 = vld [vmem:[%s4621 + $0x14] sm:$0xf]
        %v4628 = vld [vmem:[%s4621 + $0x18] sm:$0xf]
        %v4629 = vld [vmem:[%s4621 + $0x1c] sm:$0xf]
        %v4630 = vld [vmem:[%s4621 + $0x20] sm:$0xf]
        %v4631 = vld [vmem:[%s4621 + $0x24] sm:$0xf]
        %v4632 = vld [vmem:[%s4621 + $0x28] sm:$0xf]
        %v4633 = vld [vmem:[%s4621 + $0x2c] sm:$0xf]
        %v4634 = vld [vmem:[%s4621 + $0x30] sm:$0xf]
        %v4635 = vld [vmem:[%s4621 + $0x34] sm:$0xf]
        %v4636 = vld [vmem:[%s4621 + $0x38] sm:$0xf]
        %v4637 = vld [vmem:[%s4621 + $0x3c] sm:$0xf]
        %s4638 = scalar_lea.vmem %s7, 7
        %v4639 = vld [vmem:[%s4638] sm:$0x1]
        %v4641 = vlaneseq
        %v4642 = vshrl.u32 %v4641, 7
        %v4643 = vsub.s32 0, %v4642
        %v4644 = vrot.slane %v4639, %v4643
        %v4662 = vunpack.c.l.b16 %v4622
        %v4663 = vunpack.c.l.b16 %v4623
        %v4664 = vunpack.c.l.b16 %v4624
        %v4665 = vunpack.c.l.b16 %v4625
        %v4666 = vunpack.c.l.b16 %v4626
        %v4667 = vunpack.c.l.b16 %v4627
        %v4668 = vunpack.c.l.b16 %v4628
        %v4669 = vunpack.c.l.b16 %v4629
        %v4670 = vunpack.c.l.b16 %v4630
        %v4671 = vunpack.c.l.b16 %v4631
        %v4672 = vunpack.c.l.b16 %v4632
        %v4673 = vunpack.c.l.b16 %v4633
        %v4674 = vunpack.c.l.b16 %v4634
        %v4675 = vunpack.c.l.b16 %v4635
        %v4676 = vunpack.c.l.b16 %v4636
        %v4677 = vunpack.c.l.b16 %v4637
        %v4678 = vpack.c.b16 %v4663, %v4662
        %v4679 = vpack.c.b16 %v4665, %v4664
        %v4680 = vpack.c.b16 %v4667, %v4666
        %v4681 = vpack.c.b16 %v4669, %v4668
        %v4682 = vpack.c.b16 %v4671, %v4670
        %v4683 = vpack.c.b16 %v4673, %v4672
        %v4684 = vpack.c.b16 %v4675, %v4674
        %v4685 = vpack.c.b16 %v4677, %v4676
        %4694 = vmatprep.subr.bf16.mxu0 0
        %4695 = vmatpush1.bf16.msra.mxu0 %v4678
        %4696 = vmatprep.subr.bf16.mxu0 0
        %4697 = vmatpush1.bf16.msra.mxu0 %v4679
        %4698 = vmatprep.subr.bf16.mxu0 0
        %4699 = vmatpush1.bf16.msra.mxu0 %v4680
        %4700 = vmatprep.subr.bf16.mxu0 0
        %4701 = vmatpush1.bf16.msra.mxu0 %v4681
        %4702 = vmatprep.subr.bf16.mxu0 0
        %4703 = vmatpush1.bf16.msra.mxu0 %v4682
        %4704 = vmatprep.subr.bf16.mxu0 0
        %4705 = vmatpush1.bf16.msra.mxu0 %v4683
        %4706 = vmatprep.subr.bf16.mxu0 0
        %4707 = vmatpush1.bf16.msra.mxu0 %v4684
        %4708 = vmatprep.subr.bf16.mxu0 0
        %4709 = vmatpush1.bf16.msra.mxu0 %v4685
        %4710 = vmatprep.subr.bf16.mxu0 0
        %4711 = vmatpush1.bf16.msra.mxu0 0
        %4712 = vmatprep.subr.bf16.mxu0 0
        %4713 = vmatpush1.bf16.msra.mxu0 0
        %4714 = vmatprep.subr.bf16.mxu0 0
        %4715 = vmatpush1.bf16.msra.mxu0 0
        %4716 = vmatprep.subr.bf16.mxu0 0
        %4717 = vmatpush1.bf16.msra.mxu0 0
        %4718 = vmatprep.subr.bf16.mxu0 0
        %4719 = vmatpush1.bf16.msra.mxu0 0
        %4720 = vmatprep.subr.bf16.mxu0 0
        %4721 = vmatpush1.bf16.msra.mxu0 0
        %4722 = vmatprep.subr.bf16.mxu0 0
        %4723 = vmatpush1.bf16.msra.mxu0 0
        %4724 = vmatprep.subr.bf16.mxu0 0
        %4725 = vmatpush1.bf16.msra.mxu0 0
        %4726 = vmatprep.mubr.bf16.mxu0 0
        %4727 = vmatmul.mubr.bf16.gmra.mrb[0].mxu0 %v3008
        %v4728 = vpop.f32.mrb[0].mxu0
        %v4729 = vadd.f32 %v4644, %v4728
        %v4730 = vpop.f32.mrb[0].mxu0
        %v4731 = vpop.f32.mrb[0].mxu0
        %v4732 = vpop.f32.mrb[0].mxu0
        %4733 = vdwg.mxu0
        %v4734 = vpack.c.bf16 %v4729, %v4729
        %s4735 = scalar_lea.vmem %s8, 448
        %v4736 = vld [vmem:[%s4735] sm:$0xf]
        %v4737 = vld [vmem:[%s4735 + $0x4] sm:$0xf]
        %v4738 = vld [vmem:[%s4735 + $0x8] sm:$0xf]
        %v4739 = vld [vmem:[%s4735 + $0xc] sm:$0xf]
        %v4740 = vld [vmem:[%s4735 + $0x10] sm:$0xf]
        %v4741 = vld [vmem:[%s4735 + $0x14] sm:$0xf]
        %v4742 = vld [vmem:[%s4735 + $0x18] sm:$0xf]
        %v4743 = vld [vmem:[%s4735 + $0x1c] sm:$0xf]
        %v4744 = vld [vmem:[%s4735 + $0x20] sm:$0xf]
        %v4745 = vld [vmem:[%s4735 + $0x24] sm:$0xf]
        %v4746 = vld [vmem:[%s4735 + $0x28] sm:$0xf]
        %v4747 = vld [vmem:[%s4735 + $0x2c] sm:$0xf]
        %v4748 = vld [vmem:[%s4735 + $0x30] sm:$0xf]
        %v4749 = vld [vmem:[%s4735 + $0x34] sm:$0xf]
        %v4750 = vld [vmem:[%s4735 + $0x38] sm:$0xf]
        %v4751 = vld [vmem:[%s4735 + $0x3c] sm:$0xf]
        %s4752 = scalar_lea.vmem %s9, 7
        %v4753 = vld [vmem:[%s4752] sm:$0x1]
        %v4755 = vlaneseq
        %v4756 = vshrl.u32 %v4755, 7
        %v4757 = vsub.s32 0, %v4756
        %v4758 = vrot.slane %v4753, %v4757
        %v4776 = vunpack.c.l.b16 %v4736
        %v4777 = vunpack.c.l.b16 %v4737
        %v4778 = vunpack.c.l.b16 %v4738
        %v4779 = vunpack.c.l.b16 %v4739
        %v4780 = vunpack.c.l.b16 %v4740
        %v4781 = vunpack.c.l.b16 %v4741
        %v4782 = vunpack.c.l.b16 %v4742
        %v4783 = vunpack.c.l.b16 %v4743
        %v4784 = vunpack.c.l.b16 %v4744
        %v4785 = vunpack.c.l.b16 %v4745
        %v4786 = vunpack.c.l.b16 %v4746
        %v4787 = vunpack.c.l.b16 %v4747
        %v4788 = vunpack.c.l.b16 %v4748
        %v4789 = vunpack.c.l.b16 %v4749
        %v4790 = vunpack.c.l.b16 %v4750
        %v4791 = vunpack.c.l.b16 %v4751
        %v4792 = vpack.c.b16 %v4777, %v4776
        %v4793 = vpack.c.b16 %v4779, %v4778
        %v4794 = vpack.c.b16 %v4781, %v4780
        %v4795 = vpack.c.b16 %v4783, %v4782
        %v4796 = vpack.c.b16 %v4785, %v4784
        %v4797 = vpack.c.b16 %v4787, %v4786
        %v4798 = vpack.c.b16 %v4789, %v4788
        %v4799 = vpack.c.b16 %v4791, %v4790
        %4808 = vmatprep.subr.bf16.mxu0 0
        %4809 = vmatpush1.bf16.msra.mxu0 %v4792
        %4810 = vmatprep.subr.bf16.mxu0 0
        %4811 = vmatpush1.bf16.msra.mxu0 %v4793
        %4812 = vmatprep.subr.bf16.mxu0 0
        %4813 = vmatpush1.bf16.msra.mxu0 %v4794
        %4814 = vmatprep.subr.bf16.mxu0 0
        %4815 = vmatpush1.bf16.msra.mxu0 %v4795
        %4816 = vmatprep.subr.bf16.mxu0 0
        %4817 = vmatpush1.bf16.msra.mxu0 %v4796
        %4818 = vmatprep.subr.bf16.mxu0 0
        %4819 = vmatpush1.bf16.msra.mxu0 %v4797
        %4820 = vmatprep.subr.bf16.mxu0 0
        %4821 = vmatpush1.bf16.msra.mxu0 %v4798
        %4822 = vmatprep.subr.bf16.mxu0 0
        %4823 = vmatpush1.bf16.msra.mxu0 %v4799
        %4824 = vmatprep.subr.bf16.mxu0 0
        %4825 = vmatpush1.bf16.msra.mxu0 0
        %4826 = vmatprep.subr.bf16.mxu0 0
        %4827 = vmatpush1.bf16.msra.mxu0 0
        %4828 = vmatprep.subr.bf16.mxu0 0
        %4829 = vmatpush1.bf16.msra.mxu0 0
        %4830 = vmatprep.subr.bf16.mxu0 0
        %4831 = vmatpush1.bf16.msra.mxu0 0
        %4832 = vmatprep.subr.bf16.mxu0 0
        %4833 = vmatpush1.bf16.msra.mxu0 0
        %4834 = vmatprep.subr.bf16.mxu0 0
        %4835 = vmatpush1.bf16.msra.mxu0 0
        %4836 = vmatprep.subr.bf16.mxu0 0
        %4837 = vmatpush1.bf16.msra.mxu0 0
        %4838 = vmatprep.subr.bf16.mxu0 0
        %4839 = vmatpush1.bf16.msra.mxu0 0
        %4840 = vmatprep.mubr.bf16.mxu0 0
        %4841 = vmatmul.mubr.bf16.gmra.mrb[0].mxu0 %v3008
        %v4842 = vpop.f32.mrb[0].mxu0
        %v4843 = vadd.f32 %v4758, %v4842
        %v4844 = vpop.f32.mrb[0].mxu0
        %v4845 = vpop.f32.mrb[0].mxu0
        %v4846 = vpop.f32.mrb[0].mxu0
        %4847 = vdwg.mxu0
        %v4848 = vpack.c.bf16 %v4843, %v4843
        %v4850 = vsel %vm1047, %v4620, 0
        %v4853 = vsel %vm1047, %v4734, 0
        %4855 = vmatprep.subr.bf16.mxu0 0
        %4856 = vmatpush1.bf16.xpose.msra.mxu0 %v4853
        %4857 = vmatprep.subr.bf16.mxu0 0
        %4858 = vmatpush1.bf16.xpose.msra.mxu0 0
        %4859 = vmatprep.subr.bf16.mxu0 0
        %4860 = vmatpush1.bf16.xpose.msra.mxu0 0
        %4861 = vmatprep.subr.bf16.mxu0 0
        %4862 = vmatpush1.bf16.xpose.msra.mxu0 0
        %4863 = vmatprep.subr.bf16.mxu0 0
        %4864 = vmatpush1.bf16.xpose.msra.mxu0 0
        %4865 = vmatprep.subr.bf16.mxu0 0
        %4866 = vmatpush1.bf16.xpose.msra.mxu0 0
        %4867 = vmatprep.subr.bf16.mxu0 0
        %4868 = vmatpush1.bf16.xpose.msra.mxu0 0
        %4869 = vmatprep.subr.bf16.mxu0 0
        %4870 = vmatpush1.bf16.xpose.msra.mxu0 0
        %4871 = vmatprep.subr.bf16.mxu0 0
        %4872 = vmatpush1.bf16.xpose.msra.mxu0 0
        %4873 = vmatprep.subr.bf16.mxu0 0
        %4874 = vmatpush1.bf16.xpose.msra.mxu0 0
        %4875 = vmatprep.subr.bf16.mxu0 0
        %4876 = vmatpush1.bf16.xpose.msra.mxu0 0
        %4877 = vmatprep.subr.bf16.mxu0 0
        %4878 = vmatpush1.bf16.xpose.msra.mxu0 0
        %4879 = vmatprep.subr.bf16.mxu0 0
        %4880 = vmatpush1.bf16.xpose.msra.mxu0 0
        %4881 = vmatprep.subr.bf16.mxu0 0
        %4882 = vmatpush1.bf16.xpose.msra.mxu0 0
        %4883 = vmatprep.subr.bf16.mxu0 0
        %4884 = vmatpush1.bf16.xpose.msra.mxu0 0
        %4885 = vmatprep.subr.bf16.mxu0 0
        %4886 = vmatpush1.bf16.xpose.msra.mxu0 0
        %4887 = vmatprep.mubr.bf16.mxu0 0
        %4888 = vmatmul.mubr.bf16.gmra.mrb[0].mxu0 %v4850
        %v4889 = vpop.f32.mrb[0].mxu0
        %v4890 = vadd.f32 %v678, %v4889
        %v4891 = vpop.f32.mrb[0].mxu0
        %v4892 = vpop.f32.mrb[0].mxu0
        %v4893 = vpop.f32.mrb[0].mxu0
        %4894 = vdwg.mxu0
        %v4895 = vsel %vm1094, %v4890, -inf
        %4896 = vmax.xlane.f32.xlu0 %v4895
        %v4897 = vpop.xlane.xlu0 %4896
        %v4898 = vsub.f32 %v4890, %v4897
        %v4899 = vmul.f32 %v4898, 1.442695
        %v4900 = vpow.pop %v4899
        %v4901 = vsel %vm1094, %v4900, 0.0
        %4902 = vadd.xlane.f32.xlu0 %v4901
        %v4903 = vpop.xlane.xlu0 %4902
        %v4904 = vrcp.pop %v4903
        %v4905 = vmul.f32 %v4900, %v4904
        %v4906 = vpack.c.bf16 %v4905, %v4905
        %v4908 = vsel %vm1094, %v4906, 0
        %v4911 = vsel %vm1110, %v4848, 0
        %4913 = vmatprep.subr.bf16.mxu0 0
        %4914 = vmatpush1.bf16.msra.mxu0 %v4911
        %4915 = vmatprep.subr.bf16.mxu0 0
        %4916 = vmatpush1.bf16.msra.mxu0 0
        %4917 = vmatprep.subr.bf16.mxu0 0
        %4918 = vmatpush1.bf16.msra.mxu0 0
        %4919 = vmatprep.subr.bf16.mxu0 0
        %4920 = vmatpush1.bf16.msra.mxu0 0
        %4921 = vmatprep.subr.bf16.mxu0 0
        %4922 = vmatpush1.bf16.msra.mxu0 0
        %4923 = vmatprep.subr.bf16.mxu0 0
        %4924 = vmatpush1.bf16.msra.mxu0 0
        %4925 = vmatprep.subr.bf16.mxu0 0
        %4926 = vmatpush1.bf16.msra.mxu0 0
        %4927 = vmatprep.subr.bf16.mxu0 0
        %4928 = vmatpush1.bf16.msra.mxu0 0
        %4929 = vmatprep.subr.bf16.mxu0 0
        %4930 = vmatpush1.bf16.msra.mxu0 0
        %4931 = vmatprep.subr.bf16.mxu0 0
        %4932 = vmatpush1.bf16.msra.mxu0 0
        %4933 = vmatprep.subr.bf16.mxu0 0
        %4934 = vmatpush1.bf16.msra.mxu0 0
        %4935 = vmatprep.subr.bf16.mxu0 0
        %4936 = vmatpush1.bf16.msra.mxu0 0
        %4937 = vmatprep.subr.bf16.mxu0 0
        %4938 = vmatpush1.bf16.msra.mxu0 0
        %4939 = vmatprep.subr.bf16.mxu0 0
        %4940 = vmatpush1.bf16.msra.mxu0 0
        %4941 = vmatprep.subr.bf16.mxu0 0
        %4942 = vmatpush1.bf16.msra.mxu0 0
        %4943 = vmatprep.subr.bf16.mxu0 0
        %4944 = vmatpush1.bf16.msra.mxu0 0
        %4945 = vmatprep.mubr.bf16.mxu0 0
        %4946 = vmatmul.mubr.bf16.gmra.mrb[0].mxu0 %v4908
        %v4947 = vpop.f32.mrb[0].mxu0
        %v4948 = vadd.f32 0.0, %v4947
        %v4949 = vpop.f32.mrb[0].mxu0
        %v4950 = vpop.f32.mrb[0].mxu0
        %v4951 = vpop.f32.mrb[0].mxu0
        %4952 = vdwg.mxu0
        %v4953 = vpack.c.bf16 %v4948, %v4948
        %s4954 = scalar_lea.vmem %s10, 56
        %v4955 = vld [vmem:[%s4954] sm:$0xf]
        %v4956 = vld [vmem:[%s4954 + $0x4] sm:$0xf]
        %v4959 = vunpack.c.l.b16 %v4955
        %v4960 = vunpack.c.l.b16 %v4956
        %v4961 = vpack.c.b16 %v4960, %v4959
        %v4964 = vsel %vm1047, %v4953, 0
        %4966 = vmatprep.subr.bf16.mxu0 0
        %4967 = vmatpush1.bf16.msra.mxu0 %v4961
        %4968 = vmatprep.subr.bf16.mxu0 0
        %4969 = vmatpush1.bf16.msra.mxu0 0
        %4970 = vmatprep.subr.bf16.mxu0 0
        %4971 = vmatpush1.bf16.msra.mxu0 0
        %4972 = vmatprep.subr.bf16.mxu0 0
        %4973 = vmatpush1.bf16.msra.mxu0 0
        %4974 = vmatprep.subr.bf16.mxu0 0
        %4975 = vmatpush1.bf16.msra.mxu0 0
        %4976 = vmatprep.subr.bf16.mxu0 0
        %4977 = vmatpush1.bf16.msra.mxu0 0
        %4978 = vmatprep.subr.bf16.mxu0 0
        %4979 = vmatpush1.bf16.msra.mxu0 0
        %4980 = vmatprep.subr.bf16.mxu0 0
        %4981 = vmatpush1.bf16.msra.mxu0 0
        %4982 = vmatprep.subr.bf16.mxu0 0
        %4983 = vmatpush1.bf16.msra.mxu0 0
        %4984 = vmatprep.subr.bf16.mxu0 0
        %4985 = vmatpush1.bf16.msra.mxu0 0
        %4986 = vmatprep.subr.bf16.mxu0 0
        %4987 = vmatpush1.bf16.msra.mxu0 0
        %4988 = vmatprep.subr.bf16.mxu0 0
        %4989 = vmatpush1.bf16.msra.mxu0 0
        %4990 = vmatprep.subr.bf16.mxu0 0
        %4991 = vmatpush1.bf16.msra.mxu0 0
        %4992 = vmatprep.subr.bf16.mxu0 0
        %4993 = vmatpush1.bf16.msra.mxu0 0
        %4994 = vmatprep.subr.bf16.mxu0 0
        %4995 = vmatpush1.bf16.msra.mxu0 0
        %4996 = vmatprep.subr.bf16.mxu0 0
        %4997 = vmatpush1.bf16.msra.mxu0 0
        %4998 = vmatprep.mubr.bf16.mxu0 0
        %4999 = vmatmul.mubr.bf16.gmra.mrb[0].mxu0 %v4964
        %v5000 = vpop.f32.mrb[0].mxu0
        %v5001 = vadd.f32 0.0, %v5000
        %v5002 = vpop.f32.mrb[0].mxu0
        %v5003 = vpop.f32.mrb[0].mxu0
        %v5004 = vpop.f32.mrb[0].mxu0
        %5005 = vdwg.mxu0
        %v5006 = vadd.f32 %v4506, %v5001
        %s5007 = scalar_lea.vmem %s11, 1
        %v5008 = vld [vmem:[%s5007] sm:$0x1]
        %v5010 = vlaneseq
        %v5011 = vshrl.u32 %v5010, 7
        %v5012 = vsub.s32 0, %v5011
        %v5013 = vrot.slane %v5008, %v5012
        %v5015 = vadd.f32 %v5006, %v5013
        %v5016 = vadd.f32 %v3007, %v5015
        %s5017 = scalar_lea.vmem %s12, 1
        %v5018 = vld [vmem:[%s5017] sm:$0x1]
        %s5019 = scalar_lea.vmem %s13, 1
        %v5020 = vld [vmem:[%s5019] sm:$0x1]
        %5021 = vadd.xlane.f32.xlu0 %v5016
        %v5022 = vpop.xlane.xlu0 %5021
        %v5023 = vmul.f32 %v5022, 0.015625
        %v5024 = vmul.f32 %v5016, %v5016
        %5025 = vadd.xlane.f32.xlu0 %v5024
        %v5026 = vpop.xlane.xlu0 %5025
        %v5027 = vmul.f32 %v5026, 0.015625
        %v5028 = vmul.f32 %v5023, %v5023
        %v5029 = vsub.f32 %v5027, %v5028
        %v5030 = vmax.f32 %v5029, 0.0
        %v5031 = vsub.f32 %v5016, %v5023
        %v5032 = vadd.f32 %v5030, 1e-12
        %v5033 = vrsqrt.pop %v5032
        %v5034 = vmul.f32 %v5031, %v5033
        %v5036 = vlaneseq
        %v5037 = vshrl.u32 %v5036, 7
        %v5038 = vsub.s32 0, %v5037
        %v5039 = vrot.slane %v5018, %v5038
        %v5041 = vmul.f32 %v5034, %v5039
        %v5043 = vlaneseq
        %v5044 = vshrl.u32 %v5043, 7
        %v5045 = vsub.s32 0, %v5044
        %v5046 = vrot.slane %v5020, %v5045
        %v5048 = vadd.f32 %v5041, %v5046
        %v5049 = vpack.c.bf16 %v5048, %v5048
        %s5050 = scalar_lea.vmem %s14, 64
        %v5051 = vld [vmem:[%s5050] sm:$0xf]
        %v5052 = vld [vmem:[%s5050 + $0x4] sm:$0xf]
        %v5053 = vld [vmem:[%s5050 + $0x8] sm:$0xf]
        %v5054 = vld [vmem:[%s5050 + $0xc] sm:$0xf]
        %v5055 = vld [vmem:[%s5050 + $0x10] sm:$0xf]
        %v5056 = vld [vmem:[%s5050 + $0x14] sm:$0xf]
        %v5057 = vld [vmem:[%s5050 + $0x18] sm:$0xf]
        %v5058 = vld [vmem:[%s5050 + $0x1c] sm:$0xf]
        %v5059 = vld [vmem:[%s5050 + $0x20] sm:$0xf]
        %v5060 = vld [vmem:[%s5050 + $0x24] sm:$0xf]
        %v5061 = vld [vmem:[%s5050 + $0x28] sm:$0xf]
        %v5062 = vld [vmem:[%s5050 + $0x2c] sm:$0xf]
        %v5063 = vld [vmem:[%s5050 + $0x30] sm:$0xf]
        %v5064 = vld [vmem:[%s5050 + $0x34] sm:$0xf]
        %v5065 = vld [vmem:[%s5050 + $0x38] sm:$0xf]
        %v5066 = vld [vmem:[%s5050 + $0x3c] sm:$0xf]
        %s5067 = scalar_lea.vmem %s15, 1
        %v5068 = vld [vmem:[%s5067] sm:$0x1]
        %v5070 = vlaneseq
        %v5071 = vshrl.u32 %v5070, 7
        %v5072 = vsub.s32 0, %v5071
        %v5073 = vrot.slane %v5068, %v5072
        %v5091 = vunpack.c.l.b16 %v5051
        %v5092 = vunpack.c.l.b16 %v5052
        %v5093 = vunpack.c.l.b16 %v5053
        %v5094 = vunpack.c.l.b16 %v5054
        %v5095 = vunpack.c.l.b16 %v5055
        %v5096 = vunpack.c.l.b16 %v5056
        %v5097 = vunpack.c.l.b16 %v5057
        %v5098 = vunpack.c.l.b16 %v5058
        %v5099 = vunpack.c.l.b16 %v5059
        %v5100 = vunpack.c.l.b16 %v5060
        %v5101 = vunpack.c.l.b16 %v5061
        %v5102 = vunpack.c.l.b16 %v5062
        %v5103 = vunpack.c.l.b16 %v5063
        %v5104 = vunpack.c.l.b16 %v5064
        %v5105 = vunpack.c.l.b16 %v5065
        %v5106 = vunpack.c.l.b16 %v5066
        %v5107 = vpack.c.b16 %v5092, %v5091
        %v5108 = vpack.c.b16 %v5094, %v5093
        %v5109 = vpack.c.b16 %v5096, %v5095
        %v5110 = vpack.c.b16 %v5098, %v5097
        %v5111 = vpack.c.b16 %v5100, %v5099
        %v5112 = vpack.c.b16 %v5102, %v5101
        %v5113 = vpack.c.b16 %v5104, %v5103
        %v5114 = vpack.c.b16 %v5106, %v5105
        %5123 = vmatprep.subr.bf16.mxu0 0
        %5124 = vmatpush1.bf16.msra.mxu0 %v5107
        %5125 = vmatprep.subr.bf16.mxu0 0
        %5126 = vmatpush1.bf16.msra.mxu0 %v5108
        %5127 = vmatprep.subr.bf16.mxu0 0
        %5128 = vmatpush1.bf16.msra.mxu0 %v5109
        %5129 = vmatprep.subr.bf16.mxu0 0
        %5130 = vmatpush1.bf16.msra.mxu0 %v5110
        %5131 = vmatprep.subr.bf16.mxu0 0
        %5132 = vmatpush1.bf16.msra.mxu0 %v5111
        %5133 = vmatprep.subr.bf16.mxu0 0
        %5134 = vmatpush1.bf16.msra.mxu0 %v5112
        %5135 = vmatprep.subr.bf16.mxu0 0
        %5136 = vmatpush1.bf16.msra.mxu0 %v5113
        %5137 = vmatprep.subr.bf16.mxu0 0
        %5138 = vmatpush1.bf16.msra.mxu0 %v5114
        %5139 = vmatprep.subr.bf16.mxu0 0
        %5140 = vmatpush1.bf16.msra.mxu0 0
        %5141 = vmatprep.subr.bf16.mxu0 0
        %5142 = vmatpush1.bf16.msra.mxu0 0
        %5143 = vmatprep.subr.bf16.mxu0 0
        %5144 = vmatpush1.bf16.msra.mxu0 0
        %5145 = vmatprep.subr.bf16.mxu0 0
        %5146 = vmatpush1.bf16.msra.mxu0 0
        %5147 = vmatprep.subr.bf16.mxu0 0
        %5148 = vmatpush1.bf16.msra.mxu0 0
        %5149 = vmatprep.subr.bf16.mxu0 0
        %5150 = vmatpush1.bf16.msra.mxu0 0
        %5151 = vmatprep.subr.bf16.mxu0 0
        %5152 = vmatpush1.bf16.msra.mxu0 0
        %5153 = vmatprep.subr.bf16.mxu0 0
        %5154 = vmatpush1.bf16.msra.mxu0 0
        %5155 = vmatprep.mubr.bf16.mxu0 0
        %5156 = vmatmul.mubr.bf16.gmra.mrb[0].mxu0 %v5049
        %v5157 = vpop.f32.mrb[0].mxu0
        %v5158 = vadd.f32 %v5073, %v5157
        %v5159 = vpop.f32.mrb[0].mxu0
        %v5160 = vpop.f32.mrb[0].mxu0
        %v5161 = vpop.f32.mrb[0].mxu0
        %5162 = vdwg.mxu0
        %v5163 = vmul.f32 %v5158, %v5158
        %v5164 = vmul.f32 %v5158, %v5163
        %v5165 = vmul.f32 %v5164, 0.044715
        %v5166 = vadd.f32 %v5158, %v5165
        %v5167 = vmul.f32 %v5166, 0.7978846
        %v5168 = vtanh.pop %v5167
        %v5169 = vadd.f32 %v5168, 1.0
        %v5170 = vmul.f32 %v5169, 0.5
        %v5171 = vmul.f32 %v5158, %v5170
        %v5172 = vpack.c.bf16 %v5171, %v5171
        %s5173 = scalar_lea.vmem %s16, 64
        %v5174 = vld [vmem:[%s5173] sm:$0xf]
        %v5175 = vld [vmem:[%s5173 + $0x4] sm:$0xf]
        %v5176 = vld [vmem:[%s5173 + $0x8] sm:$0xf]
        %v5177 = vld [vmem:[%s5173 + $0xc] sm:$0xf]
        %v5178 = vld [vmem:[%s5173 + $0x10] sm:$0xf]
        %v5179 = vld [vmem:[%s5173 + $0x14] sm:$0xf]
        %v5180 = vld [vmem:[%s5173 + $0x18] sm:$0xf]
        %v5181 = vld [vmem:[%s5173 + $0x1c] sm:$0xf]
        %v5182 = vld [vmem:[%s5173 + $0x20] sm:$0xf]
        %v5183 = vld [vmem:[%s5173 + $0x24] sm:$0xf]
        %v5184 = vld [vmem:[%s5173 + $0x28] sm:$0xf]
        %v5185 = vld [vmem:[%s5173 + $0x2c] sm:$0xf]
        %v5186 = vld [vmem:[%s5173 + $0x30] sm:$0xf]
        %v5187 = vld [vmem:[%s5173 + $0x34] sm:$0xf]
        %v5188 = vld [vmem:[%s5173 + $0x38] sm:$0xf]
        %v5189 = vld [vmem:[%s5173 + $0x3c] sm:$0xf]
        %s5190 = scalar_lea.vmem %s17, 1
        %v5191 = vld [vmem:[%s5190] sm:$0x1]
        %v5193 = vlaneseq
        %v5194 = vshrl.u32 %v5193, 7
        %v5195 = vsub.s32 0, %v5194
        %v5196 = vrot.slane %v5191, %v5195
        %v5214 = vunpack.c.l.b16 %v5174
        %v5215 = vunpack.c.l.b16 %v5175
        %v5216 = vunpack.c.l.b16 %v5176
        %v5217 = vunpack.c.l.b16 %v5177
        %v5218 = vunpack.c.l.b16 %v5178
        %v5219 = vunpack.c.l.b16 %v5179
        %v5220 = vunpack.c.l.b16 %v5180
        %v5221 = vunpack.c.l.b16 %v5181
        %v5222 = vunpack.c.l.b16 %v5182
        %v5223 = vunpack.c.l.b16 %v5183
        %v5224 = vunpack.c.l.b16 %v5184
        %v5225 = vunpack.c.l.b16 %v5185
        %v5226 = vunpack.c.l.b16 %v5186
        %v5227 = vunpack.c.l.b16 %v5187
        %v5228 = vunpack.c.l.b16 %v5188
        %v5229 = vunpack.c.l.b16 %v5189
        %v5230 = vpack.c.b16 %v5215, %v5214
        %v5231 = vpack.c.b16 %v5217, %v5216
        %v5232 = vpack.c.b16 %v5219, %v5218
        %v5233 = vpack.c.b16 %v5221, %v5220
        %v5234 = vpack.c.b16 %v5223, %v5222
        %v5235 = vpack.c.b16 %v5225, %v5224
        %v5236 = vpack.c.b16 %v5227, %v5226
        %v5237 = vpack.c.b16 %v5229, %v5228
        %5246 = vmatprep.subr.bf16.mxu0 0
        %5247 = vmatpush1.bf16.msra.mxu0 %v5230
        %5248 = vmatprep.subr.bf16.mxu0 0
        %5249 = vmatpush1.bf16.msra.mxu0 %v5231
        %5250 = vmatprep.subr.bf16.mxu0 0
        %5251 = vmatpush1.bf16.msra.mxu0 %v5232
        %5252 = vmatprep.subr.bf16.mxu0 0
        %5253 = vmatpush1.bf16.msra.mxu0 %v5233
        %5254 = vmatprep.subr.bf16.mxu0 0
        %5255 = vmatpush1.bf16.msra.mxu0 %v5234
        %5256 = vmatprep.subr.bf16.mxu0 0
        %5257 = vmatpush1.bf16.msra.mxu0 %v5235
        %5258 = vmatprep.subr.bf16.mxu0 0
        %5259 = vmatpush1.bf16.msra.mxu0 %v5236
        %5260 = vmatprep.subr.bf16.mxu0 0
        %5261 = vmatpush1.bf16.msra.mxu0 %v5237
        %5262 = vmatprep.subr.bf16.mxu0 0
        %5263 = vmatpush1.bf16.msra.mxu0 0
        %5264 = vmatprep.subr.bf16.mxu0 0
        %5265 = vmatpush1.bf16.msra.mxu0 0
        %5266 = vmatprep.subr.bf16.mxu0 0
        %5267 = vmatpush1.bf16.msra.mxu0 0
        %5268 = vmatprep.subr.bf16.mxu0 0
        %5269 = vmatpush1.bf16.msra.mxu0 0
        %5270 = vmatprep.subr.bf16.mxu0 0
        %5271 = vmatpush1.bf16.msra.mxu0 0
        %5272 = vmatprep.subr.bf16.mxu0 0
        %5273 = vmatpush1.bf16.msra.mxu0 0
        %5274 = vmatprep.subr.bf16.mxu0 0
        %5275 = vmatpush1.bf16.msra.mxu0 0
        %5276 = vmatprep.subr.bf16.mxu0 0
        %5277 = vmatpush1.bf16.msra.mxu0 0
        %5278 = vmatprep.mubr.bf16.mxu0 0
        %5279 = vmatmul.mubr.bf16.gmra.mrb[0].mxu0 %v5172
        %v5280 = vpop.f32.mrb[0].mxu0
        %v5281 = vadd.f32 %v5196, %v5280
        %v5282 = vpop.f32.mrb[0].mxu0
        %v5283 = vpop.f32.mrb[0].mxu0
        %v5284 = vpop.f32.mrb[0].mxu0
        %5285 = vdwg.mxu0
        %v5286 = vadd.f32 %v5048, %v5281
        %s5287 = scalar_lea.vmem %s18, 1
        %v5288 = vld [vmem:[%s5287] sm:$0x1]
        %s5289 = scalar_lea.vmem %s19, 1
        %v5290 = vld [vmem:[%s5289] sm:$0x1]
        %5291 = vadd.xlane.f32.xlu0 %v5286
        %v5292 = vpop.xlane.xlu0 %5291
        %v5293 = vmul.f32 %v5292, 0.015625
        %v5294 = vmul.f32 %v5286, %v5286
        %5295 = vadd.xlane.f32.xlu0 %v5294
        %v5296 = vpop.xlane.xlu0 %5295
        %v5297 = vmul.f32 %v5296, 0.015625
        %v5298 = vmul.f32 %v5293, %v5293
        %v5299 = vsub.f32 %v5297, %v5298
        %v5300 = vmax.f32 %v5299, 0.0
        %v5301 = vsub.f32 %v5286, %v5293
        %v5302 = vadd.f32 %v5300, 1e-12
        %v5303 = vrsqrt.pop %v5302
        %v5304 = vmul.f32 %v5301, %v5303
        %v5306 = vlaneseq
        %v5307 = vshrl.u32 %v5306, 7
        %v5308 = vsub.s32 0, %v5307
        %v5309 = vrot.slane %v5288, %v5308
        %v5311 = vmul.f32 %v5304, %v5309
        %v5313 = vlaneseq
        %v5314 = vshrl.u32 %v5313, 7
        %v5315 = vsub.s32 0, %v5314
        %v5316 = vrot.slane %v5290, %v5315
        %v5318 = vadd.f32 %v5311, %v5316
        %5319 = vst [vmem:[%s599] sm:$0x1] %v5318
        %s5320 = sand.u32 %s452, 1
        %s5321 = scalar_lea.sflag [#allocation5], %s5320
        %s5322 = sand.u32 %s452, 1
        %s5323 = scalar_lea.vmem [#allocation4], %s5322
        // Predicated region
        $region97: #{tpu_custom_call.1} parent=95 // pred_check
          %p5324 = pneg %p462
        $region98: #{tpu_custom_call.1} parent=95 // pred_check_branch
          %5326 = sbr.rel (%p5324) target = $region100
        $region99: #{tpu_custom_call.1} parent=95 // pred_region
          %s5328 = ssub.s32 16, 16
          %5329 = vsyncadd %s5321, %s5328
          %s5330 = smul.addr %s40, 16
          %s5331 = scalar_lea.hbm %s20, %s5330
          %s5333 = sshll.u32 %s5323, 4
          %s5334 = int_to_ptr.vmem [resolvable:$true] %s5333
          %5336 = dma.vmem_to_hbm [thread:$0]  %s5334, 16, %s5331, %s5321
        $region100: #{tpu_custom_call.1} parent=95 // pred_fallthru
          _
      $region96: #{tpu_custom_call.1} parent=5 // pred_fallthru
        _
      %p5337 = scmp.le.s32.totalorder 2, %s35
      // Predicated region
      $region101: #{tpu_custom_call.1} parent=5 // pred_check
        %p5338 = pneg %p5337
      $region102: #{tpu_custom_call.1} parent=5 // pred_check_branch
        %5340 = sbr.rel (%p5338) target = $region104
      $region103: #{tpu_custom_call.1} parent=5 // pred_region
        %s5341 = ssub.s32 %s35, 2
        // Predicated region
        $region105: #{tpu_custom_call.1} parent=103 // pred_check
          %p5342 = pneg %p468
        $region106: #{tpu_custom_call.1} parent=103 // pred_check_branch
          %5344 = sbr.rel (%p5342) target = $region108
        $region107: #{tpu_custom_call.1} parent=103 // pred_region
          %s5345 = sand.u32 %s453, 1
          %s5346 = scalar_lea.sflag [#allocation5], %s5345
          %s5347 = sand.u32 %s453, 1
          %s5348 = scalar_lea.vmem [#allocation4], %s5347
          %5349 = dma.done %s5346, 16
        $region108: #{tpu_custom_call.1} parent=103 // pred_fallthru
          _
      $region104: #{tpu_custom_call.1} parent=5 // pred_fallthru
        _
    $region6: #{tpu_custom_call.1} parent=1 // loop_footer
      %s39 = sadd.s32 1, %s35
    $region7: #{tpu_custom_call.1} parent=1 // loop_footer_branch
      %34 = sbr.rel target = $region3
    $region8: #{tpu_custom_call.1} parent=1 // loop_exit
      _
    %5350 = vsyncpa [#allocation5], 1
    %s5351 = scalar_lea.sflag [#allocation5], 1
    %5352 = vsyncpa %s5351, 1

</llo_original>
